<compile_context>
chip_gen: v5e
topology: v5e:2x2
jax: 0.10.0
libtpu: 0.0.40
codegen_flags: <defaults>
</compile_context>

<pallas_src>
import jax
import jax.numpy as jnp
from jax.experimental import pallas as pl
from jax.experimental.pallas import tpu as pltpu


def _round_up(n, m):
    return ((n + m - 1) // m) * m


# dot_general dimension numbers (avoid explicit transposes)
_NT = (((1,), (1,)), ((), ()))   # contract dim 1 of both operands  (A @ B^T)
_TN = (((0,), (0,)), ((), ()))   # contract dim 0 of both operands  (A^T @ B)


# -----------------------------------------------------------------------------
# Fused DTCR kernel
# -----------------------------------------------------------------------------
def _make_dtcr_kernel(T, Tt, B, Bp, Bd, dims, dilations, teacher):
    L = len(dims)
    sumH = sum(dims)
    offs = []
    o = 0
    for H in dims:
        offs.append(o)
        o += H

    def kernel(*refs):
        i = 0
        x_ref = refs[i]; i += 1                       # (T*Bp, I)   encoder input (fw+bw stacked)
        dec_in_ref = refs[i]; i += 1                  # (Tt*Bd, I)  teacher-forced decoder input
        enc_w = refs[i:i + 4 * L]; i += 4 * L         # per layer: wih, whh, bih, bhh
        dwih_ref, dwhh_ref, dbih_ref, dbhh_ref, dwout_ref, dbout_ref = refs[i:i + 6]; i += 6
        f_ref, w1_ref, b1_ref, w2_ref, b2_ref = refs[i:i + 5]; i += 5
        y_ref, state_ref, wtw_ref, ftwtwf_ref, pred_ref = refs[i:i + 5]; i += 5
        scr = refs[i:]
        enc_scr = scr[:5 * L]                         # per layer: hist, act, gir, giz, gin
        hall_ref, dgr_ref, dgz_ref, dgn_ref, state_s = scr[5 * L:5 * L + 5]

        # -------------------------- encoder --------------------------------
        state_s[...] = jnp.zeros(state_s.shape, jnp.float32)   # padded rows stay zero
        cur = x_ref[...]                               # current layer input, (T*Bp, in_dim)
        for l in range(L):
            wih_ref, whh_ref, bih_ref, bhh_ref = enc_w[4 * l:4 * l + 4]
            hist_ref, act_ref, gir_ref, giz_ref, gin_ref = enc_scr[5 * l:5 * l + 5]
            d = dilations[l]
            H = dims[l]

            # Hoisted input projection for all timesteps (one MXU matmul / gate).
            gir_ref[...] = jnp.dot(cur, wih_ref[0], preferred_element_type=jnp.float32) + bih_ref[0]
            giz_ref[...] = jnp.dot(cur, wih_ref[1], preferred_element_type=jnp.float32) + bih_ref[1]
            gin_ref[...] = jnp.dot(cur, wih_ref[2], preferred_element_type=jnp.float32) + bih_ref[2]

            hist_ref[...] = jnp.zeros(hist_ref.shape, jnp.float32)
            Wr, Wz, Wn = whh_ref[0], whh_ref[1], whh_ref[2]
            bhr, bhz, bhn = bhh_ref[0], bhh_ref[1], bhh_ref[2]

            def step(t, carry):
                row = pl.multiple_of(t * Bp, Bp)
                slot = (t % d) if d > 1 else 0        # static slot when dilation == 1
                h_prev = hist_ref[slot]               # (Bp, H), zero for t < d
                gr = gir_ref[pl.ds(row, Bp), :]
                gz = giz_ref[pl.ds(row, Bp), :]
                gn = gin_ref[pl.ds(row, Bp), :]
                r = jax.nn.sigmoid(gr + jnp.dot(h_prev, Wr, preferred_element_type=jnp.float32) + bhr)
                z = jax.nn.sigmoid(gz + jnp.dot(h_prev, Wz, preferred_element_type=jnp.float32) + bhz)
                # PyTorch GRU: n = tanh(gi_n + r * (h @ W_hn + b_hn))
                n = jnp.tanh(gn + r * (jnp.dot(h_prev, Wn, preferred_element_type=jnp.float32) + bhn))
                h_new = (1.0 - z) * n + z * h_prev
                hist_ref[slot] = h_new
                act_ref[pl.ds(row, Bp), :] = h_new
                return carry

            jax.lax.fori_loop(0, T, step, jnp.int32(0), unroll=(T <= 32))

            # h_{T-1} of this layer -> fw / bw halves of encoder_state (in VMEM).
            h_last = hist_ref[(T - 1) % d]                                    # (Bp, H)
            state_s[0:B, offs[l]:offs[l] + H] = h_last[0:B, :]                # forward pass
            state_s[0:B, sumH + offs[l]:sumH + offs[l] + H] = h_last[B:2 * B, :]   # reversed pass
            cur = act_ref[...]                          # feed next layer (stays in VMEM)

        state_ref[...] = state_s[...]                   # (Bd, Hd) padded encoder_state

        # -------------------------- decoder --------------------------------
        Uir, Uiz, Uin = dwih_ref[0], dwih_ref[1], dwih_ref[2]
        bir, biz, bin_ = dbih_ref[0], dbih_ref[1], dbih_ref[2]
        Vr, Vz, Vn = dwhh_ref[0], dwhh_ref[1], dwhh_ref[2]
        chr_, chz, chn = dbhh_ref[0], dbhh_ref[1], dbhh_ref[2]
        h0 = state_s[...]                               # (Bd, Hd), padded rows zero

        if teacher:
            # All inputs known (teacher forcing): hoist input projection per gate.
            x_all = dec_in_ref[...]                                          # (Tt*Bd, I)
            dgr_ref[...] = jnp.dot(x_all, Uir, preferred_element_type=jnp.float32) + bir
            dgz_ref[...] = jnp.dot(x_all, Uiz, preferred_element_type=jnp.float32) + biz
            dgn_ref[...] = jnp.dot(x_all, Uin, preferred_element_type=jnp.float32) + bin_

            def dstep(t, h):
                row = pl.multiple_of(t * Bd, Bd)
                gr = dgr_ref[pl.ds(row, Bd), :]
                gz = dgz_ref[pl.ds(row, Bd), :]
                gn = dgn_ref[pl.ds(row, Bd), :]
                r = jax.nn.sigmoid(gr + jnp.dot(h, Vr, preferred_element_type=jnp.float32) + chr_)
                z = jax.nn.sigmoid(gz + jnp.dot(h, Vz, preferred_element_type=jnp.float32) + chz)
                n = jnp.tanh(gn + r * (jnp.dot(h, Vn, preferred_element_type=jnp.float32) + chn))
                h_new = (1.0 - z) * n + z * h
                hall_ref[pl.ds(row, Bd), :] = h_new
                return h_new

            jax.lax.fori_loop(0, Tt, dstep, h0, unroll=(Tt <= 32))
            # Hoisted output Linear over all timesteps (single matmul).
            y_ref[...] = (jnp.dot(hall_ref[...], dwout_ref[...],
                                  preferred_element_type=jnp.float32) + dbout_ref[...])
        else:
            # Free-running decoder: input at step t is the previous output.
            def dstep(t, carry):
                h, x = carry
                r = jax.nn.sigmoid(jnp.dot(x, Uir, preferred_element_type=jnp.float32) + bir
                                   + jnp.dot(h, Vr, preferred_element_type=jnp.float32) + chr_)
                z = jax.nn.sigmoid(jnp.dot(x, Uiz, preferred_element_type=jnp.float32) + biz
                                   + jnp.dot(h, Vz, preferred_element_type=jnp.float32) + chz)
                n = jnp.tanh(jnp.dot(x, Uin, preferred_element_type=jnp.float32) + bin_
                             + r * (jnp.dot(h, Vn, preferred_element_type=jnp.float32) + chn))
                h_new = (1.0 - z) * n + z * h
                y = jnp.dot(h_new, dwout_ref[...], preferred_element_type=jnp.float32) + dbout_ref[...]
                row = pl.multiple_of(t * Bd, Bd)
                y_ref[pl.ds(row, Bd), :] = y
                return (h_new, y)

            x0 = dec_in_ref[pl.ds(0, Bd), :]
            jax.lax.fori_loop(0, Tt, dstep, (h0, x0), unroll=(Tt <= 32))

        # --------------------- spectral head + classifier ------------------
        W = state_s[...]                                                   # (Bd, Hd), pad rows 0
        Fm = f_ref[...]                                                    # (Bd, C),  pad rows 0
        WTW = jax.lax.dot_general(W, W, _NT, preferred_element_type=jnp.float32)   # W @ W^T
        wtw_ref[...] = WTW
        tmp = jnp.dot(WTW, Fm, preferred_element_type=jnp.float32)         # (Bd, C)
        ftwtwf_ref[...] = jax.lax.dot_general(Fm, tmp, _TN,
                                              preferred_element_type=jnp.float32)  # F^T (W W^T) F
        h1 = jnp.maximum(
            jnp.dot(W, w1_ref[...], preferred_element_type=jnp.float32) + b1_ref[...], 0.0)
        pred_ref[...] = jax.nn.sigmoid(
            jnp.dot(h1, w2_ref[...], preferred_element_type=jnp.float32) + b2_ref[...])

    return kernel


def _dtcr_cost(T, Tt, Bp, Bd, I, dims, Hd, C):
    flops, trans, nbytes = 0, 0, 4 * T * Bp * I
    d_in = I
    for H in dims:
        flops += 2 * T * Bp * d_in * 3 * H     # hoisted input projections
        flops += 2 * T * Bp * H * 3 * H        # recurrent projections
        trans += 2 * T * Bp * 3 * H            # sigmoid / tanh
        nbytes += 4 * (3 * d_in * H + 3 * H * H + 6 * H)
        d_in = H
    # decoder
    flops += 2 * Tt * Bd * I * 3 * Hd + 2 * Tt * Bd * Hd * 3 * Hd + 2 * Tt * Bd * Hd * I
    trans += 2 * Tt * Bd * 3 * Hd
    nbytes += 4 * (2 * Tt * Bd * I + 3 * I * Hd + 3 * Hd * Hd + 6 * Hd + Hd * I + I)
    # head + classifier
    flops += 2 * Bd * Hd * Bd + 2 * Bd * Bd * C + 2 * C * Bd * C
    flops += 2 * Bd * Hd * 128 + 2 * Bd * 128 * 2
    trans += Bd * 2
    nbytes += 4 * (Bd * Hd + Bd * Bd + C * C + Bd * 2
                   + Bd * C + Hd * 128 + 128 + 128 * 2 + 2)
    return pl.CostEstimate(flops=flops, transcendentals=trans, bytes_accessed=nbytes)


# -----------------------------------------------------------------------------
# Parameter construction (deterministic, synthetic).  Weights stacked per gate
# (r, z, n order, matching PyTorch GRU) so the kernel never slices at
# non-lane-aligned gate offsets.
# -----------------------------------------------------------------------------
def _gru_params(key, in_dim, hidden):
    k1, k2, k3, k4 = jax.random.split(key, 4)
    s = 0.1
    return (s * jax.random.normal(k1, (3, in_dim, hidden), jnp.float32),   # W_ih per gate
            s * jax.random.normal(k2, (3, hidden, hidden), jnp.float32),   # W_hh per gate
            s * jax.random.normal(k3, (3, 1, hidden), jnp.float32),        # b_ih
            s * jax.random.normal(k4, (3, 1, hidden), jnp.float32))        # b_hh


def init_params(key, hidden_structs, dilations, input_dims, batch_size, cluster_num):
    keys = jax.random.split(key, len(hidden_structs) + 4)
    enc_layers = []
    in_dim = input_dims
    for i, h in enumerate(hidden_structs):
        enc_layers.append(_gru_params(keys[i], in_dim, h))
        in_dim = h
    dec_hidden = 2 * sum(hidden_structs)
    kd, kdo, kc1, kc2 = keys[len(hidden_structs):]
    dec_gru = _gru_params(kd, input_dims, dec_hidden)
    kdo1, kdo2 = jax.random.split(kdo)
    dec = dec_gru + (0.1 * jax.random.normal(kdo1, (dec_hidden, input_dims), jnp.float32),
                     0.1 * jax.random.normal(kdo2, (1, input_dims), jnp.float32))
    k1a, k1b = jax.random.split(kc1)
    k2a, k2b = jax.random.split(kc2)
    return {
        "enc_layers": enc_layers,
        "dilations": tuple(dilations),
        "dec": dec,
        "F": jnp.eye(batch_size, cluster_num, dtype=jnp.float32),
        "fc1_w": 0.1 * jax.random.normal(k1a, (dec_hidden, 128), jnp.float32),
        "fc1_b": 0.1 * jax.random.normal(k1b, (1, 128), jnp.float32),
        "fc2_w": 0.1 * jax.random.normal(k2a, (128, 2), jnp.float32),
        "fc2_b": 0.1 * jax.random.normal(k2b, (1, 2), jnp.float32),
    }


# -----------------------------------------------------------------------------
# DTCR forward (single fused pallas_call)
# -----------------------------------------------------------------------------
def dtcr_forward(params, inputs, targets, train_decoder=True):
    """inputs/targets: batch-first (B, T, input_dims), matching batch_first=True."""
    B, T, I = inputs.shape
    dims = tuple(lp[1].shape[1] for lp in params["enc_layers"])
    dilations = params["dilations"]
    sumH = sum(dims)
    Hd = 2 * sumH
    Tt = targets.shape[1]

    B2 = 2 * B
    Bp = _round_up(B2, 8)      # padded encoder batch (fw + bw stacked)
    Bd = _round_up(B, 8)       # padded decoder / head batch

    # Encoder input: fw and time-reversed sequences stacked on batch, time-major.
    x_fw = jnp.transpose(inputs, (1, 0, 2))                        # (T, B, I)
    x_bw = jnp.transpose(jnp.flip(inputs, axis=1), (1, 0, 2))      # torch.flip(inputs, [1])
    x_st = jnp.concatenate([x_fw, x_bw], axis=1)                   # (T, 2B, I)
    if Bp != B2:
        x_st = jnp.pad(x_st, ((0, 0), (0, Bp - B2), (0, 0)))
    x2d = x_st.reshape(T * Bp, I)

    # Decoder input (teacher forcing keeps the same one-step lag as the torch loop:
    # input sequence = [targets[0], targets[0], targets[1], ..., targets[T-2]]).
    tm = jnp.transpose(targets, (1, 0, 2))                         # (Tt, B, I)
    dec_in = jnp.concatenate([tm[:1], tm[:-1]], axis=0)
    if Bd != B:
        dec_in = jnp.pad(dec_in, ((0, 0), (0, Bd - B), (0, 0)))
    dec_in2d = dec_in.reshape(Tt * Bd, I)

    # F padded with zero rows so the padded-batch head math stays exact.
    Fm = params["F"]
    C = Fm.shape[1]
    if Bd != B:
        Fm = jnp.pad(Fm, ((0, Bd - B), (0, 0)))

    flat_w = []
    for lp in params["enc_layers"]:
        flat_w += list(lp)
    dwih, dwhh, dbih, dbhh, dwout, dbout = params["dec"]

    kernel = _make_dtcr_kernel(T, Tt, B, Bp, Bd, dims, dilations, bool(train_decoder))

    scratch = []
    for H, d in zip(dims, dilations):
        scratch += [pltpu.VMEM((d, Bp, H), jnp.float32),       # dilated hidden history
                    pltpu.VMEM((T * Bp, H), jnp.float32),      # layer activations
                    pltpu.VMEM((T * Bp, H), jnp.float32),      # gi_r (hoisted)
                    pltpu.VMEM((T * Bp, H), jnp.float32),      # gi_z
                    pltpu.VMEM((T * Bp, H), jnp.float32)]      # gi_n
    scratch += [pltpu.VMEM((Tt * Bd, Hd), jnp.float32),        # decoder hidden states
                pltpu.VMEM((Tt * Bd, Hd), jnp.float32),        # decoder gi_r
                pltpu.VMEM((Tt * Bd, Hd), jnp.float32),        # decoder gi_z
                pltpu.VMEM((Tt * Bd, Hd), jnp.float32),        # decoder gi_n
                pltpu.VMEM((Bd, Hd), jnp.float32)]             # encoder_state (padded)

    out_shape = (jax.ShapeDtypeStruct((Tt * Bd, I), jnp.float32),   # decoder outputs
                 jax.ShapeDtypeStruct((Bd, Hd), jnp.float32),       # encoder_state (padded)
                 jax.ShapeDtypeStruct((Bd, Bd), jnp.float32),       # W W^T (padded)
                 jax.ShapeDtypeStruct((C, C), jnp.float32),         # F^T W W^T F
                 jax.ShapeDtypeStruct((Bd, 2), jnp.float32))        # classifier probs (padded)

    y2d, state_p, wtw_p, ftwtwf, pred_p = pl.pallas_call(
        kernel,
        out_shape=out_shape,
        scratch_shapes=scratch,
        cost_estimate=_dtcr_cost(T, Tt, Bp, Bd, I, dims, Hd, C),
    )(x2d, dec_in2d, *flat_w, dwih, dwhh, dbih, dbhh, dwout, dbout,
      Fm, params["fc1_w"], params["fc1_b"], params["fc2_w"], params["fc2_b"])

    final_outputs = jnp.transpose(y2d.reshape(Tt, Bd, I)[:, :B, :], (1, 0, 2))   # (B, Tt, I)
    encoder_state = state_p[:B]
    WTW = wtw_p[:B, :B]
    pred_pro = pred_p[:B]
    return final_outputs, encoder_state, WTW, ftwtwf, pred_pro


# -----------------------------------------------------------------------------
if __name__ == "__main__":
    key = jax.random.PRNGKey(0)
    k_param, k_in, k_tg = jax.random.split(key, 3)

    # small shapes consistent with the module
    batch_size = 4
    seq_len = 8
    input_dims = 4
    hidden_structs = (8, 16, 16)     # encoder layer widths
    dilations = (1, 2, 4)
    cluster_num = 3

    params = init_params(k_param, hidden_structs, dilations,
                         input_dims, batch_size, cluster_num)

    inputs = jax.random.normal(k_in, (batch_size, seq_len, input_dims), jnp.float32)
    targets = jax.random.normal(k_tg, (batch_size, seq_len, input_dims), jnp.float32)

    outs = dtcr_forward(params, inputs, targets, train_decoder=True)
    outs = jax.tree_util.tree_map(jax.block_until_ready, outs)

    final_outputs, encoder_state, WTW, FTWTWF, pred_pro = outs
    assert final_outputs.shape == (batch_size, seq_len, input_dims)
    assert encoder_state.shape == (batch_size, 2 * sum(hidden_structs))
    assert WTW.shape == (batch_size, batch_size)
    assert FTWTWF.shape == (cluster_num, cluster_num)
    assert pred_pro.shape == (batch_size, 2)
    print("KERNEL_OK")
</pallas_src>

<mosaic_0001>
module attributes {stable_mosaic.version = 11 : i64} {
  func.func @kernel(%arg0: memref<64x4xf32, #tpu.memory_space<vmem>>, %arg1: memref<64x4xf32, #tpu.memory_space<vmem>>, %arg2: memref<3x4x8xf32, #tpu.memory_space<vmem>>, %arg3: memref<3x8x8xf32, #tpu.memory_space<vmem>>, %arg4: memref<3x1x8xf32, #tpu.memory_space<vmem>>, %arg5: memref<3x1x8xf32, #tpu.memory_space<vmem>>, %arg6: memref<3x8x16xf32, #tpu.memory_space<vmem>>, %arg7: memref<3x16x16xf32, #tpu.memory_space<vmem>>, %arg8: memref<3x1x16xf32, #tpu.memory_space<vmem>>, %arg9: memref<3x1x16xf32, #tpu.memory_space<vmem>>, %arg10: memref<3x16x16xf32, #tpu.memory_space<vmem>>, %arg11: memref<3x16x16xf32, #tpu.memory_space<vmem>>, %arg12: memref<3x1x16xf32, #tpu.memory_space<vmem>>, %arg13: memref<3x1x16xf32, #tpu.memory_space<vmem>>, %arg14: memref<3x4x80xf32, #tpu.memory_space<vmem>>, %arg15: memref<3x80x80xf32, #tpu.memory_space<vmem>>, %arg16: memref<3x1x80xf32, #tpu.memory_space<vmem>>, %arg17: memref<3x1x80xf32, #tpu.memory_space<vmem>>, %arg18: memref<80x4xf32, #tpu.memory_space<vmem>>, %arg19: memref<1x4xf32, #tpu.memory_space<vmem>>, %arg20: memref<8x3xf32, #tpu.memory_space<vmem>>, %arg21: memref<80x128xf32, #tpu.memory_space<vmem>>, %arg22: memref<1x128xf32, #tpu.memory_space<vmem>>, %arg23: memref<128x2xf32, #tpu.memory_space<vmem>>, %arg24: memref<1x2xf32, #tpu.memory_space<vmem>>, %arg25: memref<64x4xf32, #tpu.memory_space<vmem>>, %arg26: memref<8x80xf32, #tpu.memory_space<vmem>>, %arg27: memref<8x8xf32, #tpu.memory_space<vmem>>, %arg28: memref<3x3xf32, #tpu.memory_space<vmem>>, %arg29: memref<8x2xf32, #tpu.memory_space<vmem>>, %arg30: memref<1x8x8xf32, #tpu.memory_space<vmem>>, %arg31: memref<64x8xf32, #tpu.memory_space<vmem>>, %arg32: memref<64x8xf32, #tpu.memory_space<vmem>>, %arg33: memref<64x8xf32, #tpu.memory_space<vmem>>, %arg34: memref<64x8xf32, #tpu.memory_space<vmem>>, %arg35: memref<2x8x16xf32, #tpu.memory_space<vmem>>, %arg36: memref<64x16xf32, #tpu.memory_space<vmem>>, %arg37: memref<64x16xf32, #tpu.memory_space<vmem>>, %arg38: memref<64x16xf32, #tpu.memory_space<vmem>>, %arg39: memref<64x16xf32, #tpu.memory_space<vmem>>, %arg40: memref<4x8x16xf32, #tpu.memory_space<vmem>>, %arg41: memref<64x16xf32, #tpu.memory_space<vmem>>, %arg42: memref<64x16xf32, #tpu.memory_space<vmem>>, %arg43: memref<64x16xf32, #tpu.memory_space<vmem>>, %arg44: memref<64x16xf32, #tpu.memory_space<vmem>>, %arg45: memref<64x80xf32, #tpu.memory_space<vmem>>, %arg46: memref<64x80xf32, #tpu.memory_space<vmem>>, %arg47: memref<64x80xf32, #tpu.memory_space<vmem>>, %arg48: memref<64x80xf32, #tpu.memory_space<vmem>>, %arg49: memref<8x80xf32, #tpu.memory_space<vmem>>) attributes {dimension_semantics = [], scalar_prefetch = 0 : i64, scratch_operands = 20 : i64, tpu.core_type = #tpu.core_type<tc>} {
    %cst = arith.constant 0.000000e+00 : f32
    %0 = vector.broadcast %cst : f32 to vector<8x80xf32>
    %c0 = arith.constant 0 : index
    %c0_0 = arith.constant 0 : index
    %1 = vector.load %arg49[%c0, %c0_0] : memref<8x80xf32, #tpu.memory_space<vmem>>, vector<8x80xf32>
    tpu.vector_store %arg49[%c0, %c0_0], %0 {strides = array<i32>} : memref<8x80xf32, #tpu.memory_space<vmem>>, vector<8x80xf32>,
    %c0_1 = arith.constant 0 : index
    %c0_2 = arith.constant 0 : index
    %2 = vector.load %arg0[%c0_1, %c0_2] : memref<64x4xf32, #tpu.memory_space<vmem>>, vector<64x4xf32>
    %c0_3 = arith.constant 0 : index
    %c0_4 = arith.constant 0 : index
    %c0_5 = arith.constant 0 : index
    %3 = vector.load %arg2[%c0_3, %c0_4, %c0_5] : memref<3x4x8xf32, #tpu.memory_space<vmem>>, vector<1x4x8xf32>
    %4 = vector.shape_cast %3 : vector<1x4x8xf32> to vector<4x8xf32>
    %cst_6 = arith.constant dense<0.000000e+00> : vector<64x8xf32>
    %5 = tpu.matmul %2, %4, %cst_6 {dimension_numbers = #tpu.dot_dimension_numbers<[1], [0], [0], [1], [0, 0, 1, 1], [], []>} : vector<64x4xf32>, vector<4x8xf32>, vector<64x8xf32> -> vector<64x8xf32>
    %c0_7 = arith.constant 0 : index
    %c0_8 = arith.constant 0 : index
    %c0_9 = arith.constant 0 : index
    %6 = vector.load %arg4[%c0_7, %c0_8, %c0_9] : memref<3x1x8xf32, #tpu.memory_space<vmem>>, vector<1x1x8xf32>
    %7 = vector.shape_cast %6 : vector<1x1x8xf32> to vector<1x8xf32>
    %8 = vector.broadcast %7 : vector<1x8xf32> to vector<64x8xf32>
    %9 = arith.addf %5, %8 : vector<64x8xf32>
    %c0_10 = arith.constant 0 : index
    %c0_11 = arith.constant 0 : index
    %10 = vector.load %arg32[%c0_10, %c0_11] : memref<64x8xf32, #tpu.memory_space<vmem>>, vector<64x8xf32>
    tpu.vector_store %arg32[%c0_10, %c0_11], %9 {strides = array<i32>} : memref<64x8xf32, #tpu.memory_space<vmem>>, vector<64x8xf32>,
    %c1 = arith.constant 1 : index
    %c0_12 = arith.constant 0 : index
    %c0_13 = arith.constant 0 : index
    %11 = vector.load %arg2[%c1, %c0_12, %c0_13] : memref<3x4x8xf32, #tpu.memory_space<vmem>>, vector<1x4x8xf32>
    %12 = vector.shape_cast %11 : vector<1x4x8xf32> to vector<4x8xf32>
    %cst_14 = arith.constant dense<0.000000e+00> : vector<64x8xf32>
    %13 = tpu.matmul %2, %12, %cst_14 {dimension_numbers = #tpu.dot_dimension_numbers<[1], [0], [0], [1], [0, 0, 1, 1], [], []>} : vector<64x4xf32>, vector<4x8xf32>, vector<64x8xf32> -> vector<64x8xf32>
    %c1_15 = arith.constant 1 : index
    %c0_16 = arith.constant 0 : index
    %c0_17 = arith.constant 0 : index
    %14 = vector.load %arg4[%c1_15, %c0_16, %c0_17] : memref<3x1x8xf32, #tpu.memory_space<vmem>>, vector<1x1x8xf32>
    %15 = vector.shape_cast %14 : vector<1x1x8xf32> to vector<1x8xf32>
    %16 = vector.broadcast %15 : vector<1x8xf32> to vector<64x8xf32>
    %17 = arith.addf %13, %16 : vector<64x8xf32>
    %c0_18 = arith.constant 0 : index
    %c0_19 = arith.constant 0 : index
    %18 = vector.load %arg33[%c0_18, %c0_19] : memref<64x8xf32, #tpu.memory_space<vmem>>, vector<64x8xf32>
    tpu.vector_store %arg33[%c0_18, %c0_19], %17 {strides = array<i32>} : memref<64x8xf32, #tpu.memory_space<vmem>>, vector<64x8xf32>,
    %c2 = arith.constant 2 : index
    %c0_20 = arith.constant 0 : index
    %c0_21 = arith.constant 0 : index
    %19 = vector.load %arg2[%c2, %c0_20, %c0_21] : memref<3x4x8xf32, #tpu.memory_space<vmem>>, vector<1x4x8xf32>
    %20 = vector.shape_cast %19 : vector<1x4x8xf32> to vector<4x8xf32>
    %cst_22 = arith.constant dense<0.000000e+00> : vector<64x8xf32>
    %21 = tpu.matmul %2, %20, %cst_22 {dimension_numbers = #tpu.dot_dimension_numbers<[1], [0], [0], [1], [0, 0, 1, 1], [], []>} : vector<64x4xf32>, vector<4x8xf32>, vector<64x8xf32> -> vector<64x8xf32>
    %c2_23 = arith.constant 2 : index
    %c0_24 = arith.constant 0 : index
    %c0_25 = arith.constant 0 : index
    %22 = vector.load %arg4[%c2_23, %c0_24, %c0_25] : memref<3x1x8xf32, #tpu.memory_space<vmem>>, vector<1x1x8xf32>
    %23 = vector.shape_cast %22 : vector<1x1x8xf32> to vector<1x8xf32>
    %24 = vector.broadcast %23 : vector<1x8xf32> to vector<64x8xf32>
    %25 = arith.addf %21, %24 : vector<64x8xf32>
    %c0_26 = arith.constant 0 : index
    %c0_27 = arith.constant 0 : index
    %26 = vector.load %arg34[%c0_26, %c0_27] : memref<64x8xf32, #tpu.memory_space<vmem>>, vector<64x8xf32>
    tpu.vector_store %arg34[%c0_26, %c0_27], %25 {strides = array<i32>} : memref<64x8xf32, #tpu.memory_space<vmem>>, vector<64x8xf32>,
    %cst_28 = arith.constant 0.000000e+00 : f32
    %27 = vector.broadcast %cst_28 : f32 to vector<1x8x8xf32>
    %c0_29 = arith.constant 0 : index
    %c0_30 = arith.constant 0 : index
    %c0_31 = arith.constant 0 : index
    %28 = vector.load %arg30[%c0_29, %c0_30, %c0_31] : memref<1x8x8xf32, #tpu.memory_space<vmem>>, vector<1x8x8xf32>
    tpu.vector_store %arg30[%c0_29, %c0_30, %c0_31], %27 {strides = array<i32>} : memref<1x8x8xf32, #tpu.memory_space<vmem>>, vector<1x8x8xf32>,
    %c0_32 = arith.constant 0 : index
    %c0_33 = arith.constant 0 : index
    %c0_34 = arith.constant 0 : index
    %29 = vector.load %arg3[%c0_32, %c0_33, %c0_34] : memref<3x8x8xf32, #tpu.memory_space<vmem>>, vector<1x8x8xf32>
    %30 = vector.shape_cast %29 : vector<1x8x8xf32> to vector<8x8xf32>
    %c1_35 = arith.constant 1 : index
    %c0_36 = arith.constant 0 : index
    %c0_37 = arith.constant 0 : index
    %31 = vector.load %arg3[%c1_35, %c0_36, %c0_37] : memref<3x8x8xf32, #tpu.memory_space<vmem>>, vector<1x8x8xf32>
    %32 = vector.shape_cast %31 : vector<1x8x8xf32> to vector<8x8xf32>
    %c2_38 = arith.constant 2 : index
    %c0_39 = arith.constant 0 : index
    %c0_40 = arith.constant 0 : index
    %33 = vector.load %arg3[%c2_38, %c0_39, %c0_40] : memref<3x8x8xf32, #tpu.memory_space<vmem>>, vector<1x8x8xf32>
    %34 = vector.shape_cast %33 : vector<1x8x8xf32> to vector<8x8xf32>
    %c0_41 = arith.constant 0 : index
    %c0_42 = arith.constant 0 : index
    %c0_43 = arith.constant 0 : index
    %35 = vector.load %arg5[%c0_41, %c0_42, %c0_43] : memref<3x1x8xf32, #tpu.memory_space<vmem>>, vector<1x1x8xf32>
    %36 = vector.shape_cast %35 : vector<1x1x8xf32> to vector<1x8xf32>
    %c1_44 = arith.constant 1 : index
    %c0_45 = arith.constant 0 : index
    %c0_46 = arith.constant 0 : index
    %37 = vector.load %arg5[%c1_44, %c0_45, %c0_46] : memref<3x1x8xf32, #tpu.memory_space<vmem>>, vector<1x1x8xf32>
    %38 = vector.shape_cast %37 : vector<1x1x8xf32> to vector<1x8xf32>
    %c2_47 = arith.constant 2 : index
    %c0_48 = arith.constant 0 : index
    %c0_49 = arith.constant 0 : index
    %39 = vector.load %arg5[%c2_47, %c0_48, %c0_49] : memref<3x1x8xf32, #tpu.memory_space<vmem>>, vector<1x1x8xf32>
    %40 = vector.shape_cast %39 : vector<1x1x8xf32> to vector<1x8xf32>
    %c0_i32 = arith.constant 0 : i32
    %c8_i32 = arith.constant 8 : i32
    %41 = arith.muli %c0_i32, %c8_i32 : i32
    %42 = tpu.assume_multiple %41, 8 : i32
    %c0_50 = arith.constant 0 : index
    %c0_51 = arith.constant 0 : index
    %c0_52 = arith.constant 0 : index
    %43 = vector.load %arg30[%c0_50, %c0_51, %c0_52] : memref<1x8x8xf32, #tpu.memory_space<vmem>>, vector<1x8x8xf32>
    %44 = vector.shape_cast %43 : vector<1x8x8xf32> to vector<8x8xf32>
    %45 = arith.index_cast %42 : i32 to index
    %c0_53 = arith.constant 0 : index
    %46 = vector.load %arg32[%45, %c0_53] : memref<64x8xf32, #tpu.memory_space<vmem>>, vector<8x8xf32>
    %47 = arith.index_cast %42 : i32 to index
    %c0_54 = arith.constant 0 : index
    %48 = vector.load %arg33[%47, %c0_54] : memref<64x8xf32, #tpu.memory_space<vmem>>, vector<8x8xf32>
    %49 = arith.index_cast %42 : i32 to index
    %c0_55 = arith.constant 0 : index
    %50 = vector.load %arg34[%49, %c0_55] : memref<64x8xf32, #tpu.memory_space<vmem>>, vector<8x8xf32>
    %cst_56 = arith.constant dense<0.000000e+00> : vector<8x8xf32>
    %51 = tpu.matmul %44, %30, %cst_56 {dimension_numbers = #tpu.dot_dimension_numbers<[1], [0], [0], [1], [0, 0, 1, 1], [], []>} : vector<8x8xf32>, vector<8x8xf32>, vector<8x8xf32> -> vector<8x8xf32>
    %52 = arith.addf %46, %51 : vector<8x8xf32>
    %53 = vector.broadcast %36 : vector<1x8xf32> to vector<8x8xf32>
    %54 = arith.addf %52, %53 : vector<8x8xf32>
    %55 = arith.negf %54 : vector<8x8xf32>
    %56 = math.exp %55 : vector<8x8xf32>
    %cst_57 = arith.constant 1.000000e+00 : f32
    %57 = vector.broadcast %cst_57 : f32 to vector<8x8xf32>
    %58 = arith.addf %57, %56 : vector<8x8xf32>
    %59 = arith.divf %57, %58 : vector<8x8xf32>
    %cst_58 = arith.constant dense<0.000000e+00> : vector<8x8xf32>
    %60 = tpu.matmul %44, %32, %cst_58 {dimension_numbers = #tpu.dot_dimension_numbers<[1], [0], [0], [1], [0, 0, 1, 1], [], []>} : vector<8x8xf32>, vector<8x8xf32>, vector<8x8xf32> -> vector<8x8xf32>
    %61 = arith.addf %48, %60 : vector<8x8xf32>
    %62 = vector.broadcast %38 : vector<1x8xf32> to vector<8x8xf32>
    %63 = arith.addf %61, %62 : vector<8x8xf32>
    %64 = arith.negf %63 : vector<8x8xf32>
    %65 = math.exp %64 : vector<8x8xf32>
    %cst_59 = arith.constant 1.000000e+00 : f32
    %66 = vector.broadcast %cst_59 : f32 to vector<8x8xf32>
    %67 = arith.addf %66, %65 : vector<8x8xf32>
    %68 = arith.divf %66, %67 : vector<8x8xf32>
    %cst_60 = arith.constant dense<0.000000e+00> : vector<8x8xf32>
    %69 = tpu.matmul %44, %34, %cst_60 {dimension_numbers = #tpu.dot_dimension_numbers<[1], [0], [0], [1], [0, 0, 1, 1], [], []>} : vector<8x8xf32>, vector<8x8xf32>, vector<8x8xf32> -> vector<8x8xf32>
    %70 = vector.broadcast %40 : vector<1x8xf32> to vector<8x8xf32>
    %71 = arith.addf %69, %70 : vector<8x8xf32>
    %72 = arith.mulf %59, %71 : vector<8x8xf32>
    %73 = arith.addf %50, %72 : vector<8x8xf32>
    %74 = math.tanh %73 : vector<8x8xf32>
    %cst_61 = arith.constant 1.000000e+00 : f32
    %75 = vector.broadcast %cst_61 : f32 to vector<8x8xf32>
    %76 = arith.subf %75, %68 : vector<8x8xf32>
    %77 = arith.mulf %76, %74 : vector<8x8xf32>
    %78 = arith.mulf %68, %44 : vector<8x8xf32>
    %79 = arith.addf %77, %78 : vector<8x8xf32>
    %c0_62 = arith.constant 0 : index
    %c0_63 = arith.constant 0 : index
    %c0_64 = arith.constant 0 : index
    %80 = vector.load %arg30[%c0_62, %c0_63, %c0_64] : memref<1x8x8xf32, #tpu.memory_space<vmem>>, vector<1x8x8xf32>
    %81 = vector.shape_cast %80 : vector<1x8x8xf32> to vector<8x8xf32>
    %82 = vector.shape_cast %79 : vector<8x8xf32> to vector<1x8x8xf32>
    tpu.vector_store %arg30[%c0_62, %c0_63, %c0_64], %82 {strides = array<i32>} : memref<1x8x8xf32, #tpu.memory_space<vmem>>, vector<1x8x8xf32>,
    %83 = arith.index_cast %42 : i32 to index
    %c0_65 = arith.constant 0 : index
    %84 = vector.load %arg31[%83, %c0_65] : memref<64x8xf32, #tpu.memory_space<vmem>>, vector<8x8xf32>
    tpu.vector_store %arg31[%83, %c0_65], %79 {strides = array<i32>} : memref<64x8xf32, #tpu.memory_space<vmem>>, vector<8x8xf32>,
    %c1_i32 = arith.constant 1 : i32
    %c8_i32_66 = arith.constant 8 : i32
    %85 = arith.muli %c1_i32, %c8_i32_66 : i32
    %86 = tpu.assume_multiple %85, 8 : i32
    %c0_67 = arith.constant 0 : index
    %c0_68 = arith.constant 0 : index
    %c0_69 = arith.constant 0 : index
    %87 = vector.load %arg30[%c0_67, %c0_68, %c0_69] : memref<1x8x8xf32, #tpu.memory_space<vmem>>, vector<1x8x8xf32>
    %88 = vector.shape_cast %87 : vector<1x8x8xf32> to vector<8x8xf32>
    %89 = arith.index_cast %86 : i32 to index
    %c0_70 = arith.constant 0 : index
    %90 = vector.load %arg32[%89, %c0_70] : memref<64x8xf32, #tpu.memory_space<vmem>>, vector<8x8xf32>
    %91 = arith.index_cast %86 : i32 to index
    %c0_71 = arith.constant 0 : index
    %92 = vector.load %arg33[%91, %c0_71] : memref<64x8xf32, #tpu.memory_space<vmem>>, vector<8x8xf32>
    %93 = arith.index_cast %86 : i32 to index
    %c0_72 = arith.constant 0 : index
    %94 = vector.load %arg34[%93, %c0_72] : memref<64x8xf32, #tpu.memory_space<vmem>>, vector<8x8xf32>
    %cst_73 = arith.constant dense<0.000000e+00> : vector<8x8xf32>
    %95 = tpu.matmul %88, %30, %cst_73 {dimension_numbers = #tpu.dot_dimension_numbers<[1], [0], [0], [1], [0, 0, 1, 1], [], []>} : vector<8x8xf32>, vector<8x8xf32>, vector<8x8xf32> -> vector<8x8xf32>
    %96 = arith.addf %90, %95 : vector<8x8xf32>
    %97 = vector.broadcast %36 : vector<1x8xf32> to vector<8x8xf32>
    %98 = arith.addf %96, %97 : vector<8x8xf32>
    %99 = arith.negf %98 : vector<8x8xf32>
    %100 = math.exp %99 : vector<8x8xf32>
    %cst_74 = arith.constant 1.000000e+00 : f32
    %101 = vector.broadcast %cst_74 : f32 to vector<8x8xf32>
    %102 = arith.addf %101, %100 : vector<8x8xf32>
    %103 = arith.divf %101, %102 : vector<8x8xf32>
    %cst_75 = arith.constant dense<0.000000e+00> : vector<8x8xf32>
    %104 = tpu.matmul %88, %32, %cst_75 {dimension_numbers = #tpu.dot_dimension_numbers<[1], [0], [0], [1], [0, 0, 1, 1], [], []>} : vector<8x8xf32>, vector<8x8xf32>, vector<8x8xf32> -> vector<8x8xf32>
    %105 = arith.addf %92, %104 : vector<8x8xf32>
    %106 = vector.broadcast %38 : vector<1x8xf32> to vector<8x8xf32>
    %107 = arith.addf %105, %106 : vector<8x8xf32>
    %108 = arith.negf %107 : vector<8x8xf32>
    %109 = math.exp %108 : vector<8x8xf32>
    %cst_76 = arith.constant 1.000000e+00 : f32
    %110 = vector.broadcast %cst_76 : f32 to vector<8x8xf32>
    %111 = arith.addf %110, %109 : vector<8x8xf32>
    %112 = arith.divf %110, %111 : vector<8x8xf32>
    %cst_77 = arith.constant dense<0.000000e+00> : vector<8x8xf32>
    %113 = tpu.matmul %88, %34, %cst_77 {dimension_numbers = #tpu.dot_dimension_numbers<[1], [0], [0], [1], [0, 0, 1, 1], [], []>} : vector<8x8xf32>, vector<8x8xf32>, vector<8x8xf32> -> vector<8x8xf32>
    %114 = vector.broadcast %40 : vector<1x8xf32> to vector<8x8xf32>
    %115 = arith.addf %113, %114 : vector<8x8xf32>
    %116 = arith.mulf %103, %115 : vector<8x8xf32>
    %117 = arith.addf %94, %116 : vector<8x8xf32>
    %118 = math.tanh %117 : vector<8x8xf32>
    %cst_78 = arith.constant 1.000000e+00 : f32
    %119 = vector.broadcast %cst_78 : f32 to vector<8x8xf32>
    %120 = arith.subf %119, %112 : vector<8x8xf32>
    %121 = arith.mulf %120, %118 : vector<8x8xf32>
    %122 = arith.mulf %112, %88 : vector<8x8xf32>
    %123 = arith.addf %121, %122 : vector<8x8xf32>
    %c0_79 = arith.constant 0 : index
    %c0_80 = arith.constant 0 : index
    %c0_81 = arith.constant 0 : index
    %124 = vector.load %arg30[%c0_79, %c0_80, %c0_81] : memref<1x8x8xf32, #tpu.memory_space<vmem>>, vector<1x8x8xf32>
    %125 = vector.shape_cast %124 : vector<1x8x8xf32> to vector<8x8xf32>
    %126 = vector.shape_cast %123 : vector<8x8xf32> to vector<1x8x8xf32>
    tpu.vector_store %arg30[%c0_79, %c0_80, %c0_81], %126 {strides = array<i32>} : memref<1x8x8xf32, #tpu.memory_space<vmem>>, vector<1x8x8xf32>,
    %127 = arith.index_cast %86 : i32 to index
    %c0_82 = arith.constant 0 : index
    %128 = vector.load %arg31[%127, %c0_82] : memref<64x8xf32, #tpu.memory_space<vmem>>, vector<8x8xf32>
    tpu.vector_store %arg31[%127, %c0_82], %123 {strides = array<i32>} : memref<64x8xf32, #tpu.memory_space<vmem>>, vector<8x8xf32>,
    %c2_i32 = arith.constant 2 : i32
    %c8_i32_83 = arith.constant 8 : i32
    %129 = arith.muli %c2_i32, %c8_i32_83 : i32
    %130 = tpu.assume_multiple %129, 8 : i32
    %c0_84 = arith.constant 0 : index
    %c0_85 = arith.constant 0 : index
    %c0_86 = arith.constant 0 : index
    %131 = vector.load %arg30[%c0_84, %c0_85, %c0_86] : memref<1x8x8xf32, #tpu.memory_space<vmem>>, vector<1x8x8xf32>
    %132 = vector.shape_cast %131 : vector<1x8x8xf32> to vector<8x8xf32>
    %133 = arith.index_cast %130 : i32 to index
    %c0_87 = arith.constant 0 : index
    %134 = vector.load %arg32[%133, %c0_87] : memref<64x8xf32, #tpu.memory_space<vmem>>, vector<8x8xf32>
    %135 = arith.index_cast %130 : i32 to index
    %c0_88 = arith.constant 0 : index
    %136 = vector.load %arg33[%135, %c0_88] : memref<64x8xf32, #tpu.memory_space<vmem>>, vector<8x8xf32>
    %137 = arith.index_cast %130 : i32 to index
    %c0_89 = arith.constant 0 : index
    %138 = vector.load %arg34[%137, %c0_89] : memref<64x8xf32, #tpu.memory_space<vmem>>, vector<8x8xf32>
    %cst_90 = arith.constant dense<0.000000e+00> : vector<8x8xf32>
    %139 = tpu.matmul %132, %30, %cst_90 {dimension_numbers = #tpu.dot_dimension_numbers<[1], [0], [0], [1], [0, 0, 1, 1], [], []>} : vector<8x8xf32>, vector<8x8xf32>, vector<8x8xf32> -> vector<8x8xf32>
    %140 = arith.addf %134, %139 : vector<8x8xf32>
    %141 = vector.broadcast %36 : vector<1x8xf32> to vector<8x8xf32>
    %142 = arith.addf %140, %141 : vector<8x8xf32>
    %143 = arith.negf %142 : vector<8x8xf32>
    %144 = math.exp %143 : vector<8x8xf32>
    %cst_91 = arith.constant 1.000000e+00 : f32
    %145 = vector.broadcast %cst_91 : f32 to vector<8x8xf32>
    %146 = arith.addf %145, %144 : vector<8x8xf32>
    %147 = arith.divf %145, %146 : vector<8x8xf32>
    %cst_92 = arith.constant dense<0.000000e+00> : vector<8x8xf32>
    %148 = tpu.matmul %132, %32, %cst_92 {dimension_numbers = #tpu.dot_dimension_numbers<[1], [0], [0], [1], [0, 0, 1, 1], [], []>} : vector<8x8xf32>, vector<8x8xf32>, vector<8x8xf32> -> vector<8x8xf32>
    %149 = arith.addf %136, %148 : vector<8x8xf32>
    %150 = vector.broadcast %38 : vector<1x8xf32> to vector<8x8xf32>
    %151 = arith.addf %149, %150 : vector<8x8xf32>
    %152 = arith.negf %151 : vector<8x8xf32>
    %153 = math.exp %152 : vector<8x8xf32>
    %cst_93 = arith.constant 1.000000e+00 : f32
    %154 = vector.broadcast %cst_93 : f32 to vector<8x8xf32>
    %155 = arith.addf %154, %153 : vector<8x8xf32>
    %156 = arith.divf %154, %155 : vector<8x8xf32>
    %cst_94 = arith.constant dense<0.000000e+00> : vector<8x8xf32>
    %157 = tpu.matmul %132, %34, %cst_94 {dimension_numbers = #tpu.dot_dimension_numbers<[1], [0], [0], [1], [0, 0, 1, 1], [], []>} : vector<8x8xf32>, vector<8x8xf32>, vector<8x8xf32> -> vector<8x8xf32>
    %158 = vector.broadcast %40 : vector<1x8xf32> to vector<8x8xf32>
    %159 = arith.addf %157, %158 : vector<8x8xf32>
    %160 = arith.mulf %147, %159 : vector<8x8xf32>
    %161 = arith.addf %138, %160 : vector<8x8xf32>
    %162 = math.tanh %161 : vector<8x8xf32>
    %cst_95 = arith.constant 1.000000e+00 : f32
    %163 = vector.broadcast %cst_95 : f32 to vector<8x8xf32>
    %164 = arith.subf %163, %156 : vector<8x8xf32>
    %165 = arith.mulf %164, %162 : vector<8x8xf32>
    %166 = arith.mulf %156, %132 : vector<8x8xf32>
    %167 = arith.addf %165, %166 : vector<8x8xf32>
    %c0_96 = arith.constant 0 : index
    %c0_97 = arith.constant 0 : index
    %c0_98 = arith.constant 0 : index
    %168 = vector.load %arg30[%c0_96, %c0_97, %c0_98] : memref<1x8x8xf32, #tpu.memory_space<vmem>>, vector<1x8x8xf32>
    %169 = vector.shape_cast %168 : vector<1x8x8xf32> to vector<8x8xf32>
    %170 = vector.shape_cast %167 : vector<8x8xf32> to vector<1x8x8xf32>
    tpu.vector_store %arg30[%c0_96, %c0_97, %c0_98], %170 {strides = array<i32>} : memref<1x8x8xf32, #tpu.memory_space<vmem>>, vector<1x8x8xf32>,
    %171 = arith.index_cast %130 : i32 to index
    %c0_99 = arith.constant 0 : index
    %172 = vector.load %arg31[%171, %c0_99] : memref<64x8xf32, #tpu.memory_space<vmem>>, vector<8x8xf32>
    tpu.vector_store %arg31[%171, %c0_99], %167 {strides = array<i32>} : memref<64x8xf32, #tpu.memory_space<vmem>>, vector<8x8xf32>,
    %c3_i32 = arith.constant 3 : i32
    %c8_i32_100 = arith.constant 8 : i32
    %173 = arith.muli %c3_i32, %c8_i32_100 : i32
    %174 = tpu.assume_multiple %173, 8 : i32
    %c0_101 = arith.constant 0 : index
    %c0_102 = arith.constant 0 : index
    %c0_103 = arith.constant 0 : index
    %175 = vector.load %arg30[%c0_101, %c0_102, %c0_103] : memref<1x8x8xf32, #tpu.memory_space<vmem>>, vector<1x8x8xf32>
    %176 = vector.shape_cast %175 : vector<1x8x8xf32> to vector<8x8xf32>
    %177 = arith.index_cast %174 : i32 to index
    %c0_104 = arith.constant 0 : index
    %178 = vector.load %arg32[%177, %c0_104] : memref<64x8xf32, #tpu.memory_space<vmem>>, vector<8x8xf32>
    %179 = arith.index_cast %174 : i32 to index
    %c0_105 = arith.constant 0 : index
    %180 = vector.load %arg33[%179, %c0_105] : memref<64x8xf32, #tpu.memory_space<vmem>>, vector<8x8xf32>
    %181 = arith.index_cast %174 : i32 to index
    %c0_106 = arith.constant 0 : index
    %182 = vector.load %arg34[%181, %c0_106] : memref<64x8xf32, #tpu.memory_space<vmem>>, vector<8x8xf32>
    %cst_107 = arith.constant dense<0.000000e+00> : vector<8x8xf32>
    %183 = tpu.matmul %176, %30, %cst_107 {dimension_numbers = #tpu.dot_dimension_numbers<[1], [0], [0], [1], [0, 0, 1, 1], [], []>} : vector<8x8xf32>, vector<8x8xf32>, vector<8x8xf32> -> vector<8x8xf32>
    %184 = arith.addf %178, %183 : vector<8x8xf32>
    %185 = vector.broadcast %36 : vector<1x8xf32> to vector<8x8xf32>
    %186 = arith.addf %184, %185 : vector<8x8xf32>
    %187 = arith.negf %186 : vector<8x8xf32>
    %188 = math.exp %187 : vector<8x8xf32>
    %cst_108 = arith.constant 1.000000e+00 : f32
    %189 = vector.broadcast %cst_108 : f32 to vector<8x8xf32>
    %190 = arith.addf %189, %188 : vector<8x8xf32>
    %191 = arith.divf %189, %190 : vector<8x8xf32>
    %cst_109 = arith.constant dense<0.000000e+00> : vector<8x8xf32>
    %192 = tpu.matmul %176, %32, %cst_109 {dimension_numbers = #tpu.dot_dimension_numbers<[1], [0], [0], [1], [0, 0, 1, 1], [], []>} : vector<8x8xf32>, vector<8x8xf32>, vector<8x8xf32> -> vector<8x8xf32>
    %193 = arith.addf %180, %192 : vector<8x8xf32>
    %194 = vector.broadcast %38 : vector<1x8xf32> to vector<8x8xf32>
    %195 = arith.addf %193, %194 : vector<8x8xf32>
    %196 = arith.negf %195 : vector<8x8xf32>
    %197 = math.exp %196 : vector<8x8xf32>
    %cst_110 = arith.constant 1.000000e+00 : f32
    %198 = vector.broadcast %cst_110 : f32 to vector<8x8xf32>
    %199 = arith.addf %198, %197 : vector<8x8xf32>
    %200 = arith.divf %198, %199 : vector<8x8xf32>
    %cst_111 = arith.constant dense<0.000000e+00> : vector<8x8xf32>
    %201 = tpu.matmul %176, %34, %cst_111 {dimension_numbers = #tpu.dot_dimension_numbers<[1], [0], [0], [1], [0, 0, 1, 1], [], []>} : vector<8x8xf32>, vector<8x8xf32>, vector<8x8xf32> -> vector<8x8xf32>
    %202 = vector.broadcast %40 : vector<1x8xf32> to vector<8x8xf32>
    %203 = arith.addf %201, %202 : vector<8x8xf32>
    %204 = arith.mulf %191, %203 : vector<8x8xf32>
    %205 = arith.addf %182, %204 : vector<8x8xf32>
    %206 = math.tanh %205 : vector<8x8xf32>
    %cst_112 = arith.constant 1.000000e+00 : f32
    %207 = vector.broadcast %cst_112 : f32 to vector<8x8xf32>
    %208 = arith.subf %207, %200 : vector<8x8xf32>
    %209 = arith.mulf %208, %206 : vector<8x8xf32>
    %210 = arith.mulf %200, %176 : vector<8x8xf32>
    %211 = arith.addf %209, %210 : vector<8x8xf32>
    %c0_113 = arith.constant 0 : index
    %c0_114 = arith.constant 0 : index
    %c0_115 = arith.constant 0 : index
    %212 = vector.load %arg30[%c0_113, %c0_114, %c0_115] : memref<1x8x8xf32, #tpu.memory_space<vmem>>, vector<1x8x8xf32>
    %213 = vector.shape_cast %212 : vector<1x8x8xf32> to vector<8x8xf32>
    %214 = vector.shape_cast %211 : vector<8x8xf32> to vector<1x8x8xf32>
    tpu.vector_store %arg30[%c0_113, %c0_114, %c0_115], %214 {strides = array<i32>} : memref<1x8x8xf32, #tpu.memory_space<vmem>>, vector<1x8x8xf32>,
    %215 = arith.index_cast %174 : i32 to index
    %c0_116 = arith.constant 0 : index
    %216 = vector.load %arg31[%215, %c0_116] : memref<64x8xf32, #tpu.memory_space<vmem>>, vector<8x8xf32>
    tpu.vector_store %arg31[%215, %c0_116], %211 {strides = array<i32>} : memref<64x8xf32, #tpu.memory_space<vmem>>, vector<8x8xf32>,
    %c4_i32 = arith.constant 4 : i32
    %c8_i32_117 = arith.constant 8 : i32
    %217 = arith.muli %c4_i32, %c8_i32_117 : i32
    %218 = tpu.assume_multiple %217, 8 : i32
    %c0_118 = arith.constant 0 : index
    %c0_119 = arith.constant 0 : index
    %c0_120 = arith.constant 0 : index
    %219 = vector.load %arg30[%c0_118, %c0_119, %c0_120] : memref<1x8x8xf32, #tpu.memory_space<vmem>>, vector<1x8x8xf32>
    %220 = vector.shape_cast %219 : vector<1x8x8xf32> to vector<8x8xf32>
    %221 = arith.index_cast %218 : i32 to index
    %c0_121 = arith.constant 0 : index
    %222 = vector.load %arg32[%221, %c0_121] : memref<64x8xf32, #tpu.memory_space<vmem>>, vector<8x8xf32>
    %223 = arith.index_cast %218 : i32 to index
    %c0_122 = arith.constant 0 : index
    %224 = vector.load %arg33[%223, %c0_122] : memref<64x8xf32, #tpu.memory_space<vmem>>, vector<8x8xf32>
    %225 = arith.index_cast %218 : i32 to index
    %c0_123 = arith.constant 0 : index
    %226 = vector.load %arg34[%225, %c0_123] : memref<64x8xf32, #tpu.memory_space<vmem>>, vector<8x8xf32>
    %cst_124 = arith.constant dense<0.000000e+00> : vector<8x8xf32>
    %227 = tpu.matmul %220, %30, %cst_124 {dimension_numbers = #tpu.dot_dimension_numbers<[1], [0], [0], [1], [0, 0, 1, 1], [], []>} : vector<8x8xf32>, vector<8x8xf32>, vector<8x8xf32> -> vector<8x8xf32>
    %228 = arith.addf %222, %227 : vector<8x8xf32>
    %229 = vector.broadcast %36 : vector<1x8xf32> to vector<8x8xf32>
    %230 = arith.addf %228, %229 : vector<8x8xf32>
    %231 = arith.negf %230 : vector<8x8xf32>
    %232 = math.exp %231 : vector<8x8xf32>
    %cst_125 = arith.constant 1.000000e+00 : f32
    %233 = vector.broadcast %cst_125 : f32 to vector<8x8xf32>
    %234 = arith.addf %233, %232 : vector<8x8xf32>
    %235 = arith.divf %233, %234 : vector<8x8xf32>
    %cst_126 = arith.constant dense<0.000000e+00> : vector<8x8xf32>
    %236 = tpu.matmul %220, %32, %cst_126 {dimension_numbers = #tpu.dot_dimension_numbers<[1], [0], [0], [1], [0, 0, 1, 1], [], []>} : vector<8x8xf32>, vector<8x8xf32>, vector<8x8xf32> -> vector<8x8xf32>
    %237 = arith.addf %224, %236 : vector<8x8xf32>
    %238 = vector.broadcast %38 : vector<1x8xf32> to vector<8x8xf32>
    %239 = arith.addf %237, %238 : vector<8x8xf32>
    %240 = arith.negf %239 : vector<8x8xf32>
    %241 = math.exp %240 : vector<8x8xf32>
    %cst_127 = arith.constant 1.000000e+00 : f32
    %242 = vector.broadcast %cst_127 : f32 to vector<8x8xf32>
    %243 = arith.addf %242, %241 : vector<8x8xf32>
    %244 = arith.divf %242, %243 : vector<8x8xf32>
    %cst_128 = arith.constant dense<0.000000e+00> : vector<8x8xf32>
    %245 = tpu.matmul %220, %34, %cst_128 {dimension_numbers = #tpu.dot_dimension_numbers<[1], [0], [0], [1], [0, 0, 1, 1], [], []>} : vector<8x8xf32>, vector<8x8xf32>, vector<8x8xf32> -> vector<8x8xf32>
    %246 = vector.broadcast %40 : vector<1x8xf32> to vector<8x8xf32>
    %247 = arith.addf %245, %246 : vector<8x8xf32>
    %248 = arith.mulf %235, %247 : vector<8x8xf32>
    %249 = arith.addf %226, %248 : vector<8x8xf32>
    %250 = math.tanh %249 : vector<8x8xf32>
    %cst_129 = arith.constant 1.000000e+00 : f32
    %251 = vector.broadcast %cst_129 : f32 to vector<8x8xf32>
    %252 = arith.subf %251, %244 : vector<8x8xf32>
    %253 = arith.mulf %252, %250 : vector<8x8xf32>
    %254 = arith.mulf %244, %220 : vector<8x8xf32>
    %255 = arith.addf %253, %254 : vector<8x8xf32>
    %c0_130 = arith.constant 0 : index
    %c0_131 = arith.constant 0 : index
    %c0_132 = arith.constant 0 : index
    %256 = vector.load %arg30[%c0_130, %c0_131, %c0_132] : memref<1x8x8xf32, #tpu.memory_space<vmem>>, vector<1x8x8xf32>
    %257 = vector.shape_cast %256 : vector<1x8x8xf32> to vector<8x8xf32>
    %258 = vector.shape_cast %255 : vector<8x8xf32> to vector<1x8x8xf32>
    tpu.vector_store %arg30[%c0_130, %c0_131, %c0_132], %258 {strides = array<i32>} : memref<1x8x8xf32, #tpu.memory_space<vmem>>, vector<1x8x8xf32>,
    %259 = arith.index_cast %218 : i32 to index
    %c0_133 = arith.constant 0 : index
    %260 = vector.load %arg31[%259, %c0_133] : memref<64x8xf32, #tpu.memory_space<vmem>>, vector<8x8xf32>
    tpu.vector_store %arg31[%259, %c0_133], %255 {strides = array<i32>} : memref<64x8xf32, #tpu.memory_space<vmem>>, vector<8x8xf32>,
    %c5_i32 = arith.constant 5 : i32
    %c8_i32_134 = arith.constant 8 : i32
    %261 = arith.muli %c5_i32, %c8_i32_134 : i32
    %262 = tpu.assume_multiple %261, 8 : i32
    %c0_135 = arith.constant 0 : index
    %c0_136 = arith.constant 0 : index
    %c0_137 = arith.constant 0 : index
    %263 = vector.load %arg30[%c0_135, %c0_136, %c0_137] : memref<1x8x8xf32, #tpu.memory_space<vmem>>, vector<1x8x8xf32>
    %264 = vector.shape_cast %263 : vector<1x8x8xf32> to vector<8x8xf32>
    %265 = arith.index_cast %262 : i32 to index
    %c0_138 = arith.constant 0 : index
    %266 = vector.load %arg32[%265, %c0_138] : memref<64x8xf32, #tpu.memory_space<vmem>>, vector<8x8xf32>
    %267 = arith.index_cast %262 : i32 to index
    %c0_139 = arith.constant 0 : index
    %268 = vector.load %arg33[%267, %c0_139] : memref<64x8xf32, #tpu.memory_space<vmem>>, vector<8x8xf32>
    %269 = arith.index_cast %262 : i32 to index
    %c0_140 = arith.constant 0 : index
    %270 = vector.load %arg34[%269, %c0_140] : memref<64x8xf32, #tpu.memory_space<vmem>>, vector<8x8xf32>
    %cst_141 = arith.constant dense<0.000000e+00> : vector<8x8xf32>
    %271 = tpu.matmul %264, %30, %cst_141 {dimension_numbers = #tpu.dot_dimension_numbers<[1], [0], [0], [1], [0, 0, 1, 1], [], []>} : vector<8x8xf32>, vector<8x8xf32>, vector<8x8xf32> -> vector<8x8xf32>
    %272 = arith.addf %266, %271 : vector<8x8xf32>
    %273 = vector.broadcast %36 : vector<1x8xf32> to vector<8x8xf32>
    %274 = arith.addf %272, %273 : vector<8x8xf32>
    %275 = arith.negf %274 : vector<8x8xf32>
    %276 = math.exp %275 : vector<8x8xf32>
    %cst_142 = arith.constant 1.000000e+00 : f32
    %277 = vector.broadcast %cst_142 : f32 to vector<8x8xf32>
    %278 = arith.addf %277, %276 : vector<8x8xf32>
    %279 = arith.divf %277, %278 : vector<8x8xf32>
    %cst_143 = arith.constant dense<0.000000e+00> : vector<8x8xf32>
    %280 = tpu.matmul %264, %32, %cst_143 {dimension_numbers = #tpu.dot_dimension_numbers<[1], [0], [0], [1], [0, 0, 1, 1], [], []>} : vector<8x8xf32>, vector<8x8xf32>, vector<8x8xf32> -> vector<8x8xf32>
    %281 = arith.addf %268, %280 : vector<8x8xf32>
    %282 = vector.broadcast %38 : vector<1x8xf32> to vector<8x8xf32>
    %283 = arith.addf %281, %282 : vector<8x8xf32>
    %284 = arith.negf %283 : vector<8x8xf32>
    %285 = math.exp %284 : vector<8x8xf32>
    %cst_144 = arith.constant 1.000000e+00 : f32
    %286 = vector.broadcast %cst_144 : f32 to vector<8x8xf32>
    %287 = arith.addf %286, %285 : vector<8x8xf32>
    %288 = arith.divf %286, %287 : vector<8x8xf32>
    %cst_145 = arith.constant dense<0.000000e+00> : vector<8x8xf32>
    %289 = tpu.matmul %264, %34, %cst_145 {dimension_numbers = #tpu.dot_dimension_numbers<[1], [0], [0], [1], [0, 0, 1, 1], [], []>} : vector<8x8xf32>, vector<8x8xf32>, vector<8x8xf32> -> vector<8x8xf32>
    %290 = vector.broadcast %40 : vector<1x8xf32> to vector<8x8xf32>
    %291 = arith.addf %289, %290 : vector<8x8xf32>
    %292 = arith.mulf %279, %291 : vector<8x8xf32>
    %293 = arith.addf %270, %292 : vector<8x8xf32>
    %294 = math.tanh %293 : vector<8x8xf32>
    %cst_146 = arith.constant 1.000000e+00 : f32
    %295 = vector.broadcast %cst_146 : f32 to vector<8x8xf32>
    %296 = arith.subf %295, %288 : vector<8x8xf32>
    %297 = arith.mulf %296, %294 : vector<8x8xf32>
    %298 = arith.mulf %288, %264 : vector<8x8xf32>
    %299 = arith.addf %297, %298 : vector<8x8xf32>
    %c0_147 = arith.constant 0 : index
    %c0_148 = arith.constant 0 : index
    %c0_149 = arith.constant 0 : index
    %300 = vector.load %arg30[%c0_147, %c0_148, %c0_149] : memref<1x8x8xf32, #tpu.memory_space<vmem>>, vector<1x8x8xf32>
    %301 = vector.shape_cast %300 : vector<1x8x8xf32> to vector<8x8xf32>
    %302 = vector.shape_cast %299 : vector<8x8xf32> to vector<1x8x8xf32>
    tpu.vector_store %arg30[%c0_147, %c0_148, %c0_149], %302 {strides = array<i32>} : memref<1x8x8xf32, #tpu.memory_space<vmem>>, vector<1x8x8xf32>,
    %303 = arith.index_cast %262 : i32 to index
    %c0_150 = arith.constant 0 : index
    %304 = vector.load %arg31[%303, %c0_150] : memref<64x8xf32, #tpu.memory_space<vmem>>, vector<8x8xf32>
    tpu.vector_store %arg31[%303, %c0_150], %299 {strides = array<i32>} : memref<64x8xf32, #tpu.memory_space<vmem>>, vector<8x8xf32>,
    %c6_i32 = arith.constant 6 : i32
    %c8_i32_151 = arith.constant 8 : i32
    %305 = arith.muli %c6_i32, %c8_i32_151 : i32
    %306 = tpu.assume_multiple %305, 8 : i32
    %c0_152 = arith.constant 0 : index
    %c0_153 = arith.constant 0 : index
    %c0_154 = arith.constant 0 : index
    %307 = vector.load %arg30[%c0_152, %c0_153, %c0_154] : memref<1x8x8xf32, #tpu.memory_space<vmem>>, vector<1x8x8xf32>
    %308 = vector.shape_cast %307 : vector<1x8x8xf32> to vector<8x8xf32>
    %309 = arith.index_cast %306 : i32 to index
    %c0_155 = arith.constant 0 : index
    %310 = vector.load %arg32[%309, %c0_155] : memref<64x8xf32, #tpu.memory_space<vmem>>, vector<8x8xf32>
    %311 = arith.index_cast %306 : i32 to index
    %c0_156 = arith.constant 0 : index
    %312 = vector.load %arg33[%311, %c0_156] : memref<64x8xf32, #tpu.memory_space<vmem>>, vector<8x8xf32>
    %313 = arith.index_cast %306 : i32 to index
    %c0_157 = arith.constant 0 : index
    %314 = vector.load %arg34[%313, %c0_157] : memref<64x8xf32, #tpu.memory_space<vmem>>, vector<8x8xf32>
    %cst_158 = arith.constant dense<0.000000e+00> : vector<8x8xf32>
    %315 = tpu.matmul %308, %30, %cst_158 {dimension_numbers = #tpu.dot_dimension_numbers<[1], [0], [0], [1], [0, 0, 1, 1], [], []>} : vector<8x8xf32>, vector<8x8xf32>, vector<8x8xf32> -> vector<8x8xf32>
    %316 = arith.addf %310, %315 : vector<8x8xf32>
    %317 = vector.broadcast %36 : vector<1x8xf32> to vector<8x8xf32>
    %318 = arith.addf %316, %317 : vector<8x8xf32>
    %319 = arith.negf %318 : vector<8x8xf32>
    %320 = math.exp %319 : vector<8x8xf32>
    %cst_159 = arith.constant 1.000000e+00 : f32
    %321 = vector.broadcast %cst_159 : f32 to vector<8x8xf32>
    %322 = arith.addf %321, %320 : vector<8x8xf32>
    %323 = arith.divf %321, %322 : vector<8x8xf32>
    %cst_160 = arith.constant dense<0.000000e+00> : vector<8x8xf32>
    %324 = tpu.matmul %308, %32, %cst_160 {dimension_numbers = #tpu.dot_dimension_numbers<[1], [0], [0], [1], [0, 0, 1, 1], [], []>} : vector<8x8xf32>, vector<8x8xf32>, vector<8x8xf32> -> vector<8x8xf32>
    %325 = arith.addf %312, %324 : vector<8x8xf32>
    %326 = vector.broadcast %38 : vector<1x8xf32> to vector<8x8xf32>
    %327 = arith.addf %325, %326 : vector<8x8xf32>
    %328 = arith.negf %327 : vector<8x8xf32>
    %329 = math.exp %328 : vector<8x8xf32>
    %cst_161 = arith.constant 1.000000e+00 : f32
    %330 = vector.broadcast %cst_161 : f32 to vector<8x8xf32>
    %331 = arith.addf %330, %329 : vector<8x8xf32>
    %332 = arith.divf %330, %331 : vector<8x8xf32>
    %cst_162 = arith.constant dense<0.000000e+00> : vector<8x8xf32>
    %333 = tpu.matmul %308, %34, %cst_162 {dimension_numbers = #tpu.dot_dimension_numbers<[1], [0], [0], [1], [0, 0, 1, 1], [], []>} : vector<8x8xf32>, vector<8x8xf32>, vector<8x8xf32> -> vector<8x8xf32>
    %334 = vector.broadcast %40 : vector<1x8xf32> to vector<8x8xf32>
    %335 = arith.addf %333, %334 : vector<8x8xf32>
    %336 = arith.mulf %323, %335 : vector<8x8xf32>
    %337 = arith.addf %314, %336 : vector<8x8xf32>
    %338 = math.tanh %337 : vector<8x8xf32>
    %cst_163 = arith.constant 1.000000e+00 : f32
    %339 = vector.broadcast %cst_163 : f32 to vector<8x8xf32>
    %340 = arith.subf %339, %332 : vector<8x8xf32>
    %341 = arith.mulf %340, %338 : vector<8x8xf32>
    %342 = arith.mulf %332, %308 : vector<8x8xf32>
    %343 = arith.addf %341, %342 : vector<8x8xf32>
    %c0_164 = arith.constant 0 : index
    %c0_165 = arith.constant 0 : index
    %c0_166 = arith.constant 0 : index
    %344 = vector.load %arg30[%c0_164, %c0_165, %c0_166] : memref<1x8x8xf32, #tpu.memory_space<vmem>>, vector<1x8x8xf32>
    %345 = vector.shape_cast %344 : vector<1x8x8xf32> to vector<8x8xf32>
    %346 = vector.shape_cast %343 : vector<8x8xf32> to vector<1x8x8xf32>
    tpu.vector_store %arg30[%c0_164, %c0_165, %c0_166], %346 {strides = array<i32>} : memref<1x8x8xf32, #tpu.memory_space<vmem>>, vector<1x8x8xf32>,
    %347 = arith.index_cast %306 : i32 to index
    %c0_167 = arith.constant 0 : index
    %348 = vector.load %arg31[%347, %c0_167] : memref<64x8xf32, #tpu.memory_space<vmem>>, vector<8x8xf32>
    tpu.vector_store %arg31[%347, %c0_167], %343 {strides = array<i32>} : memref<64x8xf32, #tpu.memory_space<vmem>>, vector<8x8xf32>,
    %c7_i32 = arith.constant 7 : i32
    %c8_i32_168 = arith.constant 8 : i32
    %349 = arith.muli %c7_i32, %c8_i32_168 : i32
    %350 = tpu.assume_multiple %349, 8 : i32
    %c0_169 = arith.constant 0 : index
    %c0_170 = arith.constant 0 : index
    %c0_171 = arith.constant 0 : index
    %351 = vector.load %arg30[%c0_169, %c0_170, %c0_171] : memref<1x8x8xf32, #tpu.memory_space<vmem>>, vector<1x8x8xf32>
    %352 = vector.shape_cast %351 : vector<1x8x8xf32> to vector<8x8xf32>
    %353 = arith.index_cast %350 : i32 to index
    %c0_172 = arith.constant 0 : index
    %354 = vector.load %arg32[%353, %c0_172] : memref<64x8xf32, #tpu.memory_space<vmem>>, vector<8x8xf32>
    %355 = arith.index_cast %350 : i32 to index
    %c0_173 = arith.constant 0 : index
    %356 = vector.load %arg33[%355, %c0_173] : memref<64x8xf32, #tpu.memory_space<vmem>>, vector<8x8xf32>
    %357 = arith.index_cast %350 : i32 to index
    %c0_174 = arith.constant 0 : index
    %358 = vector.load %arg34[%357, %c0_174] : memref<64x8xf32, #tpu.memory_space<vmem>>, vector<8x8xf32>
    %cst_175 = arith.constant dense<0.000000e+00> : vector<8x8xf32>
    %359 = tpu.matmul %352, %30, %cst_175 {dimension_numbers = #tpu.dot_dimension_numbers<[1], [0], [0], [1], [0, 0, 1, 1], [], []>} : vector<8x8xf32>, vector<8x8xf32>, vector<8x8xf32> -> vector<8x8xf32>
    %360 = arith.addf %354, %359 : vector<8x8xf32>
    %361 = vector.broadcast %36 : vector<1x8xf32> to vector<8x8xf32>
    %362 = arith.addf %360, %361 : vector<8x8xf32>
    %363 = arith.negf %362 : vector<8x8xf32>
    %364 = math.exp %363 : vector<8x8xf32>
    %cst_176 = arith.constant 1.000000e+00 : f32
    %365 = vector.broadcast %cst_176 : f32 to vector<8x8xf32>
    %366 = arith.addf %365, %364 : vector<8x8xf32>
    %367 = arith.divf %365, %366 : vector<8x8xf32>
    %cst_177 = arith.constant dense<0.000000e+00> : vector<8x8xf32>
    %368 = tpu.matmul %352, %32, %cst_177 {dimension_numbers = #tpu.dot_dimension_numbers<[1], [0], [0], [1], [0, 0, 1, 1], [], []>} : vector<8x8xf32>, vector<8x8xf32>, vector<8x8xf32> -> vector<8x8xf32>
    %369 = arith.addf %356, %368 : vector<8x8xf32>
    %370 = vector.broadcast %38 : vector<1x8xf32> to vector<8x8xf32>
    %371 = arith.addf %369, %370 : vector<8x8xf32>
    %372 = arith.negf %371 : vector<8x8xf32>
    %373 = math.exp %372 : vector<8x8xf32>
    %cst_178 = arith.constant 1.000000e+00 : f32
    %374 = vector.broadcast %cst_178 : f32 to vector<8x8xf32>
    %375 = arith.addf %374, %373 : vector<8x8xf32>
    %376 = arith.divf %374, %375 : vector<8x8xf32>
    %cst_179 = arith.constant dense<0.000000e+00> : vector<8x8xf32>
    %377 = tpu.matmul %352, %34, %cst_179 {dimension_numbers = #tpu.dot_dimension_numbers<[1], [0], [0], [1], [0, 0, 1, 1], [], []>} : vector<8x8xf32>, vector<8x8xf32>, vector<8x8xf32> -> vector<8x8xf32>
    %378 = vector.broadcast %40 : vector<1x8xf32> to vector<8x8xf32>
    %379 = arith.addf %377, %378 : vector<8x8xf32>
    %380 = arith.mulf %367, %379 : vector<8x8xf32>
    %381 = arith.addf %358, %380 : vector<8x8xf32>
    %382 = math.tanh %381 : vector<8x8xf32>
    %cst_180 = arith.constant 1.000000e+00 : f32
    %383 = vector.broadcast %cst_180 : f32 to vector<8x8xf32>
    %384 = arith.subf %383, %376 : vector<8x8xf32>
    %385 = arith.mulf %384, %382 : vector<8x8xf32>
    %386 = arith.mulf %376, %352 : vector<8x8xf32>
    %387 = arith.addf %385, %386 : vector<8x8xf32>
    %c0_181 = arith.constant 0 : index
    %c0_182 = arith.constant 0 : index
    %c0_183 = arith.constant 0 : index
    %388 = vector.load %arg30[%c0_181, %c0_182, %c0_183] : memref<1x8x8xf32, #tpu.memory_space<vmem>>, vector<1x8x8xf32>
    %389 = vector.shape_cast %388 : vector<1x8x8xf32> to vector<8x8xf32>
    %390 = vector.shape_cast %387 : vector<8x8xf32> to vector<1x8x8xf32>
    tpu.vector_store %arg30[%c0_181, %c0_182, %c0_183], %390 {strides = array<i32>} : memref<1x8x8xf32, #tpu.memory_space<vmem>>, vector<1x8x8xf32>,
    %391 = arith.index_cast %350 : i32 to index
    %c0_184 = arith.constant 0 : index
    %392 = vector.load %arg31[%391, %c0_184] : memref<64x8xf32, #tpu.memory_space<vmem>>, vector<8x8xf32>
    tpu.vector_store %arg31[%391, %c0_184], %387 {strides = array<i32>} : memref<64x8xf32, #tpu.memory_space<vmem>>, vector<8x8xf32>,
    %c8_i32_185 = arith.constant 8 : i32
    %c0_186 = arith.constant 0 : index
    %c0_187 = arith.constant 0 : index
    %c0_188 = arith.constant 0 : index
    %393 = vector.load %arg30[%c0_186, %c0_187, %c0_188] : memref<1x8x8xf32, #tpu.memory_space<vmem>>, vector<1x8x8xf32>
    %394 = vector.shape_cast %393 : vector<1x8x8xf32> to vector<8x8xf32>
    %395 = vector.extract_strided_slice %394 {offsets = [0, 0], sizes = [4, 8], strides = [1, 1]} : vector<8x8xf32> to vector<4x8xf32>
    %c0_189 = arith.constant 0 : index
    %c0_190 = arith.constant 0 : index
    %396 = vector.load %arg49[%c0_189, %c0_190] : memref<8x80xf32, #tpu.memory_space<vmem>>, vector<4x8xf32>
    tpu.vector_store %arg49[%c0_189, %c0_190], %395 {strides = array<i32>} : memref<8x80xf32, #tpu.memory_space<vmem>>, vector<4x8xf32>,
    %397 = vector.extract_strided_slice %394 {offsets = [4, 0], sizes = [4, 8], strides = [1, 1]} : vector<8x8xf32> to vector<4x8xf32>
    %c0_191 = arith.constant 0 : index
    %c40 = arith.constant 40 : index
    %398 = vector.load %arg49[%c0_191, %c40] : memref<8x80xf32, #tpu.memory_space<vmem>>, vector<4x8xf32>
    tpu.vector_store %arg49[%c0_191, %c40], %397 {strides = array<i32>} : memref<8x80xf32, #tpu.memory_space<vmem>>, vector<4x8xf32>,
    %c0_192 = arith.constant 0 : index
    %c0_193 = arith.constant 0 : index
    %399 = vector.load %arg31[%c0_192, %c0_193] : memref<64x8xf32, #tpu.memory_space<vmem>>, vector<64x8xf32>
    %c0_194 = arith.constant 0 : index
    %c0_195 = arith.constant 0 : index
    %c0_196 = arith.constant 0 : index
    %400 = vector.load %arg6[%c0_194, %c0_195, %c0_196] : memref<3x8x16xf32, #tpu.memory_space<vmem>>, vector<1x8x16xf32>
    %401 = vector.shape_cast %400 : vector<1x8x16xf32> to vector<8x16xf32>
    %cst_197 = arith.constant dense<0.000000e+00> : vector<64x16xf32>
    %402 = tpu.matmul %399, %401, %cst_197 {dimension_numbers = #tpu.dot_dimension_numbers<[1], [0], [0], [1], [0, 0, 1, 1], [], []>} : vector<64x8xf32>, vector<8x16xf32>, vector<64x16xf32> -> vector<64x16xf32>
    %c0_198 = arith.constant 0 : index
    %c0_199 = arith.constant 0 : index
    %c0_200 = arith.constant 0 : index
    %403 = vector.load %arg8[%c0_198, %c0_199, %c0_200] : memref<3x1x16xf32, #tpu.memory_space<vmem>>, vector<1x1x16xf32>
    %404 = vector.shape_cast %403 : vector<1x1x16xf32> to vector<1x16xf32>
    %405 = vector.broadcast %404 : vector<1x16xf32> to vector<64x16xf32>
    %406 = arith.addf %402, %405 : vector<64x16xf32>
    %c0_201 = arith.constant 0 : index
    %c0_202 = arith.constant 0 : index
    %407 = vector.load %arg37[%c0_201, %c0_202] : memref<64x16xf32, #tpu.memory_space<vmem>>, vector<64x16xf32>
    tpu.vector_store %arg37[%c0_201, %c0_202], %406 {strides = array<i32>} : memref<64x16xf32, #tpu.memory_space<vmem>>, vector<64x16xf32>,
    %c1_203 = arith.constant 1 : index
    %c0_204 = arith.constant 0 : index
    %c0_205 = arith.constant 0 : index
    %408 = vector.load %arg6[%c1_203, %c0_204, %c0_205] : memref<3x8x16xf32, #tpu.memory_space<vmem>>, vector<1x8x16xf32>
    %409 = vector.shape_cast %408 : vector<1x8x16xf32> to vector<8x16xf32>
    %cst_206 = arith.constant dense<0.000000e+00> : vector<64x16xf32>
    %410 = tpu.matmul %399, %409, %cst_206 {dimension_numbers = #tpu.dot_dimension_numbers<[1], [0], [0], [1], [0, 0, 1, 1], [], []>} : vector<64x8xf32>, vector<8x16xf32>, vector<64x16xf32> -> vector<64x16xf32>
    %c1_207 = arith.constant 1 : index
    %c0_208 = arith.constant 0 : index
    %c0_209 = arith.constant 0 : index
    %411 = vector.load %arg8[%c1_207, %c0_208, %c0_209] : memref<3x1x16xf32, #tpu.memory_space<vmem>>, vector<1x1x16xf32>
    %412 = vector.shape_cast %411 : vector<1x1x16xf32> to vector<1x16xf32>
    %413 = vector.broadcast %412 : vector<1x16xf32> to vector<64x16xf32>
    %414 = arith.addf %410, %413 : vector<64x16xf32>
    %c0_210 = arith.constant 0 : index
    %c0_211 = arith.constant 0 : index
    %415 = vector.load %arg38[%c0_210, %c0_211] : memref<64x16xf32, #tpu.memory_space<vmem>>, vector<64x16xf32>
    tpu.vector_store %arg38[%c0_210, %c0_211], %414 {strides = array<i32>} : memref<64x16xf32, #tpu.memory_space<vmem>>, vector<64x16xf32>,
    %c2_212 = arith.constant 2 : index
    %c0_213 = arith.constant 0 : index
    %c0_214 = arith.constant 0 : index
    %416 = vector.load %arg6[%c2_212, %c0_213, %c0_214] : memref<3x8x16xf32, #tpu.memory_space<vmem>>, vector<1x8x16xf32>
    %417 = vector.shape_cast %416 : vector<1x8x16xf32> to vector<8x16xf32>
    %cst_215 = arith.constant dense<0.000000e+00> : vector<64x16xf32>
    %418 = tpu.matmul %399, %417, %cst_215 {dimension_numbers = #tpu.dot_dimension_numbers<[1], [0], [0], [1], [0, 0, 1, 1], [], []>} : vector<64x8xf32>, vector<8x16xf32>, vector<64x16xf32> -> vector<64x16xf32>
    %c2_216 = arith.constant 2 : index
    %c0_217 = arith.constant 0 : index
    %c0_218 = arith.constant 0 : index
    %419 = vector.load %arg8[%c2_216, %c0_217, %c0_218] : memref<3x1x16xf32, #tpu.memory_space<vmem>>, vector<1x1x16xf32>
    %420 = vector.shape_cast %419 : vector<1x1x16xf32> to vector<1x16xf32>
    %421 = vector.broadcast %420 : vector<1x16xf32> to vector<64x16xf32>
    %422 = arith.addf %418, %421 : vector<64x16xf32>
    %c0_219 = arith.constant 0 : index
    %c0_220 = arith.constant 0 : index
    %423 = vector.load %arg39[%c0_219, %c0_220] : memref<64x16xf32, #tpu.memory_space<vmem>>, vector<64x16xf32>
    tpu.vector_store %arg39[%c0_219, %c0_220], %422 {strides = array<i32>} : memref<64x16xf32, #tpu.memory_space<vmem>>, vector<64x16xf32>,
    %cst_221 = arith.constant 0.000000e+00 : f32
    %424 = vector.broadcast %cst_221 : f32 to vector<2x8x16xf32>
    %c0_222 = arith.constant 0 : index
    %c0_223 = arith.constant 0 : index
    %c0_224 = arith.constant 0 : index
    %425 = vector.load %arg35[%c0_222, %c0_223, %c0_224] : memref<2x8x16xf32, #tpu.memory_space<vmem>>, vector<2x8x16xf32>
    tpu.vector_store %arg35[%c0_222, %c0_223, %c0_224], %424 {strides = array<i32>} : memref<2x8x16xf32, #tpu.memory_space<vmem>>, vector<2x8x16xf32>,
    %c0_225 = arith.constant 0 : index
    %c0_226 = arith.constant 0 : index
    %c0_227 = arith.constant 0 : index
    %426 = vector.load %arg7[%c0_225, %c0_226, %c0_227] : memref<3x16x16xf32, #tpu.memory_space<vmem>>, vector<1x16x16xf32>
    %427 = vector.shape_cast %426 : vector<1x16x16xf32> to vector<16x16xf32>
    %c1_228 = arith.constant 1 : index
    %c0_229 = arith.constant 0 : index
    %c0_230 = arith.constant 0 : index
    %428 = vector.load %arg7[%c1_228, %c0_229, %c0_230] : memref<3x16x16xf32, #tpu.memory_space<vmem>>, vector<1x16x16xf32>
    %429 = vector.shape_cast %428 : vector<1x16x16xf32> to vector<16x16xf32>
    %c2_231 = arith.constant 2 : index
    %c0_232 = arith.constant 0 : index
    %c0_233 = arith.constant 0 : index
    %430 = vector.load %arg7[%c2_231, %c0_232, %c0_233] : memref<3x16x16xf32, #tpu.memory_space<vmem>>, vector<1x16x16xf32>
    %431 = vector.shape_cast %430 : vector<1x16x16xf32> to vector<16x16xf32>
    %c0_234 = arith.constant 0 : index
    %c0_235 = arith.constant 0 : index
    %c0_236 = arith.constant 0 : index
    %432 = vector.load %arg9[%c0_234, %c0_235, %c0_236] : memref<3x1x16xf32, #tpu.memory_space<vmem>>, vector<1x1x16xf32>
    %433 = vector.shape_cast %432 : vector<1x1x16xf32> to vector<1x16xf32>
    %c1_237 = arith.constant 1 : index
    %c0_238 = arith.constant 0 : index
    %c0_239 = arith.constant 0 : index
    %434 = vector.load %arg9[%c1_237, %c0_238, %c0_239] : memref<3x1x16xf32, #tpu.memory_space<vmem>>, vector<1x1x16xf32>
    %435 = vector.shape_cast %434 : vector<1x1x16xf32> to vector<1x16xf32>
    %c2_240 = arith.constant 2 : index
    %c0_241 = arith.constant 0 : index
    %c0_242 = arith.constant 0 : index
    %436 = vector.load %arg9[%c2_240, %c0_241, %c0_242] : memref<3x1x16xf32, #tpu.memory_space<vmem>>, vector<1x1x16xf32>
    %437 = vector.shape_cast %436 : vector<1x1x16xf32> to vector<1x16xf32>
    %c0_i32_243 = arith.constant 0 : i32
    %c8_i32_244 = arith.constant 8 : i32
    %438 = arith.muli %c0_i32_243, %c8_i32_244 : i32
    %439 = tpu.assume_multiple %438, 8 : i32
    %c2_i32_245 = arith.constant 2 : i32
    %c0_i32_246 = arith.constant 0 : i32
    %440 = arith.cmpi eq, %c2_i32_245, %c0_i32_246 : i32
    %c1_i32_247 = arith.constant 1 : i32
    %441 = arith.select %440, %c1_i32_247, %c2_i32_245 : i32
    %442 = arith.remsi %c0_i32_243, %441 : i32
    %c0_i32_248 = arith.constant 0 : i32
    %443 = arith.cmpi ne, %442, %c0_i32_248 : i32
    %c0_i32_249 = arith.constant 0 : i32
    %444 = arith.cmpi slt, %442, %c0_i32_249 : i32
    %c0_i32_250 = arith.constant 0 : i32
    %445 = arith.cmpi slt, %441, %c0_i32_250 : i32
    %446 = arith.xori %444, %445 : i1
    %447 = arith.andi %446, %443 : i1
    %448 = arith.addi %442, %441 : i32
    %449 = arith.select %447, %448, %442 : i32
    %450 = arith.index_cast %449 : i32 to index
    %c0_251 = arith.constant 0 : index
    %c0_252 = arith.constant 0 : index
    %451 = vector.load %arg35[%450, %c0_251, %c0_252] : memref<2x8x16xf32, #tpu.memory_space<vmem>>, vector<1x8x16xf32>
    %452 = vector.shape_cast %451 : vector<1x8x16xf32> to vector<8x16xf32>
    %453 = arith.index_cast %439 : i32 to index
    %c0_253 = arith.constant 0 : index
    %454 = vector.load %arg37[%453, %c0_253] : memref<64x16xf32, #tpu.memory_space<vmem>>, vector<8x16xf32>
    %455 = arith.index_cast %439 : i32 to index
    %c0_254 = arith.constant 0 : index
    %456 = vector.load %arg38[%455, %c0_254] : memref<64x16xf32, #tpu.memory_space<vmem>>, vector<8x16xf32>
    %457 = arith.index_cast %439 : i32 to index
    %c0_255 = arith.constant 0 : index
    %458 = vector.load %arg39[%457, %c0_255] : memref<64x16xf32, #tpu.memory_space<vmem>>, vector<8x16xf32>
    %cst_256 = arith.constant dense<0.000000e+00> : vector<8x16xf32>
    %459 = tpu.matmul %452, %427, %cst_256 {dimension_numbers = #tpu.dot_dimension_numbers<[1], [0], [0], [1], [0, 0, 1, 1], [], []>} : vector<8x16xf32>, vector<16x16xf32>, vector<8x16xf32> -> vector<8x16xf32>
    %460 = arith.addf %454, %459 : vector<8x16xf32>
    %461 = vector.broadcast %433 : vector<1x16xf32> to vector<8x16xf32>
    %462 = arith.addf %460, %461 : vector<8x16xf32>
    %463 = arith.negf %462 : vector<8x16xf32>
    %464 = math.exp %463 : vector<8x16xf32>
    %cst_257 = arith.constant 1.000000e+00 : f32
    %465 = vector.broadcast %cst_257 : f32 to vector<8x16xf32>
    %466 = arith.addf %465, %464 : vector<8x16xf32>
    %467 = arith.divf %465, %466 : vector<8x16xf32>
    %cst_258 = arith.constant dense<0.000000e+00> : vector<8x16xf32>
    %468 = tpu.matmul %452, %429, %cst_258 {dimension_numbers = #tpu.dot_dimension_numbers<[1], [0], [0], [1], [0, 0, 1, 1], [], []>} : vector<8x16xf32>, vector<16x16xf32>, vector<8x16xf32> -> vector<8x16xf32>
    %469 = arith.addf %456, %468 : vector<8x16xf32>
    %470 = vector.broadcast %435 : vector<1x16xf32> to vector<8x16xf32>
    %471 = arith.addf %469, %470 : vector<8x16xf32>
    %472 = arith.negf %471 : vector<8x16xf32>
    %473 = math.exp %472 : vector<8x16xf32>
    %cst_259 = arith.constant 1.000000e+00 : f32
    %474 = vector.broadcast %cst_259 : f32 to vector<8x16xf32>
    %475 = arith.addf %474, %473 : vector<8x16xf32>
    %476 = arith.divf %474, %475 : vector<8x16xf32>
    %cst_260 = arith.constant dense<0.000000e+00> : vector<8x16xf32>
    %477 = tpu.matmul %452, %431, %cst_260 {dimension_numbers = #tpu.dot_dimension_numbers<[1], [0], [0], [1], [0, 0, 1, 1], [], []>} : vector<8x16xf32>, vector<16x16xf32>, vector<8x16xf32> -> vector<8x16xf32>
    %478 = vector.broadcast %437 : vector<1x16xf32> to vector<8x16xf32>
    %479 = arith.addf %477, %478 : vector<8x16xf32>
    %480 = arith.mulf %467, %479 : vector<8x16xf32>
    %481 = arith.addf %458, %480 : vector<8x16xf32>
    %482 = math.tanh %481 : vector<8x16xf32>
    %cst_261 = arith.constant 1.000000e+00 : f32
    %483 = vector.broadcast %cst_261 : f32 to vector<8x16xf32>
    %484 = arith.subf %483, %476 : vector<8x16xf32>
    %485 = arith.mulf %484, %482 : vector<8x16xf32>
    %486 = arith.mulf %476, %452 : vector<8x16xf32>
    %487 = arith.addf %485, %486 : vector<8x16xf32>
    %488 = arith.index_cast %449 : i32 to index
    %c0_262 = arith.constant 0 : index
    %c0_263 = arith.constant 0 : index
    %489 = vector.load %arg35[%488, %c0_262, %c0_263] : memref<2x8x16xf32, #tpu.memory_space<vmem>>, vector<1x8x16xf32>
    %490 = vector.shape_cast %489 : vector<1x8x16xf32> to vector<8x16xf32>
    %491 = vector.shape_cast %487 : vector<8x16xf32> to vector<1x8x16xf32>
    tpu.vector_store %arg35[%488, %c0_262, %c0_263], %491 {strides = array<i32>} : memref<2x8x16xf32, #tpu.memory_space<vmem>>, vector<1x8x16xf32>,
    %492 = arith.index_cast %439 : i32 to index
    %c0_264 = arith.constant 0 : index
    %493 = vector.load %arg36[%492, %c0_264] : memref<64x16xf32, #tpu.memory_space<vmem>>, vector<8x16xf32>
    tpu.vector_store %arg36[%492, %c0_264], %487 {strides = array<i32>} : memref<64x16xf32, #tpu.memory_space<vmem>>, vector<8x16xf32>,
    %c1_i32_265 = arith.constant 1 : i32
    %c8_i32_266 = arith.constant 8 : i32
    %494 = arith.muli %c1_i32_265, %c8_i32_266 : i32
    %495 = tpu.assume_multiple %494, 8 : i32
    %c2_i32_267 = arith.constant 2 : i32
    %c0_i32_268 = arith.constant 0 : i32
    %496 = arith.cmpi eq, %c2_i32_267, %c0_i32_268 : i32
    %c1_i32_269 = arith.constant 1 : i32
    %497 = arith.select %496, %c1_i32_269, %c2_i32_267 : i32
    %498 = arith.remsi %c1_i32_265, %497 : i32
    %c0_i32_270 = arith.constant 0 : i32
    %499 = arith.cmpi ne, %498, %c0_i32_270 : i32
    %c0_i32_271 = arith.constant 0 : i32
    %500 = arith.cmpi slt, %498, %c0_i32_271 : i32
    %c0_i32_272 = arith.constant 0 : i32
    %501 = arith.cmpi slt, %497, %c0_i32_272 : i32
    %502 = arith.xori %500, %501 : i1
    %503 = arith.andi %502, %499 : i1
    %504 = arith.addi %498, %497 : i32
    %505 = arith.select %503, %504, %498 : i32
    %506 = arith.index_cast %505 : i32 to index
    %c0_273 = arith.constant 0 : index
    %c0_274 = arith.constant 0 : index
    %507 = vector.load %arg35[%506, %c0_273, %c0_274] : memref<2x8x16xf32, #tpu.memory_space<vmem>>, vector<1x8x16xf32>
    %508 = vector.shape_cast %507 : vector<1x8x16xf32> to vector<8x16xf32>
    %509 = arith.index_cast %495 : i32 to index
    %c0_275 = arith.constant 0 : index
    %510 = vector.load %arg37[%509, %c0_275] : memref<64x16xf32, #tpu.memory_space<vmem>>, vector<8x16xf32>
    %511 = arith.index_cast %495 : i32 to index
    %c0_276 = arith.constant 0 : index
    %512 = vector.load %arg38[%511, %c0_276] : memref<64x16xf32, #tpu.memory_space<vmem>>, vector<8x16xf32>
    %513 = arith.index_cast %495 : i32 to index
    %c0_277 = arith.constant 0 : index
    %514 = vector.load %arg39[%513, %c0_277] : memref<64x16xf32, #tpu.memory_space<vmem>>, vector<8x16xf32>
    %cst_278 = arith.constant dense<0.000000e+00> : vector<8x16xf32>
    %515 = tpu.matmul %508, %427, %cst_278 {dimension_numbers = #tpu.dot_dimension_numbers<[1], [0], [0], [1], [0, 0, 1, 1], [], []>} : vector<8x16xf32>, vector<16x16xf32>, vector<8x16xf32> -> vector<8x16xf32>
    %516 = arith.addf %510, %515 : vector<8x16xf32>
    %517 = vector.broadcast %433 : vector<1x16xf32> to vector<8x16xf32>
    %518 = arith.addf %516, %517 : vector<8x16xf32>
    %519 = arith.negf %518 : vector<8x16xf32>
    %520 = math.exp %519 : vector<8x16xf32>
    %cst_279 = arith.constant 1.000000e+00 : f32
    %521 = vector.broadcast %cst_279 : f32 to vector<8x16xf32>
    %522 = arith.addf %521, %520 : vector<8x16xf32>
    %523 = arith.divf %521, %522 : vector<8x16xf32>
    %cst_280 = arith.constant dense<0.000000e+00> : vector<8x16xf32>
    %524 = tpu.matmul %508, %429, %cst_280 {dimension_numbers = #tpu.dot_dimension_numbers<[1], [0], [0], [1], [0, 0, 1, 1], [], []>} : vector<8x16xf32>, vector<16x16xf32>, vector<8x16xf32> -> vector<8x16xf32>
    %525 = arith.addf %512, %524 : vector<8x16xf32>
    %526 = vector.broadcast %435 : vector<1x16xf32> to vector<8x16xf32>
    %527 = arith.addf %525, %526 : vector<8x16xf32>
    %528 = arith.negf %527 : vector<8x16xf32>
    %529 = math.exp %528 : vector<8x16xf32>
    %cst_281 = arith.constant 1.000000e+00 : f32
    %530 = vector.broadcast %cst_281 : f32 to vector<8x16xf32>
    %531 = arith.addf %530, %529 : vector<8x16xf32>
    %532 = arith.divf %530, %531 : vector<8x16xf32>
    %cst_282 = arith.constant dense<0.000000e+00> : vector<8x16xf32>
    %533 = tpu.matmul %508, %431, %cst_282 {dimension_numbers = #tpu.dot_dimension_numbers<[1], [0], [0], [1], [0, 0, 1, 1], [], []>} : vector<8x16xf32>, vector<16x16xf32>, vector<8x16xf32> -> vector<8x16xf32>
    %534 = vector.broadcast %437 : vector<1x16xf32> to vector<8x16xf32>
    %535 = arith.addf %533, %534 : vector<8x16xf32>
    %536 = arith.mulf %523, %535 : vector<8x16xf32>
    %537 = arith.addf %514, %536 : vector<8x16xf32>
    %538 = math.tanh %537 : vector<8x16xf32>
    %cst_283 = arith.constant 1.000000e+00 : f32
    %539 = vector.broadcast %cst_283 : f32 to vector<8x16xf32>
    %540 = arith.subf %539, %532 : vector<8x16xf32>
    %541 = arith.mulf %540, %538 : vector<8x16xf32>
    %542 = arith.mulf %532, %508 : vector<8x16xf32>
    %543 = arith.addf %541, %542 : vector<8x16xf32>
    %544 = arith.index_cast %505 : i32 to index
    %c0_284 = arith.constant 0 : index
    %c0_285 = arith.constant 0 : index
    %545 = vector.load %arg35[%544, %c0_284, %c0_285] : memref<2x8x16xf32, #tpu.memory_space<vmem>>, vector<1x8x16xf32>
    %546 = vector.shape_cast %545 : vector<1x8x16xf32> to vector<8x16xf32>
    %547 = vector.shape_cast %543 : vector<8x16xf32> to vector<1x8x16xf32>
    tpu.vector_store %arg35[%544, %c0_284, %c0_285], %547 {strides = array<i32>} : memref<2x8x16xf32, #tpu.memory_space<vmem>>, vector<1x8x16xf32>,
    %548 = arith.index_cast %495 : i32 to index
    %c0_286 = arith.constant 0 : index
    %549 = vector.load %arg36[%548, %c0_286] : memref<64x16xf32, #tpu.memory_space<vmem>>, vector<8x16xf32>
    tpu.vector_store %arg36[%548, %c0_286], %543 {strides = array<i32>} : memref<64x16xf32, #tpu.memory_space<vmem>>, vector<8x16xf32>,
    %c2_i32_287 = arith.constant 2 : i32
    %c8_i32_288 = arith.constant 8 : i32
    %550 = arith.muli %c2_i32_287, %c8_i32_288 : i32
    %551 = tpu.assume_multiple %550, 8 : i32
    %c2_i32_289 = arith.constant 2 : i32
    %c0_i32_290 = arith.constant 0 : i32
    %552 = arith.cmpi eq, %c2_i32_289, %c0_i32_290 : i32
    %c1_i32_291 = arith.constant 1 : i32
    %553 = arith.select %552, %c1_i32_291, %c2_i32_289 : i32
    %554 = arith.remsi %c2_i32_287, %553 : i32
    %c0_i32_292 = arith.constant 0 : i32
    %555 = arith.cmpi ne, %554, %c0_i32_292 : i32
    %c0_i32_293 = arith.constant 0 : i32
    %556 = arith.cmpi slt, %554, %c0_i32_293 : i32
    %c0_i32_294 = arith.constant 0 : i32
    %557 = arith.cmpi slt, %553, %c0_i32_294 : i32
    %558 = arith.xori %556, %557 : i1
    %559 = arith.andi %558, %555 : i1
    %560 = arith.addi %554, %553 : i32
    %561 = arith.select %559, %560, %554 : i32
    %562 = arith.index_cast %561 : i32 to index
    %c0_295 = arith.constant 0 : index
    %c0_296 = arith.constant 0 : index
    %563 = vector.load %arg35[%562, %c0_295, %c0_296] : memref<2x8x16xf32, #tpu.memory_space<vmem>>, vector<1x8x16xf32>
    %564 = vector.shape_cast %563 : vector<1x8x16xf32> to vector<8x16xf32>
    %565 = arith.index_cast %551 : i32 to index
    %c0_297 = arith.constant 0 : index
    %566 = vector.load %arg37[%565, %c0_297] : memref<64x16xf32, #tpu.memory_space<vmem>>, vector<8x16xf32>
    %567 = arith.index_cast %551 : i32 to index
    %c0_298 = arith.constant 0 : index
    %568 = vector.load %arg38[%567, %c0_298] : memref<64x16xf32, #tpu.memory_space<vmem>>, vector<8x16xf32>
    %569 = arith.index_cast %551 : i32 to index
    %c0_299 = arith.constant 0 : index
    %570 = vector.load %arg39[%569, %c0_299] : memref<64x16xf32, #tpu.memory_space<vmem>>, vector<8x16xf32>
    %cst_300 = arith.constant dense<0.000000e+00> : vector<8x16xf32>
    %571 = tpu.matmul %564, %427, %cst_300 {dimension_numbers = #tpu.dot_dimension_numbers<[1], [0], [0], [1], [0, 0, 1, 1], [], []>} : vector<8x16xf32>, vector<16x16xf32>, vector<8x16xf32> -> vector<8x16xf32>
    %572 = arith.addf %566, %571 : vector<8x16xf32>
    %573 = vector.broadcast %433 : vector<1x16xf32> to vector<8x16xf32>
    %574 = arith.addf %572, %573 : vector<8x16xf32>
    %575 = arith.negf %574 : vector<8x16xf32>
    %576 = math.exp %575 : vector<8x16xf32>
    %cst_301 = arith.constant 1.000000e+00 : f32
    %577 = vector.broadcast %cst_301 : f32 to vector<8x16xf32>
    %578 = arith.addf %577, %576 : vector<8x16xf32>
    %579 = arith.divf %577, %578 : vector<8x16xf32>
    %cst_302 = arith.constant dense<0.000000e+00> : vector<8x16xf32>
    %580 = tpu.matmul %564, %429, %cst_302 {dimension_numbers = #tpu.dot_dimension_numbers<[1], [0], [0], [1], [0, 0, 1, 1], [], []>} : vector<8x16xf32>, vector<16x16xf32>, vector<8x16xf32> -> vector<8x16xf32>
    %581 = arith.addf %568, %580 : vector<8x16xf32>
    %582 = vector.broadcast %435 : vector<1x16xf32> to vector<8x16xf32>
    %583 = arith.addf %581, %582 : vector<8x16xf32>
    %584 = arith.negf %583 : vector<8x16xf32>
    %585 = math.exp %584 : vector<8x16xf32>
    %cst_303 = arith.constant 1.000000e+00 : f32
    %586 = vector.broadcast %cst_303 : f32 to vector<8x16xf32>
    %587 = arith.addf %586, %585 : vector<8x16xf32>
    %588 = arith.divf %586, %587 : vector<8x16xf32>
    %cst_304 = arith.constant dense<0.000000e+00> : vector<8x16xf32>
    %589 = tpu.matmul %564, %431, %cst_304 {dimension_numbers = #tpu.dot_dimension_numbers<[1], [0], [0], [1], [0, 0, 1, 1], [], []>} : vector<8x16xf32>, vector<16x16xf32>, vector<8x16xf32> -> vector<8x16xf32>
    %590 = vector.broadcast %437 : vector<1x16xf32> to vector<8x16xf32>
    %591 = arith.addf %589, %590 : vector<8x16xf32>
    %592 = arith.mulf %579, %591 : vector<8x16xf32>
    %593 = arith.addf %570, %592 : vector<8x16xf32>
    %594 = math.tanh %593 : vector<8x16xf32>
    %cst_305 = arith.constant 1.000000e+00 : f32
    %595 = vector.broadcast %cst_305 : f32 to vector<8x16xf32>
    %596 = arith.subf %595, %588 : vector<8x16xf32>
    %597 = arith.mulf %596, %594 : vector<8x16xf32>
    %598 = arith.mulf %588, %564 : vector<8x16xf32>
    %599 = arith.addf %597, %598 : vector<8x16xf32>
    %600 = arith.index_cast %561 : i32 to index
    %c0_306 = arith.constant 0 : index
    %c0_307 = arith.constant 0 : index
    %601 = vector.load %arg35[%600, %c0_306, %c0_307] : memref<2x8x16xf32, #tpu.memory_space<vmem>>, vector<1x8x16xf32>
    %602 = vector.shape_cast %601 : vector<1x8x16xf32> to vector<8x16xf32>
    %603 = vector.shape_cast %599 : vector<8x16xf32> to vector<1x8x16xf32>
    tpu.vector_store %arg35[%600, %c0_306, %c0_307], %603 {strides = array<i32>} : memref<2x8x16xf32, #tpu.memory_space<vmem>>, vector<1x8x16xf32>,
    %604 = arith.index_cast %551 : i32 to index
    %c0_308 = arith.constant 0 : index
    %605 = vector.load %arg36[%604, %c0_308] : memref<64x16xf32, #tpu.memory_space<vmem>>, vector<8x16xf32>
    tpu.vector_store %arg36[%604, %c0_308], %599 {strides = array<i32>} : memref<64x16xf32, #tpu.memory_space<vmem>>, vector<8x16xf32>,
    %c3_i32_309 = arith.constant 3 : i32
    %c8_i32_310 = arith.constant 8 : i32
    %606 = arith.muli %c3_i32_309, %c8_i32_310 : i32
    %607 = tpu.assume_multiple %606, 8 : i32
    %c2_i32_311 = arith.constant 2 : i32
    %c0_i32_312 = arith.constant 0 : i32
    %608 = arith.cmpi eq, %c2_i32_311, %c0_i32_312 : i32
    %c1_i32_313 = arith.constant 1 : i32
    %609 = arith.select %608, %c1_i32_313, %c2_i32_311 : i32
    %610 = arith.remsi %c3_i32_309, %609 : i32
    %c0_i32_314 = arith.constant 0 : i32
    %611 = arith.cmpi ne, %610, %c0_i32_314 : i32
    %c0_i32_315 = arith.constant 0 : i32
    %612 = arith.cmpi slt, %610, %c0_i32_315 : i32
    %c0_i32_316 = arith.constant 0 : i32
    %613 = arith.cmpi slt, %609, %c0_i32_316 : i32
    %614 = arith.xori %612, %613 : i1
    %615 = arith.andi %614, %611 : i1
    %616 = arith.addi %610, %609 : i32
    %617 = arith.select %615, %616, %610 : i32
    %618 = arith.index_cast %617 : i32 to index
    %c0_317 = arith.constant 0 : index
    %c0_318 = arith.constant 0 : index
    %619 = vector.load %arg35[%618, %c0_317, %c0_318] : memref<2x8x16xf32, #tpu.memory_space<vmem>>, vector<1x8x16xf32>
    %620 = vector.shape_cast %619 : vector<1x8x16xf32> to vector<8x16xf32>
    %621 = arith.index_cast %607 : i32 to index
    %c0_319 = arith.constant 0 : index
    %622 = vector.load %arg37[%621, %c0_319] : memref<64x16xf32, #tpu.memory_space<vmem>>, vector<8x16xf32>
    %623 = arith.index_cast %607 : i32 to index
    %c0_320 = arith.constant 0 : index
    %624 = vector.load %arg38[%623, %c0_320] : memref<64x16xf32, #tpu.memory_space<vmem>>, vector<8x16xf32>
    %625 = arith.index_cast %607 : i32 to index
    %c0_321 = arith.constant 0 : index
    %626 = vector.load %arg39[%625, %c0_321] : memref<64x16xf32, #tpu.memory_space<vmem>>, vector<8x16xf32>
    %cst_322 = arith.constant dense<0.000000e+00> : vector<8x16xf32>
    %627 = tpu.matmul %620, %427, %cst_322 {dimension_numbers = #tpu.dot_dimension_numbers<[1], [0], [0], [1], [0, 0, 1, 1], [], []>} : vector<8x16xf32>, vector<16x16xf32>, vector<8x16xf32> -> vector<8x16xf32>
    %628 = arith.addf %622, %627 : vector<8x16xf32>
    %629 = vector.broadcast %433 : vector<1x16xf32> to vector<8x16xf32>
    %630 = arith.addf %628, %629 : vector<8x16xf32>
    %631 = arith.negf %630 : vector<8x16xf32>
    %632 = math.exp %631 : vector<8x16xf32>
    %cst_323 = arith.constant 1.000000e+00 : f32
    %633 = vector.broadcast %cst_323 : f32 to vector<8x16xf32>
    %634 = arith.addf %633, %632 : vector<8x16xf32>
    %635 = arith.divf %633, %634 : vector<8x16xf32>
    %cst_324 = arith.constant dense<0.000000e+00> : vector<8x16xf32>
    %636 = tpu.matmul %620, %429, %cst_324 {dimension_numbers = #tpu.dot_dimension_numbers<[1], [0], [0], [1], [0, 0, 1, 1], [], []>} : vector<8x16xf32>, vector<16x16xf32>, vector<8x16xf32> -> vector<8x16xf32>
    %637 = arith.addf %624, %636 : vector<8x16xf32>
    %638 = vector.broadcast %435 : vector<1x16xf32> to vector<8x16xf32>
    %639 = arith.addf %637, %638 : vector<8x16xf32>
    %640 = arith.negf %639 : vector<8x16xf32>
    %641 = math.exp %640 : vector<8x16xf32>
    %cst_325 = arith.constant 1.000000e+00 : f32
    %642 = vector.broadcast %cst_325 : f32 to vector<8x16xf32>
    %643 = arith.addf %642, %641 : vector<8x16xf32>
    %644 = arith.divf %642, %643 : vector<8x16xf32>
    %cst_326 = arith.constant dense<0.000000e+00> : vector<8x16xf32>
    %645 = tpu.matmul %620, %431, %cst_326 {dimension_numbers = #tpu.dot_dimension_numbers<[1], [0], [0], [1], [0, 0, 1, 1], [], []>} : vector<8x16xf32>, vector<16x16xf32>, vector<8x16xf32> -> vector<8x16xf32>
    %646 = vector.broadcast %437 : vector<1x16xf32> to vector<8x16xf32>
    %647 = arith.addf %645, %646 : vector<8x16xf32>
    %648 = arith.mulf %635, %647 : vector<8x16xf32>
    %649 = arith.addf %626, %648 : vector<8x16xf32>
    %650 = math.tanh %649 : vector<8x16xf32>
    %cst_327 = arith.constant 1.000000e+00 : f32
    %651 = vector.broadcast %cst_327 : f32 to vector<8x16xf32>
    %652 = arith.subf %651, %644 : vector<8x16xf32>
    %653 = arith.mulf %652, %650 : vector<8x16xf32>
    %654 = arith.mulf %644, %620 : vector<8x16xf32>
    %655 = arith.addf %653, %654 : vector<8x16xf32>
    %656 = arith.index_cast %617 : i32 to index
    %c0_328 = arith.constant 0 : index
    %c0_329 = arith.constant 0 : index
    %657 = vector.load %arg35[%656, %c0_328, %c0_329] : memref<2x8x16xf32, #tpu.memory_space<vmem>>, vector<1x8x16xf32>
    %658 = vector.shape_cast %657 : vector<1x8x16xf32> to vector<8x16xf32>
    %659 = vector.shape_cast %655 : vector<8x16xf32> to vector<1x8x16xf32>
    tpu.vector_store %arg35[%656, %c0_328, %c0_329], %659 {strides = array<i32>} : memref<2x8x16xf32, #tpu.memory_space<vmem>>, vector<1x8x16xf32>,
    %660 = arith.index_cast %607 : i32 to index
    %c0_330 = arith.constant 0 : index
    %661 = vector.load %arg36[%660, %c0_330] : memref<64x16xf32, #tpu.memory_space<vmem>>, vector<8x16xf32>
    tpu.vector_store %arg36[%660, %c0_330], %655 {strides = array<i32>} : memref<64x16xf32, #tpu.memory_space<vmem>>, vector<8x16xf32>,
    %c4_i32_331 = arith.constant 4 : i32
    %c8_i32_332 = arith.constant 8 : i32
    %662 = arith.muli %c4_i32_331, %c8_i32_332 : i32
    %663 = tpu.assume_multiple %662, 8 : i32
    %c2_i32_333 = arith.constant 2 : i32
    %c0_i32_334 = arith.constant 0 : i32
    %664 = arith.cmpi eq, %c2_i32_333, %c0_i32_334 : i32
    %c1_i32_335 = arith.constant 1 : i32
    %665 = arith.select %664, %c1_i32_335, %c2_i32_333 : i32
    %666 = arith.remsi %c4_i32_331, %665 : i32
    %c0_i32_336 = arith.constant 0 : i32
    %667 = arith.cmpi ne, %666, %c0_i32_336 : i32
    %c0_i32_337 = arith.constant 0 : i32
    %668 = arith.cmpi slt, %666, %c0_i32_337 : i32
    %c0_i32_338 = arith.constant 0 : i32
    %669 = arith.cmpi slt, %665, %c0_i32_338 : i32
    %670 = arith.xori %668, %669 : i1
    %671 = arith.andi %670, %667 : i1
    %672 = arith.addi %666, %665 : i32
    %673 = arith.select %671, %672, %666 : i32
    %674 = arith.index_cast %673 : i32 to index
    %c0_339 = arith.constant 0 : index
    %c0_340 = arith.constant 0 : index
    %675 = vector.load %arg35[%674, %c0_339, %c0_340] : memref<2x8x16xf32, #tpu.memory_space<vmem>>, vector<1x8x16xf32>
    %676 = vector.shape_cast %675 : vector<1x8x16xf32> to vector<8x16xf32>
    %677 = arith.index_cast %663 : i32 to index
    %c0_341 = arith.constant 0 : index
    %678 = vector.load %arg37[%677, %c0_341] : memref<64x16xf32, #tpu.memory_space<vmem>>, vector<8x16xf32>
    %679 = arith.index_cast %663 : i32 to index
    %c0_342 = arith.constant 0 : index
    %680 = vector.load %arg38[%679, %c0_342] : memref<64x16xf32, #tpu.memory_space<vmem>>, vector<8x16xf32>
    %681 = arith.index_cast %663 : i32 to index
    %c0_343 = arith.constant 0 : index
    %682 = vector.load %arg39[%681, %c0_343] : memref<64x16xf32, #tpu.memory_space<vmem>>, vector<8x16xf32>
    %cst_344 = arith.constant dense<0.000000e+00> : vector<8x16xf32>
    %683 = tpu.matmul %676, %427, %cst_344 {dimension_numbers = #tpu.dot_dimension_numbers<[1], [0], [0], [1], [0, 0, 1, 1], [], []>} : vector<8x16xf32>, vector<16x16xf32>, vector<8x16xf32> -> vector<8x16xf32>
    %684 = arith.addf %678, %683 : vector<8x16xf32>
    %685 = vector.broadcast %433 : vector<1x16xf32> to vector<8x16xf32>
    %686 = arith.addf %684, %685 : vector<8x16xf32>
    %687 = arith.negf %686 : vector<8x16xf32>
    %688 = math.exp %687 : vector<8x16xf32>
    %cst_345 = arith.constant 1.000000e+00 : f32
    %689 = vector.broadcast %cst_345 : f32 to vector<8x16xf32>
    %690 = arith.addf %689, %688 : vector<8x16xf32>
    %691 = arith.divf %689, %690 : vector<8x16xf32>
    %cst_346 = arith.constant dense<0.000000e+00> : vector<8x16xf32>
    %692 = tpu.matmul %676, %429, %cst_346 {dimension_numbers = #tpu.dot_dimension_numbers<[1], [0], [0], [1], [0, 0, 1, 1], [], []>} : vector<8x16xf32>, vector<16x16xf32>, vector<8x16xf32> -> vector<8x16xf32>
    %693 = arith.addf %680, %692 : vector<8x16xf32>
    %694 = vector.broadcast %435 : vector<1x16xf32> to vector<8x16xf32>
    %695 = arith.addf %693, %694 : vector<8x16xf32>
    %696 = arith.negf %695 : vector<8x16xf32>
    %697 = math.exp %696 : vector<8x16xf32>
    %cst_347 = arith.constant 1.000000e+00 : f32
    %698 = vector.broadcast %cst_347 : f32 to vector<8x16xf32>
    %699 = arith.addf %698, %697 : vector<8x16xf32>
    %700 = arith.divf %698, %699 : vector<8x16xf32>
    %cst_348 = arith.constant dense<0.000000e+00> : vector<8x16xf32>
    %701 = tpu.matmul %676, %431, %cst_348 {dimension_numbers = #tpu.dot_dimension_numbers<[1], [0], [0], [1], [0, 0, 1, 1], [], []>} : vector<8x16xf32>, vector<16x16xf32>, vector<8x16xf32> -> vector<8x16xf32>
    %702 = vector.broadcast %437 : vector<1x16xf32> to vector<8x16xf32>
    %703 = arith.addf %701, %702 : vector<8x16xf32>
    %704 = arith.mulf %691, %703 : vector<8x16xf32>
    %705 = arith.addf %682, %704 : vector<8x16xf32>
    %706 = math.tanh %705 : vector<8x16xf32>
    %cst_349 = arith.constant 1.000000e+00 : f32
    %707 = vector.broadcast %cst_349 : f32 to vector<8x16xf32>
    %708 = arith.subf %707, %700 : vector<8x16xf32>
    %709 = arith.mulf %708, %706 : vector<8x16xf32>
    %710 = arith.mulf %700, %676 : vector<8x16xf32>
    %711 = arith.addf %709, %710 : vector<8x16xf32>
    %712 = arith.index_cast %673 : i32 to index
    %c0_350 = arith.constant 0 : index
    %c0_351 = arith.constant 0 : index
    %713 = vector.load %arg35[%712, %c0_350, %c0_351] : memref<2x8x16xf32, #tpu.memory_space<vmem>>, vector<1x8x16xf32>
    %714 = vector.shape_cast %713 : vector<1x8x16xf32> to vector<8x16xf32>
    %715 = vector.shape_cast %711 : vector<8x16xf32> to vector<1x8x16xf32>
    tpu.vector_store %arg35[%712, %c0_350, %c0_351], %715 {strides = array<i32>} : memref<2x8x16xf32, #tpu.memory_space<vmem>>, vector<1x8x16xf32>,
    %716 = arith.index_cast %663 : i32 to index
    %c0_352 = arith.constant 0 : index
    %717 = vector.load %arg36[%716, %c0_352] : memref<64x16xf32, #tpu.memory_space<vmem>>, vector<8x16xf32>
    tpu.vector_store %arg36[%716, %c0_352], %711 {strides = array<i32>} : memref<64x16xf32, #tpu.memory_space<vmem>>, vector<8x16xf32>,
    %c5_i32_353 = arith.constant 5 : i32
    %c8_i32_354 = arith.constant 8 : i32
    %718 = arith.muli %c5_i32_353, %c8_i32_354 : i32
    %719 = tpu.assume_multiple %718, 8 : i32
    %c2_i32_355 = arith.constant 2 : i32
    %c0_i32_356 = arith.constant 0 : i32
    %720 = arith.cmpi eq, %c2_i32_355, %c0_i32_356 : i32
    %c1_i32_357 = arith.constant 1 : i32
    %721 = arith.select %720, %c1_i32_357, %c2_i32_355 : i32
    %722 = arith.remsi %c5_i32_353, %721 : i32
    %c0_i32_358 = arith.constant 0 : i32
    %723 = arith.cmpi ne, %722, %c0_i32_358 : i32
    %c0_i32_359 = arith.constant 0 : i32
    %724 = arith.cmpi slt, %722, %c0_i32_359 : i32
    %c0_i32_360 = arith.constant 0 : i32
    %725 = arith.cmpi slt, %721, %c0_i32_360 : i32
    %726 = arith.xori %724, %725 : i1
    %727 = arith.andi %726, %723 : i1
    %728 = arith.addi %722, %721 : i32
    %729 = arith.select %727, %728, %722 : i32
    %730 = arith.index_cast %729 : i32 to index
    %c0_361 = arith.constant 0 : index
    %c0_362 = arith.constant 0 : index
    %731 = vector.load %arg35[%730, %c0_361, %c0_362] : memref<2x8x16xf32, #tpu.memory_space<vmem>>, vector<1x8x16xf32>
    %732 = vector.shape_cast %731 : vector<1x8x16xf32> to vector<8x16xf32>
    %733 = arith.index_cast %719 : i32 to index
    %c0_363 = arith.constant 0 : index
    %734 = vector.load %arg37[%733, %c0_363] : memref<64x16xf32, #tpu.memory_space<vmem>>, vector<8x16xf32>
    %735 = arith.index_cast %719 : i32 to index
    %c0_364 = arith.constant 0 : index
    %736 = vector.load %arg38[%735, %c0_364] : memref<64x16xf32, #tpu.memory_space<vmem>>, vector<8x16xf32>
    %737 = arith.index_cast %719 : i32 to index
    %c0_365 = arith.constant 0 : index
    %738 = vector.load %arg39[%737, %c0_365] : memref<64x16xf32, #tpu.memory_space<vmem>>, vector<8x16xf32>
    %cst_366 = arith.constant dense<0.000000e+00> : vector<8x16xf32>
    %739 = tpu.matmul %732, %427, %cst_366 {dimension_numbers = #tpu.dot_dimension_numbers<[1], [0], [0], [1], [0, 0, 1, 1], [], []>} : vector<8x16xf32>, vector<16x16xf32>, vector<8x16xf32> -> vector<8x16xf32>
    %740 = arith.addf %734, %739 : vector<8x16xf32>
    %741 = vector.broadcast %433 : vector<1x16xf32> to vector<8x16xf32>
    %742 = arith.addf %740, %741 : vector<8x16xf32>
    %743 = arith.negf %742 : vector<8x16xf32>
    %744 = math.exp %743 : vector<8x16xf32>
    %cst_367 = arith.constant 1.000000e+00 : f32
    %745 = vector.broadcast %cst_367 : f32 to vector<8x16xf32>
    %746 = arith.addf %745, %744 : vector<8x16xf32>
    %747 = arith.divf %745, %746 : vector<8x16xf32>
    %cst_368 = arith.constant dense<0.000000e+00> : vector<8x16xf32>
    %748 = tpu.matmul %732, %429, %cst_368 {dimension_numbers = #tpu.dot_dimension_numbers<[1], [0], [0], [1], [0, 0, 1, 1], [], []>} : vector<8x16xf32>, vector<16x16xf32>, vector<8x16xf32> -> vector<8x16xf32>
    %749 = arith.addf %736, %748 : vector<8x16xf32>
    %750 = vector.broadcast %435 : vector<1x16xf32> to vector<8x16xf32>
    %751 = arith.addf %749, %750 : vector<8x16xf32>
    %752 = arith.negf %751 : vector<8x16xf32>
    %753 = math.exp %752 : vector<8x16xf32>
    %cst_369 = arith.constant 1.000000e+00 : f32
    %754 = vector.broadcast %cst_369 : f32 to vector<8x16xf32>
    %755 = arith.addf %754, %753 : vector<8x16xf32>
    %756 = arith.divf %754, %755 : vector<8x16xf32>
    %cst_370 = arith.constant dense<0.000000e+00> : vector<8x16xf32>
    %757 = tpu.matmul %732, %431, %cst_370 {dimension_numbers = #tpu.dot_dimension_numbers<[1], [0], [0], [1], [0, 0, 1, 1], [], []>} : vector<8x16xf32>, vector<16x16xf32>, vector<8x16xf32> -> vector<8x16xf32>
    %758 = vector.broadcast %437 : vector<1x16xf32> to vector<8x16xf32>
    %759 = arith.addf %757, %758 : vector<8x16xf32>
    %760 = arith.mulf %747, %759 : vector<8x16xf32>
    %761 = arith.addf %738, %760 : vector<8x16xf32>
    %762 = math.tanh %761 : vector<8x16xf32>
    %cst_371 = arith.constant 1.000000e+00 : f32
    %763 = vector.broadcast %cst_371 : f32 to vector<8x16xf32>
    %764 = arith.subf %763, %756 : vector<8x16xf32>
    %765 = arith.mulf %764, %762 : vector<8x16xf32>
    %766 = arith.mulf %756, %732 : vector<8x16xf32>
    %767 = arith.addf %765, %766 : vector<8x16xf32>
    %768 = arith.index_cast %729 : i32 to index
    %c0_372 = arith.constant 0 : index
    %c0_373 = arith.constant 0 : index
    %769 = vector.load %arg35[%768, %c0_372, %c0_373] : memref<2x8x16xf32, #tpu.memory_space<vmem>>, vector<1x8x16xf32>
    %770 = vector.shape_cast %769 : vector<1x8x16xf32> to vector<8x16xf32>
    %771 = vector.shape_cast %767 : vector<8x16xf32> to vector<1x8x16xf32>
    tpu.vector_store %arg35[%768, %c0_372, %c0_373], %771 {strides = array<i32>} : memref<2x8x16xf32, #tpu.memory_space<vmem>>, vector<1x8x16xf32>,
    %772 = arith.index_cast %719 : i32 to index
    %c0_374 = arith.constant 0 : index
    %773 = vector.load %arg36[%772, %c0_374] : memref<64x16xf32, #tpu.memory_space<vmem>>, vector<8x16xf32>
    tpu.vector_store %arg36[%772, %c0_374], %767 {strides = array<i32>} : memref<64x16xf32, #tpu.memory_space<vmem>>, vector<8x16xf32>,
    %c6_i32_375 = arith.constant 6 : i32
    %c8_i32_376 = arith.constant 8 : i32
    %774 = arith.muli %c6_i32_375, %c8_i32_376 : i32
    %775 = tpu.assume_multiple %774, 8 : i32
    %c2_i32_377 = arith.constant 2 : i32
    %c0_i32_378 = arith.constant 0 : i32
    %776 = arith.cmpi eq, %c2_i32_377, %c0_i32_378 : i32
    %c1_i32_379 = arith.constant 1 : i32
    %777 = arith.select %776, %c1_i32_379, %c2_i32_377 : i32
    %778 = arith.remsi %c6_i32_375, %777 : i32
    %c0_i32_380 = arith.constant 0 : i32
    %779 = arith.cmpi ne, %778, %c0_i32_380 : i32
    %c0_i32_381 = arith.constant 0 : i32
    %780 = arith.cmpi slt, %778, %c0_i32_381 : i32
    %c0_i32_382 = arith.constant 0 : i32
    %781 = arith.cmpi slt, %777, %c0_i32_382 : i32
    %782 = arith.xori %780, %781 : i1
    %783 = arith.andi %782, %779 : i1
    %784 = arith.addi %778, %777 : i32
    %785 = arith.select %783, %784, %778 : i32
    %786 = arith.index_cast %785 : i32 to index
    %c0_383 = arith.constant 0 : index
    %c0_384 = arith.constant 0 : index
    %787 = vector.load %arg35[%786, %c0_383, %c0_384] : memref<2x8x16xf32, #tpu.memory_space<vmem>>, vector<1x8x16xf32>
    %788 = vector.shape_cast %787 : vector<1x8x16xf32> to vector<8x16xf32>
    %789 = arith.index_cast %775 : i32 to index
    %c0_385 = arith.constant 0 : index
    %790 = vector.load %arg37[%789, %c0_385] : memref<64x16xf32, #tpu.memory_space<vmem>>, vector<8x16xf32>
    %791 = arith.index_cast %775 : i32 to index
    %c0_386 = arith.constant 0 : index
    %792 = vector.load %arg38[%791, %c0_386] : memref<64x16xf32, #tpu.memory_space<vmem>>, vector<8x16xf32>
    %793 = arith.index_cast %775 : i32 to index
    %c0_387 = arith.constant 0 : index
    %794 = vector.load %arg39[%793, %c0_387] : memref<64x16xf32, #tpu.memory_space<vmem>>, vector<8x16xf32>
    %cst_388 = arith.constant dense<0.000000e+00> : vector<8x16xf32>
    %795 = tpu.matmul %788, %427, %cst_388 {dimension_numbers = #tpu.dot_dimension_numbers<[1], [0], [0], [1], [0, 0, 1, 1], [], []>} : vector<8x16xf32>, vector<16x16xf32>, vector<8x16xf32> -> vector<8x16xf32>
    %796 = arith.addf %790, %795 : vector<8x16xf32>
    %797 = vector.broadcast %433 : vector<1x16xf32> to vector<8x16xf32>
    %798 = arith.addf %796, %797 : vector<8x16xf32>
    %799 = arith.negf %798 : vector<8x16xf32>
    %800 = math.exp %799 : vector<8x16xf32>
    %cst_389 = arith.constant 1.000000e+00 : f32
    %801 = vector.broadcast %cst_389 : f32 to vector<8x16xf32>
    %802 = arith.addf %801, %800 : vector<8x16xf32>
    %803 = arith.divf %801, %802 : vector<8x16xf32>
    %cst_390 = arith.constant dense<0.000000e+00> : vector<8x16xf32>
    %804 = tpu.matmul %788, %429, %cst_390 {dimension_numbers = #tpu.dot_dimension_numbers<[1], [0], [0], [1], [0, 0, 1, 1], [], []>} : vector<8x16xf32>, vector<16x16xf32>, vector<8x16xf32> -> vector<8x16xf32>
    %805 = arith.addf %792, %804 : vector<8x16xf32>
    %806 = vector.broadcast %435 : vector<1x16xf32> to vector<8x16xf32>
    %807 = arith.addf %805, %806 : vector<8x16xf32>
    %808 = arith.negf %807 : vector<8x16xf32>
    %809 = math.exp %808 : vector<8x16xf32>
    %cst_391 = arith.constant 1.000000e+00 : f32
    %810 = vector.broadcast %cst_391 : f32 to vector<8x16xf32>
    %811 = arith.addf %810, %809 : vector<8x16xf32>
    %812 = arith.divf %810, %811 : vector<8x16xf32>
    %cst_392 = arith.constant dense<0.000000e+00> : vector<8x16xf32>
    %813 = tpu.matmul %788, %431, %cst_392 {dimension_numbers = #tpu.dot_dimension_numbers<[1], [0], [0], [1], [0, 0, 1, 1], [], []>} : vector<8x16xf32>, vector<16x16xf32>, vector<8x16xf32> -> vector<8x16xf32>
    %814 = vector.broadcast %437 : vector<1x16xf32> to vector<8x16xf32>
    %815 = arith.addf %813, %814 : vector<8x16xf32>
    %816 = arith.mulf %803, %815 : vector<8x16xf32>
    %817 = arith.addf %794, %816 : vector<8x16xf32>
    %818 = math.tanh %817 : vector<8x16xf32>
    %cst_393 = arith.constant 1.000000e+00 : f32
    %819 = vector.broadcast %cst_393 : f32 to vector<8x16xf32>
    %820 = arith.subf %819, %812 : vector<8x16xf32>
    %821 = arith.mulf %820, %818 : vector<8x16xf32>
    %822 = arith.mulf %812, %788 : vector<8x16xf32>
    %823 = arith.addf %821, %822 : vector<8x16xf32>
    %824 = arith.index_cast %785 : i32 to index
    %c0_394 = arith.constant 0 : index
    %c0_395 = arith.constant 0 : index
    %825 = vector.load %arg35[%824, %c0_394, %c0_395] : memref<2x8x16xf32, #tpu.memory_space<vmem>>, vector<1x8x16xf32>
    %826 = vector.shape_cast %825 : vector<1x8x16xf32> to vector<8x16xf32>
    %827 = vector.shape_cast %823 : vector<8x16xf32> to vector<1x8x16xf32>
    tpu.vector_store %arg35[%824, %c0_394, %c0_395], %827 {strides = array<i32>} : memref<2x8x16xf32, #tpu.memory_space<vmem>>, vector<1x8x16xf32>,
    %828 = arith.index_cast %775 : i32 to index
    %c0_396 = arith.constant 0 : index
    %829 = vector.load %arg36[%828, %c0_396] : memref<64x16xf32, #tpu.memory_space<vmem>>, vector<8x16xf32>
    tpu.vector_store %arg36[%828, %c0_396], %823 {strides = array<i32>} : memref<64x16xf32, #tpu.memory_space<vmem>>, vector<8x16xf32>,
    %c7_i32_397 = arith.constant 7 : i32
    %c8_i32_398 = arith.constant 8 : i32
    %830 = arith.muli %c7_i32_397, %c8_i32_398 : i32
    %831 = tpu.assume_multiple %830, 8 : i32
    %c2_i32_399 = arith.constant 2 : i32
    %c0_i32_400 = arith.constant 0 : i32
    %832 = arith.cmpi eq, %c2_i32_399, %c0_i32_400 : i32
    %c1_i32_401 = arith.constant 1 : i32
    %833 = arith.select %832, %c1_i32_401, %c2_i32_399 : i32
    %834 = arith.remsi %c7_i32_397, %833 : i32
    %c0_i32_402 = arith.constant 0 : i32
    %835 = arith.cmpi ne, %834, %c0_i32_402 : i32
    %c0_i32_403 = arith.constant 0 : i32
    %836 = arith.cmpi slt, %834, %c0_i32_403 : i32
    %c0_i32_404 = arith.constant 0 : i32
    %837 = arith.cmpi slt, %833, %c0_i32_404 : i32
    %838 = arith.xori %836, %837 : i1
    %839 = arith.andi %838, %835 : i1
    %840 = arith.addi %834, %833 : i32
    %841 = arith.select %839, %840, %834 : i32
    %842 = arith.index_cast %841 : i32 to index
    %c0_405 = arith.constant 0 : index
    %c0_406 = arith.constant 0 : index
    %843 = vector.load %arg35[%842, %c0_405, %c0_406] : memref<2x8x16xf32, #tpu.memory_space<vmem>>, vector<1x8x16xf32>
    %844 = vector.shape_cast %843 : vector<1x8x16xf32> to vector<8x16xf32>
    %845 = arith.index_cast %831 : i32 to index
    %c0_407 = arith.constant 0 : index
    %846 = vector.load %arg37[%845, %c0_407] : memref<64x16xf32, #tpu.memory_space<vmem>>, vector<8x16xf32>
    %847 = arith.index_cast %831 : i32 to index
    %c0_408 = arith.constant 0 : index
    %848 = vector.load %arg38[%847, %c0_408] : memref<64x16xf32, #tpu.memory_space<vmem>>, vector<8x16xf32>
    %849 = arith.index_cast %831 : i32 to index
    %c0_409 = arith.constant 0 : index
    %850 = vector.load %arg39[%849, %c0_409] : memref<64x16xf32, #tpu.memory_space<vmem>>, vector<8x16xf32>
    %cst_410 = arith.constant dense<0.000000e+00> : vector<8x16xf32>
    %851 = tpu.matmul %844, %427, %cst_410 {dimension_numbers = #tpu.dot_dimension_numbers<[1], [0], [0], [1], [0, 0, 1, 1], [], []>} : vector<8x16xf32>, vector<16x16xf32>, vector<8x16xf32> -> vector<8x16xf32>
    %852 = arith.addf %846, %851 : vector<8x16xf32>
    %853 = vector.broadcast %433 : vector<1x16xf32> to vector<8x16xf32>
    %854 = arith.addf %852, %853 : vector<8x16xf32>
    %855 = arith.negf %854 : vector<8x16xf32>
    %856 = math.exp %855 : vector<8x16xf32>
    %cst_411 = arith.constant 1.000000e+00 : f32
    %857 = vector.broadcast %cst_411 : f32 to vector<8x16xf32>
    %858 = arith.addf %857, %856 : vector<8x16xf32>
    %859 = arith.divf %857, %858 : vector<8x16xf32>
    %cst_412 = arith.constant dense<0.000000e+00> : vector<8x16xf32>
    %860 = tpu.matmul %844, %429, %cst_412 {dimension_numbers = #tpu.dot_dimension_numbers<[1], [0], [0], [1], [0, 0, 1, 1], [], []>} : vector<8x16xf32>, vector<16x16xf32>, vector<8x16xf32> -> vector<8x16xf32>
    %861 = arith.addf %848, %860 : vector<8x16xf32>
    %862 = vector.broadcast %435 : vector<1x16xf32> to vector<8x16xf32>
    %863 = arith.addf %861, %862 : vector<8x16xf32>
    %864 = arith.negf %863 : vector<8x16xf32>
    %865 = math.exp %864 : vector<8x16xf32>
    %cst_413 = arith.constant 1.000000e+00 : f32
    %866 = vector.broadcast %cst_413 : f32 to vector<8x16xf32>
    %867 = arith.addf %866, %865 : vector<8x16xf32>
    %868 = arith.divf %866, %867 : vector<8x16xf32>
    %cst_414 = arith.constant dense<0.000000e+00> : vector<8x16xf32>
    %869 = tpu.matmul %844, %431, %cst_414 {dimension_numbers = #tpu.dot_dimension_numbers<[1], [0], [0], [1], [0, 0, 1, 1], [], []>} : vector<8x16xf32>, vector<16x16xf32>, vector<8x16xf32> -> vector<8x16xf32>
    %870 = vector.broadcast %437 : vector<1x16xf32> to vector<8x16xf32>
    %871 = arith.addf %869, %870 : vector<8x16xf32>
    %872 = arith.mulf %859, %871 : vector<8x16xf32>
    %873 = arith.addf %850, %872 : vector<8x16xf32>
    %874 = math.tanh %873 : vector<8x16xf32>
    %cst_415 = arith.constant 1.000000e+00 : f32
    %875 = vector.broadcast %cst_415 : f32 to vector<8x16xf32>
    %876 = arith.subf %875, %868 : vector<8x16xf32>
    %877 = arith.mulf %876, %874 : vector<8x16xf32>
    %878 = arith.mulf %868, %844 : vector<8x16xf32>
    %879 = arith.addf %877, %878 : vector<8x16xf32>
    %880 = arith.index_cast %841 : i32 to index
    %c0_416 = arith.constant 0 : index
    %c0_417 = arith.constant 0 : index
    %881 = vector.load %arg35[%880, %c0_416, %c0_417] : memref<2x8x16xf32, #tpu.memory_space<vmem>>, vector<1x8x16xf32>
    %882 = vector.shape_cast %881 : vector<1x8x16xf32> to vector<8x16xf32>
    %883 = vector.shape_cast %879 : vector<8x16xf32> to vector<1x8x16xf32>
    tpu.vector_store %arg35[%880, %c0_416, %c0_417], %883 {strides = array<i32>} : memref<2x8x16xf32, #tpu.memory_space<vmem>>, vector<1x8x16xf32>,
    %884 = arith.index_cast %831 : i32 to index
    %c0_418 = arith.constant 0 : index
    %885 = vector.load %arg36[%884, %c0_418] : memref<64x16xf32, #tpu.memory_space<vmem>>, vector<8x16xf32>
    tpu.vector_store %arg36[%884, %c0_418], %879 {strides = array<i32>} : memref<64x16xf32, #tpu.memory_space<vmem>>, vector<8x16xf32>,
    %c8_i32_419 = arith.constant 8 : i32
    %c1_420 = arith.constant 1 : index
    %c0_421 = arith.constant 0 : index
    %c0_422 = arith.constant 0 : index
    %886 = vector.load %arg35[%c1_420, %c0_421, %c0_422] : memref<2x8x16xf32, #tpu.memory_space<vmem>>, vector<1x8x16xf32>
    %887 = vector.shape_cast %886 : vector<1x8x16xf32> to vector<8x16xf32>
    %888 = vector.extract_strided_slice %887 {offsets = [0, 0], sizes = [4, 16], strides = [1, 1]} : vector<8x16xf32> to vector<4x16xf32>
    %c0_423 = arith.constant 0 : index
    %c8 = arith.constant 8 : index
    %889 = vector.load %arg49[%c0_423, %c8] : memref<8x80xf32, #tpu.memory_space<vmem>>, vector<4x16xf32>
    tpu.vector_store %arg49[%c0_423, %c8], %888 {strides = array<i32>} : memref<8x80xf32, #tpu.memory_space<vmem>>, vector<4x16xf32>,
    %890 = vector.extract_strided_slice %887 {offsets = [4, 0], sizes = [4, 16], strides = [1, 1]} : vector<8x16xf32> to vector<4x16xf32>
    %c0_424 = arith.constant 0 : index
    %c48 = arith.constant 48 : index
    %891 = vector.load %arg49[%c0_424, %c48] : memref<8x80xf32, #tpu.memory_space<vmem>>, vector<4x16xf32>
    tpu.vector_store %arg49[%c0_424, %c48], %890 {strides = array<i32>} : memref<8x80xf32, #tpu.memory_space<vmem>>, vector<4x16xf32>,
    %c0_425 = arith.constant 0 : index
    %c0_426 = arith.constant 0 : index
    %892 = vector.load %arg36[%c0_425, %c0_426] : memref<64x16xf32, #tpu.memory_space<vmem>>, vector<64x16xf32>
    %c0_427 = arith.constant 0 : index
    %c0_428 = arith.constant 0 : index
    %c0_429 = arith.constant 0 : index
    %893 = vector.load %arg10[%c0_427, %c0_428, %c0_429] : memref<3x16x16xf32, #tpu.memory_space<vmem>>, vector<1x16x16xf32>
    %894 = vector.shape_cast %893 : vector<1x16x16xf32> to vector<16x16xf32>
    %cst_430 = arith.constant dense<0.000000e+00> : vector<64x16xf32>
    %895 = tpu.matmul %892, %894, %cst_430 {dimension_numbers = #tpu.dot_dimension_numbers<[1], [0], [0], [1], [0, 0, 1, 1], [], []>} : vector<64x16xf32>, vector<16x16xf32>, vector<64x16xf32> -> vector<64x16xf32>
    %c0_431 = arith.constant 0 : index
    %c0_432 = arith.constant 0 : index
    %c0_433 = arith.constant 0 : index
    %896 = vector.load %arg12[%c0_431, %c0_432, %c0_433] : memref<3x1x16xf32, #tpu.memory_space<vmem>>, vector<1x1x16xf32>
    %897 = vector.shape_cast %896 : vector<1x1x16xf32> to vector<1x16xf32>
    %898 = vector.broadcast %897 : vector<1x16xf32> to vector<64x16xf32>
    %899 = arith.addf %895, %898 : vector<64x16xf32>
    %c0_434 = arith.constant 0 : index
    %c0_435 = arith.constant 0 : index
    %900 = vector.load %arg42[%c0_434, %c0_435] : memref<64x16xf32, #tpu.memory_space<vmem>>, vector<64x16xf32>
    tpu.vector_store %arg42[%c0_434, %c0_435], %899 {strides = array<i32>} : memref<64x16xf32, #tpu.memory_space<vmem>>, vector<64x16xf32>,
    %c1_436 = arith.constant 1 : index
    %c0_437 = arith.constant 0 : index
    %c0_438 = arith.constant 0 : index
    %901 = vector.load %arg10[%c1_436, %c0_437, %c0_438] : memref<3x16x16xf32, #tpu.memory_space<vmem>>, vector<1x16x16xf32>
    %902 = vector.shape_cast %901 : vector<1x16x16xf32> to vector<16x16xf32>
    %cst_439 = arith.constant dense<0.000000e+00> : vector<64x16xf32>
    %903 = tpu.matmul %892, %902, %cst_439 {dimension_numbers = #tpu.dot_dimension_numbers<[1], [0], [0], [1], [0, 0, 1, 1], [], []>} : vector<64x16xf32>, vector<16x16xf32>, vector<64x16xf32> -> vector<64x16xf32>
    %c1_440 = arith.constant 1 : index
    %c0_441 = arith.constant 0 : index
    %c0_442 = arith.constant 0 : index
    %904 = vector.load %arg12[%c1_440, %c0_441, %c0_442] : memref<3x1x16xf32, #tpu.memory_space<vmem>>, vector<1x1x16xf32>
    %905 = vector.shape_cast %904 : vector<1x1x16xf32> to vector<1x16xf32>
    %906 = vector.broadcast %905 : vector<1x16xf32> to vector<64x16xf32>
    %907 = arith.addf %903, %906 : vector<64x16xf32>
    %c0_443 = arith.constant 0 : index
    %c0_444 = arith.constant 0 : index
    %908 = vector.load %arg43[%c0_443, %c0_444] : memref<64x16xf32, #tpu.memory_space<vmem>>, vector<64x16xf32>
    tpu.vector_store %arg43[%c0_443, %c0_444], %907 {strides = array<i32>} : memref<64x16xf32, #tpu.memory_space<vmem>>, vector<64x16xf32>,
    %c2_445 = arith.constant 2 : index
    %c0_446 = arith.constant 0 : index
    %c0_447 = arith.constant 0 : index
    %909 = vector.load %arg10[%c2_445, %c0_446, %c0_447] : memref<3x16x16xf32, #tpu.memory_space<vmem>>, vector<1x16x16xf32>
    %910 = vector.shape_cast %909 : vector<1x16x16xf32> to vector<16x16xf32>
    %cst_448 = arith.constant dense<0.000000e+00> : vector<64x16xf32>
    %911 = tpu.matmul %892, %910, %cst_448 {dimension_numbers = #tpu.dot_dimension_numbers<[1], [0], [0], [1], [0, 0, 1, 1], [], []>} : vector<64x16xf32>, vector<16x16xf32>, vector<64x16xf32> -> vector<64x16xf32>
    %c2_449 = arith.constant 2 : index
    %c0_450 = arith.constant 0 : index
    %c0_451 = arith.constant 0 : index
    %912 = vector.load %arg12[%c2_449, %c0_450, %c0_451] : memref<3x1x16xf32, #tpu.memory_space<vmem>>, vector<1x1x16xf32>
    %913 = vector.shape_cast %912 : vector<1x1x16xf32> to vector<1x16xf32>
    %914 = vector.broadcast %913 : vector<1x16xf32> to vector<64x16xf32>
    %915 = arith.addf %911, %914 : vector<64x16xf32>
    %c0_452 = arith.constant 0 : index
    %c0_453 = arith.constant 0 : index
    %916 = vector.load %arg44[%c0_452, %c0_453] : memref<64x16xf32, #tpu.memory_space<vmem>>, vector<64x16xf32>
    tpu.vector_store %arg44[%c0_452, %c0_453], %915 {strides = array<i32>} : memref<64x16xf32, #tpu.memory_space<vmem>>, vector<64x16xf32>,
    %cst_454 = arith.constant 0.000000e+00 : f32
    %917 = vector.broadcast %cst_454 : f32 to vector<4x8x16xf32>
    %c0_455 = arith.constant 0 : index
    %c0_456 = arith.constant 0 : index
    %c0_457 = arith.constant 0 : index
    %918 = vector.load %arg40[%c0_455, %c0_456, %c0_457] : memref<4x8x16xf32, #tpu.memory_space<vmem>>, vector<4x8x16xf32>
    tpu.vector_store %arg40[%c0_455, %c0_456, %c0_457], %917 {strides = array<i32>} : memref<4x8x16xf32, #tpu.memory_space<vmem>>, vector<4x8x16xf32>,
    %c0_458 = arith.constant 0 : index
    %c0_459 = arith.constant 0 : index
    %c0_460 = arith.constant 0 : index
    %919 = vector.load %arg11[%c0_458, %c0_459, %c0_460] : memref<3x16x16xf32, #tpu.memory_space<vmem>>, vector<1x16x16xf32>
    %920 = vector.shape_cast %919 : vector<1x16x16xf32> to vector<16x16xf32>
    %c1_461 = arith.constant 1 : index
    %c0_462 = arith.constant 0 : index
    %c0_463 = arith.constant 0 : index
    %921 = vector.load %arg11[%c1_461, %c0_462, %c0_463] : memref<3x16x16xf32, #tpu.memory_space<vmem>>, vector<1x16x16xf32>
    %922 = vector.shape_cast %921 : vector<1x16x16xf32> to vector<16x16xf32>
    %c2_464 = arith.constant 2 : index
    %c0_465 = arith.constant 0 : index
    %c0_466 = arith.constant 0 : index
    %923 = vector.load %arg11[%c2_464, %c0_465, %c0_466] : memref<3x16x16xf32, #tpu.memory_space<vmem>>, vector<1x16x16xf32>
    %924 = vector.shape_cast %923 : vector<1x16x16xf32> to vector<16x16xf32>
    %c0_467 = arith.constant 0 : index
    %c0_468 = arith.constant 0 : index
    %c0_469 = arith.constant 0 : index
    %925 = vector.load %arg13[%c0_467, %c0_468, %c0_469] : memref<3x1x16xf32, #tpu.memory_space<vmem>>, vector<1x1x16xf32>
    %926 = vector.shape_cast %925 : vector<1x1x16xf32> to vector<1x16xf32>
    %c1_470 = arith.constant 1 : index
    %c0_471 = arith.constant 0 : index
    %c0_472 = arith.constant 0 : index
    %927 = vector.load %arg13[%c1_470, %c0_471, %c0_472] : memref<3x1x16xf32, #tpu.memory_space<vmem>>, vector<1x1x16xf32>
    %928 = vector.shape_cast %927 : vector<1x1x16xf32> to vector<1x16xf32>
    %c2_473 = arith.constant 2 : index
    %c0_474 = arith.constant 0 : index
    %c0_475 = arith.constant 0 : index
    %929 = vector.load %arg13[%c2_473, %c0_474, %c0_475] : memref<3x1x16xf32, #tpu.memory_space<vmem>>, vector<1x1x16xf32>
    %930 = vector.shape_cast %929 : vector<1x1x16xf32> to vector<1x16xf32>
    %c0_i32_476 = arith.constant 0 : i32
    %c8_i32_477 = arith.constant 8 : i32
    %931 = arith.muli %c0_i32_476, %c8_i32_477 : i32
    %932 = tpu.assume_multiple %931, 8 : i32
    %c4_i32_478 = arith.constant 4 : i32
    %c0_i32_479 = arith.constant 0 : i32
    %933 = arith.cmpi eq, %c4_i32_478, %c0_i32_479 : i32
    %c1_i32_480 = arith.constant 1 : i32
    %934 = arith.select %933, %c1_i32_480, %c4_i32_478 : i32
    %935 = arith.remsi %c0_i32_476, %934 : i32
    %c0_i32_481 = arith.constant 0 : i32
    %936 = arith.cmpi ne, %935, %c0_i32_481 : i32
    %c0_i32_482 = arith.constant 0 : i32
    %937 = arith.cmpi slt, %935, %c0_i32_482 : i32
    %c0_i32_483 = arith.constant 0 : i32
    %938 = arith.cmpi slt, %934, %c0_i32_483 : i32
    %939 = arith.xori %937, %938 : i1
    %940 = arith.andi %939, %936 : i1
    %941 = arith.addi %935, %934 : i32
    %942 = arith.select %940, %941, %935 : i32
    %943 = arith.index_cast %942 : i32 to index
    %c0_484 = arith.constant 0 : index
    %c0_485 = arith.constant 0 : index
    %944 = vector.load %arg40[%943, %c0_484, %c0_485] : memref<4x8x16xf32, #tpu.memory_space<vmem>>, vector<1x8x16xf32>
    %945 = vector.shape_cast %944 : vector<1x8x16xf32> to vector<8x16xf32>
    %946 = arith.index_cast %932 : i32 to index
    %c0_486 = arith.constant 0 : index
    %947 = vector.load %arg42[%946, %c0_486] : memref<64x16xf32, #tpu.memory_space<vmem>>, vector<8x16xf32>
    %948 = arith.index_cast %932 : i32 to index
    %c0_487 = arith.constant 0 : index
    %949 = vector.load %arg43[%948, %c0_487] : memref<64x16xf32, #tpu.memory_space<vmem>>, vector<8x16xf32>
    %950 = arith.index_cast %932 : i32 to index
    %c0_488 = arith.constant 0 : index
    %951 = vector.load %arg44[%950, %c0_488] : memref<64x16xf32, #tpu.memory_space<vmem>>, vector<8x16xf32>
    %cst_489 = arith.constant dense<0.000000e+00> : vector<8x16xf32>
    %952 = tpu.matmul %945, %920, %cst_489 {dimension_numbers = #tpu.dot_dimension_numbers<[1], [0], [0], [1], [0, 0, 1, 1], [], []>} : vector<8x16xf32>, vector<16x16xf32>, vector<8x16xf32> -> vector<8x16xf32>
    %953 = arith.addf %947, %952 : vector<8x16xf32>
    %954 = vector.broadcast %926 : vector<1x16xf32> to vector<8x16xf32>
    %955 = arith.addf %953, %954 : vector<8x16xf32>
    %956 = arith.negf %955 : vector<8x16xf32>
    %957 = math.exp %956 : vector<8x16xf32>
    %cst_490 = arith.constant 1.000000e+00 : f32
    %958 = vector.broadcast %cst_490 : f32 to vector<8x16xf32>
    %959 = arith.addf %958, %957 : vector<8x16xf32>
    %960 = arith.divf %958, %959 : vector<8x16xf32>
    %cst_491 = arith.constant dense<0.000000e+00> : vector<8x16xf32>
    %961 = tpu.matmul %945, %922, %cst_491 {dimension_numbers = #tpu.dot_dimension_numbers<[1], [0], [0], [1], [0, 0, 1, 1], [], []>} : vector<8x16xf32>, vector<16x16xf32>, vector<8x16xf32> -> vector<8x16xf32>
    %962 = arith.addf %949, %961 : vector<8x16xf32>
    %963 = vector.broadcast %928 : vector<1x16xf32> to vector<8x16xf32>
    %964 = arith.addf %962, %963 : vector<8x16xf32>
    %965 = arith.negf %964 : vector<8x16xf32>
    %966 = math.exp %965 : vector<8x16xf32>
    %cst_492 = arith.constant 1.000000e+00 : f32
    %967 = vector.broadcast %cst_492 : f32 to vector<8x16xf32>
    %968 = arith.addf %967, %966 : vector<8x16xf32>
    %969 = arith.divf %967, %968 : vector<8x16xf32>
    %cst_493 = arith.constant dense<0.000000e+00> : vector<8x16xf32>
    %970 = tpu.matmul %945, %924, %cst_493 {dimension_numbers = #tpu.dot_dimension_numbers<[1], [0], [0], [1], [0, 0, 1, 1], [], []>} : vector<8x16xf32>, vector<16x16xf32>, vector<8x16xf32> -> vector<8x16xf32>
    %971 = vector.broadcast %930 : vector<1x16xf32> to vector<8x16xf32>
    %972 = arith.addf %970, %971 : vector<8x16xf32>
    %973 = arith.mulf %960, %972 : vector<8x16xf32>
    %974 = arith.addf %951, %973 : vector<8x16xf32>
    %975 = math.tanh %974 : vector<8x16xf32>
    %cst_494 = arith.constant 1.000000e+00 : f32
    %976 = vector.broadcast %cst_494 : f32 to vector<8x16xf32>
    %977 = arith.subf %976, %969 : vector<8x16xf32>
    %978 = arith.mulf %977, %975 : vector<8x16xf32>
    %979 = arith.mulf %969, %945 : vector<8x16xf32>
    %980 = arith.addf %978, %979 : vector<8x16xf32>
    %981 = arith.index_cast %942 : i32 to index
    %c0_495 = arith.constant 0 : index
    %c0_496 = arith.constant 0 : index
    %982 = vector.load %arg40[%981, %c0_495, %c0_496] : memref<4x8x16xf32, #tpu.memory_space<vmem>>, vector<1x8x16xf32>
    %983 = vector.shape_cast %982 : vector<1x8x16xf32> to vector<8x16xf32>
    %984 = vector.shape_cast %980 : vector<8x16xf32> to vector<1x8x16xf32>
    tpu.vector_store %arg40[%981, %c0_495, %c0_496], %984 {strides = array<i32>} : memref<4x8x16xf32, #tpu.memory_space<vmem>>, vector<1x8x16xf32>,
    %985 = arith.index_cast %932 : i32 to index
    %c0_497 = arith.constant 0 : index
    %986 = vector.load %arg41[%985, %c0_497] : memref<64x16xf32, #tpu.memory_space<vmem>>, vector<8x16xf32>
    tpu.vector_store %arg41[%985, %c0_497], %980 {strides = array<i32>} : memref<64x16xf32, #tpu.memory_space<vmem>>, vector<8x16xf32>,
    %c1_i32_498 = arith.constant 1 : i32
    %c8_i32_499 = arith.constant 8 : i32
    %987 = arith.muli %c1_i32_498, %c8_i32_499 : i32
    %988 = tpu.assume_multiple %987, 8 : i32
    %c4_i32_500 = arith.constant 4 : i32
    %c0_i32_501 = arith.constant 0 : i32
    %989 = arith.cmpi eq, %c4_i32_500, %c0_i32_501 : i32
    %c1_i32_502 = arith.constant 1 : i32
    %990 = arith.select %989, %c1_i32_502, %c4_i32_500 : i32
    %991 = arith.remsi %c1_i32_498, %990 : i32
    %c0_i32_503 = arith.constant 0 : i32
    %992 = arith.cmpi ne, %991, %c0_i32_503 : i32
    %c0_i32_504 = arith.constant 0 : i32
    %993 = arith.cmpi slt, %991, %c0_i32_504 : i32
    %c0_i32_505 = arith.constant 0 : i32
    %994 = arith.cmpi slt, %990, %c0_i32_505 : i32
    %995 = arith.xori %993, %994 : i1
    %996 = arith.andi %995, %992 : i1
    %997 = arith.addi %991, %990 : i32
    %998 = arith.select %996, %997, %991 : i32
    %999 = arith.index_cast %998 : i32 to index
    %c0_506 = arith.constant 0 : index
    %c0_507 = arith.constant 0 : index
    %1000 = vector.load %arg40[%999, %c0_506, %c0_507] : memref<4x8x16xf32, #tpu.memory_space<vmem>>, vector<1x8x16xf32>
    %1001 = vector.shape_cast %1000 : vector<1x8x16xf32> to vector<8x16xf32>
    %1002 = arith.index_cast %988 : i32 to index
    %c0_508 = arith.constant 0 : index
    %1003 = vector.load %arg42[%1002, %c0_508] : memref<64x16xf32, #tpu.memory_space<vmem>>, vector<8x16xf32>
    %1004 = arith.index_cast %988 : i32 to index
    %c0_509 = arith.constant 0 : index
    %1005 = vector.load %arg43[%1004, %c0_509] : memref<64x16xf32, #tpu.memory_space<vmem>>, vector<8x16xf32>
    %1006 = arith.index_cast %988 : i32 to index
    %c0_510 = arith.constant 0 : index
    %1007 = vector.load %arg44[%1006, %c0_510] : memref<64x16xf32, #tpu.memory_space<vmem>>, vector<8x16xf32>
    %cst_511 = arith.constant dense<0.000000e+00> : vector<8x16xf32>
    %1008 = tpu.matmul %1001, %920, %cst_511 {dimension_numbers = #tpu.dot_dimension_numbers<[1], [0], [0], [1], [0, 0, 1, 1], [], []>} : vector<8x16xf32>, vector<16x16xf32>, vector<8x16xf32> -> vector<8x16xf32>
    %1009 = arith.addf %1003, %1008 : vector<8x16xf32>
    %1010 = vector.broadcast %926 : vector<1x16xf32> to vector<8x16xf32>
    %1011 = arith.addf %1009, %1010 : vector<8x16xf32>
    %1012 = arith.negf %1011 : vector<8x16xf32>
    %1013 = math.exp %1012 : vector<8x16xf32>
    %cst_512 = arith.constant 1.000000e+00 : f32
    %1014 = vector.broadcast %cst_512 : f32 to vector<8x16xf32>
    %1015 = arith.addf %1014, %1013 : vector<8x16xf32>
    %1016 = arith.divf %1014, %1015 : vector<8x16xf32>
    %cst_513 = arith.constant dense<0.000000e+00> : vector<8x16xf32>
    %1017 = tpu.matmul %1001, %922, %cst_513 {dimension_numbers = #tpu.dot_dimension_numbers<[1], [0], [0], [1], [0, 0, 1, 1], [], []>} : vector<8x16xf32>, vector<16x16xf32>, vector<8x16xf32> -> vector<8x16xf32>
    %1018 = arith.addf %1005, %1017 : vector<8x16xf32>
    %1019 = vector.broadcast %928 : vector<1x16xf32> to vector<8x16xf32>
    %1020 = arith.addf %1018, %1019 : vector<8x16xf32>
    %1021 = arith.negf %1020 : vector<8x16xf32>
    %1022 = math.exp %1021 : vector<8x16xf32>
    %cst_514 = arith.constant 1.000000e+00 : f32
    %1023 = vector.broadcast %cst_514 : f32 to vector<8x16xf32>
    %1024 = arith.addf %1023, %1022 : vector<8x16xf32>
    %1025 = arith.divf %1023, %1024 : vector<8x16xf32>
    %cst_515 = arith.constant dense<0.000000e+00> : vector<8x16xf32>
    %1026 = tpu.matmul %1001, %924, %cst_515 {dimension_numbers = #tpu.dot_dimension_numbers<[1], [0], [0], [1], [0, 0, 1, 1], [], []>} : vector<8x16xf32>, vector<16x16xf32>, vector<8x16xf32> -> vector<8x16xf32>
    %1027 = vector.broadcast %930 : vector<1x16xf32> to vector<8x16xf32>
    %1028 = arith.addf %1026, %1027 : vector<8x16xf32>
    %1029 = arith.mulf %1016, %1028 : vector<8x16xf32>
    %1030 = arith.addf %1007, %1029 : vector<8x16xf32>
    %1031 = math.tanh %1030 : vector<8x16xf32>
    %cst_516 = arith.constant 1.000000e+00 : f32
    %1032 = vector.broadcast %cst_516 : f32 to vector<8x16xf32>
    %1033 = arith.subf %1032, %1025 : vector<8x16xf32>
    %1034 = arith.mulf %1033, %1031 : vector<8x16xf32>
    %1035 = arith.mulf %1025, %1001 : vector<8x16xf32>
    %1036 = arith.addf %1034, %1035 : vector<8x16xf32>
    %1037 = arith.index_cast %998 : i32 to index
    %c0_517 = arith.constant 0 : index
    %c0_518 = arith.constant 0 : index
    %1038 = vector.load %arg40[%1037, %c0_517, %c0_518] : memref<4x8x16xf32, #tpu.memory_space<vmem>>, vector<1x8x16xf32>
    %1039 = vector.shape_cast %1038 : vector<1x8x16xf32> to vector<8x16xf32>
    %1040 = vector.shape_cast %1036 : vector<8x16xf32> to vector<1x8x16xf32>
    tpu.vector_store %arg40[%1037, %c0_517, %c0_518], %1040 {strides = array<i32>} : memref<4x8x16xf32, #tpu.memory_space<vmem>>, vector<1x8x16xf32>,
    %1041 = arith.index_cast %988 : i32 to index
    %c0_519 = arith.constant 0 : index
    %1042 = vector.load %arg41[%1041, %c0_519] : memref<64x16xf32, #tpu.memory_space<vmem>>, vector<8x16xf32>
    tpu.vector_store %arg41[%1041, %c0_519], %1036 {strides = array<i32>} : memref<64x16xf32, #tpu.memory_space<vmem>>, vector<8x16xf32>,
    %c2_i32_520 = arith.constant 2 : i32
    %c8_i32_521 = arith.constant 8 : i32
    %1043 = arith.muli %c2_i32_520, %c8_i32_521 : i32
    %1044 = tpu.assume_multiple %1043, 8 : i32
    %c4_i32_522 = arith.constant 4 : i32
    %c0_i32_523 = arith.constant 0 : i32
    %1045 = arith.cmpi eq, %c4_i32_522, %c0_i32_523 : i32
    %c1_i32_524 = arith.constant 1 : i32
    %1046 = arith.select %1045, %c1_i32_524, %c4_i32_522 : i32
    %1047 = arith.remsi %c2_i32_520, %1046 : i32
    %c0_i32_525 = arith.constant 0 : i32
    %1048 = arith.cmpi ne, %1047, %c0_i32_525 : i32
    %c0_i32_526 = arith.constant 0 : i32
    %1049 = arith.cmpi slt, %1047, %c0_i32_526 : i32
    %c0_i32_527 = arith.constant 0 : i32
    %1050 = arith.cmpi slt, %1046, %c0_i32_527 : i32
    %1051 = arith.xori %1049, %1050 : i1
    %1052 = arith.andi %1051, %1048 : i1
    %1053 = arith.addi %1047, %1046 : i32
    %1054 = arith.select %1052, %1053, %1047 : i32
    %1055 = arith.index_cast %1054 : i32 to index
    %c0_528 = arith.constant 0 : index
    %c0_529 = arith.constant 0 : index
    %1056 = vector.load %arg40[%1055, %c0_528, %c0_529] : memref<4x8x16xf32, #tpu.memory_space<vmem>>, vector<1x8x16xf32>
    %1057 = vector.shape_cast %1056 : vector<1x8x16xf32> to vector<8x16xf32>
    %1058 = arith.index_cast %1044 : i32 to index
    %c0_530 = arith.constant 0 : index
    %1059 = vector.load %arg42[%1058, %c0_530] : memref<64x16xf32, #tpu.memory_space<vmem>>, vector<8x16xf32>
    %1060 = arith.index_cast %1044 : i32 to index
    %c0_531 = arith.constant 0 : index
    %1061 = vector.load %arg43[%1060, %c0_531] : memref<64x16xf32, #tpu.memory_space<vmem>>, vector<8x16xf32>
    %1062 = arith.index_cast %1044 : i32 to index
    %c0_532 = arith.constant 0 : index
    %1063 = vector.load %arg44[%1062, %c0_532] : memref<64x16xf32, #tpu.memory_space<vmem>>, vector<8x16xf32>
    %cst_533 = arith.constant dense<0.000000e+00> : vector<8x16xf32>
    %1064 = tpu.matmul %1057, %920, %cst_533 {dimension_numbers = #tpu.dot_dimension_numbers<[1], [0], [0], [1], [0, 0, 1, 1], [], []>} : vector<8x16xf32>, vector<16x16xf32>, vector<8x16xf32> -> vector<8x16xf32>
    %1065 = arith.addf %1059, %1064 : vector<8x16xf32>
    %1066 = vector.broadcast %926 : vector<1x16xf32> to vector<8x16xf32>
    %1067 = arith.addf %1065, %1066 : vector<8x16xf32>
    %1068 = arith.negf %1067 : vector<8x16xf32>
    %1069 = math.exp %1068 : vector<8x16xf32>
    %cst_534 = arith.constant 1.000000e+00 : f32
    %1070 = vector.broadcast %cst_534 : f32 to vector<8x16xf32>
    %1071 = arith.addf %1070, %1069 : vector<8x16xf32>
    %1072 = arith.divf %1070, %1071 : vector<8x16xf32>
    %cst_535 = arith.constant dense<0.000000e+00> : vector<8x16xf32>
    %1073 = tpu.matmul %1057, %922, %cst_535 {dimension_numbers = #tpu.dot_dimension_numbers<[1], [0], [0], [1], [0, 0, 1, 1], [], []>} : vector<8x16xf32>, vector<16x16xf32>, vector<8x16xf32> -> vector<8x16xf32>
    %1074 = arith.addf %1061, %1073 : vector<8x16xf32>
    %1075 = vector.broadcast %928 : vector<1x16xf32> to vector<8x16xf32>
    %1076 = arith.addf %1074, %1075 : vector<8x16xf32>
    %1077 = arith.negf %1076 : vector<8x16xf32>
    %1078 = math.exp %1077 : vector<8x16xf32>
    %cst_536 = arith.constant 1.000000e+00 : f32
    %1079 = vector.broadcast %cst_536 : f32 to vector<8x16xf32>
    %1080 = arith.addf %1079, %1078 : vector<8x16xf32>
    %1081 = arith.divf %1079, %1080 : vector<8x16xf32>
    %cst_537 = arith.constant dense<0.000000e+00> : vector<8x16xf32>
    %1082 = tpu.matmul %1057, %924, %cst_537 {dimension_numbers = #tpu.dot_dimension_numbers<[1], [0], [0], [1], [0, 0, 1, 1], [], []>} : vector<8x16xf32>, vector<16x16xf32>, vector<8x16xf32> -> vector<8x16xf32>
    %1083 = vector.broadcast %930 : vector<1x16xf32> to vector<8x16xf32>
    %1084 = arith.addf %1082, %1083 : vector<8x16xf32>
    %1085 = arith.mulf %1072, %1084 : vector<8x16xf32>
    %1086 = arith.addf %1063, %1085 : vector<8x16xf32>
    %1087 = math.tanh %1086 : vector<8x16xf32>
    %cst_538 = arith.constant 1.000000e+00 : f32
    %1088 = vector.broadcast %cst_538 : f32 to vector<8x16xf32>
    %1089 = arith.subf %1088, %1081 : vector<8x16xf32>
    %1090 = arith.mulf %1089, %1087 : vector<8x16xf32>
    %1091 = arith.mulf %1081, %1057 : vector<8x16xf32>
    %1092 = arith.addf %1090, %1091 : vector<8x16xf32>
    %1093 = arith.index_cast %1054 : i32 to index
    %c0_539 = arith.constant 0 : index
    %c0_540 = arith.constant 0 : index
    %1094 = vector.load %arg40[%1093, %c0_539, %c0_540] : memref<4x8x16xf32, #tpu.memory_space<vmem>>, vector<1x8x16xf32>
    %1095 = vector.shape_cast %1094 : vector<1x8x16xf32> to vector<8x16xf32>
    %1096 = vector.shape_cast %1092 : vector<8x16xf32> to vector<1x8x16xf32>
    tpu.vector_store %arg40[%1093, %c0_539, %c0_540], %1096 {strides = array<i32>} : memref<4x8x16xf32, #tpu.memory_space<vmem>>, vector<1x8x16xf32>,
    %1097 = arith.index_cast %1044 : i32 to index
    %c0_541 = arith.constant 0 : index
    %1098 = vector.load %arg41[%1097, %c0_541] : memref<64x16xf32, #tpu.memory_space<vmem>>, vector<8x16xf32>
    tpu.vector_store %arg41[%1097, %c0_541], %1092 {strides = array<i32>} : memref<64x16xf32, #tpu.memory_space<vmem>>, vector<8x16xf32>,
    %c3_i32_542 = arith.constant 3 : i32
    %c8_i32_543 = arith.constant 8 : i32
    %1099 = arith.muli %c3_i32_542, %c8_i32_543 : i32
    %1100 = tpu.assume_multiple %1099, 8 : i32
    %c4_i32_544 = arith.constant 4 : i32
    %c0_i32_545 = arith.constant 0 : i32
    %1101 = arith.cmpi eq, %c4_i32_544, %c0_i32_545 : i32
    %c1_i32_546 = arith.constant 1 : i32
    %1102 = arith.select %1101, %c1_i32_546, %c4_i32_544 : i32
    %1103 = arith.remsi %c3_i32_542, %1102 : i32
    %c0_i32_547 = arith.constant 0 : i32
    %1104 = arith.cmpi ne, %1103, %c0_i32_547 : i32
    %c0_i32_548 = arith.constant 0 : i32
    %1105 = arith.cmpi slt, %1103, %c0_i32_548 : i32
    %c0_i32_549 = arith.constant 0 : i32
    %1106 = arith.cmpi slt, %1102, %c0_i32_549 : i32
    %1107 = arith.xori %1105, %1106 : i1
    %1108 = arith.andi %1107, %1104 : i1
    %1109 = arith.addi %1103, %1102 : i32
    %1110 = arith.select %1108, %1109, %1103 : i32
    %1111 = arith.index_cast %1110 : i32 to index
    %c0_550 = arith.constant 0 : index
    %c0_551 = arith.constant 0 : index
    %1112 = vector.load %arg40[%1111, %c0_550, %c0_551] : memref<4x8x16xf32, #tpu.memory_space<vmem>>, vector<1x8x16xf32>
    %1113 = vector.shape_cast %1112 : vector<1x8x16xf32> to vector<8x16xf32>
    %1114 = arith.index_cast %1100 : i32 to index
    %c0_552 = arith.constant 0 : index
    %1115 = vector.load %arg42[%1114, %c0_552] : memref<64x16xf32, #tpu.memory_space<vmem>>, vector<8x16xf32>
    %1116 = arith.index_cast %1100 : i32 to index
    %c0_553 = arith.constant 0 : index
    %1117 = vector.load %arg43[%1116, %c0_553] : memref<64x16xf32, #tpu.memory_space<vmem>>, vector<8x16xf32>
    %1118 = arith.index_cast %1100 : i32 to index
    %c0_554 = arith.constant 0 : index
    %1119 = vector.load %arg44[%1118, %c0_554] : memref<64x16xf32, #tpu.memory_space<vmem>>, vector<8x16xf32>
    %cst_555 = arith.constant dense<0.000000e+00> : vector<8x16xf32>
    %1120 = tpu.matmul %1113, %920, %cst_555 {dimension_numbers = #tpu.dot_dimension_numbers<[1], [0], [0], [1], [0, 0, 1, 1], [], []>} : vector<8x16xf32>, vector<16x16xf32>, vector<8x16xf32> -> vector<8x16xf32>
    %1121 = arith.addf %1115, %1120 : vector<8x16xf32>
    %1122 = vector.broadcast %926 : vector<1x16xf32> to vector<8x16xf32>
    %1123 = arith.addf %1121, %1122 : vector<8x16xf32>
    %1124 = arith.negf %1123 : vector<8x16xf32>
    %1125 = math.exp %1124 : vector<8x16xf32>
    %cst_556 = arith.constant 1.000000e+00 : f32
    %1126 = vector.broadcast %cst_556 : f32 to vector<8x16xf32>
    %1127 = arith.addf %1126, %1125 : vector<8x16xf32>
    %1128 = arith.divf %1126, %1127 : vector<8x16xf32>
    %cst_557 = arith.constant dense<0.000000e+00> : vector<8x16xf32>
    %1129 = tpu.matmul %1113, %922, %cst_557 {dimension_numbers = #tpu.dot_dimension_numbers<[1], [0], [0], [1], [0, 0, 1, 1], [], []>} : vector<8x16xf32>, vector<16x16xf32>, vector<8x16xf32> -> vector<8x16xf32>
    %1130 = arith.addf %1117, %1129 : vector<8x16xf32>
    %1131 = vector.broadcast %928 : vector<1x16xf32> to vector<8x16xf32>
    %1132 = arith.addf %1130, %1131 : vector<8x16xf32>
    %1133 = arith.negf %1132 : vector<8x16xf32>
    %1134 = math.exp %1133 : vector<8x16xf32>
    %cst_558 = arith.constant 1.000000e+00 : f32
    %1135 = vector.broadcast %cst_558 : f32 to vector<8x16xf32>
    %1136 = arith.addf %1135, %1134 : vector<8x16xf32>
    %1137 = arith.divf %1135, %1136 : vector<8x16xf32>
    %cst_559 = arith.constant dense<0.000000e+00> : vector<8x16xf32>
    %1138 = tpu.matmul %1113, %924, %cst_559 {dimension_numbers = #tpu.dot_dimension_numbers<[1], [0], [0], [1], [0, 0, 1, 1], [], []>} : vector<8x16xf32>, vector<16x16xf32>, vector<8x16xf32> -> vector<8x16xf32>
    %1139 = vector.broadcast %930 : vector<1x16xf32> to vector<8x16xf32>
    %1140 = arith.addf %1138, %1139 : vector<8x16xf32>
    %1141 = arith.mulf %1128, %1140 : vector<8x16xf32>
    %1142 = arith.addf %1119, %1141 : vector<8x16xf32>
    %1143 = math.tanh %1142 : vector<8x16xf32>
    %cst_560 = arith.constant 1.000000e+00 : f32
    %1144 = vector.broadcast %cst_560 : f32 to vector<8x16xf32>
    %1145 = arith.subf %1144, %1137 : vector<8x16xf32>
    %1146 = arith.mulf %1145, %1143 : vector<8x16xf32>
    %1147 = arith.mulf %1137, %1113 : vector<8x16xf32>
    %1148 = arith.addf %1146, %1147 : vector<8x16xf32>
    %1149 = arith.index_cast %1110 : i32 to index
    %c0_561 = arith.constant 0 : index
    %c0_562 = arith.constant 0 : index
    %1150 = vector.load %arg40[%1149, %c0_561, %c0_562] : memref<4x8x16xf32, #tpu.memory_space<vmem>>, vector<1x8x16xf32>
    %1151 = vector.shape_cast %1150 : vector<1x8x16xf32> to vector<8x16xf32>
    %1152 = vector.shape_cast %1148 : vector<8x16xf32> to vector<1x8x16xf32>
    tpu.vector_store %arg40[%1149, %c0_561, %c0_562], %1152 {strides = array<i32>} : memref<4x8x16xf32, #tpu.memory_space<vmem>>, vector<1x8x16xf32>,
    %1153 = arith.index_cast %1100 : i32 to index
    %c0_563 = arith.constant 0 : index
    %1154 = vector.load %arg41[%1153, %c0_563] : memref<64x16xf32, #tpu.memory_space<vmem>>, vector<8x16xf32>
    tpu.vector_store %arg41[%1153, %c0_563], %1148 {strides = array<i32>} : memref<64x16xf32, #tpu.memory_space<vmem>>, vector<8x16xf32>,
    %c4_i32_564 = arith.constant 4 : i32
    %c8_i32_565 = arith.constant 8 : i32
    %1155 = arith.muli %c4_i32_564, %c8_i32_565 : i32
    %1156 = tpu.assume_multiple %1155, 8 : i32
    %c4_i32_566 = arith.constant 4 : i32
    %c0_i32_567 = arith.constant 0 : i32
    %1157 = arith.cmpi eq, %c4_i32_566, %c0_i32_567 : i32
    %c1_i32_568 = arith.constant 1 : i32
    %1158 = arith.select %1157, %c1_i32_568, %c4_i32_566 : i32
    %1159 = arith.remsi %c4_i32_564, %1158 : i32
    %c0_i32_569 = arith.constant 0 : i32
    %1160 = arith.cmpi ne, %1159, %c0_i32_569 : i32
    %c0_i32_570 = arith.constant 0 : i32
    %1161 = arith.cmpi slt, %1159, %c0_i32_570 : i32
    %c0_i32_571 = arith.constant 0 : i32
    %1162 = arith.cmpi slt, %1158, %c0_i32_571 : i32
    %1163 = arith.xori %1161, %1162 : i1
    %1164 = arith.andi %1163, %1160 : i1
    %1165 = arith.addi %1159, %1158 : i32
    %1166 = arith.select %1164, %1165, %1159 : i32
    %1167 = arith.index_cast %1166 : i32 to index
    %c0_572 = arith.constant 0 : index
    %c0_573 = arith.constant 0 : index
    %1168 = vector.load %arg40[%1167, %c0_572, %c0_573] : memref<4x8x16xf32, #tpu.memory_space<vmem>>, vector<1x8x16xf32>
    %1169 = vector.shape_cast %1168 : vector<1x8x16xf32> to vector<8x16xf32>
    %1170 = arith.index_cast %1156 : i32 to index
    %c0_574 = arith.constant 0 : index
    %1171 = vector.load %arg42[%1170, %c0_574] : memref<64x16xf32, #tpu.memory_space<vmem>>, vector<8x16xf32>
    %1172 = arith.index_cast %1156 : i32 to index
    %c0_575 = arith.constant 0 : index
    %1173 = vector.load %arg43[%1172, %c0_575] : memref<64x16xf32, #tpu.memory_space<vmem>>, vector<8x16xf32>
    %1174 = arith.index_cast %1156 : i32 to index
    %c0_576 = arith.constant 0 : index
    %1175 = vector.load %arg44[%1174, %c0_576] : memref<64x16xf32, #tpu.memory_space<vmem>>, vector<8x16xf32>
    %cst_577 = arith.constant dense<0.000000e+00> : vector<8x16xf32>
    %1176 = tpu.matmul %1169, %920, %cst_577 {dimension_numbers = #tpu.dot_dimension_numbers<[1], [0], [0], [1], [0, 0, 1, 1], [], []>} : vector<8x16xf32>, vector<16x16xf32>, vector<8x16xf32> -> vector<8x16xf32>
    %1177 = arith.addf %1171, %1176 : vector<8x16xf32>
    %1178 = vector.broadcast %926 : vector<1x16xf32> to vector<8x16xf32>
    %1179 = arith.addf %1177, %1178 : vector<8x16xf32>
    %1180 = arith.negf %1179 : vector<8x16xf32>
    %1181 = math.exp %1180 : vector<8x16xf32>
    %cst_578 = arith.constant 1.000000e+00 : f32
    %1182 = vector.broadcast %cst_578 : f32 to vector<8x16xf32>
    %1183 = arith.addf %1182, %1181 : vector<8x16xf32>
    %1184 = arith.divf %1182, %1183 : vector<8x16xf32>
    %cst_579 = arith.constant dense<0.000000e+00> : vector<8x16xf32>
    %1185 = tpu.matmul %1169, %922, %cst_579 {dimension_numbers = #tpu.dot_dimension_numbers<[1], [0], [0], [1], [0, 0, 1, 1], [], []>} : vector<8x16xf32>, vector<16x16xf32>, vector<8x16xf32> -> vector<8x16xf32>
    %1186 = arith.addf %1173, %1185 : vector<8x16xf32>
    %1187 = vector.broadcast %928 : vector<1x16xf32> to vector<8x16xf32>
    %1188 = arith.addf %1186, %1187 : vector<8x16xf32>
    %1189 = arith.negf %1188 : vector<8x16xf32>
    %1190 = math.exp %1189 : vector<8x16xf32>
    %cst_580 = arith.constant 1.000000e+00 : f32
    %1191 = vector.broadcast %cst_580 : f32 to vector<8x16xf32>
    %1192 = arith.addf %1191, %1190 : vector<8x16xf32>
    %1193 = arith.divf %1191, %1192 : vector<8x16xf32>
    %cst_581 = arith.constant dense<0.000000e+00> : vector<8x16xf32>
    %1194 = tpu.matmul %1169, %924, %cst_581 {dimension_numbers = #tpu.dot_dimension_numbers<[1], [0], [0], [1], [0, 0, 1, 1], [], []>} : vector<8x16xf32>, vector<16x16xf32>, vector<8x16xf32> -> vector<8x16xf32>
    %1195 = vector.broadcast %930 : vector<1x16xf32> to vector<8x16xf32>
    %1196 = arith.addf %1194, %1195 : vector<8x16xf32>
    %1197 = arith.mulf %1184, %1196 : vector<8x16xf32>
    %1198 = arith.addf %1175, %1197 : vector<8x16xf32>
    %1199 = math.tanh %1198 : vector<8x16xf32>
    %cst_582 = arith.constant 1.000000e+00 : f32
    %1200 = vector.broadcast %cst_582 : f32 to vector<8x16xf32>
    %1201 = arith.subf %1200, %1193 : vector<8x16xf32>
    %1202 = arith.mulf %1201, %1199 : vector<8x16xf32>
    %1203 = arith.mulf %1193, %1169 : vector<8x16xf32>
    %1204 = arith.addf %1202, %1203 : vector<8x16xf32>
    %1205 = arith.index_cast %1166 : i32 to index
    %c0_583 = arith.constant 0 : index
    %c0_584 = arith.constant 0 : index
    %1206 = vector.load %arg40[%1205, %c0_583, %c0_584] : memref<4x8x16xf32, #tpu.memory_space<vmem>>, vector<1x8x16xf32>
    %1207 = vector.shape_cast %1206 : vector<1x8x16xf32> to vector<8x16xf32>
    %1208 = vector.shape_cast %1204 : vector<8x16xf32> to vector<1x8x16xf32>
    tpu.vector_store %arg40[%1205, %c0_583, %c0_584], %1208 {strides = array<i32>} : memref<4x8x16xf32, #tpu.memory_space<vmem>>, vector<1x8x16xf32>,
    %1209 = arith.index_cast %1156 : i32 to index
    %c0_585 = arith.constant 0 : index
    %1210 = vector.load %arg41[%1209, %c0_585] : memref<64x16xf32, #tpu.memory_space<vmem>>, vector<8x16xf32>
    tpu.vector_store %arg41[%1209, %c0_585], %1204 {strides = array<i32>} : memref<64x16xf32, #tpu.memory_space<vmem>>, vector<8x16xf32>,
    %c5_i32_586 = arith.constant 5 : i32
    %c8_i32_587 = arith.constant 8 : i32
    %1211 = arith.muli %c5_i32_586, %c8_i32_587 : i32
    %1212 = tpu.assume_multiple %1211, 8 : i32
    %c4_i32_588 = arith.constant 4 : i32
    %c0_i32_589 = arith.constant 0 : i32
    %1213 = arith.cmpi eq, %c4_i32_588, %c0_i32_589 : i32
    %c1_i32_590 = arith.constant 1 : i32
    %1214 = arith.select %1213, %c1_i32_590, %c4_i32_588 : i32
    %1215 = arith.remsi %c5_i32_586, %1214 : i32
    %c0_i32_591 = arith.constant 0 : i32
    %1216 = arith.cmpi ne, %1215, %c0_i32_591 : i32
    %c0_i32_592 = arith.constant 0 : i32
    %1217 = arith.cmpi slt, %1215, %c0_i32_592 : i32
    %c0_i32_593 = arith.constant 0 : i32
    %1218 = arith.cmpi slt, %1214, %c0_i32_593 : i32
    %1219 = arith.xori %1217, %1218 : i1
    %1220 = arith.andi %1219, %1216 : i1
    %1221 = arith.addi %1215, %1214 : i32
    %1222 = arith.select %1220, %1221, %1215 : i32
    %1223 = arith.index_cast %1222 : i32 to index
    %c0_594 = arith.constant 0 : index
    %c0_595 = arith.constant 0 : index
    %1224 = vector.load %arg40[%1223, %c0_594, %c0_595] : memref<4x8x16xf32, #tpu.memory_space<vmem>>, vector<1x8x16xf32>
    %1225 = vector.shape_cast %1224 : vector<1x8x16xf32> to vector<8x16xf32>
    %1226 = arith.index_cast %1212 : i32 to index
    %c0_596 = arith.constant 0 : index
    %1227 = vector.load %arg42[%1226, %c0_596] : memref<64x16xf32, #tpu.memory_space<vmem>>, vector<8x16xf32>
    %1228 = arith.index_cast %1212 : i32 to index
    %c0_597 = arith.constant 0 : index
    %1229 = vector.load %arg43[%1228, %c0_597] : memref<64x16xf32, #tpu.memory_space<vmem>>, vector<8x16xf32>
    %1230 = arith.index_cast %1212 : i32 to index
    %c0_598 = arith.constant 0 : index
    %1231 = vector.load %arg44[%1230, %c0_598] : memref<64x16xf32, #tpu.memory_space<vmem>>, vector<8x16xf32>
    %cst_599 = arith.constant dense<0.000000e+00> : vector<8x16xf32>
    %1232 = tpu.matmul %1225, %920, %cst_599 {dimension_numbers = #tpu.dot_dimension_numbers<[1], [0], [0], [1], [0, 0, 1, 1], [], []>} : vector<8x16xf32>, vector<16x16xf32>, vector<8x16xf32> -> vector<8x16xf32>
    %1233 = arith.addf %1227, %1232 : vector<8x16xf32>
    %1234 = vector.broadcast %926 : vector<1x16xf32> to vector<8x16xf32>
    %1235 = arith.addf %1233, %1234 : vector<8x16xf32>
    %1236 = arith.negf %1235 : vector<8x16xf32>
    %1237 = math.exp %1236 : vector<8x16xf32>
    %cst_600 = arith.constant 1.000000e+00 : f32
    %1238 = vector.broadcast %cst_600 : f32 to vector<8x16xf32>
    %1239 = arith.addf %1238, %1237 : vector<8x16xf32>
    %1240 = arith.divf %1238, %1239 : vector<8x16xf32>
    %cst_601 = arith.constant dense<0.000000e+00> : vector<8x16xf32>
    %1241 = tpu.matmul %1225, %922, %cst_601 {dimension_numbers = #tpu.dot_dimension_numbers<[1], [0], [0], [1], [0, 0, 1, 1], [], []>} : vector<8x16xf32>, vector<16x16xf32>, vector<8x16xf32> -> vector<8x16xf32>
    %1242 = arith.addf %1229, %1241 : vector<8x16xf32>
    %1243 = vector.broadcast %928 : vector<1x16xf32> to vector<8x16xf32>
    %1244 = arith.addf %1242, %1243 : vector<8x16xf32>
    %1245 = arith.negf %1244 : vector<8x16xf32>
    %1246 = math.exp %1245 : vector<8x16xf32>
    %cst_602 = arith.constant 1.000000e+00 : f32
    %1247 = vector.broadcast %cst_602 : f32 to vector<8x16xf32>
    %1248 = arith.addf %1247, %1246 : vector<8x16xf32>
    %1249 = arith.divf %1247, %1248 : vector<8x16xf32>
    %cst_603 = arith.constant dense<0.000000e+00> : vector<8x16xf32>
    %1250 = tpu.matmul %1225, %924, %cst_603 {dimension_numbers = #tpu.dot_dimension_numbers<[1], [0], [0], [1], [0, 0, 1, 1], [], []>} : vector<8x16xf32>, vector<16x16xf32>, vector<8x16xf32> -> vector<8x16xf32>
    %1251 = vector.broadcast %930 : vector<1x16xf32> to vector<8x16xf32>
    %1252 = arith.addf %1250, %1251 : vector<8x16xf32>
    %1253 = arith.mulf %1240, %1252 : vector<8x16xf32>
    %1254 = arith.addf %1231, %1253 : vector<8x16xf32>
    %1255 = math.tanh %1254 : vector<8x16xf32>
    %cst_604 = arith.constant 1.000000e+00 : f32
    %1256 = vector.broadcast %cst_604 : f32 to vector<8x16xf32>
    %1257 = arith.subf %1256, %1249 : vector<8x16xf32>
    %1258 = arith.mulf %1257, %1255 : vector<8x16xf32>
    %1259 = arith.mulf %1249, %1225 : vector<8x16xf32>
    %1260 = arith.addf %1258, %1259 : vector<8x16xf32>
    %1261 = arith.index_cast %1222 : i32 to index
    %c0_605 = arith.constant 0 : index
    %c0_606 = arith.constant 0 : index
    %1262 = vector.load %arg40[%1261, %c0_605, %c0_606] : memref<4x8x16xf32, #tpu.memory_space<vmem>>, vector<1x8x16xf32>
    %1263 = vector.shape_cast %1262 : vector<1x8x16xf32> to vector<8x16xf32>
    %1264 = vector.shape_cast %1260 : vector<8x16xf32> to vector<1x8x16xf32>
    tpu.vector_store %arg40[%1261, %c0_605, %c0_606], %1264 {strides = array<i32>} : memref<4x8x16xf32, #tpu.memory_space<vmem>>, vector<1x8x16xf32>,
    %1265 = arith.index_cast %1212 : i32 to index
    %c0_607 = arith.constant 0 : index
    %1266 = vector.load %arg41[%1265, %c0_607] : memref<64x16xf32, #tpu.memory_space<vmem>>, vector<8x16xf32>
    tpu.vector_store %arg41[%1265, %c0_607], %1260 {strides = array<i32>} : memref<64x16xf32, #tpu.memory_space<vmem>>, vector<8x16xf32>,
    %c6_i32_608 = arith.constant 6 : i32
    %c8_i32_609 = arith.constant 8 : i32
    %1267 = arith.muli %c6_i32_608, %c8_i32_609 : i32
    %1268 = tpu.assume_multiple %1267, 8 : i32
    %c4_i32_610 = arith.constant 4 : i32
    %c0_i32_611 = arith.constant 0 : i32
    %1269 = arith.cmpi eq, %c4_i32_610, %c0_i32_611 : i32
    %c1_i32_612 = arith.constant 1 : i32
    %1270 = arith.select %1269, %c1_i32_612, %c4_i32_610 : i32
    %1271 = arith.remsi %c6_i32_608, %1270 : i32
    %c0_i32_613 = arith.constant 0 : i32
    %1272 = arith.cmpi ne, %1271, %c0_i32_613 : i32
    %c0_i32_614 = arith.constant 0 : i32
    %1273 = arith.cmpi slt, %1271, %c0_i32_614 : i32
    %c0_i32_615 = arith.constant 0 : i32
    %1274 = arith.cmpi slt, %1270, %c0_i32_615 : i32
    %1275 = arith.xori %1273, %1274 : i1
    %1276 = arith.andi %1275, %1272 : i1
    %1277 = arith.addi %1271, %1270 : i32
    %1278 = arith.select %1276, %1277, %1271 : i32
    %1279 = arith.index_cast %1278 : i32 to index
    %c0_616 = arith.constant 0 : index
    %c0_617 = arith.constant 0 : index
    %1280 = vector.load %arg40[%1279, %c0_616, %c0_617] : memref<4x8x16xf32, #tpu.memory_space<vmem>>, vector<1x8x16xf32>
    %1281 = vector.shape_cast %1280 : vector<1x8x16xf32> to vector<8x16xf32>
    %1282 = arith.index_cast %1268 : i32 to index
    %c0_618 = arith.constant 0 : index
    %1283 = vector.load %arg42[%1282, %c0_618] : memref<64x16xf32, #tpu.memory_space<vmem>>, vector<8x16xf32>
    %1284 = arith.index_cast %1268 : i32 to index
    %c0_619 = arith.constant 0 : index
    %1285 = vector.load %arg43[%1284, %c0_619] : memref<64x16xf32, #tpu.memory_space<vmem>>, vector<8x16xf32>
    %1286 = arith.index_cast %1268 : i32 to index
    %c0_620 = arith.constant 0 : index
    %1287 = vector.load %arg44[%1286, %c0_620] : memref<64x16xf32, #tpu.memory_space<vmem>>, vector<8x16xf32>
    %cst_621 = arith.constant dense<0.000000e+00> : vector<8x16xf32>
    %1288 = tpu.matmul %1281, %920, %cst_621 {dimension_numbers = #tpu.dot_dimension_numbers<[1], [0], [0], [1], [0, 0, 1, 1], [], []>} : vector<8x16xf32>, vector<16x16xf32>, vector<8x16xf32> -> vector<8x16xf32>
    %1289 = arith.addf %1283, %1288 : vector<8x16xf32>
    %1290 = vector.broadcast %926 : vector<1x16xf32> to vector<8x16xf32>
    %1291 = arith.addf %1289, %1290 : vector<8x16xf32>
    %1292 = arith.negf %1291 : vector<8x16xf32>
    %1293 = math.exp %1292 : vector<8x16xf32>
    %cst_622 = arith.constant 1.000000e+00 : f32
    %1294 = vector.broadcast %cst_622 : f32 to vector<8x16xf32>
    %1295 = arith.addf %1294, %1293 : vector<8x16xf32>
    %1296 = arith.divf %1294, %1295 : vector<8x16xf32>
    %cst_623 = arith.constant dense<0.000000e+00> : vector<8x16xf32>
    %1297 = tpu.matmul %1281, %922, %cst_623 {dimension_numbers = #tpu.dot_dimension_numbers<[1], [0], [0], [1], [0, 0, 1, 1], [], []>} : vector<8x16xf32>, vector<16x16xf32>, vector<8x16xf32> -> vector<8x16xf32>
    %1298 = arith.addf %1285, %1297 : vector<8x16xf32>
    %1299 = vector.broadcast %928 : vector<1x16xf32> to vector<8x16xf32>
    %1300 = arith.addf %1298, %1299 : vector<8x16xf32>
    %1301 = arith.negf %1300 : vector<8x16xf32>
    %1302 = math.exp %1301 : vector<8x16xf32>
    %cst_624 = arith.constant 1.000000e+00 : f32
    %1303 = vector.broadcast %cst_624 : f32 to vector<8x16xf32>
    %1304 = arith.addf %1303, %1302 : vector<8x16xf32>
    %1305 = arith.divf %1303, %1304 : vector<8x16xf32>
    %cst_625 = arith.constant dense<0.000000e+00> : vector<8x16xf32>
    %1306 = tpu.matmul %1281, %924, %cst_625 {dimension_numbers = #tpu.dot_dimension_numbers<[1], [0], [0], [1], [0, 0, 1, 1], [], []>} : vector<8x16xf32>, vector<16x16xf32>, vector<8x16xf32> -> vector<8x16xf32>
    %1307 = vector.broadcast %930 : vector<1x16xf32> to vector<8x16xf32>
    %1308 = arith.addf %1306, %1307 : vector<8x16xf32>
    %1309 = arith.mulf %1296, %1308 : vector<8x16xf32>
    %1310 = arith.addf %1287, %1309 : vector<8x16xf32>
    %1311 = math.tanh %1310 : vector<8x16xf32>
    %cst_626 = arith.constant 1.000000e+00 : f32
    %1312 = vector.broadcast %cst_626 : f32 to vector<8x16xf32>
    %1313 = arith.subf %1312, %1305 : vector<8x16xf32>
    %1314 = arith.mulf %1313, %1311 : vector<8x16xf32>
    %1315 = arith.mulf %1305, %1281 : vector<8x16xf32>
    %1316 = arith.addf %1314, %1315 : vector<8x16xf32>
    %1317 = arith.index_cast %1278 : i32 to index
    %c0_627 = arith.constant 0 : index
    %c0_628 = arith.constant 0 : index
    %1318 = vector.load %arg40[%1317, %c0_627, %c0_628] : memref<4x8x16xf32, #tpu.memory_space<vmem>>, vector<1x8x16xf32>
    %1319 = vector.shape_cast %1318 : vector<1x8x16xf32> to vector<8x16xf32>
    %1320 = vector.shape_cast %1316 : vector<8x16xf32> to vector<1x8x16xf32>
    tpu.vector_store %arg40[%1317, %c0_627, %c0_628], %1320 {strides = array<i32>} : memref<4x8x16xf32, #tpu.memory_space<vmem>>, vector<1x8x16xf32>,
    %1321 = arith.index_cast %1268 : i32 to index
    %c0_629 = arith.constant 0 : index
    %1322 = vector.load %arg41[%1321, %c0_629] : memref<64x16xf32, #tpu.memory_space<vmem>>, vector<8x16xf32>
    tpu.vector_store %arg41[%1321, %c0_629], %1316 {strides = array<i32>} : memref<64x16xf32, #tpu.memory_space<vmem>>, vector<8x16xf32>,
    %c7_i32_630 = arith.constant 7 : i32
    %c8_i32_631 = arith.constant 8 : i32
    %1323 = arith.muli %c7_i32_630, %c8_i32_631 : i32
    %1324 = tpu.assume_multiple %1323, 8 : i32
    %c4_i32_632 = arith.constant 4 : i32
    %c0_i32_633 = arith.constant 0 : i32
    %1325 = arith.cmpi eq, %c4_i32_632, %c0_i32_633 : i32
    %c1_i32_634 = arith.constant 1 : i32
    %1326 = arith.select %1325, %c1_i32_634, %c4_i32_632 : i32
    %1327 = arith.remsi %c7_i32_630, %1326 : i32
    %c0_i32_635 = arith.constant 0 : i32
    %1328 = arith.cmpi ne, %1327, %c0_i32_635 : i32
    %c0_i32_636 = arith.constant 0 : i32
    %1329 = arith.cmpi slt, %1327, %c0_i32_636 : i32
    %c0_i32_637 = arith.constant 0 : i32
    %1330 = arith.cmpi slt, %1326, %c0_i32_637 : i32
    %1331 = arith.xori %1329, %1330 : i1
    %1332 = arith.andi %1331, %1328 : i1
    %1333 = arith.addi %1327, %1326 : i32
    %1334 = arith.select %1332, %1333, %1327 : i32
    %1335 = arith.index_cast %1334 : i32 to index
    %c0_638 = arith.constant 0 : index
    %c0_639 = arith.constant 0 : index
    %1336 = vector.load %arg40[%1335, %c0_638, %c0_639] : memref<4x8x16xf32, #tpu.memory_space<vmem>>, vector<1x8x16xf32>
    %1337 = vector.shape_cast %1336 : vector<1x8x16xf32> to vector<8x16xf32>
    %1338 = arith.index_cast %1324 : i32 to index
    %c0_640 = arith.constant 0 : index
    %1339 = vector.load %arg42[%1338, %c0_640] : memref<64x16xf32, #tpu.memory_space<vmem>>, vector<8x16xf32>
    %1340 = arith.index_cast %1324 : i32 to index
    %c0_641 = arith.constant 0 : index
    %1341 = vector.load %arg43[%1340, %c0_641] : memref<64x16xf32, #tpu.memory_space<vmem>>, vector<8x16xf32>
    %1342 = arith.index_cast %1324 : i32 to index
    %c0_642 = arith.constant 0 : index
    %1343 = vector.load %arg44[%1342, %c0_642] : memref<64x16xf32, #tpu.memory_space<vmem>>, vector<8x16xf32>
    %cst_643 = arith.constant dense<0.000000e+00> : vector<8x16xf32>
    %1344 = tpu.matmul %1337, %920, %cst_643 {dimension_numbers = #tpu.dot_dimension_numbers<[1], [0], [0], [1], [0, 0, 1, 1], [], []>} : vector<8x16xf32>, vector<16x16xf32>, vector<8x16xf32> -> vector<8x16xf32>
    %1345 = arith.addf %1339, %1344 : vector<8x16xf32>
    %1346 = vector.broadcast %926 : vector<1x16xf32> to vector<8x16xf32>
    %1347 = arith.addf %1345, %1346 : vector<8x16xf32>
    %1348 = arith.negf %1347 : vector<8x16xf32>
    %1349 = math.exp %1348 : vector<8x16xf32>
    %cst_644 = arith.constant 1.000000e+00 : f32
    %1350 = vector.broadcast %cst_644 : f32 to vector<8x16xf32>
    %1351 = arith.addf %1350, %1349 : vector<8x16xf32>
    %1352 = arith.divf %1350, %1351 : vector<8x16xf32>
    %cst_645 = arith.constant dense<0.000000e+00> : vector<8x16xf32>
    %1353 = tpu.matmul %1337, %922, %cst_645 {dimension_numbers = #tpu.dot_dimension_numbers<[1], [0], [0], [1], [0, 0, 1, 1], [], []>} : vector<8x16xf32>, vector<16x16xf32>, vector<8x16xf32> -> vector<8x16xf32>
    %1354 = arith.addf %1341, %1353 : vector<8x16xf32>
    %1355 = vector.broadcast %928 : vector<1x16xf32> to vector<8x16xf32>
    %1356 = arith.addf %1354, %1355 : vector<8x16xf32>
    %1357 = arith.negf %1356 : vector<8x16xf32>
    %1358 = math.exp %1357 : vector<8x16xf32>
    %cst_646 = arith.constant 1.000000e+00 : f32
    %1359 = vector.broadcast %cst_646 : f32 to vector<8x16xf32>
    %1360 = arith.addf %1359, %1358 : vector<8x16xf32>
    %1361 = arith.divf %1359, %1360 : vector<8x16xf32>
    %cst_647 = arith.constant dense<0.000000e+00> : vector<8x16xf32>
    %1362 = tpu.matmul %1337, %924, %cst_647 {dimension_numbers = #tpu.dot_dimension_numbers<[1], [0], [0], [1], [0, 0, 1, 1], [], []>} : vector<8x16xf32>, vector<16x16xf32>, vector<8x16xf32> -> vector<8x16xf32>
    %1363 = vector.broadcast %930 : vector<1x16xf32> to vector<8x16xf32>
    %1364 = arith.addf %1362, %1363 : vector<8x16xf32>
    %1365 = arith.mulf %1352, %1364 : vector<8x16xf32>
    %1366 = arith.addf %1343, %1365 : vector<8x16xf32>
    %1367 = math.tanh %1366 : vector<8x16xf32>
    %cst_648 = arith.constant 1.000000e+00 : f32
    %1368 = vector.broadcast %cst_648 : f32 to vector<8x16xf32>
    %1369 = arith.subf %1368, %1361 : vector<8x16xf32>
    %1370 = arith.mulf %1369, %1367 : vector<8x16xf32>
    %1371 = arith.mulf %1361, %1337 : vector<8x16xf32>
    %1372 = arith.addf %1370, %1371 : vector<8x16xf32>
    %1373 = arith.index_cast %1334 : i32 to index
    %c0_649 = arith.constant 0 : index
    %c0_650 = arith.constant 0 : index
    %1374 = vector.load %arg40[%1373, %c0_649, %c0_650] : memref<4x8x16xf32, #tpu.memory_space<vmem>>, vector<1x8x16xf32>
    %1375 = vector.shape_cast %1374 : vector<1x8x16xf32> to vector<8x16xf32>
    %1376 = vector.shape_cast %1372 : vector<8x16xf32> to vector<1x8x16xf32>
    tpu.vector_store %arg40[%1373, %c0_649, %c0_650], %1376 {strides = array<i32>} : memref<4x8x16xf32, #tpu.memory_space<vmem>>, vector<1x8x16xf32>,
    %1377 = arith.index_cast %1324 : i32 to index
    %c0_651 = arith.constant 0 : index
    %1378 = vector.load %arg41[%1377, %c0_651] : memref<64x16xf32, #tpu.memory_space<vmem>>, vector<8x16xf32>
    tpu.vector_store %arg41[%1377, %c0_651], %1372 {strides = array<i32>} : memref<64x16xf32, #tpu.memory_space<vmem>>, vector<8x16xf32>,
    %c8_i32_652 = arith.constant 8 : i32
    %c3 = arith.constant 3 : index
    %c0_653 = arith.constant 0 : index
    %c0_654 = arith.constant 0 : index
    %1379 = vector.load %arg40[%c3, %c0_653, %c0_654] : memref<4x8x16xf32, #tpu.memory_space<vmem>>, vector<1x8x16xf32>
    %1380 = vector.shape_cast %1379 : vector<1x8x16xf32> to vector<8x16xf32>
    %1381 = vector.extract_strided_slice %1380 {offsets = [0, 0], sizes = [4, 16], strides = [1, 1]} : vector<8x16xf32> to vector<4x16xf32>
    %c0_655 = arith.constant 0 : index
    %c24 = arith.constant 24 : index
    %1382 = vector.load %arg49[%c0_655, %c24] : memref<8x80xf32, #tpu.memory_space<vmem>>, vector<4x16xf32>
    tpu.vector_store %arg49[%c0_655, %c24], %1381 {strides = array<i32>} : memref<8x80xf32, #tpu.memory_space<vmem>>, vector<4x16xf32>,
    %1383 = vector.extract_strided_slice %1380 {offsets = [4, 0], sizes = [4, 16], strides = [1, 1]} : vector<8x16xf32> to vector<4x16xf32>
    %c0_656 = arith.constant 0 : index
    %c64 = arith.constant 64 : index
    %1384 = vector.load %arg49[%c0_656, %c64] : memref<8x80xf32, #tpu.memory_space<vmem>>, vector<4x16xf32>
    tpu.vector_store %arg49[%c0_656, %c64], %1383 {strides = array<i32>} : memref<8x80xf32, #tpu.memory_space<vmem>>, vector<4x16xf32>,
    %c0_657 = arith.constant 0 : index
    %c0_658 = arith.constant 0 : index
    %1385 = vector.load %arg49[%c0_657, %c0_658] : memref<8x80xf32, #tpu.memory_space<vmem>>, vector<8x80xf32>
    %c0_659 = arith.constant 0 : index
    %c0_660 = arith.constant 0 : index
    %1386 = vector.load %arg26[%c0_659, %c0_660] : memref<8x80xf32, #tpu.memory_space<vmem>>, vector<8x80xf32>
    tpu.vector_store %arg26[%c0_659, %c0_660], %1385 {strides = array<i32>} : memref<8x80xf32, #tpu.memory_space<vmem>>, vector<8x80xf32>,
    %c0_661 = arith.constant 0 : index
    %c0_662 = arith.constant 0 : index
    %c0_663 = arith.constant 0 : index
    %1387 = vector.load %arg14[%c0_661, %c0_662, %c0_663] : memref<3x4x80xf32, #tpu.memory_space<vmem>>, vector<1x4x80xf32>
    %1388 = vector.shape_cast %1387 : vector<1x4x80xf32> to vector<4x80xf32>
    %c1_664 = arith.constant 1 : index
    %c0_665 = arith.constant 0 : index
    %c0_666 = arith.constant 0 : index
    %1389 = vector.load %arg14[%c1_664, %c0_665, %c0_666] : memref<3x4x80xf32, #tpu.memory_space<vmem>>, vector<1x4x80xf32>
    %1390 = vector.shape_cast %1389 : vector<1x4x80xf32> to vector<4x80xf32>
    %c2_667 = arith.constant 2 : index
    %c0_668 = arith.constant 0 : index
    %c0_669 = arith.constant 0 : index
    %1391 = vector.load %arg14[%c2_667, %c0_668, %c0_669] : memref<3x4x80xf32, #tpu.memory_space<vmem>>, vector<1x4x80xf32>
    %1392 = vector.shape_cast %1391 : vector<1x4x80xf32> to vector<4x80xf32>
    %c0_670 = arith.constant 0 : index
    %c0_671 = arith.constant 0 : index
    %c0_672 = arith.constant 0 : index
    %1393 = vector.load %arg16[%c0_670, %c0_671, %c0_672] : memref<3x1x80xf32, #tpu.memory_space<vmem>>, vector<1x1x80xf32>
    %1394 = vector.shape_cast %1393 : vector<1x1x80xf32> to vector<1x80xf32>
    %c1_673 = arith.constant 1 : index
    %c0_674 = arith.constant 0 : index
    %c0_675 = arith.constant 0 : index
    %1395 = vector.load %arg16[%c1_673, %c0_674, %c0_675] : memref<3x1x80xf32, #tpu.memory_space<vmem>>, vector<1x1x80xf32>
    %1396 = vector.shape_cast %1395 : vector<1x1x80xf32> to vector<1x80xf32>
    %c2_676 = arith.constant 2 : index
    %c0_677 = arith.constant 0 : index
    %c0_678 = arith.constant 0 : index
    %1397 = vector.load %arg16[%c2_676, %c0_677, %c0_678] : memref<3x1x80xf32, #tpu.memory_space<vmem>>, vector<1x1x80xf32>
    %1398 = vector.shape_cast %1397 : vector<1x1x80xf32> to vector<1x80xf32>
    %c0_679 = arith.constant 0 : index
    %c0_680 = arith.constant 0 : index
    %c0_681 = arith.constant 0 : index
    %1399 = vector.load %arg15[%c0_679, %c0_680, %c0_681] : memref<3x80x80xf32, #tpu.memory_space<vmem>>, vector<1x80x80xf32>
    %1400 = vector.shape_cast %1399 : vector<1x80x80xf32> to vector<80x80xf32>
    %c1_682 = arith.constant 1 : index
    %c0_683 = arith.constant 0 : index
    %c0_684 = arith.constant 0 : index
    %1401 = vector.load %arg15[%c1_682, %c0_683, %c0_684] : memref<3x80x80xf32, #tpu.memory_space<vmem>>, vector<1x80x80xf32>
    %1402 = vector.shape_cast %1401 : vector<1x80x80xf32> to vector<80x80xf32>
    %c2_685 = arith.constant 2 : index
    %c0_686 = arith.constant 0 : index
    %c0_687 = arith.constant 0 : index
    %1403 = vector.load %arg15[%c2_685, %c0_686, %c0_687] : memref<3x80x80xf32, #tpu.memory_space<vmem>>, vector<1x80x80xf32>
    %1404 = vector.shape_cast %1403 : vector<1x80x80xf32> to vector<80x80xf32>
    %c0_688 = arith.constant 0 : index
    %c0_689 = arith.constant 0 : index
    %c0_690 = arith.constant 0 : index
    %1405 = vector.load %arg17[%c0_688, %c0_689, %c0_690] : memref<3x1x80xf32, #tpu.memory_space<vmem>>, vector<1x1x80xf32>
    %1406 = vector.shape_cast %1405 : vector<1x1x80xf32> to vector<1x80xf32>
    %c1_691 = arith.constant 1 : index
    %c0_692 = arith.constant 0 : index
    %c0_693 = arith.constant 0 : index
    %1407 = vector.load %arg17[%c1_691, %c0_692, %c0_693] : memref<3x1x80xf32, #tpu.memory_space<vmem>>, vector<1x1x80xf32>
    %1408 = vector.shape_cast %1407 : vector<1x1x80xf32> to vector<1x80xf32>
    %c2_694 = arith.constant 2 : index
    %c0_695 = arith.constant 0 : index
    %c0_696 = arith.constant 0 : index
    %1409 = vector.load %arg17[%c2_694, %c0_695, %c0_696] : memref<3x1x80xf32, #tpu.memory_space<vmem>>, vector<1x1x80xf32>
    %1410 = vector.shape_cast %1409 : vector<1x1x80xf32> to vector<1x80xf32>
    %c0_697 = arith.constant 0 : index
    %c0_698 = arith.constant 0 : index
    %1411 = vector.load %arg49[%c0_697, %c0_698] : memref<8x80xf32, #tpu.memory_space<vmem>>, vector<8x80xf32>
    %c0_699 = arith.constant 0 : index
    %c0_700 = arith.constant 0 : index
    %1412 = vector.load %arg1[%c0_699, %c0_700] : memref<64x4xf32, #tpu.memory_space<vmem>>, vector<64x4xf32>
    %cst_701 = arith.constant dense<0.000000e+00> : vector<64x80xf32>
    %1413 = tpu.matmul %1412, %1388, %cst_701 {dimension_numbers = #tpu.dot_dimension_numbers<[1], [0], [0], [1], [0, 0, 1, 1], [], []>} : vector<64x4xf32>, vector<4x80xf32>, vector<64x80xf32> -> vector<64x80xf32>
    %1414 = vector.broadcast %1394 : vector<1x80xf32> to vector<64x80xf32>
    %1415 = arith.addf %1413, %1414 : vector<64x80xf32>
    %c0_702 = arith.constant 0 : index
    %c0_703 = arith.constant 0 : index
    %1416 = vector.load %arg46[%c0_702, %c0_703] : memref<64x80xf32, #tpu.memory_space<vmem>>, vector<64x80xf32>
    tpu.vector_store %arg46[%c0_702, %c0_703], %1415 {strides = array<i32>} : memref<64x80xf32, #tpu.memory_space<vmem>>, vector<64x80xf32>,
    %cst_704 = arith.constant dense<0.000000e+00> : vector<64x80xf32>
    %1417 = tpu.matmul %1412, %1390, %cst_704 {dimension_numbers = #tpu.dot_dimension_numbers<[1], [0], [0], [1], [0, 0, 1, 1], [], []>} : vector<64x4xf32>, vector<4x80xf32>, vector<64x80xf32> -> vector<64x80xf32>
    %1418 = vector.broadcast %1396 : vector<1x80xf32> to vector<64x80xf32>
    %1419 = arith.addf %1417, %1418 : vector<64x80xf32>
    %c0_705 = arith.constant 0 : index
    %c0_706 = arith.constant 0 : index
    %1420 = vector.load %arg47[%c0_705, %c0_706] : memref<64x80xf32, #tpu.memory_space<vmem>>, vector<64x80xf32>
    tpu.vector_store %arg47[%c0_705, %c0_706], %1419 {strides = array<i32>} : memref<64x80xf32, #tpu.memory_space<vmem>>, vector<64x80xf32>,
    %cst_707 = arith.constant dense<0.000000e+00> : vector<64x80xf32>
    %1421 = tpu.matmul %1412, %1392, %cst_707 {dimension_numbers = #tpu.dot_dimension_numbers<[1], [0], [0], [1], [0, 0, 1, 1], [], []>} : vector<64x4xf32>, vector<4x80xf32>, vector<64x80xf32> -> vector<64x80xf32>
    %1422 = vector.broadcast %1398 : vector<1x80xf32> to vector<64x80xf32>
    %1423 = arith.addf %1421, %1422 : vector<64x80xf32>
    %c0_708 = arith.constant 0 : index
    %c0_709 = arith.constant 0 : index
    %1424 = vector.load %arg48[%c0_708, %c0_709] : memref<64x80xf32, #tpu.memory_space<vmem>>, vector<64x80xf32>
    tpu.vector_store %arg48[%c0_708, %c0_709], %1423 {strides = array<i32>} : memref<64x80xf32, #tpu.memory_space<vmem>>, vector<64x80xf32>,
    %c0_i32_710 = arith.constant 0 : i32
    %c8_i32_711 = arith.constant 8 : i32
    %1425 = arith.muli %c0_i32_710, %c8_i32_711 : i32
    %1426 = tpu.assume_multiple %1425, 8 : i32
    %1427 = arith.index_cast %1426 : i32 to index
    %c0_712 = arith.constant 0 : index
    %1428 = vector.load %arg46[%1427, %c0_712] : memref<64x80xf32, #tpu.memory_space<vmem>>, vector<8x80xf32>
    %1429 = arith.index_cast %1426 : i32 to index
    %c0_713 = arith.constant 0 : index
    %1430 = vector.load %arg47[%1429, %c0_713] : memref<64x80xf32, #tpu.memory_space<vmem>>, vector<8x80xf32>
    %1431 = arith.index_cast %1426 : i32 to index
    %c0_714 = arith.constant 0 : index
    %1432 = vector.load %arg48[%1431, %c0_714] : memref<64x80xf32, #tpu.memory_space<vmem>>, vector<8x80xf32>
    %cst_715 = arith.constant dense<0.000000e+00> : vector<8x80xf32>
    %1433 = tpu.matmul %1411, %1400, %cst_715 {dimension_numbers = #tpu.dot_dimension_numbers<[1], [0], [0], [1], [0, 0, 1, 1], [], []>} : vector<8x80xf32>, vector<80x80xf32>, vector<8x80xf32> -> vector<8x80xf32>
    %1434 = arith.addf %1428, %1433 : vector<8x80xf32>
    %1435 = vector.broadcast %1406 : vector<1x80xf32> to vector<8x80xf32>
    %1436 = arith.addf %1434, %1435 : vector<8x80xf32>
    %1437 = arith.negf %1436 : vector<8x80xf32>
    %1438 = math.exp %1437 : vector<8x80xf32>
    %cst_716 = arith.constant 1.000000e+00 : f32
    %1439 = vector.broadcast %cst_716 : f32 to vector<8x80xf32>
    %1440 = arith.addf %1439, %1438 : vector<8x80xf32>
    %1441 = arith.divf %1439, %1440 : vector<8x80xf32>
    %cst_717 = arith.constant dense<0.000000e+00> : vector<8x80xf32>
    %1442 = tpu.matmul %1411, %1402, %cst_717 {dimension_numbers = #tpu.dot_dimension_numbers<[1], [0], [0], [1], [0, 0, 1, 1], [], []>} : vector<8x80xf32>, vector<80x80xf32>, vector<8x80xf32> -> vector<8x80xf32>
    %1443 = arith.addf %1430, %1442 : vector<8x80xf32>
    %1444 = vector.broadcast %1408 : vector<1x80xf32> to vector<8x80xf32>
    %1445 = arith.addf %1443, %1444 : vector<8x80xf32>
    %1446 = arith.negf %1445 : vector<8x80xf32>
    %1447 = math.exp %1446 : vector<8x80xf32>
    %cst_718 = arith.constant 1.000000e+00 : f32
    %1448 = vector.broadcast %cst_718 : f32 to vector<8x80xf32>
    %1449 = arith.addf %1448, %1447 : vector<8x80xf32>
    %1450 = arith.divf %1448, %1449 : vector<8x80xf32>
    %cst_719 = arith.constant dense<0.000000e+00> : vector<8x80xf32>
    %1451 = tpu.matmul %1411, %1404, %cst_719 {dimension_numbers = #tpu.dot_dimension_numbers<[1], [0], [0], [1], [0, 0, 1, 1], [], []>} : vector<8x80xf32>, vector<80x80xf32>, vector<8x80xf32> -> vector<8x80xf32>
    %1452 = vector.broadcast %1410 : vector<1x80xf32> to vector<8x80xf32>
    %1453 = arith.addf %1451, %1452 : vector<8x80xf32>
    %1454 = arith.mulf %1441, %1453 : vector<8x80xf32>
    %1455 = arith.addf %1432, %1454 : vector<8x80xf32>
    %1456 = math.tanh %1455 : vector<8x80xf32>
    %cst_720 = arith.constant 1.000000e+00 : f32
    %1457 = vector.broadcast %cst_720 : f32 to vector<8x80xf32>
    %1458 = arith.subf %1457, %1450 : vector<8x80xf32>
    %1459 = arith.mulf %1458, %1456 : vector<8x80xf32>
    %1460 = arith.mulf %1450, %1411 : vector<8x80xf32>
    %1461 = arith.addf %1459, %1460 : vector<8x80xf32>
    %1462 = arith.index_cast %1426 : i32 to index
    %c0_721 = arith.constant 0 : index
    %1463 = vector.load %arg45[%1462, %c0_721] : memref<64x80xf32, #tpu.memory_space<vmem>>, vector<8x80xf32>
    tpu.vector_store %arg45[%1462, %c0_721], %1461 {strides = array<i32>} : memref<64x80xf32, #tpu.memory_space<vmem>>, vector<8x80xf32>,
    %c1_i32_722 = arith.constant 1 : i32
    %c8_i32_723 = arith.constant 8 : i32
    %1464 = arith.muli %c1_i32_722, %c8_i32_723 : i32
    %1465 = tpu.assume_multiple %1464, 8 : i32
    %1466 = arith.index_cast %1465 : i32 to index
    %c0_724 = arith.constant 0 : index
    %1467 = vector.load %arg46[%1466, %c0_724] : memref<64x80xf32, #tpu.memory_space<vmem>>, vector<8x80xf32>
    %1468 = arith.index_cast %1465 : i32 to index
    %c0_725 = arith.constant 0 : index
    %1469 = vector.load %arg47[%1468, %c0_725] : memref<64x80xf32, #tpu.memory_space<vmem>>, vector<8x80xf32>
    %1470 = arith.index_cast %1465 : i32 to index
    %c0_726 = arith.constant 0 : index
    %1471 = vector.load %arg48[%1470, %c0_726] : memref<64x80xf32, #tpu.memory_space<vmem>>, vector<8x80xf32>
    %cst_727 = arith.constant dense<0.000000e+00> : vector<8x80xf32>
    %1472 = tpu.matmul %1461, %1400, %cst_727 {dimension_numbers = #tpu.dot_dimension_numbers<[1], [0], [0], [1], [0, 0, 1, 1], [], []>} : vector<8x80xf32>, vector<80x80xf32>, vector<8x80xf32> -> vector<8x80xf32>
    %1473 = arith.addf %1467, %1472 : vector<8x80xf32>
    %1474 = vector.broadcast %1406 : vector<1x80xf32> to vector<8x80xf32>
    %1475 = arith.addf %1473, %1474 : vector<8x80xf32>
    %1476 = arith.negf %1475 : vector<8x80xf32>
    %1477 = math.exp %1476 : vector<8x80xf32>
    %cst_728 = arith.constant 1.000000e+00 : f32
    %1478 = vector.broadcast %cst_728 : f32 to vector<8x80xf32>
    %1479 = arith.addf %1478, %1477 : vector<8x80xf32>
    %1480 = arith.divf %1478, %1479 : vector<8x80xf32>
    %cst_729 = arith.constant dense<0.000000e+00> : vector<8x80xf32>
    %1481 = tpu.matmul %1461, %1402, %cst_729 {dimension_numbers = #tpu.dot_dimension_numbers<[1], [0], [0], [1], [0, 0, 1, 1], [], []>} : vector<8x80xf32>, vector<80x80xf32>, vector<8x80xf32> -> vector<8x80xf32>
    %1482 = arith.addf %1469, %1481 : vector<8x80xf32>
    %1483 = vector.broadcast %1408 : vector<1x80xf32> to vector<8x80xf32>
    %1484 = arith.addf %1482, %1483 : vector<8x80xf32>
    %1485 = arith.negf %1484 : vector<8x80xf32>
    %1486 = math.exp %1485 : vector<8x80xf32>
    %cst_730 = arith.constant 1.000000e+00 : f32
    %1487 = vector.broadcast %cst_730 : f32 to vector<8x80xf32>
    %1488 = arith.addf %1487, %1486 : vector<8x80xf32>
    %1489 = arith.divf %1487, %1488 : vector<8x80xf32>
    %cst_731 = arith.constant dense<0.000000e+00> : vector<8x80xf32>
    %1490 = tpu.matmul %1461, %1404, %cst_731 {dimension_numbers = #tpu.dot_dimension_numbers<[1], [0], [0], [1], [0, 0, 1, 1], [], []>} : vector<8x80xf32>, vector<80x80xf32>, vector<8x80xf32> -> vector<8x80xf32>
    %1491 = vector.broadcast %1410 : vector<1x80xf32> to vector<8x80xf32>
    %1492 = arith.addf %1490, %1491 : vector<8x80xf32>
    %1493 = arith.mulf %1480, %1492 : vector<8x80xf32>
    %1494 = arith.addf %1471, %1493 : vector<8x80xf32>
    %1495 = math.tanh %1494 : vector<8x80xf32>
    %cst_732 = arith.constant 1.000000e+00 : f32
    %1496 = vector.broadcast %cst_732 : f32 to vector<8x80xf32>
    %1497 = arith.subf %1496, %1489 : vector<8x80xf32>
    %1498 = arith.mulf %1497, %1495 : vector<8x80xf32>
    %1499 = arith.mulf %1489, %1461 : vector<8x80xf32>
    %1500 = arith.addf %1498, %1499 : vector<8x80xf32>
    %1501 = arith.index_cast %1465 : i32 to index
    %c0_733 = arith.constant 0 : index
    %1502 = vector.load %arg45[%1501, %c0_733] : memref<64x80xf32, #tpu.memory_space<vmem>>, vector<8x80xf32>
    tpu.vector_store %arg45[%1501, %c0_733], %1500 {strides = array<i32>} : memref<64x80xf32, #tpu.memory_space<vmem>>, vector<8x80xf32>,
    %c2_i32_734 = arith.constant 2 : i32
    %c8_i32_735 = arith.constant 8 : i32
    %1503 = arith.muli %c2_i32_734, %c8_i32_735 : i32
    %1504 = tpu.assume_multiple %1503, 8 : i32
    %1505 = arith.index_cast %1504 : i32 to index
    %c0_736 = arith.constant 0 : index
    %1506 = vector.load %arg46[%1505, %c0_736] : memref<64x80xf32, #tpu.memory_space<vmem>>, vector<8x80xf32>
    %1507 = arith.index_cast %1504 : i32 to index
    %c0_737 = arith.constant 0 : index
    %1508 = vector.load %arg47[%1507, %c0_737] : memref<64x80xf32, #tpu.memory_space<vmem>>, vector<8x80xf32>
    %1509 = arith.index_cast %1504 : i32 to index
    %c0_738 = arith.constant 0 : index
    %1510 = vector.load %arg48[%1509, %c0_738] : memref<64x80xf32, #tpu.memory_space<vmem>>, vector<8x80xf32>
    %cst_739 = arith.constant dense<0.000000e+00> : vector<8x80xf32>
    %1511 = tpu.matmul %1500, %1400, %cst_739 {dimension_numbers = #tpu.dot_dimension_numbers<[1], [0], [0], [1], [0, 0, 1, 1], [], []>} : vector<8x80xf32>, vector<80x80xf32>, vector<8x80xf32> -> vector<8x80xf32>
    %1512 = arith.addf %1506, %1511 : vector<8x80xf32>
    %1513 = vector.broadcast %1406 : vector<1x80xf32> to vector<8x80xf32>
    %1514 = arith.addf %1512, %1513 : vector<8x80xf32>
    %1515 = arith.negf %1514 : vector<8x80xf32>
    %1516 = math.exp %1515 : vector<8x80xf32>
    %cst_740 = arith.constant 1.000000e+00 : f32
    %1517 = vector.broadcast %cst_740 : f32 to vector<8x80xf32>
    %1518 = arith.addf %1517, %1516 : vector<8x80xf32>
    %1519 = arith.divf %1517, %1518 : vector<8x80xf32>
    %cst_741 = arith.constant dense<0.000000e+00> : vector<8x80xf32>
    %1520 = tpu.matmul %1500, %1402, %cst_741 {dimension_numbers = #tpu.dot_dimension_numbers<[1], [0], [0], [1], [0, 0, 1, 1], [], []>} : vector<8x80xf32>, vector<80x80xf32>, vector<8x80xf32> -> vector<8x80xf32>
    %1521 = arith.addf %1508, %1520 : vector<8x80xf32>
    %1522 = vector.broadcast %1408 : vector<1x80xf32> to vector<8x80xf32>
    %1523 = arith.addf %1521, %1522 : vector<8x80xf32>
    %1524 = arith.negf %1523 : vector<8x80xf32>
    %1525 = math.exp %1524 : vector<8x80xf32>
    %cst_742 = arith.constant 1.000000e+00 : f32
    %1526 = vector.broadcast %cst_742 : f32 to vector<8x80xf32>
    %1527 = arith.addf %1526, %1525 : vector<8x80xf32>
    %1528 = arith.divf %1526, %1527 : vector<8x80xf32>
    %cst_743 = arith.constant dense<0.000000e+00> : vector<8x80xf32>
    %1529 = tpu.matmul %1500, %1404, %cst_743 {dimension_numbers = #tpu.dot_dimension_numbers<[1], [0], [0], [1], [0, 0, 1, 1], [], []>} : vector<8x80xf32>, vector<80x80xf32>, vector<8x80xf32> -> vector<8x80xf32>
    %1530 = vector.broadcast %1410 : vector<1x80xf32> to vector<8x80xf32>
    %1531 = arith.addf %1529, %1530 : vector<8x80xf32>
    %1532 = arith.mulf %1519, %1531 : vector<8x80xf32>
    %1533 = arith.addf %1510, %1532 : vector<8x80xf32>
    %1534 = math.tanh %1533 : vector<8x80xf32>
    %cst_744 = arith.constant 1.000000e+00 : f32
    %1535 = vector.broadcast %cst_744 : f32 to vector<8x80xf32>
    %1536 = arith.subf %1535, %1528 : vector<8x80xf32>
    %1537 = arith.mulf %1536, %1534 : vector<8x80xf32>
    %1538 = arith.mulf %1528, %1500 : vector<8x80xf32>
    %1539 = arith.addf %1537, %1538 : vector<8x80xf32>
    %1540 = arith.index_cast %1504 : i32 to index
    %c0_745 = arith.constant 0 : index
    %1541 = vector.load %arg45[%1540, %c0_745] : memref<64x80xf32, #tpu.memory_space<vmem>>, vector<8x80xf32>
    tpu.vector_store %arg45[%1540, %c0_745], %1539 {strides = array<i32>} : memref<64x80xf32, #tpu.memory_space<vmem>>, vector<8x80xf32>,
    %c3_i32_746 = arith.constant 3 : i32
    %c8_i32_747 = arith.constant 8 : i32
    %1542 = arith.muli %c3_i32_746, %c8_i32_747 : i32
    %1543 = tpu.assume_multiple %1542, 8 : i32
    %1544 = arith.index_cast %1543 : i32 to index
    %c0_748 = arith.constant 0 : index
    %1545 = vector.load %arg46[%1544, %c0_748] : memref<64x80xf32, #tpu.memory_space<vmem>>, vector<8x80xf32>
    %1546 = arith.index_cast %1543 : i32 to index
    %c0_749 = arith.constant 0 : index
    %1547 = vector.load %arg47[%1546, %c0_749] : memref<64x80xf32, #tpu.memory_space<vmem>>, vector<8x80xf32>
    %1548 = arith.index_cast %1543 : i32 to index
    %c0_750 = arith.constant 0 : index
    %1549 = vector.load %arg48[%1548, %c0_750] : memref<64x80xf32, #tpu.memory_space<vmem>>, vector<8x80xf32>
    %cst_751 = arith.constant dense<0.000000e+00> : vector<8x80xf32>
    %1550 = tpu.matmul %1539, %1400, %cst_751 {dimension_numbers = #tpu.dot_dimension_numbers<[1], [0], [0], [1], [0, 0, 1, 1], [], []>} : vector<8x80xf32>, vector<80x80xf32>, vector<8x80xf32> -> vector<8x80xf32>
    %1551 = arith.addf %1545, %1550 : vector<8x80xf32>
    %1552 = vector.broadcast %1406 : vector<1x80xf32> to vector<8x80xf32>
    %1553 = arith.addf %1551, %1552 : vector<8x80xf32>
    %1554 = arith.negf %1553 : vector<8x80xf32>
    %1555 = math.exp %1554 : vector<8x80xf32>
    %cst_752 = arith.constant 1.000000e+00 : f32
    %1556 = vector.broadcast %cst_752 : f32 to vector<8x80xf32>
    %1557 = arith.addf %1556, %1555 : vector<8x80xf32>
    %1558 = arith.divf %1556, %1557 : vector<8x80xf32>
    %cst_753 = arith.constant dense<0.000000e+00> : vector<8x80xf32>
    %1559 = tpu.matmul %1539, %1402, %cst_753 {dimension_numbers = #tpu.dot_dimension_numbers<[1], [0], [0], [1], [0, 0, 1, 1], [], []>} : vector<8x80xf32>, vector<80x80xf32>, vector<8x80xf32> -> vector<8x80xf32>
    %1560 = arith.addf %1547, %1559 : vector<8x80xf32>
    %1561 = vector.broadcast %1408 : vector<1x80xf32> to vector<8x80xf32>
    %1562 = arith.addf %1560, %1561 : vector<8x80xf32>
    %1563 = arith.negf %1562 : vector<8x80xf32>
    %1564 = math.exp %1563 : vector<8x80xf32>
    %cst_754 = arith.constant 1.000000e+00 : f32
    %1565 = vector.broadcast %cst_754 : f32 to vector<8x80xf32>
    %1566 = arith.addf %1565, %1564 : vector<8x80xf32>
    %1567 = arith.divf %1565, %1566 : vector<8x80xf32>
    %cst_755 = arith.constant dense<0.000000e+00> : vector<8x80xf32>
    %1568 = tpu.matmul %1539, %1404, %cst_755 {dimension_numbers = #tpu.dot_dimension_numbers<[1], [0], [0], [1], [0, 0, 1, 1], [], []>} : vector<8x80xf32>, vector<80x80xf32>, vector<8x80xf32> -> vector<8x80xf32>
    %1569 = vector.broadcast %1410 : vector<1x80xf32> to vector<8x80xf32>
    %1570 = arith.addf %1568, %1569 : vector<8x80xf32>
    %1571 = arith.mulf %1558, %1570 : vector<8x80xf32>
    %1572 = arith.addf %1549, %1571 : vector<8x80xf32>
    %1573 = math.tanh %1572 : vector<8x80xf32>
    %cst_756 = arith.constant 1.000000e+00 : f32
    %1574 = vector.broadcast %cst_756 : f32 to vector<8x80xf32>
    %1575 = arith.subf %1574, %1567 : vector<8x80xf32>
    %1576 = arith.mulf %1575, %1573 : vector<8x80xf32>
    %1577 = arith.mulf %1567, %1539 : vector<8x80xf32>
    %1578 = arith.addf %1576, %1577 : vector<8x80xf32>
    %1579 = arith.index_cast %1543 : i32 to index
    %c0_757 = arith.constant 0 : index
    %1580 = vector.load %arg45[%1579, %c0_757] : memref<64x80xf32, #tpu.memory_space<vmem>>, vector<8x80xf32>
    tpu.vector_store %arg45[%1579, %c0_757], %1578 {strides = array<i32>} : memref<64x80xf32, #tpu.memory_space<vmem>>, vector<8x80xf32>,
    %c4_i32_758 = arith.constant 4 : i32
    %c8_i32_759 = arith.constant 8 : i32
    %1581 = arith.muli %c4_i32_758, %c8_i32_759 : i32
    %1582 = tpu.assume_multiple %1581, 8 : i32
    %1583 = arith.index_cast %1582 : i32 to index
    %c0_760 = arith.constant 0 : index
    %1584 = vector.load %arg46[%1583, %c0_760] : memref<64x80xf32, #tpu.memory_space<vmem>>, vector<8x80xf32>
    %1585 = arith.index_cast %1582 : i32 to index
    %c0_761 = arith.constant 0 : index
    %1586 = vector.load %arg47[%1585, %c0_761] : memref<64x80xf32, #tpu.memory_space<vmem>>, vector<8x80xf32>
    %1587 = arith.index_cast %1582 : i32 to index
    %c0_762 = arith.constant 0 : index
    %1588 = vector.load %arg48[%1587, %c0_762] : memref<64x80xf32, #tpu.memory_space<vmem>>, vector<8x80xf32>
    %cst_763 = arith.constant dense<0.000000e+00> : vector<8x80xf32>
    %1589 = tpu.matmul %1578, %1400, %cst_763 {dimension_numbers = #tpu.dot_dimension_numbers<[1], [0], [0], [1], [0, 0, 1, 1], [], []>} : vector<8x80xf32>, vector<80x80xf32>, vector<8x80xf32> -> vector<8x80xf32>
    %1590 = arith.addf %1584, %1589 : vector<8x80xf32>
    %1591 = vector.broadcast %1406 : vector<1x80xf32> to vector<8x80xf32>
    %1592 = arith.addf %1590, %1591 : vector<8x80xf32>
    %1593 = arith.negf %1592 : vector<8x80xf32>
    %1594 = math.exp %1593 : vector<8x80xf32>
    %cst_764 = arith.constant 1.000000e+00 : f32
    %1595 = vector.broadcast %cst_764 : f32 to vector<8x80xf32>
    %1596 = arith.addf %1595, %1594 : vector<8x80xf32>
    %1597 = arith.divf %1595, %1596 : vector<8x80xf32>
    %cst_765 = arith.constant dense<0.000000e+00> : vector<8x80xf32>
    %1598 = tpu.matmul %1578, %1402, %cst_765 {dimension_numbers = #tpu.dot_dimension_numbers<[1], [0], [0], [1], [0, 0, 1, 1], [], []>} : vector<8x80xf32>, vector<80x80xf32>, vector<8x80xf32> -> vector<8x80xf32>
    %1599 = arith.addf %1586, %1598 : vector<8x80xf32>
    %1600 = vector.broadcast %1408 : vector<1x80xf32> to vector<8x80xf32>
    %1601 = arith.addf %1599, %1600 : vector<8x80xf32>
    %1602 = arith.negf %1601 : vector<8x80xf32>
    %1603 = math.exp %1602 : vector<8x80xf32>
    %cst_766 = arith.constant 1.000000e+00 : f32
    %1604 = vector.broadcast %cst_766 : f32 to vector<8x80xf32>
    %1605 = arith.addf %1604, %1603 : vector<8x80xf32>
    %1606 = arith.divf %1604, %1605 : vector<8x80xf32>
    %cst_767 = arith.constant dense<0.000000e+00> : vector<8x80xf32>
    %1607 = tpu.matmul %1578, %1404, %cst_767 {dimension_numbers = #tpu.dot_dimension_numbers<[1], [0], [0], [1], [0, 0, 1, 1], [], []>} : vector<8x80xf32>, vector<80x80xf32>, vector<8x80xf32> -> vector<8x80xf32>
    %1608 = vector.broadcast %1410 : vector<1x80xf32> to vector<8x80xf32>
    %1609 = arith.addf %1607, %1608 : vector<8x80xf32>
    %1610 = arith.mulf %1597, %1609 : vector<8x80xf32>
    %1611 = arith.addf %1588, %1610 : vector<8x80xf32>
    %1612 = math.tanh %1611 : vector<8x80xf32>
    %cst_768 = arith.constant 1.000000e+00 : f32
    %1613 = vector.broadcast %cst_768 : f32 to vector<8x80xf32>
    %1614 = arith.subf %1613, %1606 : vector<8x80xf32>
    %1615 = arith.mulf %1614, %1612 : vector<8x80xf32>
    %1616 = arith.mulf %1606, %1578 : vector<8x80xf32>
    %1617 = arith.addf %1615, %1616 : vector<8x80xf32>
    %1618 = arith.index_cast %1582 : i32 to index
    %c0_769 = arith.constant 0 : index
    %1619 = vector.load %arg45[%1618, %c0_769] : memref<64x80xf32, #tpu.memory_space<vmem>>, vector<8x80xf32>
    tpu.vector_store %arg45[%1618, %c0_769], %1617 {strides = array<i32>} : memref<64x80xf32, #tpu.memory_space<vmem>>, vector<8x80xf32>,
    %c5_i32_770 = arith.constant 5 : i32
    %c8_i32_771 = arith.constant 8 : i32
    %1620 = arith.muli %c5_i32_770, %c8_i32_771 : i32
    %1621 = tpu.assume_multiple %1620, 8 : i32
    %1622 = arith.index_cast %1621 : i32 to index
    %c0_772 = arith.constant 0 : index
    %1623 = vector.load %arg46[%1622, %c0_772] : memref<64x80xf32, #tpu.memory_space<vmem>>, vector<8x80xf32>
    %1624 = arith.index_cast %1621 : i32 to index
    %c0_773 = arith.constant 0 : index
    %1625 = vector.load %arg47[%1624, %c0_773] : memref<64x80xf32, #tpu.memory_space<vmem>>, vector<8x80xf32>
    %1626 = arith.index_cast %1621 : i32 to index
    %c0_774 = arith.constant 0 : index
    %1627 = vector.load %arg48[%1626, %c0_774] : memref<64x80xf32, #tpu.memory_space<vmem>>, vector<8x80xf32>
    %cst_775 = arith.constant dense<0.000000e+00> : vector<8x80xf32>
    %1628 = tpu.matmul %1617, %1400, %cst_775 {dimension_numbers = #tpu.dot_dimension_numbers<[1], [0], [0], [1], [0, 0, 1, 1], [], []>} : vector<8x80xf32>, vector<80x80xf32>, vector<8x80xf32> -> vector<8x80xf32>
    %1629 = arith.addf %1623, %1628 : vector<8x80xf32>
    %1630 = vector.broadcast %1406 : vector<1x80xf32> to vector<8x80xf32>
    %1631 = arith.addf %1629, %1630 : vector<8x80xf32>
    %1632 = arith.negf %1631 : vector<8x80xf32>
    %1633 = math.exp %1632 : vector<8x80xf32>
    %cst_776 = arith.constant 1.000000e+00 : f32
    %1634 = vector.broadcast %cst_776 : f32 to vector<8x80xf32>
    %1635 = arith.addf %1634, %1633 : vector<8x80xf32>
    %1636 = arith.divf %1634, %1635 : vector<8x80xf32>
    %cst_777 = arith.constant dense<0.000000e+00> : vector<8x80xf32>
    %1637 = tpu.matmul %1617, %1402, %cst_777 {dimension_numbers = #tpu.dot_dimension_numbers<[1], [0], [0], [1], [0, 0, 1, 1], [], []>} : vector<8x80xf32>, vector<80x80xf32>, vector<8x80xf32> -> vector<8x80xf32>
    %1638 = arith.addf %1625, %1637 : vector<8x80xf32>
    %1639 = vector.broadcast %1408 : vector<1x80xf32> to vector<8x80xf32>
    %1640 = arith.addf %1638, %1639 : vector<8x80xf32>
    %1641 = arith.negf %1640 : vector<8x80xf32>
    %1642 = math.exp %1641 : vector<8x80xf32>
    %cst_778 = arith.constant 1.000000e+00 : f32
    %1643 = vector.broadcast %cst_778 : f32 to vector<8x80xf32>
    %1644 = arith.addf %1643, %1642 : vector<8x80xf32>
    %1645 = arith.divf %1643, %1644 : vector<8x80xf32>
    %cst_779 = arith.constant dense<0.000000e+00> : vector<8x80xf32>
    %1646 = tpu.matmul %1617, %1404, %cst_779 {dimension_numbers = #tpu.dot_dimension_numbers<[1], [0], [0], [1], [0, 0, 1, 1], [], []>} : vector<8x80xf32>, vector<80x80xf32>, vector<8x80xf32> -> vector<8x80xf32>
    %1647 = vector.broadcast %1410 : vector<1x80xf32> to vector<8x80xf32>
    %1648 = arith.addf %1646, %1647 : vector<8x80xf32>
    %1649 = arith.mulf %1636, %1648 : vector<8x80xf32>
    %1650 = arith.addf %1627, %1649 : vector<8x80xf32>
    %1651 = math.tanh %1650 : vector<8x80xf32>
    %cst_780 = arith.constant 1.000000e+00 : f32
    %1652 = vector.broadcast %cst_780 : f32 to vector<8x80xf32>
    %1653 = arith.subf %1652, %1645 : vector<8x80xf32>
    %1654 = arith.mulf %1653, %1651 : vector<8x80xf32>
    %1655 = arith.mulf %1645, %1617 : vector<8x80xf32>
    %1656 = arith.addf %1654, %1655 : vector<8x80xf32>
    %1657 = arith.index_cast %1621 : i32 to index
    %c0_781 = arith.constant 0 : index
    %1658 = vector.load %arg45[%1657, %c0_781] : memref<64x80xf32, #tpu.memory_space<vmem>>, vector<8x80xf32>
    tpu.vector_store %arg45[%1657, %c0_781], %1656 {strides = array<i32>} : memref<64x80xf32, #tpu.memory_space<vmem>>, vector<8x80xf32>,
    %c6_i32_782 = arith.constant 6 : i32
    %c8_i32_783 = arith.constant 8 : i32
    %1659 = arith.muli %c6_i32_782, %c8_i32_783 : i32
    %1660 = tpu.assume_multiple %1659, 8 : i32
    %1661 = arith.index_cast %1660 : i32 to index
    %c0_784 = arith.constant 0 : index
    %1662 = vector.load %arg46[%1661, %c0_784] : memref<64x80xf32, #tpu.memory_space<vmem>>, vector<8x80xf32>
    %1663 = arith.index_cast %1660 : i32 to index
    %c0_785 = arith.constant 0 : index
    %1664 = vector.load %arg47[%1663, %c0_785] : memref<64x80xf32, #tpu.memory_space<vmem>>, vector<8x80xf32>
    %1665 = arith.index_cast %1660 : i32 to index
    %c0_786 = arith.constant 0 : index
    %1666 = vector.load %arg48[%1665, %c0_786] : memref<64x80xf32, #tpu.memory_space<vmem>>, vector<8x80xf32>
    %cst_787 = arith.constant dense<0.000000e+00> : vector<8x80xf32>
    %1667 = tpu.matmul %1656, %1400, %cst_787 {dimension_numbers = #tpu.dot_dimension_numbers<[1], [0], [0], [1], [0, 0, 1, 1], [], []>} : vector<8x80xf32>, vector<80x80xf32>, vector<8x80xf32> -> vector<8x80xf32>
    %1668 = arith.addf %1662, %1667 : vector<8x80xf32>
    %1669 = vector.broadcast %1406 : vector<1x80xf32> to vector<8x80xf32>
    %1670 = arith.addf %1668, %1669 : vector<8x80xf32>
    %1671 = arith.negf %1670 : vector<8x80xf32>
    %1672 = math.exp %1671 : vector<8x80xf32>
    %cst_788 = arith.constant 1.000000e+00 : f32
    %1673 = vector.broadcast %cst_788 : f32 to vector<8x80xf32>
    %1674 = arith.addf %1673, %1672 : vector<8x80xf32>
    %1675 = arith.divf %1673, %1674 : vector<8x80xf32>
    %cst_789 = arith.constant dense<0.000000e+00> : vector<8x80xf32>
    %1676 = tpu.matmul %1656, %1402, %cst_789 {dimension_numbers = #tpu.dot_dimension_numbers<[1], [0], [0], [1], [0, 0, 1, 1], [], []>} : vector<8x80xf32>, vector<80x80xf32>, vector<8x80xf32> -> vector<8x80xf32>
    %1677 = arith.addf %1664, %1676 : vector<8x80xf32>
    %1678 = vector.broadcast %1408 : vector<1x80xf32> to vector<8x80xf32>
    %1679 = arith.addf %1677, %1678 : vector<8x80xf32>
    %1680 = arith.negf %1679 : vector<8x80xf32>
    %1681 = math.exp %1680 : vector<8x80xf32>
    %cst_790 = arith.constant 1.000000e+00 : f32
    %1682 = vector.broadcast %cst_790 : f32 to vector<8x80xf32>
    %1683 = arith.addf %1682, %1681 : vector<8x80xf32>
    %1684 = arith.divf %1682, %1683 : vector<8x80xf32>
    %cst_791 = arith.constant dense<0.000000e+00> : vector<8x80xf32>
    %1685 = tpu.matmul %1656, %1404, %cst_791 {dimension_numbers = #tpu.dot_dimension_numbers<[1], [0], [0], [1], [0, 0, 1, 1], [], []>} : vector<8x80xf32>, vector<80x80xf32>, vector<8x80xf32> -> vector<8x80xf32>
    %1686 = vector.broadcast %1410 : vector<1x80xf32> to vector<8x80xf32>
    %1687 = arith.addf %1685, %1686 : vector<8x80xf32>
    %1688 = arith.mulf %1675, %1687 : vector<8x80xf32>
    %1689 = arith.addf %1666, %1688 : vector<8x80xf32>
    %1690 = math.tanh %1689 : vector<8x80xf32>
    %cst_792 = arith.constant 1.000000e+00 : f32
    %1691 = vector.broadcast %cst_792 : f32 to vector<8x80xf32>
    %1692 = arith.subf %1691, %1684 : vector<8x80xf32>
    %1693 = arith.mulf %1692, %1690 : vector<8x80xf32>
    %1694 = arith.mulf %1684, %1656 : vector<8x80xf32>
    %1695 = arith.addf %1693, %1694 : vector<8x80xf32>
    %1696 = arith.index_cast %1660 : i32 to index
    %c0_793 = arith.constant 0 : index
    %1697 = vector.load %arg45[%1696, %c0_793] : memref<64x80xf32, #tpu.memory_space<vmem>>, vector<8x80xf32>
    tpu.vector_store %arg45[%1696, %c0_793], %1695 {strides = array<i32>} : memref<64x80xf32, #tpu.memory_space<vmem>>, vector<8x80xf32>,
    %c7_i32_794 = arith.constant 7 : i32
    %c8_i32_795 = arith.constant 8 : i32
    %1698 = arith.muli %c7_i32_794, %c8_i32_795 : i32
    %1699 = tpu.assume_multiple %1698, 8 : i32
    %1700 = arith.index_cast %1699 : i32 to index
    %c0_796 = arith.constant 0 : index
    %1701 = vector.load %arg46[%1700, %c0_796] : memref<64x80xf32, #tpu.memory_space<vmem>>, vector<8x80xf32>
    %1702 = arith.index_cast %1699 : i32 to index
    %c0_797 = arith.constant 0 : index
    %1703 = vector.load %arg47[%1702, %c0_797] : memref<64x80xf32, #tpu.memory_space<vmem>>, vector<8x80xf32>
    %1704 = arith.index_cast %1699 : i32 to index
    %c0_798 = arith.constant 0 : index
    %1705 = vector.load %arg48[%1704, %c0_798] : memref<64x80xf32, #tpu.memory_space<vmem>>, vector<8x80xf32>
    %cst_799 = arith.constant dense<0.000000e+00> : vector<8x80xf32>
    %1706 = tpu.matmul %1695, %1400, %cst_799 {dimension_numbers = #tpu.dot_dimension_numbers<[1], [0], [0], [1], [0, 0, 1, 1], [], []>} : vector<8x80xf32>, vector<80x80xf32>, vector<8x80xf32> -> vector<8x80xf32>
    %1707 = arith.addf %1701, %1706 : vector<8x80xf32>
    %1708 = vector.broadcast %1406 : vector<1x80xf32> to vector<8x80xf32>
    %1709 = arith.addf %1707, %1708 : vector<8x80xf32>
    %1710 = arith.negf %1709 : vector<8x80xf32>
    %1711 = math.exp %1710 : vector<8x80xf32>
    %cst_800 = arith.constant 1.000000e+00 : f32
    %1712 = vector.broadcast %cst_800 : f32 to vector<8x80xf32>
    %1713 = arith.addf %1712, %1711 : vector<8x80xf32>
    %1714 = arith.divf %1712, %1713 : vector<8x80xf32>
    %cst_801 = arith.constant dense<0.000000e+00> : vector<8x80xf32>
    %1715 = tpu.matmul %1695, %1402, %cst_801 {dimension_numbers = #tpu.dot_dimension_numbers<[1], [0], [0], [1], [0, 0, 1, 1], [], []>} : vector<8x80xf32>, vector<80x80xf32>, vector<8x80xf32> -> vector<8x80xf32>
    %1716 = arith.addf %1703, %1715 : vector<8x80xf32>
    %1717 = vector.broadcast %1408 : vector<1x80xf32> to vector<8x80xf32>
    %1718 = arith.addf %1716, %1717 : vector<8x80xf32>
    %1719 = arith.negf %1718 : vector<8x80xf32>
    %1720 = math.exp %1719 : vector<8x80xf32>
    %cst_802 = arith.constant 1.000000e+00 : f32
    %1721 = vector.broadcast %cst_802 : f32 to vector<8x80xf32>
    %1722 = arith.addf %1721, %1720 : vector<8x80xf32>
    %1723 = arith.divf %1721, %1722 : vector<8x80xf32>
    %cst_803 = arith.constant dense<0.000000e+00> : vector<8x80xf32>
    %1724 = tpu.matmul %1695, %1404, %cst_803 {dimension_numbers = #tpu.dot_dimension_numbers<[1], [0], [0], [1], [0, 0, 1, 1], [], []>} : vector<8x80xf32>, vector<80x80xf32>, vector<8x80xf32> -> vector<8x80xf32>
    %1725 = vector.broadcast %1410 : vector<1x80xf32> to vector<8x80xf32>
    %1726 = arith.addf %1724, %1725 : vector<8x80xf32>
    %1727 = arith.mulf %1714, %1726 : vector<8x80xf32>
    %1728 = arith.addf %1705, %1727 : vector<8x80xf32>
    %1729 = math.tanh %1728 : vector<8x80xf32>
    %cst_804 = arith.constant 1.000000e+00 : f32
    %1730 = vector.broadcast %cst_804 : f32 to vector<8x80xf32>
    %1731 = arith.subf %1730, %1723 : vector<8x80xf32>
    %1732 = arith.mulf %1731, %1729 : vector<8x80xf32>
    %1733 = arith.mulf %1723, %1695 : vector<8x80xf32>
    %1734 = arith.addf %1732, %1733 : vector<8x80xf32>
    %1735 = arith.index_cast %1699 : i32 to index
    %c0_805 = arith.constant 0 : index
    %1736 = vector.load %arg45[%1735, %c0_805] : memref<64x80xf32, #tpu.memory_space<vmem>>, vector<8x80xf32>
    tpu.vector_store %arg45[%1735, %c0_805], %1734 {strides = array<i32>} : memref<64x80xf32, #tpu.memory_space<vmem>>, vector<8x80xf32>,
    %c8_i32_806 = arith.constant 8 : i32
    %c0_807 = arith.constant 0 : index
    %c0_808 = arith.constant 0 : index
    %1737 = vector.load %arg45[%c0_807, %c0_808] : memref<64x80xf32, #tpu.memory_space<vmem>>, vector<64x80xf32>
    %c0_809 = arith.constant 0 : index
    %c0_810 = arith.constant 0 : index
    %1738 = vector.load %arg18[%c0_809, %c0_810] : memref<80x4xf32, #tpu.memory_space<vmem>>, vector<80x4xf32>
    %cst_811 = arith.constant dense<0.000000e+00> : vector<64x4xf32>
    %1739 = tpu.matmul %1737, %1738, %cst_811 {dimension_numbers = #tpu.dot_dimension_numbers<[1], [0], [0], [1], [0, 0, 1, 1], [], []>} : vector<64x80xf32>, vector<80x4xf32>, vector<64x4xf32> -> vector<64x4xf32>
    %c0_812 = arith.constant 0 : index
    %c0_813 = arith.constant 0 : index
    %1740 = vector.load %arg19[%c0_812, %c0_813] : memref<1x4xf32, #tpu.memory_space<vmem>>, vector<1x4xf32>
    %1741 = vector.broadcast %1740 : vector<1x4xf32> to vector<64x4xf32>
    %1742 = arith.addf %1739, %1741 : vector<64x4xf32>
    %c0_814 = arith.constant 0 : index
    %c0_815 = arith.constant 0 : index
    %1743 = vector.load %arg25[%c0_814, %c0_815] : memref<64x4xf32, #tpu.memory_space<vmem>>, vector<64x4xf32>
    tpu.vector_store %arg25[%c0_814, %c0_815], %1742 {strides = array<i32>} : memref<64x4xf32, #tpu.memory_space<vmem>>, vector<64x4xf32>,
    %c0_816 = arith.constant 0 : index
    %c0_817 = arith.constant 0 : index
    %1744 = vector.load %arg49[%c0_816, %c0_817] : memref<8x80xf32, #tpu.memory_space<vmem>>, vector<8x80xf32>
    %c0_818 = arith.constant 0 : index
    %c0_819 = arith.constant 0 : index
    %1745 = vector.load %arg20[%c0_818, %c0_819] : memref<8x3xf32, #tpu.memory_space<vmem>>, vector<8x3xf32>
    %cst_820 = arith.constant dense<0.000000e+00> : vector<8x8xf32>
    %1746 = tpu.matmul %1744, %1744, %cst_820 {dimension_numbers = #tpu.dot_dimension_numbers<[1], [1], [0], [0], [0, 0, 1, 0], [], []>} : vector<8x80xf32>, vector<8x80xf32>, vector<8x8xf32> -> vector<8x8xf32>
    %c0_821 = arith.constant 0 : index
    %c0_822 = arith.constant 0 : index
    %1747 = vector.load %arg27[%c0_821, %c0_822] : memref<8x8xf32, #tpu.memory_space<vmem>>, vector<8x8xf32>
    tpu.vector_store %arg27[%c0_821, %c0_822], %1746 {strides = array<i32>} : memref<8x8xf32, #tpu.memory_space<vmem>>, vector<8x8xf32>,
    %cst_823 = arith.constant dense<0.000000e+00> : vector<8x3xf32>
    %1748 = tpu.matmul %1746, %1745, %cst_823 {dimension_numbers = #tpu.dot_dimension_numbers<[1], [0], [0], [1], [0, 0, 1, 1], [], []>} : vector<8x8xf32>, vector<8x3xf32>, vector<8x3xf32> -> vector<8x3xf32>
    %cst_824 = arith.constant dense<0.000000e+00> : vector<3x3xf32>
    %1749 = tpu.matmul %1745, %1748, %cst_824 {dimension_numbers = #tpu.dot_dimension_numbers<[0], [0], [1], [1], [0, 1, 1, 1], [], []>} : vector<8x3xf32>, vector<8x3xf32>, vector<3x3xf32> -> vector<3x3xf32>
    %c0_825 = arith.constant 0 : index
    %c0_826 = arith.constant 0 : index
    %1750 = vector.load %arg28[%c0_825, %c0_826] : memref<3x3xf32, #tpu.memory_space<vmem>>, vector<3x3xf32>
    tpu.vector_store %arg28[%c0_825, %c0_826], %1749 {strides = array<i32>} : memref<3x3xf32, #tpu.memory_space<vmem>>, vector<3x3xf32>,
    %c0_827 = arith.constant 0 : index
    %c0_828 = arith.constant 0 : index
    %1751 = vector.load %arg21[%c0_827, %c0_828] : memref<80x128xf32, #tpu.memory_space<vmem>>, vector<80x128xf32>
    %cst_829 = arith.constant dense<0.000000e+00> : vector<8x128xf32>
    %1752 = tpu.matmul %1744, %1751, %cst_829 {dimension_numbers = #tpu.dot_dimension_numbers<[1], [0], [0], [1], [0, 0, 1, 1], [], []>} : vector<8x80xf32>, vector<80x128xf32>, vector<8x128xf32> -> vector<8x128xf32>
    %c0_830 = arith.constant 0 : index
    %c0_831 = arith.constant 0 : index
    %1753 = vector.load %arg22[%c0_830, %c0_831] : memref<1x128xf32, #tpu.memory_space<vmem>>, vector<1x128xf32>
    %1754 = vector.broadcast %1753 : vector<1x128xf32> to vector<8x128xf32>
    %1755 = arith.addf %1752, %1754 : vector<8x128xf32>
    %cst_832 = arith.constant 0.000000e+00 : f32
    %1756 = vector.broadcast %cst_832 : f32 to vector<8x128xf32>
    %1757 = arith.maximumf %1755, %1756 : vector<8x128xf32>
    %c0_833 = arith.constant 0 : index
    %c0_834 = arith.constant 0 : index
    %1758 = vector.load %arg23[%c0_833, %c0_834] : memref<128x2xf32, #tpu.memory_space<vmem>>, vector<128x2xf32>
    %cst_835 = arith.constant dense<0.000000e+00> : vector<8x2xf32>
    %1759 = tpu.matmul %1757, %1758, %cst_835 {dimension_numbers = #tpu.dot_dimension_numbers<[1], [0], [0], [1], [0, 0, 1, 1], [], []>} : vector<8x128xf32>, vector<128x2xf32>, vector<8x2xf32> -> vector<8x2xf32>
    %c0_836 = arith.constant 0 : index
    %c0_837 = arith.constant 0 : index
    %1760 = vector.load %arg24[%c0_836, %c0_837] : memref<1x2xf32, #tpu.memory_space<vmem>>, vector<1x2xf32>
    %1761 = vector.broadcast %1760 : vector<1x2xf32> to vector<8x2xf32>
    %1762 = arith.addf %1759, %1761 : vector<8x2xf32>
    %1763 = arith.negf %1762 : vector<8x2xf32>
    %1764 = math.exp %1763 : vector<8x2xf32>
    %cst_838 = arith.constant 1.000000e+00 : f32
    %1765 = vector.broadcast %cst_838 : f32 to vector<8x2xf32>
    %1766 = arith.addf %1765, %1764 : vector<8x2xf32>
    %1767 = arith.divf %1765, %1766 : vector<8x2xf32>
    %c0_839 = arith.constant 0 : index
    %c0_840 = arith.constant 0 : index
    %1768 = vector.load %arg29[%c0_839, %c0_840] : memref<8x2xf32, #tpu.memory_space<vmem>>, vector<8x2xf32>
    tpu.vector_store %arg29[%c0_839, %c0_840], %1767 {strides = array<i32>} : memref<8x2xf32, #tpu.memory_space<vmem>>, vector<8x2xf32>,
    return
  }
}

</mosaic_0001>

<llo_original>
// kernel: tpu_custom_call.1
$region0: #{tpu_custom_call.1}
  #allocation0 [shape = 'u32[]', space=smem, size = 0x4, offset = 0x4, fixed_abs, tag = 'smem constant byte address 0x4 - core index']
  #allocation1 [shape = 'u32[72,128]{1,0:T(1,128)}', space=vmem, size = 0x9000, scoped, tag = 'internal scratch']
  #allocation2 [shape = 'f32[1,8,8]{2,1,0:T(8,128)}', space=vmem, size = 0x1000, scoped, tag = 'scratch operand']
  #allocation3 [shape = 'f32[64,8]{1,0:T(8,128)}', space=vmem, size = 0x8000, scoped, tag = 'scratch operand']
  #allocation4 [shape = 'f32[64,8]{1,0:T(8,128)}', space=vmem, size = 0x8000, scoped, tag = 'scratch operand']
  #allocation5 [shape = 'f32[64,8]{1,0:T(8,128)}', space=vmem, size = 0x8000, scoped, tag = 'scratch operand']
  #allocation6 [shape = 'f32[64,8]{1,0:T(8,128)}', space=vmem, size = 0x8000, scoped, tag = 'scratch operand']
  #allocation7 [shape = 'f32[2,8,16]{2,1,0:T(8,128)}', space=vmem, size = 0x2000, scoped, tag = 'scratch operand']
  #allocation8 [shape = 'f32[64,16]{1,0:T(8,128)}', space=vmem, size = 0x8000, scoped, tag = 'scratch operand']
  #allocation9 [shape = 'f32[64,16]{1,0:T(8,128)}', space=vmem, size = 0x8000, scoped, tag = 'scratch operand']
  #allocation10 [shape = 'f32[64,16]{1,0:T(8,128)}', space=vmem, size = 0x8000, scoped, tag = 'scratch operand']
  #allocation11 [shape = 'f32[64,16]{1,0:T(8,128)}', space=vmem, size = 0x8000, scoped, tag = 'scratch operand']
  #allocation12 [shape = 'f32[4,8,16]{2,1,0:T(8,128)}', space=vmem, size = 0x4000, scoped, tag = 'scratch operand']
  #allocation13 [shape = 'f32[64,16]{1,0:T(8,128)}', space=vmem, size = 0x8000, scoped, tag = 'scratch operand']
  #allocation14 [shape = 'f32[64,16]{1,0:T(8,128)}', space=vmem, size = 0x8000, scoped, tag = 'scratch operand']
  #allocation15 [shape = 'f32[64,16]{1,0:T(8,128)}', space=vmem, size = 0x8000, scoped, tag = 'scratch operand']
  #allocation16 [shape = 'f32[64,16]{1,0:T(8,128)}', space=vmem, size = 0x8000, scoped, tag = 'scratch operand']
  #allocation17 [shape = 'f32[64,80]{1,0:T(8,128)}', space=vmem, size = 0x8000, scoped, tag = 'scratch operand']
  #allocation18 [shape = 'f32[64,80]{1,0:T(8,128)}', space=vmem, size = 0x8000, scoped, tag = 'scratch operand']
  #allocation19 [shape = 'f32[64,80]{1,0:T(8,128)}', space=vmem, size = 0x8000, scoped, tag = 'scratch operand']
  #allocation20 [shape = 'f32[64,80]{1,0:T(8,128)}', space=vmem, size = 0x8000, scoped, tag = 'scratch operand']
  #allocation21 [shape = 'f32[8,80]{1,0:T(8,128)}', space=vmem, size = 0x1000, scoped, tag = 'scratch operand']
  %s0 = inlined_call_operand.smem [shape: u32[30], index: -1, kind: input, shape index: {}]
  %s1 = sld [smem:[%s0]]
  %s2 = scalar_lea.smem %s0, 1
  %s3 = sld [smem:[%s2]]
  %s4 = scalar_lea.smem %s0, 2
  %s5 = sld [smem:[%s4]]
  %s6 = scalar_lea.smem %s0, 3
  %s7 = sld [smem:[%s6]]
  %s8 = scalar_lea.smem %s0, 4
  %s9 = sld [smem:[%s8]]
  %s10 = scalar_lea.smem %s0, 5
  %s11 = sld [smem:[%s10]]
  %s12 = scalar_lea.smem %s0, 6
  %s13 = sld [smem:[%s12]]
  %s14 = scalar_lea.smem %s0, 7
  %s15 = sld [smem:[%s14]]
  %s16 = scalar_lea.smem %s0, 8
  %s17 = sld [smem:[%s16]]
  %s18 = scalar_lea.smem %s0, 9
  %s19 = sld [smem:[%s18]]
  %s20 = scalar_lea.smem %s0, 10
  %s21 = sld [smem:[%s20]]
  %s22 = scalar_lea.smem %s0, 11
  %s23 = sld [smem:[%s22]]
  %s24 = scalar_lea.smem %s0, 12
  %s25 = sld [smem:[%s24]]
  %s26 = scalar_lea.smem %s0, 13
  %s27 = sld [smem:[%s26]]
  %s28 = scalar_lea.smem %s0, 14
  %s29 = sld [smem:[%s28]]
  %s30 = scalar_lea.smem %s0, 15
  %s31 = sld [smem:[%s30]]
  %s32 = scalar_lea.smem %s0, 16
  %s33 = sld [smem:[%s32]]
  %s34 = scalar_lea.smem %s0, 17
  %s35 = sld [smem:[%s34]]
  %s36 = scalar_lea.smem %s0, 18
  %s37 = sld [smem:[%s36]]
  %s38 = scalar_lea.smem %s0, 19
  %s39 = sld [smem:[%s38]]
  %s40 = scalar_lea.smem %s0, 20
  %s41 = sld [smem:[%s40]]
  %s42 = scalar_lea.smem %s0, 21
  %s43 = sld [smem:[%s42]]
  %s44 = scalar_lea.smem %s0, 22
  %s45 = sld [smem:[%s44]]
  %s46 = scalar_lea.smem %s0, 23
  %s47 = sld [smem:[%s46]]
  %s48 = scalar_lea.smem %s0, 24
  %s49 = sld [smem:[%s48]]
  %s50 = scalar_lea.smem %s0, 25
  %s51 = sld [smem:[%s50]]
  %s52 = scalar_lea.smem %s0, 26
  %s53 = sld [smem:[%s52]]
  %s54 = scalar_lea.smem %s0, 27
  %s55 = sld [smem:[%s54]]
  %s56 = scalar_lea.smem %s0, 28
  %s57 = sld [smem:[%s56]]
  %s58 = scalar_lea.smem %s0, 29
  %s59 = sld [smem:[%s58]]
  %60 = xla_tuple %s51, %s53, %s55, %s57, %s59
  %s61 = sld [smem:[#allocation0]]
  $region198: #{tpu_custom_call.1} parent=0
    _
  %s63 = ssub.s32 1, %s61
  %s64 = scalar_select 0, %s63, %s61
  $region1: #{tpu_custom_call.1} parent=0
    #allocation22 [shape = 'u8[6144]{0}', space=vmem, size = 0x1800, scoped, tag = 'input window, operand 2, single buffered']
    #allocation23 [shape = 's32[1]{0}', space=sflag, size = 0x4, scoped, tag = 'scoped memory for tpu_custom_call.1']
    #allocation24 [shape = 's32[1]{0}', space=sflag, size = 0x4, scoped, tag = 'scoped memory for tpu_custom_call.1']
    #allocation25 [shape = 'u8[12288]{0}', space=vmem, size = 0x3000, scoped, tag = 'input window, operand 3, single buffered']
    #allocation26 [shape = 's32[1]{0}', space=sflag, size = 0x4, scoped, tag = 'scoped memory for tpu_custom_call.1']
    #allocation27 [shape = 'u8[1536]{0}', space=vmem, size = 0x800, scoped, tag = 'input window, operand 4, single buffered']
    #allocation28 [shape = 'u8[1536]{0}', space=vmem, size = 0x800, scoped, tag = 'input window, operand 5, single buffered']
    #allocation29 [shape = 's32[1]{0}', space=sflag, size = 0x4, scoped, tag = 'scoped memory for tpu_custom_call.1']
    #allocation30 [shape = 'u8[12288]{0}', space=vmem, size = 0x3000, scoped, tag = 'input window, operand 6, single buffered']
    #allocation31 [shape = 'u8[1536]{0}', space=vmem, size = 0x800, scoped, tag = 'input window, operand 8, single buffered']
    #allocation32 [shape = 's32[1]{0}', space=sflag, size = 0x4, scoped, tag = 'scoped memory for tpu_custom_call.1']
    #allocation33 [shape = 'u8[1536]{0}', space=vmem, size = 0x800, scoped, tag = 'input window, operand 9, single buffered']
    #allocation34 [shape = 'u8[24576]{0}', space=vmem, size = 0x6000, scoped, tag = 'input window, operand 10, single buffered']
    #allocation35 [shape = 's32[1]{0}', space=sflag, size = 0x4, scoped, tag = 'scoped memory for tpu_custom_call.1']
    #allocation36 [shape = 'u8[24576]{0}', space=vmem, size = 0x6000, scoped, tag = 'input window, operand 11, single buffered']
    #allocation37 [shape = 'u8[1536]{0}', space=vmem, size = 0x800, scoped, tag = 'input window, operand 12, single buffered']
    #allocation38 [shape = 's32[1]{0}', space=sflag, size = 0x4, scoped, tag = 'scoped memory for tpu_custom_call.1']
    #allocation39 [shape = 'u8[1536]{0}', space=vmem, size = 0x800, scoped, tag = 'input window, operand 13, single buffered']
    #allocation40 [shape = 'u8[6144]{0}', space=vmem, size = 0x1800, scoped, tag = 'input window, operand 14, single buffered']
    #allocation41 [shape = 's32[1]{0}', space=sflag, size = 0x4, scoped, tag = 'scoped memory for tpu_custom_call.1']
    #allocation42 [shape = 'u8[1536]{0}', space=vmem, size = 0x800, scoped, tag = 'input window, operand 16, single buffered']
    #allocation43 [shape = 'u8[1536]{0}', space=vmem, size = 0x800, scoped, tag = 'input window, operand 17, single buffered']
    #allocation44 [shape = 's32[1]{0}', space=sflag, size = 0x4, scoped, tag = 'scoped memory for tpu_custom_call.1']
    #allocation45 [shape = 'u8[4096]{0}', space=vmem, size = 0x1000, scoped, tag = 'output window, operand 1, single buffered']
    #allocation46 [shape = 'u8[4096]{0}', space=vmem, size = 0x1000, scoped, tag = 'output window, operand 2, single buffered']
    #allocation47 [shape = 's32[1]{0}', space=sflag, size = 0x4, scoped, tag = 'scoped memory for tpu_custom_call.1']
    #allocation48 [shape = 'u8[2048]{0}', space=vmem, size = 0x800, scoped, tag = 'output window, operand 3, single buffered']
    %65 = vsyncpa [#allocation23], 0
    %66 = vsyncpa [#allocation26], 0
    %67 = vsyncpa [#allocation29], 0
    %68 = vsyncpa [#allocation32], 0
    %69 = vsyncpa [#allocation35], 0
    %70 = vsyncpa [#allocation38], 0
    %71 = vsyncpa [#allocation41], 0
    %72 = vsyncpa [#allocation44], 0
    %73 = vsyncpa [#allocation24], 0
    %74 = vsyncpa [#allocation47], 0
    // Predicated region
    $region2: #{tpu_custom_call.1} parent=1 // pred_check
      _
    $region3: #{tpu_custom_call.1} parent=1 // pred_check_branch
      %76 = sbr.rel (0) target = $region5
    $region4: #{tpu_custom_call.1} parent=1 // pred_region
      _
    $region5: #{tpu_custom_call.1} parent=1 // pred_fallthru
      _
    // Predicated region
    $region6: #{tpu_custom_call.1} parent=1 // pred_check
      _
    $region7: #{tpu_custom_call.1} parent=1 // pred_check_branch
      %78 = sbr.rel (0) target = $region9
    $region8: #{tpu_custom_call.1} parent=1 // pred_region
      _
    $region9: #{tpu_custom_call.1} parent=1 // pred_fallthru
      _
    // Predicated region
    $region10: #{tpu_custom_call.1} parent=1 // pred_check
      _
    $region11: #{tpu_custom_call.1} parent=1 // pred_check_branch
      %80 = sbr.rel (0) target = $region13
    $region12: #{tpu_custom_call.1} parent=1 // pred_region
      %82 = vsyncadd [#allocation23], 0
      %s83 = sshll.u32 %s5, 4
      %s84 = int_to_ptr.hbm [resolvable:$true] %s83
      %s85 = sshll.u32 [#allocation22], 4
      %s86 = int_to_ptr.vmem [resolvable:$true] %s85
      %91 = dma.hbm_to_vmem [thread:$0]  %s84, 192, %s86, [#allocation23], 64, 64, 4
    $region13: #{tpu_custom_call.1} parent=1 // pred_fallthru
      _
    // Predicated region
    $region14: #{tpu_custom_call.1} parent=1 // pred_check
      _
    $region15: #{tpu_custom_call.1} parent=1 // pred_check_branch
      %93 = sbr.rel (0) target = $region17
    $region16: #{tpu_custom_call.1} parent=1 // pred_region
      %95 = vsyncadd [#allocation26], 0
      %s96 = sshll.u32 %s7, 4
      %s97 = int_to_ptr.hbm [resolvable:$true] %s96
      %s98 = sshll.u32 [#allocation25], 4
      %s99 = int_to_ptr.vmem [resolvable:$true] %s98
      %104 = dma.hbm_to_vmem [thread:$0]  %s97, 384, %s99, [#allocation26], 128, 128, 8
    $region17: #{tpu_custom_call.1} parent=1 // pred_fallthru
      _
    // Predicated region
    $region18: #{tpu_custom_call.1} parent=1 // pred_check
      _
    $region19: #{tpu_custom_call.1} parent=1 // pred_check_branch
      %106 = sbr.rel (0) target = $region21
    $region20: #{tpu_custom_call.1} parent=1 // pred_region
      %108 = vsyncadd [#allocation26], 0
      %s109 = sshll.u32 %s9, 4
      %s110 = int_to_ptr.hbm [resolvable:$true] %s109
      %s111 = sshll.u32 [#allocation27], 4
      %s112 = int_to_ptr.vmem [resolvable:$true] %s111
      %117 = dma.hbm_to_vmem [thread:$0]  %s110, 48, %s112, [#allocation26], 16, 16, 1
    $region21: #{tpu_custom_call.1} parent=1 // pred_fallthru
      _
    // Predicated region
    $region22: #{tpu_custom_call.1} parent=1 // pred_check
      _
    $region23: #{tpu_custom_call.1} parent=1 // pred_check_branch
      %119 = sbr.rel (0) target = $region25
    $region24: #{tpu_custom_call.1} parent=1 // pred_region
      %121 = vsyncadd [#allocation29], 0
      %s122 = sshll.u32 %s11, 4
      %s123 = int_to_ptr.hbm [resolvable:$true] %s122
      %s124 = sshll.u32 [#allocation28], 4
      %s125 = int_to_ptr.vmem [resolvable:$true] %s124
      %130 = dma.hbm_to_vmem [thread:$0]  %s123, 48, %s125, [#allocation29], 16, 16, 1
    $region25: #{tpu_custom_call.1} parent=1 // pred_fallthru
      _
    // Predicated region
    $region26: #{tpu_custom_call.1} parent=1 // pred_check
      _
    $region27: #{tpu_custom_call.1} parent=1 // pred_check_branch
      %132 = sbr.rel (0) target = $region29
    $region28: #{tpu_custom_call.1} parent=1 // pred_region
      %134 = vsyncadd [#allocation29], 0
      %s135 = sshll.u32 %s13, 4
      %s136 = int_to_ptr.hbm [resolvable:$true] %s135
      %s137 = sshll.u32 [#allocation30], 4
      %s138 = int_to_ptr.vmem [resolvable:$true] %s137
      %143 = dma.hbm_to_vmem [thread:$0]  %s136, 384, %s138, [#allocation29], 128, 128, 8
    $region29: #{tpu_custom_call.1} parent=1 // pred_fallthru
      _
    // Predicated region
    $region30: #{tpu_custom_call.1} parent=1 // pred_check
      _
    $region31: #{tpu_custom_call.1} parent=1 // pred_check_branch
      %145 = sbr.rel (0) target = $region33
    $region32: #{tpu_custom_call.1} parent=1 // pred_region
      _
    $region33: #{tpu_custom_call.1} parent=1 // pred_fallthru
      _
    // Predicated region
    $region34: #{tpu_custom_call.1} parent=1 // pred_check
      _
    $region35: #{tpu_custom_call.1} parent=1 // pred_check_branch
      %147 = sbr.rel (0) target = $region37
    $region36: #{tpu_custom_call.1} parent=1 // pred_region
      %149 = vsyncadd [#allocation32], 0
      %s150 = sshll.u32 %s17, 4
      %s151 = int_to_ptr.hbm [resolvable:$true] %s150
      %s152 = sshll.u32 [#allocation31], 4
      %s153 = int_to_ptr.vmem [resolvable:$true] %s152
      %158 = dma.hbm_to_vmem [thread:$0]  %s151, 48, %s153, [#allocation32], 16, 16, 1
    $region37: #{tpu_custom_call.1} parent=1 // pred_fallthru
      _
    // Predicated region
    $region38: #{tpu_custom_call.1} parent=1 // pred_check
      _
    $region39: #{tpu_custom_call.1} parent=1 // pred_check_branch
      %160 = sbr.rel (0) target = $region41
    $region40: #{tpu_custom_call.1} parent=1 // pred_region
      %162 = vsyncadd [#allocation32], 0
      %s163 = sshll.u32 %s19, 4
      %s164 = int_to_ptr.hbm [resolvable:$true] %s163
      %s165 = sshll.u32 [#allocation33], 4
      %s166 = int_to_ptr.vmem [resolvable:$true] %s165
      %171 = dma.hbm_to_vmem [thread:$0]  %s164, 48, %s166, [#allocation32], 16, 16, 1
    $region41: #{tpu_custom_call.1} parent=1 // pred_fallthru
      _
    // Predicated region
    $region42: #{tpu_custom_call.1} parent=1 // pred_check
      _
    $region43: #{tpu_custom_call.1} parent=1 // pred_check_branch
      %173 = sbr.rel (0) target = $region45
    $region44: #{tpu_custom_call.1} parent=1 // pred_region
      %175 = vsyncadd [#allocation35], 0
      %s176 = sshll.u32 %s21, 4
      %s177 = int_to_ptr.hbm [resolvable:$true] %s176
      %s178 = sshll.u32 [#allocation34], 4
      %s179 = int_to_ptr.vmem [resolvable:$true] %s178
      %184 = dma.hbm_to_vmem [thread:$0]  %s177, 768, %s179, [#allocation35], 128, 128, 8
    $region45: #{tpu_custom_call.1} parent=1 // pred_fallthru
      _
    // Predicated region
    $region46: #{tpu_custom_call.1} parent=1 // pred_check
      _
    $region47: #{tpu_custom_call.1} parent=1 // pred_check_branch
      %186 = sbr.rel (0) target = $region49
    $region48: #{tpu_custom_call.1} parent=1 // pred_region
      %188 = vsyncadd [#allocation35], 0
      %s189 = sshll.u32 %s23, 4
      %s190 = int_to_ptr.hbm [resolvable:$true] %s189
      %s191 = sshll.u32 [#allocation36], 4
      %s192 = int_to_ptr.vmem [resolvable:$true] %s191
      %197 = dma.hbm_to_vmem [thread:$0]  %s190, 768, %s192, [#allocation35], 128, 128, 8
    $region49: #{tpu_custom_call.1} parent=1 // pred_fallthru
      _
    // Predicated region
    $region50: #{tpu_custom_call.1} parent=1 // pred_check
      _
    $region51: #{tpu_custom_call.1} parent=1 // pred_check_branch
      %199 = sbr.rel (0) target = $region53
    $region52: #{tpu_custom_call.1} parent=1 // pred_region
      %201 = vsyncadd [#allocation38], 0
      %s202 = sshll.u32 %s25, 4
      %s203 = int_to_ptr.hbm [resolvable:$true] %s202
      %s204 = sshll.u32 [#allocation37], 4
      %s205 = int_to_ptr.vmem [resolvable:$true] %s204
      %210 = dma.hbm_to_vmem [thread:$0]  %s203, 48, %s205, [#allocation38], 16, 16, 1
    $region53: #{tpu_custom_call.1} parent=1 // pred_fallthru
      _
    // Predicated region
    $region54: #{tpu_custom_call.1} parent=1 // pred_check
      _
    $region55: #{tpu_custom_call.1} parent=1 // pred_check_branch
      %212 = sbr.rel (0) target = $region57
    $region56: #{tpu_custom_call.1} parent=1 // pred_region
      %214 = vsyncadd [#allocation38], 0
      %s215 = sshll.u32 %s27, 4
      %s216 = int_to_ptr.hbm [resolvable:$true] %s215
      %s217 = sshll.u32 [#allocation39], 4
      %s218 = int_to_ptr.vmem [resolvable:$true] %s217
      %223 = dma.hbm_to_vmem [thread:$0]  %s216, 48, %s218, [#allocation38], 16, 16, 1
    $region57: #{tpu_custom_call.1} parent=1 // pred_fallthru
      _
    // Predicated region
    $region58: #{tpu_custom_call.1} parent=1 // pred_check
      _
    $region59: #{tpu_custom_call.1} parent=1 // pred_check_branch
      %225 = sbr.rel (0) target = $region61
    $region60: #{tpu_custom_call.1} parent=1 // pred_region
      %227 = vsyncadd [#allocation41], 0
      %s228 = sshll.u32 %s29, 4
      %s229 = int_to_ptr.hbm [resolvable:$true] %s228
      %s230 = sshll.u32 [#allocation40], 4
      %s231 = int_to_ptr.vmem [resolvable:$true] %s230
      %236 = dma.hbm_to_vmem [thread:$0]  %s229, 192, %s231, [#allocation41], 64, 64, 4
    $region61: #{tpu_custom_call.1} parent=1 // pred_fallthru
      _
    // Predicated region
    $region62: #{tpu_custom_call.1} parent=1 // pred_check
      _
    $region63: #{tpu_custom_call.1} parent=1 // pred_check_branch
      %238 = sbr.rel (0) target = $region65
    $region64: #{tpu_custom_call.1} parent=1 // pred_region
      _
    $region65: #{tpu_custom_call.1} parent=1 // pred_fallthru
      _
    // Predicated region
    $region66: #{tpu_custom_call.1} parent=1 // pred_check
      _
    $region67: #{tpu_custom_call.1} parent=1 // pred_check_branch
      %240 = sbr.rel (0) target = $region69
    $region68: #{tpu_custom_call.1} parent=1 // pred_region
      %242 = vsyncadd [#allocation41], 0
      %s243 = sshll.u32 %s33, 4
      %s244 = int_to_ptr.hbm [resolvable:$true] %s243
      %s245 = sshll.u32 [#allocation42], 4
      %s246 = int_to_ptr.vmem [resolvable:$true] %s245
      %251 = dma.hbm_to_vmem [thread:$0]  %s244, 48, %s246, [#allocation41], 16, 16, 1
    $region69: #{tpu_custom_call.1} parent=1 // pred_fallthru
      _
    // Predicated region
    $region70: #{tpu_custom_call.1} parent=1 // pred_check
      _
    $region71: #{tpu_custom_call.1} parent=1 // pred_check_branch
      %253 = sbr.rel (0) target = $region73
    $region72: #{tpu_custom_call.1} parent=1 // pred_region
      %255 = vsyncadd [#allocation44], 0
      %s256 = sshll.u32 %s35, 4
      %s257 = int_to_ptr.hbm [resolvable:$true] %s256
      %s258 = sshll.u32 [#allocation43], 4
      %s259 = int_to_ptr.vmem [resolvable:$true] %s258
      %264 = dma.hbm_to_vmem [thread:$0]  %s257, 48, %s259, [#allocation44], 16, 16, 1
    $region73: #{tpu_custom_call.1} parent=1 // pred_fallthru
      _
    // Predicated region
    $region74: #{tpu_custom_call.1} parent=1 // pred_check
      _
    $region75: #{tpu_custom_call.1} parent=1 // pred_check_branch
      %266 = sbr.rel (0) target = $region77
    $region76: #{tpu_custom_call.1} parent=1 // pred_region
      _
    $region77: #{tpu_custom_call.1} parent=1 // pred_fallthru
      _
    // Predicated region
    $region78: #{tpu_custom_call.1} parent=1 // pred_check
      _
    $region79: #{tpu_custom_call.1} parent=1 // pred_check_branch
      %268 = sbr.rel (0) target = $region81
    $region80: #{tpu_custom_call.1} parent=1 // pred_region
      _
    $region81: #{tpu_custom_call.1} parent=1 // pred_fallthru
      _
    // Predicated region
    $region82: #{tpu_custom_call.1} parent=1 // pred_check
      _
    $region83: #{tpu_custom_call.1} parent=1 // pred_check_branch
      %270 = sbr.rel (0) target = $region85
    $region84: #{tpu_custom_call.1} parent=1 // pred_region
      _
    $region85: #{tpu_custom_call.1} parent=1 // pred_fallthru
      _
    // Predicated region
    $region86: #{tpu_custom_call.1} parent=1 // pred_check
      _
    $region87: #{tpu_custom_call.1} parent=1 // pred_check_branch
      %272 = sbr.rel (0) target = $region89
    $region88: #{tpu_custom_call.1} parent=1 // pred_region
      _
    $region89: #{tpu_custom_call.1} parent=1 // pred_fallthru
      _
    // Predicated region
    $region90: #{tpu_custom_call.1} parent=1 // pred_check
      _
    $region91: #{tpu_custom_call.1} parent=1 // pred_check_branch
      %274 = sbr.rel (0) target = $region93
    $region92: #{tpu_custom_call.1} parent=1 // pred_region
      _
    $region93: #{tpu_custom_call.1} parent=1 // pred_fallthru
      _
    // Predicated region
    $region94: #{tpu_custom_call.1} parent=1 // pred_check
      _
    $region95: #{tpu_custom_call.1} parent=1 // pred_check_branch
      %276 = sbr.rel (0) target = $region97
    $region96: #{tpu_custom_call.1} parent=1 // pred_region
      _
    $region97: #{tpu_custom_call.1} parent=1 // pred_fallthru
      _
    // Predicated region
    $region98: #{tpu_custom_call.1} parent=1 // pred_check
      _
    $region99: #{tpu_custom_call.1} parent=1 // pred_check_branch
      %278 = sbr.rel (0) target = $region101
    $region100: #{tpu_custom_call.1} parent=1 // pred_region
      _
    $region101: #{tpu_custom_call.1} parent=1 // pred_fallthru
      _
    // Predicated region
    $region102: #{tpu_custom_call.1} parent=1 // pred_check
      _
    $region103: #{tpu_custom_call.1} parent=1 // pred_check_branch
      %280 = sbr.rel (0) target = $region105
    $region104: #{tpu_custom_call.1} parent=1 // pred_region
      %282 = dma.done [#allocation23], 192
    $region105: #{tpu_custom_call.1} parent=1 // pred_fallthru
      _
    // Predicated region
    $region106: #{tpu_custom_call.1} parent=1 // pred_check
      _
    $region107: #{tpu_custom_call.1} parent=1 // pred_check_branch
      %284 = sbr.rel (0) target = $region109
    $region108: #{tpu_custom_call.1} parent=1 // pred_region
      %286 = dma.done [#allocation26], 384
    $region109: #{tpu_custom_call.1} parent=1 // pred_fallthru
      _
    // Predicated region
    $region110: #{tpu_custom_call.1} parent=1 // pred_check
      _
    $region111: #{tpu_custom_call.1} parent=1 // pred_check_branch
      %288 = sbr.rel (0) target = $region113
    $region112: #{tpu_custom_call.1} parent=1 // pred_region
      %290 = dma.done [#allocation26], 48
    $region113: #{tpu_custom_call.1} parent=1 // pred_fallthru
      _
    // Predicated region
    $region114: #{tpu_custom_call.1} parent=1 // pred_check
      _
    $region115: #{tpu_custom_call.1} parent=1 // pred_check_branch
      %292 = sbr.rel (0) target = $region117
    $region116: #{tpu_custom_call.1} parent=1 // pred_region
      %294 = dma.done [#allocation29], 48
    $region117: #{tpu_custom_call.1} parent=1 // pred_fallthru
      _
    // Predicated region
    $region118: #{tpu_custom_call.1} parent=1 // pred_check
      _
    $region119: #{tpu_custom_call.1} parent=1 // pred_check_branch
      %296 = sbr.rel (0) target = $region121
    $region120: #{tpu_custom_call.1} parent=1 // pred_region
      %298 = dma.done [#allocation29], 384
    $region121: #{tpu_custom_call.1} parent=1 // pred_fallthru
      _
    // Predicated region
    $region122: #{tpu_custom_call.1} parent=1 // pred_check
      _
    $region123: #{tpu_custom_call.1} parent=1 // pred_check_branch
      %300 = sbr.rel (0) target = $region125
    $region124: #{tpu_custom_call.1} parent=1 // pred_region
      %302 = dma.done [#allocation32], 48
    $region125: #{tpu_custom_call.1} parent=1 // pred_fallthru
      _
    // Predicated region
    $region126: #{tpu_custom_call.1} parent=1 // pred_check
      _
    $region127: #{tpu_custom_call.1} parent=1 // pred_check_branch
      %304 = sbr.rel (0) target = $region129
    $region128: #{tpu_custom_call.1} parent=1 // pred_region
      %306 = dma.done [#allocation32], 48
    $region129: #{tpu_custom_call.1} parent=1 // pred_fallthru
      _
    // Predicated region
    $region130: #{tpu_custom_call.1} parent=1 // pred_check
      _
    $region131: #{tpu_custom_call.1} parent=1 // pred_check_branch
      %308 = sbr.rel (0) target = $region133
    $region132: #{tpu_custom_call.1} parent=1 // pred_region
      %310 = dma.done [#allocation35], 768
    $region133: #{tpu_custom_call.1} parent=1 // pred_fallthru
      _
    // Predicated region
    $region134: #{tpu_custom_call.1} parent=1 // pred_check
      _
    $region135: #{tpu_custom_call.1} parent=1 // pred_check_branch
      %312 = sbr.rel (0) target = $region137
    $region136: #{tpu_custom_call.1} parent=1 // pred_region
      %314 = dma.done [#allocation35], 768
    $region137: #{tpu_custom_call.1} parent=1 // pred_fallthru
      _
    // Predicated region
    $region138: #{tpu_custom_call.1} parent=1 // pred_check
      _
    $region139: #{tpu_custom_call.1} parent=1 // pred_check_branch
      %316 = sbr.rel (0) target = $region141
    $region140: #{tpu_custom_call.1} parent=1 // pred_region
      %318 = dma.done [#allocation38], 48
    $region141: #{tpu_custom_call.1} parent=1 // pred_fallthru
      _
    // Predicated region
    $region142: #{tpu_custom_call.1} parent=1 // pred_check
      _
    $region143: #{tpu_custom_call.1} parent=1 // pred_check_branch
      %320 = sbr.rel (0) target = $region145
    $region144: #{tpu_custom_call.1} parent=1 // pred_region
      %322 = dma.done [#allocation38], 48
    $region145: #{tpu_custom_call.1} parent=1 // pred_fallthru
      _
    // Predicated region
    $region146: #{tpu_custom_call.1} parent=1 // pred_check
      _
    $region147: #{tpu_custom_call.1} parent=1 // pred_check_branch
      %324 = sbr.rel (0) target = $region149
    $region148: #{tpu_custom_call.1} parent=1 // pred_region
      %326 = dma.done [#allocation41], 192
    $region149: #{tpu_custom_call.1} parent=1 // pred_fallthru
      _
    // Predicated region
    $region150: #{tpu_custom_call.1} parent=1 // pred_check
      _
    $region151: #{tpu_custom_call.1} parent=1 // pred_check_branch
      %328 = sbr.rel (0) target = $region153
    $region152: #{tpu_custom_call.1} parent=1 // pred_region
      %330 = dma.done [#allocation41], 48
    $region153: #{tpu_custom_call.1} parent=1 // pred_fallthru
      _
    // Predicated region
    $region154: #{tpu_custom_call.1} parent=1 // pred_check
      _
    $region155: #{tpu_custom_call.1} parent=1 // pred_check_branch
      %332 = sbr.rel (0) target = $region157
    $region156: #{tpu_custom_call.1} parent=1 // pred_region
      %334 = dma.done [#allocation44], 48
    $region157: #{tpu_custom_call.1} parent=1 // pred_fallthru
      _
    %vm335 = vcmask 654336
    %336 = vst.msk [vmem:[#allocation21] sm:$0xff] %vm335, 0.0
    %v337 = vld [vmem:[%s1] sm:$0xff]
    %v338 = vld [vmem:[%s1 + $0x8] sm:$0xff]
    %v339 = vld [vmem:[%s1 + $0x10] sm:$0xff]
    %v340 = vld [vmem:[%s1 + $0x18] sm:$0xff]
    %v341 = vld [vmem:[%s1 + $0x20] sm:$0xff]
    %v342 = vld [vmem:[%s1 + $0x28] sm:$0xff]
    %v343 = vld [vmem:[%s1 + $0x30] sm:$0xff]
    %v344 = vld [vmem:[%s1 + $0x38] sm:$0xff]
    %v345 = vld [vmem:[#allocation22] sm:$0xf]
    %v346 = vld [vmem:[#allocation27] sm:$0x1]
    %v348 = vperm.slane %v346, 0
    %vm350 = vcmask 31744
    %v352 = vsel %vm350, %v337, 0
    %v355 = vsel %vm350, %v338, 0
    %v358 = vsel %vm350, %v339, 0
    %v361 = vsel %vm350, %v340, 0
    %v364 = vsel %vm350, %v341, 0
    %v367 = vsel %vm350, %v342, 0
    %v370 = vsel %vm350, %v343, 0
    %v373 = vsel %vm350, %v344, 0
    %vm375 = vcmask 1043456
    %v377 = vsel %vm375, %v345, 0
    %379 = vmatpush.msra.mxu0 0.0
    %380 = vmatpush.msra.mxu0 0.0
    %381 = vmatpush.msra.mxu0 0.0
    %382 = vmatpush.msra.mxu0 0.0
    %383 = vmatpush.msra.mxu0 0.0
    %384 = vmatpush.msra.mxu0 0.0
    %385 = vmatpush.msra.mxu0 0.0
    %386 = vmatpush.msra.mxu0 0.0
    %387 = vmatpush.msra.mxu0 0.0
    %388 = vmatpush.msra.mxu0 0.0
    %389 = vmatpush.msra.mxu0 0.0
    %390 = vmatpush.msra.mxu0 0.0
    %391 = vmatpush.msra.mxu0 0.0
    %392 = vmatpush.msra.mxu0 0.0
    %393 = vmatpush.msra.mxu0 0.0
    %394 = vmatpush.msra.mxu0 %v377
    %395 = vmatmul.f32.gmra.mxu0 %v352
    %v396 = vpop.f32.mrf.mxu0
    %v397 = vadd.f32 %v348, %v396
    %398 = vmatmul.f32.gmra.mxu0 %v355
    %v399 = vpop.f32.mrf.mxu0
    %v400 = vadd.f32 %v348, %v399
    %401 = vmatmul.f32.gmra.mxu0 %v358
    %v402 = vpop.f32.mrf.mxu0
    %v403 = vadd.f32 %v348, %v402
    %404 = vmatmul.f32.gmra.mxu0 %v361
    %v405 = vpop.f32.mrf.mxu0
    %v406 = vadd.f32 %v348, %v405
    %407 = vmatmul.f32.gmra.mxu0 %v364
    %v408 = vpop.f32.mrf.mxu0
    %v409 = vadd.f32 %v348, %v408
    %410 = vmatmul.f32.gmra.mxu0 %v367
    %v411 = vpop.f32.mrf.mxu0
    %v412 = vadd.f32 %v348, %v411
    %413 = vmatmul.f32.gmra.mxu0 %v370
    %v414 = vpop.f32.mrf.mxu0
    %v415 = vadd.f32 %v348, %v414
    %416 = vmatmul.f32.gmra.mxu0 %v373
    %v417 = vpop.f32.mrf.mxu0
    %v418 = vadd.f32 %v348, %v417
    %419 = vdwg.mxu0
    %vm420 = vcmask 64512
    %421 = vst.msk [vmem:[#allocation4] sm:$0xff] %vm420, %v397
    %422 = vst.msk [vmem:[#allocation4 + $0x8] sm:$0xff] %vm420, %v400
    %423 = vst.msk [vmem:[#allocation4 + $0x10] sm:$0xff] %vm420, %v403
    %424 = vst.msk [vmem:[#allocation4 + $0x18] sm:$0xff] %vm420, %v406
    %425 = vst.msk [vmem:[#allocation4 + $0x20] sm:$0xff] %vm420, %v409
    %426 = vst.msk [vmem:[#allocation4 + $0x28] sm:$0xff] %vm420, %v412
    %427 = vst.msk [vmem:[#allocation4 + $0x30] sm:$0xff] %vm420, %v415
    %428 = vst.msk [vmem:[#allocation4 + $0x38] sm:$0xff] %vm420, %v418
    %s429 = scalar_lea.vmem [#allocation22], 4
    %v430 = vld [vmem:[%s429] sm:$0xf]
    %s431 = scalar_lea.vmem [#allocation27], 1
    %v432 = vld [vmem:[%s431] sm:$0x1]
    %v434 = vperm.slane %v432, 0
    %v437 = vsel %vm375, %v430, 0
    %439 = vmatpush.msra.mxu0 0.0
    %440 = vmatpush.msra.mxu0 0.0
    %441 = vmatpush.msra.mxu0 0.0
    %442 = vmatpush.msra.mxu0 0.0
    %443 = vmatpush.msra.mxu0 0.0
    %444 = vmatpush.msra.mxu0 0.0
    %445 = vmatpush.msra.mxu0 0.0
    %446 = vmatpush.msra.mxu0 0.0
    %447 = vmatpush.msra.mxu0 0.0
    %448 = vmatpush.msra.mxu0 0.0
    %449 = vmatpush.msra.mxu0 0.0
    %450 = vmatpush.msra.mxu0 0.0
    %451 = vmatpush.msra.mxu0 0.0
    %452 = vmatpush.msra.mxu0 0.0
    %453 = vmatpush.msra.mxu0 0.0
    %454 = vmatpush.msra.mxu0 %v437
    %455 = vmatmul.f32.gmra.mxu0 %v352
    %v456 = vpop.f32.mrf.mxu0
    %v457 = vadd.f32 %v434, %v456
    %458 = vmatmul.f32.gmra.mxu0 %v355
    %v459 = vpop.f32.mrf.mxu0
    %v460 = vadd.f32 %v434, %v459
    %461 = vmatmul.f32.gmra.mxu0 %v358
    %v462 = vpop.f32.mrf.mxu0
    %v463 = vadd.f32 %v434, %v462
    %464 = vmatmul.f32.gmra.mxu0 %v361
    %v465 = vpop.f32.mrf.mxu0
    %v466 = vadd.f32 %v434, %v465
    %467 = vmatmul.f32.gmra.mxu0 %v364
    %v468 = vpop.f32.mrf.mxu0
    %v469 = vadd.f32 %v434, %v468
    %470 = vmatmul.f32.gmra.mxu0 %v367
    %v471 = vpop.f32.mrf.mxu0
    %v472 = vadd.f32 %v434, %v471
    %473 = vmatmul.f32.gmra.mxu0 %v370
    %v474 = vpop.f32.mrf.mxu0
    %v475 = vadd.f32 %v434, %v474
    %476 = vmatmul.f32.gmra.mxu0 %v373
    %v477 = vpop.f32.mrf.mxu0
    %v478 = vadd.f32 %v434, %v477
    %479 = vdwg.mxu0
    %480 = vst.msk [vmem:[#allocation5] sm:$0xff] %vm420, %v457
    %481 = vst.msk [vmem:[#allocation5 + $0x8] sm:$0xff] %vm420, %v460
    %482 = vst.msk [vmem:[#allocation5 + $0x10] sm:$0xff] %vm420, %v463
    %483 = vst.msk [vmem:[#allocation5 + $0x18] sm:$0xff] %vm420, %v466
    %484 = vst.msk [vmem:[#allocation5 + $0x20] sm:$0xff] %vm420, %v469
    %485 = vst.msk [vmem:[#allocation5 + $0x28] sm:$0xff] %vm420, %v472
    %486 = vst.msk [vmem:[#allocation5 + $0x30] sm:$0xff] %vm420, %v475
    %487 = vst.msk [vmem:[#allocation5 + $0x38] sm:$0xff] %vm420, %v478
    %s488 = scalar_lea.vmem [#allocation22], 8
    %v489 = vld [vmem:[%s488] sm:$0xf]
    %s490 = scalar_lea.vmem [#allocation27], 2
    %v491 = vld [vmem:[%s490] sm:$0x1]
    %v493 = vperm.slane %v491, 0
    %v496 = vsel %vm375, %v489, 0
    %498 = vmatpush.msra.mxu0 0.0
    %499 = vmatpush.msra.mxu0 0.0
    %500 = vmatpush.msra.mxu0 0.0
    %501 = vmatpush.msra.mxu0 0.0
    %502 = vmatpush.msra.mxu0 0.0
    %503 = vmatpush.msra.mxu0 0.0
    %504 = vmatpush.msra.mxu0 0.0
    %505 = vmatpush.msra.mxu0 0.0
    %506 = vmatpush.msra.mxu0 0.0
    %507 = vmatpush.msra.mxu0 0.0
    %508 = vmatpush.msra.mxu0 0.0
    %509 = vmatpush.msra.mxu0 0.0
    %510 = vmatpush.msra.mxu0 0.0
    %511 = vmatpush.msra.mxu0 0.0
    %512 = vmatpush.msra.mxu0 0.0
    %513 = vmatpush.msra.mxu0 %v496
    %514 = vmatmul.f32.gmra.mxu0 %v352
    %v515 = vpop.f32.mrf.mxu0
    %v516 = vadd.f32 %v493, %v515
    %517 = vmatmul.f32.gmra.mxu0 %v355
    %v518 = vpop.f32.mrf.mxu0
    %v519 = vadd.f32 %v493, %v518
    %520 = vmatmul.f32.gmra.mxu0 %v358
    %v521 = vpop.f32.mrf.mxu0
    %v522 = vadd.f32 %v493, %v521
    %523 = vmatmul.f32.gmra.mxu0 %v361
    %v524 = vpop.f32.mrf.mxu0
    %v525 = vadd.f32 %v493, %v524
    %526 = vmatmul.f32.gmra.mxu0 %v364
    %v527 = vpop.f32.mrf.mxu0
    %v528 = vadd.f32 %v493, %v527
    %529 = vmatmul.f32.gmra.mxu0 %v367
    %v530 = vpop.f32.mrf.mxu0
    %v531 = vadd.f32 %v493, %v530
    %532 = vmatmul.f32.gmra.mxu0 %v370
    %v533 = vpop.f32.mrf.mxu0
    %v534 = vadd.f32 %v493, %v533
    %535 = vmatmul.f32.gmra.mxu0 %v373
    %v536 = vpop.f32.mrf.mxu0
    %v537 = vadd.f32 %v493, %v536
    %538 = vdwg.mxu0
    %539 = vst.msk [vmem:[#allocation6] sm:$0xff] %vm420, %v516
    %540 = vst.msk [vmem:[#allocation6 + $0x8] sm:$0xff] %vm420, %v519
    %541 = vst.msk [vmem:[#allocation6 + $0x10] sm:$0xff] %vm420, %v522
    %542 = vst.msk [vmem:[#allocation6 + $0x18] sm:$0xff] %vm420, %v525
    %543 = vst.msk [vmem:[#allocation6 + $0x20] sm:$0xff] %vm420, %v528
    %544 = vst.msk [vmem:[#allocation6 + $0x28] sm:$0xff] %vm420, %v531
    %545 = vst.msk [vmem:[#allocation6 + $0x30] sm:$0xff] %vm420, %v534
    %546 = vst.msk [vmem:[#allocation6 + $0x38] sm:$0xff] %vm420, %v537
    %547 = vst.msk [vmem:[#allocation2] sm:$0xff] %vm420, 0.0
    %v548 = vld [vmem:[#allocation25] sm:$0xff]
    %s549 = scalar_lea.vmem [#allocation25], 8
    %v550 = vld [vmem:[%s549] sm:$0xff]
    %s551 = scalar_lea.vmem [#allocation25], 16
    %v552 = vld [vmem:[%s551] sm:$0xff]
    %v553 = vld [vmem:[#allocation28] sm:$0x1]
    %s554 = scalar_lea.vmem [#allocation28], 1
    %v555 = vld [vmem:[%s554] sm:$0x1]
    %s556 = scalar_lea.vmem [#allocation28], 2
    %v557 = vld [vmem:[%s556] sm:$0x1]
    %v558 = vld [vmem:[#allocation2] sm:$0xff]
    %v559 = vld [vmem:[#allocation4] sm:$0xff]
    %v560 = vld [vmem:[#allocation5] sm:$0xff]
    %v561 = vld [vmem:[#allocation6] sm:$0xff]
    %v563 = vsel %vm420, %v558, 0
    %565 = vmatpush.msra.mxu0 0.0
    %566 = vmatpush.msra.mxu0 0.0
    %567 = vmatpush.msra.mxu0 0.0
    %568 = vmatpush.msra.mxu0 0.0
    %569 = vmatpush.msra.mxu0 0.0
    %570 = vmatpush.msra.mxu0 0.0
    %571 = vmatpush.msra.mxu0 0.0
    %572 = vmatpush.msra.mxu0 0.0
    %573 = vmatpush.msra.mxu0 0.0
    %574 = vmatpush.msra.mxu0 0.0
    %575 = vmatpush.msra.mxu0 0.0
    %576 = vmatpush.msra.mxu0 0.0
    %577 = vmatpush.msra.mxu0 0.0
    %578 = vmatpush.msra.mxu0 0.0
    %579 = vmatpush.msra.mxu0 0.0
    %580 = vmatpush.msra.mxu0 %v548
    %581 = vmatmul.f32.gmra.mxu0 %v563
    %v582 = vpop.f32.mrf.mxu0
    %v583 = vadd.f32 0.0, %v582
    %584 = vdwg.mxu0
    %v585 = vadd.f32 %v559, %v583
    %v587 = vperm.slane %v553, 0
    %v589 = vadd.f32 %v585, %v587
    %v590 = vxor.u32 %v589, 2147483648
    %v591 = vmul.f32 %v590, 1.442695
    %v592 = vpow.pop %v591
    %v593 = vadd.f32 %v592, 1.0
    %v594 = vrcp.pop %v593
    %v595 = vmul.f32 %v593, %v594
    %v596 = vsub.f32 1.0, %v595
    %v597 = vmul.f32 %v594, %v596
    %v598 = vadd.f32 %v594, %v597
    %vm599 = vweird.f32 %v593
    %vm600 = vweird.f32 %v594
    %vm601 = vmor %vm599, %vm600
    %v602 = vsel %vm601, %v594, %v598
    %v603 = vand.u32 2147483647, %v593
    %vm604 = vcmp.eq.f32.partialorder %v603, 8.507059e+37
    %v605 = vand.u32 %v593, 2147483648
    %v606 = vor.u32 1.1754944e-38, %v605
    %v607 = vsel %vm604, %v606, %v602
    %v608 = vmul.f32 1.0, %v607
    %609 = vmatpush.msra.mxu0 0.0
    %610 = vmatpush.msra.mxu0 0.0
    %611 = vmatpush.msra.mxu0 0.0
    %612 = vmatpush.msra.mxu0 0.0
    %613 = vmatpush.msra.mxu0 0.0
    %614 = vmatpush.msra.mxu0 0.0
    %615 = vmatpush.msra.mxu0 0.0
    %616 = vmatpush.msra.mxu0 0.0
    %617 = vmatpush.msra.mxu0 0.0
    %618 = vmatpush.msra.mxu0 0.0
    %619 = vmatpush.msra.mxu0 0.0
    %620 = vmatpush.msra.mxu0 0.0
    %621 = vmatpush.msra.mxu0 0.0
    %622 = vmatpush.msra.mxu0 0.0
    %623 = vmatpush.msra.mxu0 0.0
    %624 = vmatpush.msra.mxu0 %v550
    %625 = vmatmul.f32.gmra.mxu0 %v563
    %v626 = vpop.f32.mrf.mxu0
    %v627 = vadd.f32 0.0, %v626
    %628 = vdwg.mxu0
    %v629 = vadd.f32 %v560, %v627
    %v631 = vperm.slane %v555, 0
    %v633 = vadd.f32 %v629, %v631
    %v634 = vxor.u32 %v633, 2147483648
    %v635 = vmul.f32 %v634, 1.442695
    %v636 = vpow.pop %v635
    %v637 = vadd.f32 %v636, 1.0
    %v638 = vrcp.pop %v637
    %v639 = vmul.f32 %v637, %v638
    %v640 = vsub.f32 1.0, %v639
    %v641 = vmul.f32 %v638, %v640
    %v642 = vadd.f32 %v638, %v641
    %vm643 = vweird.f32 %v637
    %vm644 = vweird.f32 %v638
    %vm645 = vmor %vm643, %vm644
    %v646 = vsel %vm645, %v638, %v642
    %v647 = vand.u32 2147483647, %v637
    %vm648 = vcmp.eq.f32.partialorder %v647, 8.507059e+37
    %v649 = vand.u32 %v637, 2147483648
    %v650 = vor.u32 1.1754944e-38, %v649
    %v651 = vsel %vm648, %v650, %v646
    %v652 = vmul.f32 1.0, %v651
    %v654 = vperm.slane %v557, 0
    %656 = vmatpush.msra.mxu0 0.0
    %657 = vmatpush.msra.mxu0 0.0
    %658 = vmatpush.msra.mxu0 0.0
    %659 = vmatpush.msra.mxu0 0.0
    %660 = vmatpush.msra.mxu0 0.0
    %661 = vmatpush.msra.mxu0 0.0
    %662 = vmatpush.msra.mxu0 0.0
    %663 = vmatpush.msra.mxu0 0.0
    %664 = vmatpush.msra.mxu0 0.0
    %665 = vmatpush.msra.mxu0 0.0
    %666 = vmatpush.msra.mxu0 0.0
    %667 = vmatpush.msra.mxu0 0.0
    %668 = vmatpush.msra.mxu0 0.0
    %669 = vmatpush.msra.mxu0 0.0
    %670 = vmatpush.msra.mxu0 0.0
    %671 = vmatpush.msra.mxu0 %v552
    %672 = vmatmul.f32.gmra.mxu0 %v563
    %v673 = vpop.f32.mrf.mxu0
    %v674 = vadd.f32 %v654, %v673
    %675 = vdwg.mxu0
    %v676 = vmul.f32 %v608, %v674
    %v677 = vadd.f32 %v561, %v676
    %v678 = vtanh.pop %v677
    %v679 = vsub.f32 1.0, %v652
    %v680 = vmul.f32 %v679, %v678
    %v681 = vmul.f32 %v652, %v558
    %v682 = vadd.f32 %v680, %v681
    %683 = vst.msk [vmem:[#allocation2] sm:$0xff] %vm420, %v682
    %684 = vst.msk [vmem:[#allocation3] sm:$0xff] %vm420, %v682
    %v685 = vld [vmem:[#allocation2] sm:$0xff]
    %s686 = scalar_lea.vmem [#allocation4], 8
    %v687 = vld [vmem:[%s686] sm:$0xff]
    %s688 = scalar_lea.vmem [#allocation5], 8
    %v689 = vld [vmem:[%s688] sm:$0xff]
    %s690 = scalar_lea.vmem [#allocation6], 8
    %v691 = vld [vmem:[%s690] sm:$0xff]
    %v693 = vsel %vm420, %v685, 0
    %695 = vmatpush.msra.mxu0 0.0
    %696 = vmatpush.msra.mxu0 0.0
    %697 = vmatpush.msra.mxu0 0.0
    %698 = vmatpush.msra.mxu0 0.0
    %699 = vmatpush.msra.mxu0 0.0
    %700 = vmatpush.msra.mxu0 0.0
    %701 = vmatpush.msra.mxu0 0.0
    %702 = vmatpush.msra.mxu0 0.0
    %703 = vmatpush.msra.mxu0 0.0
    %704 = vmatpush.msra.mxu0 0.0
    %705 = vmatpush.msra.mxu0 0.0
    %706 = vmatpush.msra.mxu0 0.0
    %707 = vmatpush.msra.mxu0 0.0
    %708 = vmatpush.msra.mxu0 0.0
    %709 = vmatpush.msra.mxu0 0.0
    %710 = vmatpush.msra.mxu0 %v548
    %711 = vmatmul.f32.gmra.mxu0 %v693
    %v712 = vpop.f32.mrf.mxu0
    %v713 = vadd.f32 0.0, %v712
    %714 = vdwg.mxu0
    %v715 = vadd.f32 %v687, %v713
    %v716 = vadd.f32 %v715, %v587
    %v717 = vxor.u32 %v716, 2147483648
    %v718 = vmul.f32 %v717, 1.442695
    %v719 = vpow.pop %v718
    %v720 = vadd.f32 %v719, 1.0
    %v721 = vrcp.pop %v720
    %v722 = vmul.f32 %v720, %v721
    %v723 = vsub.f32 1.0, %v722
    %v724 = vmul.f32 %v721, %v723
    %v725 = vadd.f32 %v721, %v724
    %vm726 = vweird.f32 %v720
    %vm727 = vweird.f32 %v721
    %vm728 = vmor %vm726, %vm727
    %v729 = vsel %vm728, %v721, %v725
    %v730 = vand.u32 2147483647, %v720
    %vm731 = vcmp.eq.f32.partialorder %v730, 8.507059e+37
    %v732 = vand.u32 %v720, 2147483648
    %v733 = vor.u32 1.1754944e-38, %v732
    %v734 = vsel %vm731, %v733, %v729
    %v735 = vmul.f32 1.0, %v734
    %736 = vmatpush.msra.mxu0 0.0
    %737 = vmatpush.msra.mxu0 0.0
    %738 = vmatpush.msra.mxu0 0.0
    %739 = vmatpush.msra.mxu0 0.0
    %740 = vmatpush.msra.mxu0 0.0
    %741 = vmatpush.msra.mxu0 0.0
    %742 = vmatpush.msra.mxu0 0.0
    %743 = vmatpush.msra.mxu0 0.0
    %744 = vmatpush.msra.mxu0 0.0
    %745 = vmatpush.msra.mxu0 0.0
    %746 = vmatpush.msra.mxu0 0.0
    %747 = vmatpush.msra.mxu0 0.0
    %748 = vmatpush.msra.mxu0 0.0
    %749 = vmatpush.msra.mxu0 0.0
    %750 = vmatpush.msra.mxu0 0.0
    %751 = vmatpush.msra.mxu0 %v550
    %752 = vmatmul.f32.gmra.mxu0 %v693
    %v753 = vpop.f32.mrf.mxu0
    %v754 = vadd.f32 0.0, %v753
    %755 = vdwg.mxu0
    %v756 = vadd.f32 %v689, %v754
    %v757 = vadd.f32 %v756, %v631
    %v758 = vxor.u32 %v757, 2147483648
    %v759 = vmul.f32 %v758, 1.442695
    %v760 = vpow.pop %v759
    %v761 = vadd.f32 %v760, 1.0
    %v762 = vrcp.pop %v761
    %v763 = vmul.f32 %v761, %v762
    %v764 = vsub.f32 1.0, %v763
    %v765 = vmul.f32 %v762, %v764
    %v766 = vadd.f32 %v762, %v765
    %vm767 = vweird.f32 %v761
    %vm768 = vweird.f32 %v762
    %vm769 = vmor %vm767, %vm768
    %v770 = vsel %vm769, %v762, %v766
    %v771 = vand.u32 2147483647, %v761
    %vm772 = vcmp.eq.f32.partialorder %v771, 8.507059e+37
    %v773 = vand.u32 %v761, 2147483648
    %v774 = vor.u32 1.1754944e-38, %v773
    %v775 = vsel %vm772, %v774, %v770
    %v776 = vmul.f32 1.0, %v775
    %777 = vmatpush.msra.mxu0 0.0
    %778 = vmatpush.msra.mxu0 0.0
    %779 = vmatpush.msra.mxu0 0.0
    %780 = vmatpush.msra.mxu0 0.0
    %781 = vmatpush.msra.mxu0 0.0
    %782 = vmatpush.msra.mxu0 0.0
    %783 = vmatpush.msra.mxu0 0.0
    %784 = vmatpush.msra.mxu0 0.0
    %785 = vmatpush.msra.mxu0 0.0
    %786 = vmatpush.msra.mxu0 0.0
    %787 = vmatpush.msra.mxu0 0.0
    %788 = vmatpush.msra.mxu0 0.0
    %789 = vmatpush.msra.mxu0 0.0
    %790 = vmatpush.msra.mxu0 0.0
    %791 = vmatpush.msra.mxu0 0.0
    %792 = vmatpush.msra.mxu0 %v552
    %793 = vmatmul.f32.gmra.mxu0 %v693
    %v794 = vpop.f32.mrf.mxu0
    %v795 = vadd.f32 %v654, %v794
    %796 = vdwg.mxu0
    %v797 = vmul.f32 %v735, %v795
    %v798 = vadd.f32 %v691, %v797
    %v799 = vtanh.pop %v798
    %v800 = vsub.f32 1.0, %v776
    %v801 = vmul.f32 %v800, %v799
    %v802 = vmul.f32 %v776, %v685
    %v803 = vadd.f32 %v801, %v802
    %804 = vst.msk [vmem:[#allocation2] sm:$0xff] %vm420, %v803
    %s805 = scalar_lea.vmem [#allocation3], 8
    %806 = vst.msk [vmem:[%s805] sm:$0xff] %vm420, %v803
    %v807 = vld [vmem:[#allocation2] sm:$0xff]
    %s808 = scalar_lea.vmem [#allocation4], 16
    %v809 = vld [vmem:[%s808] sm:$0xff]
    %s810 = scalar_lea.vmem [#allocation5], 16
    %v811 = vld [vmem:[%s810] sm:$0xff]
    %s812 = scalar_lea.vmem [#allocation6], 16
    %v813 = vld [vmem:[%s812] sm:$0xff]
    %v815 = vsel %vm420, %v807, 0
    %817 = vmatpush.msra.mxu0 0.0
    %818 = vmatpush.msra.mxu0 0.0
    %819 = vmatpush.msra.mxu0 0.0
    %820 = vmatpush.msra.mxu0 0.0
    %821 = vmatpush.msra.mxu0 0.0
    %822 = vmatpush.msra.mxu0 0.0
    %823 = vmatpush.msra.mxu0 0.0
    %824 = vmatpush.msra.mxu0 0.0
    %825 = vmatpush.msra.mxu0 0.0
    %826 = vmatpush.msra.mxu0 0.0
    %827 = vmatpush.msra.mxu0 0.0
    %828 = vmatpush.msra.mxu0 0.0
    %829 = vmatpush.msra.mxu0 0.0
    %830 = vmatpush.msra.mxu0 0.0
    %831 = vmatpush.msra.mxu0 0.0
    %832 = vmatpush.msra.mxu0 %v548
    %833 = vmatmul.f32.gmra.mxu0 %v815
    %v834 = vpop.f32.mrf.mxu0
    %v835 = vadd.f32 0.0, %v834
    %836 = vdwg.mxu0
    %v837 = vadd.f32 %v809, %v835
    %v838 = vadd.f32 %v837, %v587
    %v839 = vxor.u32 %v838, 2147483648
    %v840 = vmul.f32 %v839, 1.442695
    %v841 = vpow.pop %v840
    %v842 = vadd.f32 %v841, 1.0
    %v843 = vrcp.pop %v842
    %v844 = vmul.f32 %v842, %v843
    %v845 = vsub.f32 1.0, %v844
    %v846 = vmul.f32 %v843, %v845
    %v847 = vadd.f32 %v843, %v846
    %vm848 = vweird.f32 %v842
    %vm849 = vweird.f32 %v843
    %vm850 = vmor %vm848, %vm849
    %v851 = vsel %vm850, %v843, %v847
    %v852 = vand.u32 2147483647, %v842
    %vm853 = vcmp.eq.f32.partialorder %v852, 8.507059e+37
    %v854 = vand.u32 %v842, 2147483648
    %v855 = vor.u32 1.1754944e-38, %v854
    %v856 = vsel %vm853, %v855, %v851
    %v857 = vmul.f32 1.0, %v856
    %858 = vmatpush.msra.mxu0 0.0
    %859 = vmatpush.msra.mxu0 0.0
    %860 = vmatpush.msra.mxu0 0.0
    %861 = vmatpush.msra.mxu0 0.0
    %862 = vmatpush.msra.mxu0 0.0
    %863 = vmatpush.msra.mxu0 0.0
    %864 = vmatpush.msra.mxu0 0.0
    %865 = vmatpush.msra.mxu0 0.0
    %866 = vmatpush.msra.mxu0 0.0
    %867 = vmatpush.msra.mxu0 0.0
    %868 = vmatpush.msra.mxu0 0.0
    %869 = vmatpush.msra.mxu0 0.0
    %870 = vmatpush.msra.mxu0 0.0
    %871 = vmatpush.msra.mxu0 0.0
    %872 = vmatpush.msra.mxu0 0.0
    %873 = vmatpush.msra.mxu0 %v550
    %874 = vmatmul.f32.gmra.mxu0 %v815
    %v875 = vpop.f32.mrf.mxu0
    %v876 = vadd.f32 0.0, %v875
    %877 = vdwg.mxu0
    %v878 = vadd.f32 %v811, %v876
    %v879 = vadd.f32 %v878, %v631
    %v880 = vxor.u32 %v879, 2147483648
    %v881 = vmul.f32 %v880, 1.442695
    %v882 = vpow.pop %v881
    %v883 = vadd.f32 %v882, 1.0
    %v884 = vrcp.pop %v883
    %v885 = vmul.f32 %v883, %v884
    %v886 = vsub.f32 1.0, %v885
    %v887 = vmul.f32 %v884, %v886
    %v888 = vadd.f32 %v884, %v887
    %vm889 = vweird.f32 %v883
    %vm890 = vweird.f32 %v884
    %vm891 = vmor %vm889, %vm890
    %v892 = vsel %vm891, %v884, %v888
    %v893 = vand.u32 2147483647, %v883
    %vm894 = vcmp.eq.f32.partialorder %v893, 8.507059e+37
    %v895 = vand.u32 %v883, 2147483648
    %v896 = vor.u32 1.1754944e-38, %v895
    %v897 = vsel %vm894, %v896, %v892
    %v898 = vmul.f32 1.0, %v897
    %899 = vmatpush.msra.mxu0 0.0
    %900 = vmatpush.msra.mxu0 0.0
    %901 = vmatpush.msra.mxu0 0.0
    %902 = vmatpush.msra.mxu0 0.0
    %903 = vmatpush.msra.mxu0 0.0
    %904 = vmatpush.msra.mxu0 0.0
    %905 = vmatpush.msra.mxu0 0.0
    %906 = vmatpush.msra.mxu0 0.0
    %907 = vmatpush.msra.mxu0 0.0
    %908 = vmatpush.msra.mxu0 0.0
    %909 = vmatpush.msra.mxu0 0.0
    %910 = vmatpush.msra.mxu0 0.0
    %911 = vmatpush.msra.mxu0 0.0
    %912 = vmatpush.msra.mxu0 0.0
    %913 = vmatpush.msra.mxu0 0.0
    %914 = vmatpush.msra.mxu0 %v552
    %915 = vmatmul.f32.gmra.mxu0 %v815
    %v916 = vpop.f32.mrf.mxu0
    %v917 = vadd.f32 %v654, %v916
    %918 = vdwg.mxu0
    %v919 = vmul.f32 %v857, %v917
    %v920 = vadd.f32 %v813, %v919
    %v921 = vtanh.pop %v920
    %v922 = vsub.f32 1.0, %v898
    %v923 = vmul.f32 %v922, %v921
    %v924 = vmul.f32 %v898, %v807
    %v925 = vadd.f32 %v923, %v924
    %926 = vst.msk [vmem:[#allocation2] sm:$0xff] %vm420, %v925
    %s927 = scalar_lea.vmem [#allocation3], 16
    %928 = vst.msk [vmem:[%s927] sm:$0xff] %vm420, %v925
    %v929 = vld [vmem:[#allocation2] sm:$0xff]
    %s930 = scalar_lea.vmem [#allocation4], 24
    %v931 = vld [vmem:[%s930] sm:$0xff]
    %s932 = scalar_lea.vmem [#allocation5], 24
    %v933 = vld [vmem:[%s932] sm:$0xff]
    %s934 = scalar_lea.vmem [#allocation6], 24
    %v935 = vld [vmem:[%s934] sm:$0xff]
    %v937 = vsel %vm420, %v929, 0
    %939 = vmatpush.msra.mxu0 0.0
    %940 = vmatpush.msra.mxu0 0.0
    %941 = vmatpush.msra.mxu0 0.0
    %942 = vmatpush.msra.mxu0 0.0
    %943 = vmatpush.msra.mxu0 0.0
    %944 = vmatpush.msra.mxu0 0.0
    %945 = vmatpush.msra.mxu0 0.0
    %946 = vmatpush.msra.mxu0 0.0
    %947 = vmatpush.msra.mxu0 0.0
    %948 = vmatpush.msra.mxu0 0.0
    %949 = vmatpush.msra.mxu0 0.0
    %950 = vmatpush.msra.mxu0 0.0
    %951 = vmatpush.msra.mxu0 0.0
    %952 = vmatpush.msra.mxu0 0.0
    %953 = vmatpush.msra.mxu0 0.0
    %954 = vmatpush.msra.mxu0 %v548
    %955 = vmatmul.f32.gmra.mxu0 %v937
    %v956 = vpop.f32.mrf.mxu0
    %v957 = vadd.f32 0.0, %v956
    %958 = vdwg.mxu0
    %v959 = vadd.f32 %v931, %v957
    %v960 = vadd.f32 %v959, %v587
    %v961 = vxor.u32 %v960, 2147483648
    %v962 = vmul.f32 %v961, 1.442695
    %v963 = vpow.pop %v962
    %v964 = vadd.f32 %v963, 1.0
    %v965 = vrcp.pop %v964
    %v966 = vmul.f32 %v964, %v965
    %v967 = vsub.f32 1.0, %v966
    %v968 = vmul.f32 %v965, %v967
    %v969 = vadd.f32 %v965, %v968
    %vm970 = vweird.f32 %v964
    %vm971 = vweird.f32 %v965
    %vm972 = vmor %vm970, %vm971
    %v973 = vsel %vm972, %v965, %v969
    %v974 = vand.u32 2147483647, %v964
    %vm975 = vcmp.eq.f32.partialorder %v974, 8.507059e+37
    %v976 = vand.u32 %v964, 2147483648
    %v977 = vor.u32 1.1754944e-38, %v976
    %v978 = vsel %vm975, %v977, %v973
    %v979 = vmul.f32 1.0, %v978
    %980 = vmatpush.msra.mxu0 0.0
    %981 = vmatpush.msra.mxu0 0.0
    %982 = vmatpush.msra.mxu0 0.0
    %983 = vmatpush.msra.mxu0 0.0
    %984 = vmatpush.msra.mxu0 0.0
    %985 = vmatpush.msra.mxu0 0.0
    %986 = vmatpush.msra.mxu0 0.0
    %987 = vmatpush.msra.mxu0 0.0
    %988 = vmatpush.msra.mxu0 0.0
    %989 = vmatpush.msra.mxu0 0.0
    %990 = vmatpush.msra.mxu0 0.0
    %991 = vmatpush.msra.mxu0 0.0
    %992 = vmatpush.msra.mxu0 0.0
    %993 = vmatpush.msra.mxu0 0.0
    %994 = vmatpush.msra.mxu0 0.0
    %995 = vmatpush.msra.mxu0 %v550
    %996 = vmatmul.f32.gmra.mxu0 %v937
    %v997 = vpop.f32.mrf.mxu0
    %v998 = vadd.f32 0.0, %v997
    %999 = vdwg.mxu0
    %v1000 = vadd.f32 %v933, %v998
    %v1001 = vadd.f32 %v1000, %v631
    %v1002 = vxor.u32 %v1001, 2147483648
    %v1003 = vmul.f32 %v1002, 1.442695
    %v1004 = vpow.pop %v1003
    %v1005 = vadd.f32 %v1004, 1.0
    %v1006 = vrcp.pop %v1005
    %v1007 = vmul.f32 %v1005, %v1006
    %v1008 = vsub.f32 1.0, %v1007
    %v1009 = vmul.f32 %v1006, %v1008
    %v1010 = vadd.f32 %v1006, %v1009
    %vm1011 = vweird.f32 %v1005
    %vm1012 = vweird.f32 %v1006
    %vm1013 = vmor %vm1011, %vm1012
    %v1014 = vsel %vm1013, %v1006, %v1010
    %v1015 = vand.u32 2147483647, %v1005
    %vm1016 = vcmp.eq.f32.partialorder %v1015, 8.507059e+37
    %v1017 = vand.u32 %v1005, 2147483648
    %v1018 = vor.u32 1.1754944e-38, %v1017
    %v1019 = vsel %vm1016, %v1018, %v1014
    %v1020 = vmul.f32 1.0, %v1019
    %1021 = vmatpush.msra.mxu0 0.0
    %1022 = vmatpush.msra.mxu0 0.0
    %1023 = vmatpush.msra.mxu0 0.0
    %1024 = vmatpush.msra.mxu0 0.0
    %1025 = vmatpush.msra.mxu0 0.0
    %1026 = vmatpush.msra.mxu0 0.0
    %1027 = vmatpush.msra.mxu0 0.0
    %1028 = vmatpush.msra.mxu0 0.0
    %1029 = vmatpush.msra.mxu0 0.0
    %1030 = vmatpush.msra.mxu0 0.0
    %1031 = vmatpush.msra.mxu0 0.0
    %1032 = vmatpush.msra.mxu0 0.0
    %1033 = vmatpush.msra.mxu0 0.0
    %1034 = vmatpush.msra.mxu0 0.0
    %1035 = vmatpush.msra.mxu0 0.0
    %1036 = vmatpush.msra.mxu0 %v552
    %1037 = vmatmul.f32.gmra.mxu0 %v937
    %v1038 = vpop.f32.mrf.mxu0
    %v1039 = vadd.f32 %v654, %v1038
    %1040 = vdwg.mxu0
    %v1041 = vmul.f32 %v979, %v1039
    %v1042 = vadd.f32 %v935, %v1041
    %v1043 = vtanh.pop %v1042
    %v1044 = vsub.f32 1.0, %v1020
    %v1045 = vmul.f32 %v1044, %v1043
    %v1046 = vmul.f32 %v1020, %v929
    %v1047 = vadd.f32 %v1045, %v1046
    %1048 = vst.msk [vmem:[#allocation2] sm:$0xff] %vm420, %v1047
    %s1049 = scalar_lea.vmem [#allocation3], 24
    %1050 = vst.msk [vmem:[%s1049] sm:$0xff] %vm420, %v1047
    %v1051 = vld [vmem:[#allocation2] sm:$0xff]
    %s1052 = scalar_lea.vmem [#allocation4], 32
    %v1053 = vld [vmem:[%s1052] sm:$0xff]
    %s1054 = scalar_lea.vmem [#allocation5], 32
    %v1055 = vld [vmem:[%s1054] sm:$0xff]
    %s1056 = scalar_lea.vmem [#allocation6], 32
    %v1057 = vld [vmem:[%s1056] sm:$0xff]
    %v1059 = vsel %vm420, %v1051, 0
    %1061 = vmatpush.msra.mxu0 0.0
    %1062 = vmatpush.msra.mxu0 0.0
    %1063 = vmatpush.msra.mxu0 0.0
    %1064 = vmatpush.msra.mxu0 0.0
    %1065 = vmatpush.msra.mxu0 0.0
    %1066 = vmatpush.msra.mxu0 0.0
    %1067 = vmatpush.msra.mxu0 0.0
    %1068 = vmatpush.msra.mxu0 0.0
    %1069 = vmatpush.msra.mxu0 0.0
    %1070 = vmatpush.msra.mxu0 0.0
    %1071 = vmatpush.msra.mxu0 0.0
    %1072 = vmatpush.msra.mxu0 0.0
    %1073 = vmatpush.msra.mxu0 0.0
    %1074 = vmatpush.msra.mxu0 0.0
    %1075 = vmatpush.msra.mxu0 0.0
    %1076 = vmatpush.msra.mxu0 %v548
    %1077 = vmatmul.f32.gmra.mxu0 %v1059
    %v1078 = vpop.f32.mrf.mxu0
    %v1079 = vadd.f32 0.0, %v1078
    %1080 = vdwg.mxu0
    %v1081 = vadd.f32 %v1053, %v1079
    %v1082 = vadd.f32 %v1081, %v587
    %v1083 = vxor.u32 %v1082, 2147483648
    %v1084 = vmul.f32 %v1083, 1.442695
    %v1085 = vpow.pop %v1084
    %v1086 = vadd.f32 %v1085, 1.0
    %v1087 = vrcp.pop %v1086
    %v1088 = vmul.f32 %v1086, %v1087
    %v1089 = vsub.f32 1.0, %v1088
    %v1090 = vmul.f32 %v1087, %v1089
    %v1091 = vadd.f32 %v1087, %v1090
    %vm1092 = vweird.f32 %v1086
    %vm1093 = vweird.f32 %v1087
    %vm1094 = vmor %vm1092, %vm1093
    %v1095 = vsel %vm1094, %v1087, %v1091
    %v1096 = vand.u32 2147483647, %v1086
    %vm1097 = vcmp.eq.f32.partialorder %v1096, 8.507059e+37
    %v1098 = vand.u32 %v1086, 2147483648
    %v1099 = vor.u32 1.1754944e-38, %v1098
    %v1100 = vsel %vm1097, %v1099, %v1095
    %v1101 = vmul.f32 1.0, %v1100
    %1102 = vmatpush.msra.mxu0 0.0
    %1103 = vmatpush.msra.mxu0 0.0
    %1104 = vmatpush.msra.mxu0 0.0
    %1105 = vmatpush.msra.mxu0 0.0
    %1106 = vmatpush.msra.mxu0 0.0
    %1107 = vmatpush.msra.mxu0 0.0
    %1108 = vmatpush.msra.mxu0 0.0
    %1109 = vmatpush.msra.mxu0 0.0
    %1110 = vmatpush.msra.mxu0 0.0
    %1111 = vmatpush.msra.mxu0 0.0
    %1112 = vmatpush.msra.mxu0 0.0
    %1113 = vmatpush.msra.mxu0 0.0
    %1114 = vmatpush.msra.mxu0 0.0
    %1115 = vmatpush.msra.mxu0 0.0
    %1116 = vmatpush.msra.mxu0 0.0
    %1117 = vmatpush.msra.mxu0 %v550
    %1118 = vmatmul.f32.gmra.mxu0 %v1059
    %v1119 = vpop.f32.mrf.mxu0
    %v1120 = vadd.f32 0.0, %v1119
    %1121 = vdwg.mxu0
    %v1122 = vadd.f32 %v1055, %v1120
    %v1123 = vadd.f32 %v1122, %v631
    %v1124 = vxor.u32 %v1123, 2147483648
    %v1125 = vmul.f32 %v1124, 1.442695
    %v1126 = vpow.pop %v1125
    %v1127 = vadd.f32 %v1126, 1.0
    %v1128 = vrcp.pop %v1127
    %v1129 = vmul.f32 %v1127, %v1128
    %v1130 = vsub.f32 1.0, %v1129
    %v1131 = vmul.f32 %v1128, %v1130
    %v1132 = vadd.f32 %v1128, %v1131
    %vm1133 = vweird.f32 %v1127
    %vm1134 = vweird.f32 %v1128
    %vm1135 = vmor %vm1133, %vm1134
    %v1136 = vsel %vm1135, %v1128, %v1132
    %v1137 = vand.u32 2147483647, %v1127
    %vm1138 = vcmp.eq.f32.partialorder %v1137, 8.507059e+37
    %v1139 = vand.u32 %v1127, 2147483648
    %v1140 = vor.u32 1.1754944e-38, %v1139
    %v1141 = vsel %vm1138, %v1140, %v1136
    %v1142 = vmul.f32 1.0, %v1141
    %1143 = vmatpush.msra.mxu0 0.0
    %1144 = vmatpush.msra.mxu0 0.0
    %1145 = vmatpush.msra.mxu0 0.0
    %1146 = vmatpush.msra.mxu0 0.0
    %1147 = vmatpush.msra.mxu0 0.0
    %1148 = vmatpush.msra.mxu0 0.0
    %1149 = vmatpush.msra.mxu0 0.0
    %1150 = vmatpush.msra.mxu0 0.0
    %1151 = vmatpush.msra.mxu0 0.0
    %1152 = vmatpush.msra.mxu0 0.0
    %1153 = vmatpush.msra.mxu0 0.0
    %1154 = vmatpush.msra.mxu0 0.0
    %1155 = vmatpush.msra.mxu0 0.0
    %1156 = vmatpush.msra.mxu0 0.0
    %1157 = vmatpush.msra.mxu0 0.0
    %1158 = vmatpush.msra.mxu0 %v552
    %1159 = vmatmul.f32.gmra.mxu0 %v1059
    %v1160 = vpop.f32.mrf.mxu0
    %v1161 = vadd.f32 %v654, %v1160
    %1162 = vdwg.mxu0
    %v1163 = vmul.f32 %v1101, %v1161
    %v1164 = vadd.f32 %v1057, %v1163
    %v1165 = vtanh.pop %v1164
    %v1166 = vsub.f32 1.0, %v1142
    %v1167 = vmul.f32 %v1166, %v1165
    %v1168 = vmul.f32 %v1142, %v1051
    %v1169 = vadd.f32 %v1167, %v1168
    %1170 = vst.msk [vmem:[#allocation2] sm:$0xff] %vm420, %v1169
    %s1171 = scalar_lea.vmem [#allocation3], 32
    %1172 = vst.msk [vmem:[%s1171] sm:$0xff] %vm420, %v1169
    %v1173 = vld [vmem:[#allocation2] sm:$0xff]
    %s1174 = scalar_lea.vmem [#allocation4], 40
    %v1175 = vld [vmem:[%s1174] sm:$0xff]
    %s1176 = scalar_lea.vmem [#allocation5], 40
    %v1177 = vld [vmem:[%s1176] sm:$0xff]
    %s1178 = scalar_lea.vmem [#allocation6], 40
    %v1179 = vld [vmem:[%s1178] sm:$0xff]
    %v1181 = vsel %vm420, %v1173, 0
    %1183 = vmatpush.msra.mxu0 0.0
    %1184 = vmatpush.msra.mxu0 0.0
    %1185 = vmatpush.msra.mxu0 0.0
    %1186 = vmatpush.msra.mxu0 0.0
    %1187 = vmatpush.msra.mxu0 0.0
    %1188 = vmatpush.msra.mxu0 0.0
    %1189 = vmatpush.msra.mxu0 0.0
    %1190 = vmatpush.msra.mxu0 0.0
    %1191 = vmatpush.msra.mxu0 0.0
    %1192 = vmatpush.msra.mxu0 0.0
    %1193 = vmatpush.msra.mxu0 0.0
    %1194 = vmatpush.msra.mxu0 0.0
    %1195 = vmatpush.msra.mxu0 0.0
    %1196 = vmatpush.msra.mxu0 0.0
    %1197 = vmatpush.msra.mxu0 0.0
    %1198 = vmatpush.msra.mxu0 %v548
    %1199 = vmatmul.f32.gmra.mxu0 %v1181
    %v1200 = vpop.f32.mrf.mxu0
    %v1201 = vadd.f32 0.0, %v1200
    %1202 = vdwg.mxu0
    %v1203 = vadd.f32 %v1175, %v1201
    %v1204 = vadd.f32 %v1203, %v587
    %v1205 = vxor.u32 %v1204, 2147483648
    %v1206 = vmul.f32 %v1205, 1.442695
    %v1207 = vpow.pop %v1206
    %v1208 = vadd.f32 %v1207, 1.0
    %v1209 = vrcp.pop %v1208
    %v1210 = vmul.f32 %v1208, %v1209
    %v1211 = vsub.f32 1.0, %v1210
    %v1212 = vmul.f32 %v1209, %v1211
    %v1213 = vadd.f32 %v1209, %v1212
    %vm1214 = vweird.f32 %v1208
    %vm1215 = vweird.f32 %v1209
    %vm1216 = vmor %vm1214, %vm1215
    %v1217 = vsel %vm1216, %v1209, %v1213
    %v1218 = vand.u32 2147483647, %v1208
    %vm1219 = vcmp.eq.f32.partialorder %v1218, 8.507059e+37
    %v1220 = vand.u32 %v1208, 2147483648
    %v1221 = vor.u32 1.1754944e-38, %v1220
    %v1222 = vsel %vm1219, %v1221, %v1217
    %v1223 = vmul.f32 1.0, %v1222
    %1224 = vmatpush.msra.mxu0 0.0
    %1225 = vmatpush.msra.mxu0 0.0
    %1226 = vmatpush.msra.mxu0 0.0
    %1227 = vmatpush.msra.mxu0 0.0
    %1228 = vmatpush.msra.mxu0 0.0
    %1229 = vmatpush.msra.mxu0 0.0
    %1230 = vmatpush.msra.mxu0 0.0
    %1231 = vmatpush.msra.mxu0 0.0
    %1232 = vmatpush.msra.mxu0 0.0
    %1233 = vmatpush.msra.mxu0 0.0
    %1234 = vmatpush.msra.mxu0 0.0
    %1235 = vmatpush.msra.mxu0 0.0
    %1236 = vmatpush.msra.mxu0 0.0
    %1237 = vmatpush.msra.mxu0 0.0
    %1238 = vmatpush.msra.mxu0 0.0
    %1239 = vmatpush.msra.mxu0 %v550
    %1240 = vmatmul.f32.gmra.mxu0 %v1181
    %v1241 = vpop.f32.mrf.mxu0
    %v1242 = vadd.f32 0.0, %v1241
    %1243 = vdwg.mxu0
    %v1244 = vadd.f32 %v1177, %v1242
    %v1245 = vadd.f32 %v1244, %v631
    %v1246 = vxor.u32 %v1245, 2147483648
    %v1247 = vmul.f32 %v1246, 1.442695
    %v1248 = vpow.pop %v1247
    %v1249 = vadd.f32 %v1248, 1.0
    %v1250 = vrcp.pop %v1249
    %v1251 = vmul.f32 %v1249, %v1250
    %v1252 = vsub.f32 1.0, %v1251
    %v1253 = vmul.f32 %v1250, %v1252
    %v1254 = vadd.f32 %v1250, %v1253
    %vm1255 = vweird.f32 %v1249
    %vm1256 = vweird.f32 %v1250
    %vm1257 = vmor %vm1255, %vm1256
    %v1258 = vsel %vm1257, %v1250, %v1254
    %v1259 = vand.u32 2147483647, %v1249
    %vm1260 = vcmp.eq.f32.partialorder %v1259, 8.507059e+37
    %v1261 = vand.u32 %v1249, 2147483648
    %v1262 = vor.u32 1.1754944e-38, %v1261
    %v1263 = vsel %vm1260, %v1262, %v1258
    %v1264 = vmul.f32 1.0, %v1263
    %1265 = vmatpush.msra.mxu0 0.0
    %1266 = vmatpush.msra.mxu0 0.0
    %1267 = vmatpush.msra.mxu0 0.0
    %1268 = vmatpush.msra.mxu0 0.0
    %1269 = vmatpush.msra.mxu0 0.0
    %1270 = vmatpush.msra.mxu0 0.0
    %1271 = vmatpush.msra.mxu0 0.0
    %1272 = vmatpush.msra.mxu0 0.0
    %1273 = vmatpush.msra.mxu0 0.0
    %1274 = vmatpush.msra.mxu0 0.0
    %1275 = vmatpush.msra.mxu0 0.0
    %1276 = vmatpush.msra.mxu0 0.0
    %1277 = vmatpush.msra.mxu0 0.0
    %1278 = vmatpush.msra.mxu0 0.0
    %1279 = vmatpush.msra.mxu0 0.0
    %1280 = vmatpush.msra.mxu0 %v552
    %1281 = vmatmul.f32.gmra.mxu0 %v1181
    %v1282 = vpop.f32.mrf.mxu0
    %v1283 = vadd.f32 %v654, %v1282
    %1284 = vdwg.mxu0
    %v1285 = vmul.f32 %v1223, %v1283
    %v1286 = vadd.f32 %v1179, %v1285
    %v1287 = vtanh.pop %v1286
    %v1288 = vsub.f32 1.0, %v1264
    %v1289 = vmul.f32 %v1288, %v1287
    %v1290 = vmul.f32 %v1264, %v1173
    %v1291 = vadd.f32 %v1289, %v1290
    %1292 = vst.msk [vmem:[#allocation2] sm:$0xff] %vm420, %v1291
    %s1293 = scalar_lea.vmem [#allocation3], 40
    %1294 = vst.msk [vmem:[%s1293] sm:$0xff] %vm420, %v1291
    %v1295 = vld [vmem:[#allocation2] sm:$0xff]
    %s1296 = scalar_lea.vmem [#allocation4], 48
    %v1297 = vld [vmem:[%s1296] sm:$0xff]
    %s1298 = scalar_lea.vmem [#allocation5], 48
    %v1299 = vld [vmem:[%s1298] sm:$0xff]
    %s1300 = scalar_lea.vmem [#allocation6], 48
    %v1301 = vld [vmem:[%s1300] sm:$0xff]
    %v1303 = vsel %vm420, %v1295, 0
    %1305 = vmatpush.msra.mxu0 0.0
    %1306 = vmatpush.msra.mxu0 0.0
    %1307 = vmatpush.msra.mxu0 0.0
    %1308 = vmatpush.msra.mxu0 0.0
    %1309 = vmatpush.msra.mxu0 0.0
    %1310 = vmatpush.msra.mxu0 0.0
    %1311 = vmatpush.msra.mxu0 0.0
    %1312 = vmatpush.msra.mxu0 0.0
    %1313 = vmatpush.msra.mxu0 0.0
    %1314 = vmatpush.msra.mxu0 0.0
    %1315 = vmatpush.msra.mxu0 0.0
    %1316 = vmatpush.msra.mxu0 0.0
    %1317 = vmatpush.msra.mxu0 0.0
    %1318 = vmatpush.msra.mxu0 0.0
    %1319 = vmatpush.msra.mxu0 0.0
    %1320 = vmatpush.msra.mxu0 %v548
    %1321 = vmatmul.f32.gmra.mxu0 %v1303
    %v1322 = vpop.f32.mrf.mxu0
    %v1323 = vadd.f32 0.0, %v1322
    %1324 = vdwg.mxu0
    %v1325 = vadd.f32 %v1297, %v1323
    %v1326 = vadd.f32 %v1325, %v587
    %v1327 = vxor.u32 %v1326, 2147483648
    %v1328 = vmul.f32 %v1327, 1.442695
    %v1329 = vpow.pop %v1328
    %v1330 = vadd.f32 %v1329, 1.0
    %v1331 = vrcp.pop %v1330
    %v1332 = vmul.f32 %v1330, %v1331
    %v1333 = vsub.f32 1.0, %v1332
    %v1334 = vmul.f32 %v1331, %v1333
    %v1335 = vadd.f32 %v1331, %v1334
    %vm1336 = vweird.f32 %v1330
    %vm1337 = vweird.f32 %v1331
    %vm1338 = vmor %vm1336, %vm1337
    %v1339 = vsel %vm1338, %v1331, %v1335
    %v1340 = vand.u32 2147483647, %v1330
    %vm1341 = vcmp.eq.f32.partialorder %v1340, 8.507059e+37
    %v1342 = vand.u32 %v1330, 2147483648
    %v1343 = vor.u32 1.1754944e-38, %v1342
    %v1344 = vsel %vm1341, %v1343, %v1339
    %v1345 = vmul.f32 1.0, %v1344
    %1346 = vmatpush.msra.mxu0 0.0
    %1347 = vmatpush.msra.mxu0 0.0
    %1348 = vmatpush.msra.mxu0 0.0
    %1349 = vmatpush.msra.mxu0 0.0
    %1350 = vmatpush.msra.mxu0 0.0
    %1351 = vmatpush.msra.mxu0 0.0
    %1352 = vmatpush.msra.mxu0 0.0
    %1353 = vmatpush.msra.mxu0 0.0
    %1354 = vmatpush.msra.mxu0 0.0
    %1355 = vmatpush.msra.mxu0 0.0
    %1356 = vmatpush.msra.mxu0 0.0
    %1357 = vmatpush.msra.mxu0 0.0
    %1358 = vmatpush.msra.mxu0 0.0
    %1359 = vmatpush.msra.mxu0 0.0
    %1360 = vmatpush.msra.mxu0 0.0
    %1361 = vmatpush.msra.mxu0 %v550
    %1362 = vmatmul.f32.gmra.mxu0 %v1303
    %v1363 = vpop.f32.mrf.mxu0
    %v1364 = vadd.f32 0.0, %v1363
    %1365 = vdwg.mxu0
    %v1366 = vadd.f32 %v1299, %v1364
    %v1367 = vadd.f32 %v1366, %v631
    %v1368 = vxor.u32 %v1367, 2147483648
    %v1369 = vmul.f32 %v1368, 1.442695
    %v1370 = vpow.pop %v1369
    %v1371 = vadd.f32 %v1370, 1.0
    %v1372 = vrcp.pop %v1371
    %v1373 = vmul.f32 %v1371, %v1372
    %v1374 = vsub.f32 1.0, %v1373
    %v1375 = vmul.f32 %v1372, %v1374
    %v1376 = vadd.f32 %v1372, %v1375
    %vm1377 = vweird.f32 %v1371
    %vm1378 = vweird.f32 %v1372
    %vm1379 = vmor %vm1377, %vm1378
    %v1380 = vsel %vm1379, %v1372, %v1376
    %v1381 = vand.u32 2147483647, %v1371
    %vm1382 = vcmp.eq.f32.partialorder %v1381, 8.507059e+37
    %v1383 = vand.u32 %v1371, 2147483648
    %v1384 = vor.u32 1.1754944e-38, %v1383
    %v1385 = vsel %vm1382, %v1384, %v1380
    %v1386 = vmul.f32 1.0, %v1385
    %1387 = vmatpush.msra.mxu0 0.0
    %1388 = vmatpush.msra.mxu0 0.0
    %1389 = vmatpush.msra.mxu0 0.0
    %1390 = vmatpush.msra.mxu0 0.0
    %1391 = vmatpush.msra.mxu0 0.0
    %1392 = vmatpush.msra.mxu0 0.0
    %1393 = vmatpush.msra.mxu0 0.0
    %1394 = vmatpush.msra.mxu0 0.0
    %1395 = vmatpush.msra.mxu0 0.0
    %1396 = vmatpush.msra.mxu0 0.0
    %1397 = vmatpush.msra.mxu0 0.0
    %1398 = vmatpush.msra.mxu0 0.0
    %1399 = vmatpush.msra.mxu0 0.0
    %1400 = vmatpush.msra.mxu0 0.0
    %1401 = vmatpush.msra.mxu0 0.0
    %1402 = vmatpush.msra.mxu0 %v552
    %1403 = vmatmul.f32.gmra.mxu0 %v1303
    %v1404 = vpop.f32.mrf.mxu0
    %v1405 = vadd.f32 %v654, %v1404
    %1406 = vdwg.mxu0
    %v1407 = vmul.f32 %v1345, %v1405
    %v1408 = vadd.f32 %v1301, %v1407
    %v1409 = vtanh.pop %v1408
    %v1410 = vsub.f32 1.0, %v1386
    %v1411 = vmul.f32 %v1410, %v1409
    %v1412 = vmul.f32 %v1386, %v1295
    %v1413 = vadd.f32 %v1411, %v1412
    %1414 = vst.msk [vmem:[#allocation2] sm:$0xff] %vm420, %v1413
    %s1415 = scalar_lea.vmem [#allocation3], 48
    %1416 = vst.msk [vmem:[%s1415] sm:$0xff] %vm420, %v1413
    %v1417 = vld [vmem:[#allocation2] sm:$0xff]
    %s1418 = scalar_lea.vmem [#allocation4], 56
    %v1419 = vld [vmem:[%s1418] sm:$0xff]
    %s1420 = scalar_lea.vmem [#allocation5], 56
    %v1421 = vld [vmem:[%s1420] sm:$0xff]
    %s1422 = scalar_lea.vmem [#allocation6], 56
    %v1423 = vld [vmem:[%s1422] sm:$0xff]
    %v1425 = vsel %vm420, %v1417, 0
    %1427 = vmatpush.msra.mxu0 0.0
    %1428 = vmatpush.msra.mxu0 0.0
    %1429 = vmatpush.msra.mxu0 0.0
    %1430 = vmatpush.msra.mxu0 0.0
    %1431 = vmatpush.msra.mxu0 0.0
    %1432 = vmatpush.msra.mxu0 0.0
    %1433 = vmatpush.msra.mxu0 0.0
    %1434 = vmatpush.msra.mxu0 0.0
    %1435 = vmatpush.msra.mxu0 0.0
    %1436 = vmatpush.msra.mxu0 0.0
    %1437 = vmatpush.msra.mxu0 0.0
    %1438 = vmatpush.msra.mxu0 0.0
    %1439 = vmatpush.msra.mxu0 0.0
    %1440 = vmatpush.msra.mxu0 0.0
    %1441 = vmatpush.msra.mxu0 0.0
    %1442 = vmatpush.msra.mxu0 %v548
    %1443 = vmatmul.f32.gmra.mxu0 %v1425
    %v1444 = vpop.f32.mrf.mxu0
    %v1445 = vadd.f32 0.0, %v1444
    %1446 = vdwg.mxu0
    %v1447 = vadd.f32 %v1419, %v1445
    %v1448 = vadd.f32 %v1447, %v587
    %v1449 = vxor.u32 %v1448, 2147483648
    %v1450 = vmul.f32 %v1449, 1.442695
    %v1451 = vpow.pop %v1450
    %v1452 = vadd.f32 %v1451, 1.0
    %v1453 = vrcp.pop %v1452
    %v1454 = vmul.f32 %v1452, %v1453
    %v1455 = vsub.f32 1.0, %v1454
    %v1456 = vmul.f32 %v1453, %v1455
    %v1457 = vadd.f32 %v1453, %v1456
    %vm1458 = vweird.f32 %v1452
    %vm1459 = vweird.f32 %v1453
    %vm1460 = vmor %vm1458, %vm1459
    %v1461 = vsel %vm1460, %v1453, %v1457
    %v1462 = vand.u32 2147483647, %v1452
    %vm1463 = vcmp.eq.f32.partialorder %v1462, 8.507059e+37
    %v1464 = vand.u32 %v1452, 2147483648
    %v1465 = vor.u32 1.1754944e-38, %v1464
    %v1466 = vsel %vm1463, %v1465, %v1461
    %v1467 = vmul.f32 1.0, %v1466
    %1468 = vmatpush.msra.mxu0 0.0
    %1469 = vmatpush.msra.mxu0 0.0
    %1470 = vmatpush.msra.mxu0 0.0
    %1471 = vmatpush.msra.mxu0 0.0
    %1472 = vmatpush.msra.mxu0 0.0
    %1473 = vmatpush.msra.mxu0 0.0
    %1474 = vmatpush.msra.mxu0 0.0
    %1475 = vmatpush.msra.mxu0 0.0
    %1476 = vmatpush.msra.mxu0 0.0
    %1477 = vmatpush.msra.mxu0 0.0
    %1478 = vmatpush.msra.mxu0 0.0
    %1479 = vmatpush.msra.mxu0 0.0
    %1480 = vmatpush.msra.mxu0 0.0
    %1481 = vmatpush.msra.mxu0 0.0
    %1482 = vmatpush.msra.mxu0 0.0
    %1483 = vmatpush.msra.mxu0 %v550
    %1484 = vmatmul.f32.gmra.mxu0 %v1425
    %v1485 = vpop.f32.mrf.mxu0
    %v1486 = vadd.f32 0.0, %v1485
    %1487 = vdwg.mxu0
    %v1488 = vadd.f32 %v1421, %v1486
    %v1489 = vadd.f32 %v1488, %v631
    %v1490 = vxor.u32 %v1489, 2147483648
    %v1491 = vmul.f32 %v1490, 1.442695
    %v1492 = vpow.pop %v1491
    %v1493 = vadd.f32 %v1492, 1.0
    %v1494 = vrcp.pop %v1493
    %v1495 = vmul.f32 %v1493, %v1494
    %v1496 = vsub.f32 1.0, %v1495
    %v1497 = vmul.f32 %v1494, %v1496
    %v1498 = vadd.f32 %v1494, %v1497
    %vm1499 = vweird.f32 %v1493
    %vm1500 = vweird.f32 %v1494
    %vm1501 = vmor %vm1499, %vm1500
    %v1502 = vsel %vm1501, %v1494, %v1498
    %v1503 = vand.u32 2147483647, %v1493
    %vm1504 = vcmp.eq.f32.partialorder %v1503, 8.507059e+37
    %v1505 = vand.u32 %v1493, 2147483648
    %v1506 = vor.u32 1.1754944e-38, %v1505
    %v1507 = vsel %vm1504, %v1506, %v1502
    %v1508 = vmul.f32 1.0, %v1507
    %1509 = vmatpush.msra.mxu0 0.0
    %1510 = vmatpush.msra.mxu0 0.0
    %1511 = vmatpush.msra.mxu0 0.0
    %1512 = vmatpush.msra.mxu0 0.0
    %1513 = vmatpush.msra.mxu0 0.0
    %1514 = vmatpush.msra.mxu0 0.0
    %1515 = vmatpush.msra.mxu0 0.0
    %1516 = vmatpush.msra.mxu0 0.0
    %1517 = vmatpush.msra.mxu0 0.0
    %1518 = vmatpush.msra.mxu0 0.0
    %1519 = vmatpush.msra.mxu0 0.0
    %1520 = vmatpush.msra.mxu0 0.0
    %1521 = vmatpush.msra.mxu0 0.0
    %1522 = vmatpush.msra.mxu0 0.0
    %1523 = vmatpush.msra.mxu0 0.0
    %1524 = vmatpush.msra.mxu0 %v552
    %1525 = vmatmul.f32.gmra.mxu0 %v1425
    %v1526 = vpop.f32.mrf.mxu0
    %v1527 = vadd.f32 %v654, %v1526
    %1528 = vdwg.mxu0
    %v1529 = vmul.f32 %v1467, %v1527
    %v1530 = vadd.f32 %v1423, %v1529
    %v1531 = vtanh.pop %v1530
    %v1532 = vsub.f32 1.0, %v1508
    %v1533 = vmul.f32 %v1532, %v1531
    %v1534 = vmul.f32 %v1508, %v1417
    %v1535 = vadd.f32 %v1533, %v1534
    %1536 = vst.msk [vmem:[#allocation2] sm:$0xff] %vm420, %v1535
    %s1537 = scalar_lea.vmem [#allocation3], 56
    %1538 = vst.msk [vmem:[%s1537] sm:$0xff] %vm420, %v1535
    %v1539 = vld [vmem:[#allocation2] sm:$0xff]
    %vm1540 = vcmask 60416
    %1541 = vst.msk [vmem:[#allocation21] sm:$0xf] %vm1540, %v1539
    %1543 = vrot.lane.b32.xlu0 %v1539, 40
    %v1544 = vpop.permute.xlu0 %1543
    %vm1546 = vcmask 392516
    %1547 = vst.msk [vmem:[#allocation21 - $0x4] sm:$0xf0] %vm1546, %v1544
    %v1548 = vld [vmem:[#allocation3] sm:$0xff]
    %v1549 = vld [vmem:[#allocation3 + $0x8] sm:$0xff]
    %v1550 = vld [vmem:[#allocation3 + $0x10] sm:$0xff]
    %v1551 = vld [vmem:[#allocation3 + $0x18] sm:$0xff]
    %v1552 = vld [vmem:[#allocation3 + $0x20] sm:$0xff]
    %v1553 = vld [vmem:[#allocation3 + $0x28] sm:$0xff]
    %v1554 = vld [vmem:[#allocation3 + $0x30] sm:$0xff]
    %v1555 = vld [vmem:[#allocation3 + $0x38] sm:$0xff]
    %v1556 = vld [vmem:[#allocation30] sm:$0xff]
    %v1557 = vld [vmem:[#allocation31] sm:$0x1]
    %v1559 = vperm.slane %v1557, 0
    %v1562 = vsel %vm420, %v1548, 0
    %v1565 = vsel %vm420, %v1549, 0
    %v1568 = vsel %vm420, %v1550, 0
    %v1571 = vsel %vm420, %v1551, 0
    %v1574 = vsel %vm420, %v1552, 0
    %v1577 = vsel %vm420, %v1553, 0
    %v1580 = vsel %vm420, %v1554, 0
    %v1583 = vsel %vm420, %v1555, 0
    %1585 = vmatpush.msra.mxu0 0.0
    %1586 = vmatpush.msra.mxu0 0.0
    %1587 = vmatpush.msra.mxu0 0.0
    %1588 = vmatpush.msra.mxu0 0.0
    %1589 = vmatpush.msra.mxu0 0.0
    %1590 = vmatpush.msra.mxu0 0.0
    %1591 = vmatpush.msra.mxu0 0.0
    %1592 = vmatpush.msra.mxu0 0.0
    %1593 = vmatpush.msra.mxu0 0.0
    %1594 = vmatpush.msra.mxu0 0.0
    %1595 = vmatpush.msra.mxu0 0.0
    %1596 = vmatpush.msra.mxu0 0.0
    %1597 = vmatpush.msra.mxu0 0.0
    %1598 = vmatpush.msra.mxu0 0.0
    %1599 = vmatpush.msra.mxu0 0.0
    %1600 = vmatpush.msra.mxu0 %v1556
    %1601 = vmatmul.f32.gmra.mxu0 %v1562
    %v1602 = vpop.f32.mrf.mxu0
    %v1603 = vadd.f32 %v1559, %v1602
    %1604 = vmatmul.f32.gmra.mxu0 %v1565
    %v1605 = vpop.f32.mrf.mxu0
    %v1606 = vadd.f32 %v1559, %v1605
    %1607 = vmatmul.f32.gmra.mxu0 %v1568
    %v1608 = vpop.f32.mrf.mxu0
    %v1609 = vadd.f32 %v1559, %v1608
    %1610 = vmatmul.f32.gmra.mxu0 %v1571
    %v1611 = vpop.f32.mrf.mxu0
    %v1612 = vadd.f32 %v1559, %v1611
    %1613 = vmatmul.f32.gmra.mxu0 %v1574
    %v1614 = vpop.f32.mrf.mxu0
    %v1615 = vadd.f32 %v1559, %v1614
    %1616 = vmatmul.f32.gmra.mxu0 %v1577
    %v1617 = vpop.f32.mrf.mxu0
    %v1618 = vadd.f32 %v1559, %v1617
    %1619 = vmatmul.f32.gmra.mxu0 %v1580
    %v1620 = vpop.f32.mrf.mxu0
    %v1621 = vadd.f32 %v1559, %v1620
    %1622 = vmatmul.f32.gmra.mxu0 %v1583
    %v1623 = vpop.f32.mrf.mxu0
    %v1624 = vadd.f32 %v1559, %v1623
    %1625 = vdwg.mxu0
    %vm1626 = vcmask 130048
    %1627 = vst.msk [vmem:[#allocation9] sm:$0xff] %vm1626, %v1603
    %1628 = vst.msk [vmem:[#allocation9 + $0x8] sm:$0xff] %vm1626, %v1606
    %1629 = vst.msk [vmem:[#allocation9 + $0x10] sm:$0xff] %vm1626, %v1609
    %1630 = vst.msk [vmem:[#allocation9 + $0x18] sm:$0xff] %vm1626, %v1612
    %1631 = vst.msk [vmem:[#allocation9 + $0x20] sm:$0xff] %vm1626, %v1615
    %1632 = vst.msk [vmem:[#allocation9 + $0x28] sm:$0xff] %vm1626, %v1618
    %1633 = vst.msk [vmem:[#allocation9 + $0x30] sm:$0xff] %vm1626, %v1621
    %1634 = vst.msk [vmem:[#allocation9 + $0x38] sm:$0xff] %vm1626, %v1624
    %s1635 = scalar_lea.vmem [#allocation30], 8
    %v1636 = vld [vmem:[%s1635] sm:$0xff]
    %s1637 = scalar_lea.vmem [#allocation31], 1
    %v1638 = vld [vmem:[%s1637] sm:$0x1]
    %v1640 = vperm.slane %v1638, 0
    %1642 = vmatpush.msra.mxu0 0.0
    %1643 = vmatpush.msra.mxu0 0.0
    %1644 = vmatpush.msra.mxu0 0.0
    %1645 = vmatpush.msra.mxu0 0.0
    %1646 = vmatpush.msra.mxu0 0.0
    %1647 = vmatpush.msra.mxu0 0.0
    %1648 = vmatpush.msra.mxu0 0.0
    %1649 = vmatpush.msra.mxu0 0.0
    %1650 = vmatpush.msra.mxu0 0.0
    %1651 = vmatpush.msra.mxu0 0.0
    %1652 = vmatpush.msra.mxu0 0.0
    %1653 = vmatpush.msra.mxu0 0.0
    %1654 = vmatpush.msra.mxu0 0.0
    %1655 = vmatpush.msra.mxu0 0.0
    %1656 = vmatpush.msra.mxu0 0.0
    %1657 = vmatpush.msra.mxu0 %v1636
    %1658 = vmatmul.f32.gmra.mxu0 %v1562
    %v1659 = vpop.f32.mrf.mxu0
    %v1660 = vadd.f32 %v1640, %v1659
    %1661 = vmatmul.f32.gmra.mxu0 %v1565
    %v1662 = vpop.f32.mrf.mxu0
    %v1663 = vadd.f32 %v1640, %v1662
    %1664 = vmatmul.f32.gmra.mxu0 %v1568
    %v1665 = vpop.f32.mrf.mxu0
    %v1666 = vadd.f32 %v1640, %v1665
    %1667 = vmatmul.f32.gmra.mxu0 %v1571
    %v1668 = vpop.f32.mrf.mxu0
    %v1669 = vadd.f32 %v1640, %v1668
    %1670 = vmatmul.f32.gmra.mxu0 %v1574
    %v1671 = vpop.f32.mrf.mxu0
    %v1672 = vadd.f32 %v1640, %v1671
    %1673 = vmatmul.f32.gmra.mxu0 %v1577
    %v1674 = vpop.f32.mrf.mxu0
    %v1675 = vadd.f32 %v1640, %v1674
    %1676 = vmatmul.f32.gmra.mxu0 %v1580
    %v1677 = vpop.f32.mrf.mxu0
    %v1678 = vadd.f32 %v1640, %v1677
    %1679 = vmatmul.f32.gmra.mxu0 %v1583
    %v1680 = vpop.f32.mrf.mxu0
    %v1681 = vadd.f32 %v1640, %v1680
    %1682 = vdwg.mxu0
    %1683 = vst.msk [vmem:[#allocation10] sm:$0xff] %vm1626, %v1660
    %1684 = vst.msk [vmem:[#allocation10 + $0x8] sm:$0xff] %vm1626, %v1663
    %1685 = vst.msk [vmem:[#allocation10 + $0x10] sm:$0xff] %vm1626, %v1666
    %1686 = vst.msk [vmem:[#allocation10 + $0x18] sm:$0xff] %vm1626, %v1669
    %1687 = vst.msk [vmem:[#allocation10 + $0x20] sm:$0xff] %vm1626, %v1672
    %1688 = vst.msk [vmem:[#allocation10 + $0x28] sm:$0xff] %vm1626, %v1675
    %1689 = vst.msk [vmem:[#allocation10 + $0x30] sm:$0xff] %vm1626, %v1678
    %1690 = vst.msk [vmem:[#allocation10 + $0x38] sm:$0xff] %vm1626, %v1681
    %s1691 = scalar_lea.vmem [#allocation30], 16
    %v1692 = vld [vmem:[%s1691] sm:$0xff]
    %s1693 = scalar_lea.vmem [#allocation31], 2
    %v1694 = vld [vmem:[%s1693] sm:$0x1]
    %v1696 = vperm.slane %v1694, 0
    %1698 = vmatpush.msra.mxu0 0.0
    %1699 = vmatpush.msra.mxu0 0.0
    %1700 = vmatpush.msra.mxu0 0.0
    %1701 = vmatpush.msra.mxu0 0.0
    %1702 = vmatpush.msra.mxu0 0.0
    %1703 = vmatpush.msra.mxu0 0.0
    %1704 = vmatpush.msra.mxu0 0.0
    %1705 = vmatpush.msra.mxu0 0.0
    %1706 = vmatpush.msra.mxu0 0.0
    %1707 = vmatpush.msra.mxu0 0.0
    %1708 = vmatpush.msra.mxu0 0.0
    %1709 = vmatpush.msra.mxu0 0.0
    %1710 = vmatpush.msra.mxu0 0.0
    %1711 = vmatpush.msra.mxu0 0.0
    %1712 = vmatpush.msra.mxu0 0.0
    %1713 = vmatpush.msra.mxu0 %v1692
    %1714 = vmatmul.f32.gmra.mxu0 %v1562
    %v1715 = vpop.f32.mrf.mxu0
    %v1716 = vadd.f32 %v1696, %v1715
    %1717 = vmatmul.f32.gmra.mxu0 %v1565
    %v1718 = vpop.f32.mrf.mxu0
    %v1719 = vadd.f32 %v1696, %v1718
    %1720 = vmatmul.f32.gmra.mxu0 %v1568
    %v1721 = vpop.f32.mrf.mxu0
    %v1722 = vadd.f32 %v1696, %v1721
    %1723 = vmatmul.f32.gmra.mxu0 %v1571
    %v1724 = vpop.f32.mrf.mxu0
    %v1725 = vadd.f32 %v1696, %v1724
    %1726 = vmatmul.f32.gmra.mxu0 %v1574
    %v1727 = vpop.f32.mrf.mxu0
    %v1728 = vadd.f32 %v1696, %v1727
    %1729 = vmatmul.f32.gmra.mxu0 %v1577
    %v1730 = vpop.f32.mrf.mxu0
    %v1731 = vadd.f32 %v1696, %v1730
    %1732 = vmatmul.f32.gmra.mxu0 %v1580
    %v1733 = vpop.f32.mrf.mxu0
    %v1734 = vadd.f32 %v1696, %v1733
    %1735 = vmatmul.f32.gmra.mxu0 %v1583
    %v1736 = vpop.f32.mrf.mxu0
    %v1737 = vadd.f32 %v1696, %v1736
    %1738 = vdwg.mxu0
    %1739 = vst.msk [vmem:[#allocation11] sm:$0xff] %vm1626, %v1716
    %1740 = vst.msk [vmem:[#allocation11 + $0x8] sm:$0xff] %vm1626, %v1719
    %1741 = vst.msk [vmem:[#allocation11 + $0x10] sm:$0xff] %vm1626, %v1722
    %1742 = vst.msk [vmem:[#allocation11 + $0x18] sm:$0xff] %vm1626, %v1725
    %1743 = vst.msk [vmem:[#allocation11 + $0x20] sm:$0xff] %vm1626, %v1728
    %1744 = vst.msk [vmem:[#allocation11 + $0x28] sm:$0xff] %vm1626, %v1731
    %1745 = vst.msk [vmem:[#allocation11 + $0x30] sm:$0xff] %vm1626, %v1734
    %1746 = vst.msk [vmem:[#allocation11 + $0x38] sm:$0xff] %vm1626, %v1737
    %1747 = vst.msk [vmem:[#allocation7] sm:$0xff] %vm1626, 0.0
    %1748 = vst.msk [vmem:[#allocation7 + $0x8] sm:$0xff] %vm1626, 0.0
    %v1749 = vld [vmem:[%s15] sm:$0xff]
    %v1750 = vld [vmem:[%s15 + $0x8] sm:$0xff]
    %s1751 = scalar_lea.vmem %s15, 16
    %v1752 = vld [vmem:[%s1751] sm:$0xff]
    %v1753 = vld [vmem:[%s1751 + $0x8] sm:$0xff]
    %s1754 = scalar_lea.vmem %s15, 32
    %v1755 = vld [vmem:[%s1754] sm:$0xff]
    %v1756 = vld [vmem:[%s1754 + $0x8] sm:$0xff]
    %v1757 = vld [vmem:[#allocation33] sm:$0x1]
    %s1758 = scalar_lea.vmem [#allocation33], 1
    %v1759 = vld [vmem:[%s1758] sm:$0x1]
    %s1760 = scalar_lea.vmem [#allocation33], 2
    %v1761 = vld [vmem:[%s1760] sm:$0x1]
    %v1762 = vld [vmem:[#allocation7] sm:$0xff]
    %v1763 = vld [vmem:[#allocation9] sm:$0xff]
    %v1764 = vld [vmem:[#allocation10] sm:$0xff]
    %v1765 = vld [vmem:[#allocation11] sm:$0xff]
    %v1767 = vsel %vm1626, %v1762, 0
    %1769 = vmatpush.msra.mxu0 0.0
    %1770 = vmatpush.msra.mxu0 0.0
    %1771 = vmatpush.msra.mxu0 0.0
    %1772 = vmatpush.msra.mxu0 0.0
    %1773 = vmatpush.msra.mxu0 0.0
    %1774 = vmatpush.msra.mxu0 0.0
    %1775 = vmatpush.msra.mxu0 0.0
    %1776 = vmatpush.msra.mxu0 0.0
    %1777 = vmatpush.msra.mxu0 0.0
    %1778 = vmatpush.msra.mxu0 0.0
    %1779 = vmatpush.msra.mxu0 0.0
    %1780 = vmatpush.msra.mxu0 0.0
    %1781 = vmatpush.msra.mxu0 0.0
    %1782 = vmatpush.msra.mxu0 0.0
    %1783 = vmatpush.msra.mxu0 %v1750
    %1784 = vmatpush.msra.mxu0 %v1749
    %1785 = vmatmul.f32.gmra.mxu0 %v1767
    %v1786 = vpop.f32.mrf.mxu0
    %v1787 = vadd.f32 0.0, %v1786
    %1788 = vdwg.mxu0
    %v1789 = vadd.f32 %v1763, %v1787
    %v1791 = vperm.slane %v1757, 0
    %v1793 = vadd.f32 %v1789, %v1791
    %v1794 = vxor.u32 %v1793, 2147483648
    %v1795 = vmul.f32 %v1794, 1.442695
    %v1796 = vpow.pop %v1795
    %v1797 = vadd.f32 %v1796, 1.0
    %v1798 = vrcp.pop %v1797
    %v1799 = vmul.f32 %v1797, %v1798
    %v1800 = vsub.f32 1.0, %v1799
    %v1801 = vmul.f32 %v1798, %v1800
    %v1802 = vadd.f32 %v1798, %v1801
    %vm1803 = vweird.f32 %v1797
    %vm1804 = vweird.f32 %v1798
    %vm1805 = vmor %vm1803, %vm1804
    %v1806 = vsel %vm1805, %v1798, %v1802
    %v1807 = vand.u32 2147483647, %v1797
    %vm1808 = vcmp.eq.f32.partialorder %v1807, 8.507059e+37
    %v1809 = vand.u32 %v1797, 2147483648
    %v1810 = vor.u32 1.1754944e-38, %v1809
    %v1811 = vsel %vm1808, %v1810, %v1806
    %v1812 = vmul.f32 1.0, %v1811
    %1813 = vmatpush.msra.mxu0 0.0
    %1814 = vmatpush.msra.mxu0 0.0
    %1815 = vmatpush.msra.mxu0 0.0
    %1816 = vmatpush.msra.mxu0 0.0
    %1817 = vmatpush.msra.mxu0 0.0
    %1818 = vmatpush.msra.mxu0 0.0
    %1819 = vmatpush.msra.mxu0 0.0
    %1820 = vmatpush.msra.mxu0 0.0
    %1821 = vmatpush.msra.mxu0 0.0
    %1822 = vmatpush.msra.mxu0 0.0
    %1823 = vmatpush.msra.mxu0 0.0
    %1824 = vmatpush.msra.mxu0 0.0
    %1825 = vmatpush.msra.mxu0 0.0
    %1826 = vmatpush.msra.mxu0 0.0
    %1827 = vmatpush.msra.mxu0 %v1753
    %1828 = vmatpush.msra.mxu0 %v1752
    %1829 = vmatmul.f32.gmra.mxu0 %v1767
    %v1830 = vpop.f32.mrf.mxu0
    %v1831 = vadd.f32 0.0, %v1830
    %1832 = vdwg.mxu0
    %v1833 = vadd.f32 %v1764, %v1831
    %v1835 = vperm.slane %v1759, 0
    %v1837 = vadd.f32 %v1833, %v1835
    %v1838 = vxor.u32 %v1837, 2147483648
    %v1839 = vmul.f32 %v1838, 1.442695
    %v1840 = vpow.pop %v1839
    %v1841 = vadd.f32 %v1840, 1.0
    %v1842 = vrcp.pop %v1841
    %v1843 = vmul.f32 %v1841, %v1842
    %v1844 = vsub.f32 1.0, %v1843
    %v1845 = vmul.f32 %v1842, %v1844
    %v1846 = vadd.f32 %v1842, %v1845
    %vm1847 = vweird.f32 %v1841
    %vm1848 = vweird.f32 %v1842
    %vm1849 = vmor %vm1847, %vm1848
    %v1850 = vsel %vm1849, %v1842, %v1846
    %v1851 = vand.u32 2147483647, %v1841
    %vm1852 = vcmp.eq.f32.partialorder %v1851, 8.507059e+37
    %v1853 = vand.u32 %v1841, 2147483648
    %v1854 = vor.u32 1.1754944e-38, %v1853
    %v1855 = vsel %vm1852, %v1854, %v1850
    %v1856 = vmul.f32 1.0, %v1855
    %v1858 = vperm.slane %v1761, 0
    %1860 = vmatpush.msra.mxu0 0.0
    %1861 = vmatpush.msra.mxu0 0.0
    %1862 = vmatpush.msra.mxu0 0.0
    %1863 = vmatpush.msra.mxu0 0.0
    %1864 = vmatpush.msra.mxu0 0.0
    %1865 = vmatpush.msra.mxu0 0.0
    %1866 = vmatpush.msra.mxu0 0.0
    %1867 = vmatpush.msra.mxu0 0.0
    %1868 = vmatpush.msra.mxu0 0.0
    %1869 = vmatpush.msra.mxu0 0.0
    %1870 = vmatpush.msra.mxu0 0.0
    %1871 = vmatpush.msra.mxu0 0.0
    %1872 = vmatpush.msra.mxu0 0.0
    %1873 = vmatpush.msra.mxu0 0.0
    %1874 = vmatpush.msra.mxu0 %v1756
    %1875 = vmatpush.msra.mxu0 %v1755
    %1876 = vmatmul.f32.gmra.mxu0 %v1767
    %v1877 = vpop.f32.mrf.mxu0
    %v1878 = vadd.f32 %v1858, %v1877
    %1879 = vdwg.mxu0
    %v1880 = vmul.f32 %v1812, %v1878
    %v1881 = vadd.f32 %v1765, %v1880
    %v1882 = vtanh.pop %v1881
    %v1883 = vsub.f32 1.0, %v1856
    %v1884 = vmul.f32 %v1883, %v1882
    %v1885 = vmul.f32 %v1856, %v1762
    %v1886 = vadd.f32 %v1884, %v1885
    %1887 = vst.msk [vmem:[#allocation7] sm:$0xff] %vm1626, %v1886
    %1888 = vst.msk [vmem:[#allocation8] sm:$0xff] %vm1626, %v1886
    %s1889 = scalar_lea.vmem [#allocation7], 8
    %v1890 = vld [vmem:[%s1889] sm:$0xff]
    %s1891 = scalar_lea.vmem [#allocation9], 8
    %v1892 = vld [vmem:[%s1891] sm:$0xff]
    %s1893 = scalar_lea.vmem [#allocation10], 8
    %v1894 = vld [vmem:[%s1893] sm:$0xff]
    %s1895 = scalar_lea.vmem [#allocation11], 8
    %v1896 = vld [vmem:[%s1895] sm:$0xff]
    %v1898 = vsel %vm1626, %v1890, 0
    %1900 = vmatpush.msra.mxu0 0.0
    %1901 = vmatpush.msra.mxu0 0.0
    %1902 = vmatpush.msra.mxu0 0.0
    %1903 = vmatpush.msra.mxu0 0.0
    %1904 = vmatpush.msra.mxu0 0.0
    %1905 = vmatpush.msra.mxu0 0.0
    %1906 = vmatpush.msra.mxu0 0.0
    %1907 = vmatpush.msra.mxu0 0.0
    %1908 = vmatpush.msra.mxu0 0.0
    %1909 = vmatpush.msra.mxu0 0.0
    %1910 = vmatpush.msra.mxu0 0.0
    %1911 = vmatpush.msra.mxu0 0.0
    %1912 = vmatpush.msra.mxu0 0.0
    %1913 = vmatpush.msra.mxu0 0.0
    %1914 = vmatpush.msra.mxu0 %v1750
    %1915 = vmatpush.msra.mxu0 %v1749
    %1916 = vmatmul.f32.gmra.mxu0 %v1898
    %v1917 = vpop.f32.mrf.mxu0
    %v1918 = vadd.f32 0.0, %v1917
    %1919 = vdwg.mxu0
    %v1920 = vadd.f32 %v1892, %v1918
    %v1921 = vadd.f32 %v1920, %v1791
    %v1922 = vxor.u32 %v1921, 2147483648
    %v1923 = vmul.f32 %v1922, 1.442695
    %v1924 = vpow.pop %v1923
    %v1925 = vadd.f32 %v1924, 1.0
    %v1926 = vrcp.pop %v1925
    %v1927 = vmul.f32 %v1925, %v1926
    %v1928 = vsub.f32 1.0, %v1927
    %v1929 = vmul.f32 %v1926, %v1928
    %v1930 = vadd.f32 %v1926, %v1929
    %vm1931 = vweird.f32 %v1925
    %vm1932 = vweird.f32 %v1926
    %vm1933 = vmor %vm1931, %vm1932
    %v1934 = vsel %vm1933, %v1926, %v1930
    %v1935 = vand.u32 2147483647, %v1925
    %vm1936 = vcmp.eq.f32.partialorder %v1935, 8.507059e+37
    %v1937 = vand.u32 %v1925, 2147483648
    %v1938 = vor.u32 1.1754944e-38, %v1937
    %v1939 = vsel %vm1936, %v1938, %v1934
    %v1940 = vmul.f32 1.0, %v1939
    %1941 = vmatpush.msra.mxu0 0.0
    %1942 = vmatpush.msra.mxu0 0.0
    %1943 = vmatpush.msra.mxu0 0.0
    %1944 = vmatpush.msra.mxu0 0.0
    %1945 = vmatpush.msra.mxu0 0.0
    %1946 = vmatpush.msra.mxu0 0.0
    %1947 = vmatpush.msra.mxu0 0.0
    %1948 = vmatpush.msra.mxu0 0.0
    %1949 = vmatpush.msra.mxu0 0.0
    %1950 = vmatpush.msra.mxu0 0.0
    %1951 = vmatpush.msra.mxu0 0.0
    %1952 = vmatpush.msra.mxu0 0.0
    %1953 = vmatpush.msra.mxu0 0.0
    %1954 = vmatpush.msra.mxu0 0.0
    %1955 = vmatpush.msra.mxu0 %v1753
    %1956 = vmatpush.msra.mxu0 %v1752
    %1957 = vmatmul.f32.gmra.mxu0 %v1898
    %v1958 = vpop.f32.mrf.mxu0
    %v1959 = vadd.f32 0.0, %v1958
    %1960 = vdwg.mxu0
    %v1961 = vadd.f32 %v1894, %v1959
    %v1962 = vadd.f32 %v1961, %v1835
    %v1963 = vxor.u32 %v1962, 2147483648
    %v1964 = vmul.f32 %v1963, 1.442695
    %v1965 = vpow.pop %v1964
    %v1966 = vadd.f32 %v1965, 1.0
    %v1967 = vrcp.pop %v1966
    %v1968 = vmul.f32 %v1966, %v1967
    %v1969 = vsub.f32 1.0, %v1968
    %v1970 = vmul.f32 %v1967, %v1969
    %v1971 = vadd.f32 %v1967, %v1970
    %vm1972 = vweird.f32 %v1966
    %vm1973 = vweird.f32 %v1967
    %vm1974 = vmor %vm1972, %vm1973
    %v1975 = vsel %vm1974, %v1967, %v1971
    %v1976 = vand.u32 2147483647, %v1966
    %vm1977 = vcmp.eq.f32.partialorder %v1976, 8.507059e+37
    %v1978 = vand.u32 %v1966, 2147483648
    %v1979 = vor.u32 1.1754944e-38, %v1978
    %v1980 = vsel %vm1977, %v1979, %v1975
    %v1981 = vmul.f32 1.0, %v1980
    %1982 = vmatpush.msra.mxu0 0.0
    %1983 = vmatpush.msra.mxu0 0.0
    %1984 = vmatpush.msra.mxu0 0.0
    %1985 = vmatpush.msra.mxu0 0.0
    %1986 = vmatpush.msra.mxu0 0.0
    %1987 = vmatpush.msra.mxu0 0.0
    %1988 = vmatpush.msra.mxu0 0.0
    %1989 = vmatpush.msra.mxu0 0.0
    %1990 = vmatpush.msra.mxu0 0.0
    %1991 = vmatpush.msra.mxu0 0.0
    %1992 = vmatpush.msra.mxu0 0.0
    %1993 = vmatpush.msra.mxu0 0.0
    %1994 = vmatpush.msra.mxu0 0.0
    %1995 = vmatpush.msra.mxu0 0.0
    %1996 = vmatpush.msra.mxu0 %v1756
    %1997 = vmatpush.msra.mxu0 %v1755
    %1998 = vmatmul.f32.gmra.mxu0 %v1898
    %v1999 = vpop.f32.mrf.mxu0
    %v2000 = vadd.f32 %v1858, %v1999
    %2001 = vdwg.mxu0
    %v2002 = vmul.f32 %v1940, %v2000
    %v2003 = vadd.f32 %v1896, %v2002
    %v2004 = vtanh.pop %v2003
    %v2005 = vsub.f32 1.0, %v1981
    %v2006 = vmul.f32 %v2005, %v2004
    %v2007 = vmul.f32 %v1981, %v1890
    %v2008 = vadd.f32 %v2006, %v2007
    %2009 = vst.msk [vmem:[%s1889] sm:$0xff] %vm1626, %v2008
    %s2010 = scalar_lea.vmem [#allocation8], 8
    %2011 = vst.msk [vmem:[%s2010] sm:$0xff] %vm1626, %v2008
    %v2012 = vld [vmem:[#allocation7] sm:$0xff]
    %s2013 = scalar_lea.vmem [#allocation9], 16
    %v2014 = vld [vmem:[%s2013] sm:$0xff]
    %s2015 = scalar_lea.vmem [#allocation10], 16
    %v2016 = vld [vmem:[%s2015] sm:$0xff]
    %s2017 = scalar_lea.vmem [#allocation11], 16
    %v2018 = vld [vmem:[%s2017] sm:$0xff]
    %v2020 = vsel %vm1626, %v2012, 0
    %2022 = vmatpush.msra.mxu0 0.0
    %2023 = vmatpush.msra.mxu0 0.0
    %2024 = vmatpush.msra.mxu0 0.0
    %2025 = vmatpush.msra.mxu0 0.0
    %2026 = vmatpush.msra.mxu0 0.0
    %2027 = vmatpush.msra.mxu0 0.0
    %2028 = vmatpush.msra.mxu0 0.0
    %2029 = vmatpush.msra.mxu0 0.0
    %2030 = vmatpush.msra.mxu0 0.0
    %2031 = vmatpush.msra.mxu0 0.0
    %2032 = vmatpush.msra.mxu0 0.0
    %2033 = vmatpush.msra.mxu0 0.0
    %2034 = vmatpush.msra.mxu0 0.0
    %2035 = vmatpush.msra.mxu0 0.0
    %2036 = vmatpush.msra.mxu0 %v1750
    %2037 = vmatpush.msra.mxu0 %v1749
    %2038 = vmatmul.f32.gmra.mxu0 %v2020
    %v2039 = vpop.f32.mrf.mxu0
    %v2040 = vadd.f32 0.0, %v2039
    %2041 = vdwg.mxu0
    %v2042 = vadd.f32 %v2014, %v2040
    %v2043 = vadd.f32 %v2042, %v1791
    %v2044 = vxor.u32 %v2043, 2147483648
    %v2045 = vmul.f32 %v2044, 1.442695
    %v2046 = vpow.pop %v2045
    %v2047 = vadd.f32 %v2046, 1.0
    %v2048 = vrcp.pop %v2047
    %v2049 = vmul.f32 %v2047, %v2048
    %v2050 = vsub.f32 1.0, %v2049
    %v2051 = vmul.f32 %v2048, %v2050
    %v2052 = vadd.f32 %v2048, %v2051
    %vm2053 = vweird.f32 %v2047
    %vm2054 = vweird.f32 %v2048
    %vm2055 = vmor %vm2053, %vm2054
    %v2056 = vsel %vm2055, %v2048, %v2052
    %v2057 = vand.u32 2147483647, %v2047
    %vm2058 = vcmp.eq.f32.partialorder %v2057, 8.507059e+37
    %v2059 = vand.u32 %v2047, 2147483648
    %v2060 = vor.u32 1.1754944e-38, %v2059
    %v2061 = vsel %vm2058, %v2060, %v2056
    %v2062 = vmul.f32 1.0, %v2061
    %2063 = vmatpush.msra.mxu0 0.0
    %2064 = vmatpush.msra.mxu0 0.0
    %2065 = vmatpush.msra.mxu0 0.0
    %2066 = vmatpush.msra.mxu0 0.0
    %2067 = vmatpush.msra.mxu0 0.0
    %2068 = vmatpush.msra.mxu0 0.0
    %2069 = vmatpush.msra.mxu0 0.0
    %2070 = vmatpush.msra.mxu0 0.0
    %2071 = vmatpush.msra.mxu0 0.0
    %2072 = vmatpush.msra.mxu0 0.0
    %2073 = vmatpush.msra.mxu0 0.0
    %2074 = vmatpush.msra.mxu0 0.0
    %2075 = vmatpush.msra.mxu0 0.0
    %2076 = vmatpush.msra.mxu0 0.0
    %2077 = vmatpush.msra.mxu0 %v1753
    %2078 = vmatpush.msra.mxu0 %v1752
    %2079 = vmatmul.f32.gmra.mxu0 %v2020
    %v2080 = vpop.f32.mrf.mxu0
    %v2081 = vadd.f32 0.0, %v2080
    %2082 = vdwg.mxu0
    %v2083 = vadd.f32 %v2016, %v2081
    %v2084 = vadd.f32 %v2083, %v1835
    %v2085 = vxor.u32 %v2084, 2147483648
    %v2086 = vmul.f32 %v2085, 1.442695
    %v2087 = vpow.pop %v2086
    %v2088 = vadd.f32 %v2087, 1.0
    %v2089 = vrcp.pop %v2088
    %v2090 = vmul.f32 %v2088, %v2089
    %v2091 = vsub.f32 1.0, %v2090
    %v2092 = vmul.f32 %v2089, %v2091
    %v2093 = vadd.f32 %v2089, %v2092
    %vm2094 = vweird.f32 %v2088
    %vm2095 = vweird.f32 %v2089
    %vm2096 = vmor %vm2094, %vm2095
    %v2097 = vsel %vm2096, %v2089, %v2093
    %v2098 = vand.u32 2147483647, %v2088
    %vm2099 = vcmp.eq.f32.partialorder %v2098, 8.507059e+37
    %v2100 = vand.u32 %v2088, 2147483648
    %v2101 = vor.u32 1.1754944e-38, %v2100
    %v2102 = vsel %vm2099, %v2101, %v2097
    %v2103 = vmul.f32 1.0, %v2102
    %2104 = vmatpush.msra.mxu0 0.0
    %2105 = vmatpush.msra.mxu0 0.0
    %2106 = vmatpush.msra.mxu0 0.0
    %2107 = vmatpush.msra.mxu0 0.0
    %2108 = vmatpush.msra.mxu0 0.0
    %2109 = vmatpush.msra.mxu0 0.0
    %2110 = vmatpush.msra.mxu0 0.0
    %2111 = vmatpush.msra.mxu0 0.0
    %2112 = vmatpush.msra.mxu0 0.0
    %2113 = vmatpush.msra.mxu0 0.0
    %2114 = vmatpush.msra.mxu0 0.0
    %2115 = vmatpush.msra.mxu0 0.0
    %2116 = vmatpush.msra.mxu0 0.0
    %2117 = vmatpush.msra.mxu0 0.0
    %2118 = vmatpush.msra.mxu0 %v1756
    %2119 = vmatpush.msra.mxu0 %v1755
    %2120 = vmatmul.f32.gmra.mxu0 %v2020
    %v2121 = vpop.f32.mrf.mxu0
    %v2122 = vadd.f32 %v1858, %v2121
    %2123 = vdwg.mxu0
    %v2124 = vmul.f32 %v2062, %v2122
    %v2125 = vadd.f32 %v2018, %v2124
    %v2126 = vtanh.pop %v2125
    %v2127 = vsub.f32 1.0, %v2103
    %v2128 = vmul.f32 %v2127, %v2126
    %v2129 = vmul.f32 %v2103, %v2012
    %v2130 = vadd.f32 %v2128, %v2129
    %2131 = vst.msk [vmem:[#allocation7] sm:$0xff] %vm1626, %v2130
    %s2132 = scalar_lea.vmem [#allocation8], 16
    %2133 = vst.msk [vmem:[%s2132] sm:$0xff] %vm1626, %v2130
    %v2134 = vld [vmem:[%s1889] sm:$0xff]
    %s2135 = scalar_lea.vmem [#allocation9], 24
    %v2136 = vld [vmem:[%s2135] sm:$0xff]
    %s2137 = scalar_lea.vmem [#allocation10], 24
    %v2138 = vld [vmem:[%s2137] sm:$0xff]
    %s2139 = scalar_lea.vmem [#allocation11], 24
    %v2140 = vld [vmem:[%s2139] sm:$0xff]
    %v2142 = vsel %vm1626, %v2134, 0
    %2144 = vmatpush.msra.mxu0 0.0
    %2145 = vmatpush.msra.mxu0 0.0
    %2146 = vmatpush.msra.mxu0 0.0
    %2147 = vmatpush.msra.mxu0 0.0
    %2148 = vmatpush.msra.mxu0 0.0
    %2149 = vmatpush.msra.mxu0 0.0
    %2150 = vmatpush.msra.mxu0 0.0
    %2151 = vmatpush.msra.mxu0 0.0
    %2152 = vmatpush.msra.mxu0 0.0
    %2153 = vmatpush.msra.mxu0 0.0
    %2154 = vmatpush.msra.mxu0 0.0
    %2155 = vmatpush.msra.mxu0 0.0
    %2156 = vmatpush.msra.mxu0 0.0
    %2157 = vmatpush.msra.mxu0 0.0
    %2158 = vmatpush.msra.mxu0 %v1750
    %2159 = vmatpush.msra.mxu0 %v1749
    %2160 = vmatmul.f32.gmra.mxu0 %v2142
    %v2161 = vpop.f32.mrf.mxu0
    %v2162 = vadd.f32 0.0, %v2161
    %2163 = vdwg.mxu0
    %v2164 = vadd.f32 %v2136, %v2162
    %v2165 = vadd.f32 %v2164, %v1791
    %v2166 = vxor.u32 %v2165, 2147483648
    %v2167 = vmul.f32 %v2166, 1.442695
    %v2168 = vpow.pop %v2167
    %v2169 = vadd.f32 %v2168, 1.0
    %v2170 = vrcp.pop %v2169
    %v2171 = vmul.f32 %v2169, %v2170
    %v2172 = vsub.f32 1.0, %v2171
    %v2173 = vmul.f32 %v2170, %v2172
    %v2174 = vadd.f32 %v2170, %v2173
    %vm2175 = vweird.f32 %v2169
    %vm2176 = vweird.f32 %v2170
    %vm2177 = vmor %vm2175, %vm2176
    %v2178 = vsel %vm2177, %v2170, %v2174
    %v2179 = vand.u32 2147483647, %v2169
    %vm2180 = vcmp.eq.f32.partialorder %v2179, 8.507059e+37
    %v2181 = vand.u32 %v2169, 2147483648
    %v2182 = vor.u32 1.1754944e-38, %v2181
    %v2183 = vsel %vm2180, %v2182, %v2178
    %v2184 = vmul.f32 1.0, %v2183
    %2185 = vmatpush.msra.mxu0 0.0
    %2186 = vmatpush.msra.mxu0 0.0
    %2187 = vmatpush.msra.mxu0 0.0
    %2188 = vmatpush.msra.mxu0 0.0
    %2189 = vmatpush.msra.mxu0 0.0
    %2190 = vmatpush.msra.mxu0 0.0
    %2191 = vmatpush.msra.mxu0 0.0
    %2192 = vmatpush.msra.mxu0 0.0
    %2193 = vmatpush.msra.mxu0 0.0
    %2194 = vmatpush.msra.mxu0 0.0
    %2195 = vmatpush.msra.mxu0 0.0
    %2196 = vmatpush.msra.mxu0 0.0
    %2197 = vmatpush.msra.mxu0 0.0
    %2198 = vmatpush.msra.mxu0 0.0
    %2199 = vmatpush.msra.mxu0 %v1753
    %2200 = vmatpush.msra.mxu0 %v1752
    %2201 = vmatmul.f32.gmra.mxu0 %v2142
    %v2202 = vpop.f32.mrf.mxu0
    %v2203 = vadd.f32 0.0, %v2202
    %2204 = vdwg.mxu0
    %v2205 = vadd.f32 %v2138, %v2203
    %v2206 = vadd.f32 %v2205, %v1835
    %v2207 = vxor.u32 %v2206, 2147483648
    %v2208 = vmul.f32 %v2207, 1.442695
    %v2209 = vpow.pop %v2208
    %v2210 = vadd.f32 %v2209, 1.0
    %v2211 = vrcp.pop %v2210
    %v2212 = vmul.f32 %v2210, %v2211
    %v2213 = vsub.f32 1.0, %v2212
    %v2214 = vmul.f32 %v2211, %v2213
    %v2215 = vadd.f32 %v2211, %v2214
    %vm2216 = vweird.f32 %v2210
    %vm2217 = vweird.f32 %v2211
    %vm2218 = vmor %vm2216, %vm2217
    %v2219 = vsel %vm2218, %v2211, %v2215
    %v2220 = vand.u32 2147483647, %v2210
    %vm2221 = vcmp.eq.f32.partialorder %v2220, 8.507059e+37
    %v2222 = vand.u32 %v2210, 2147483648
    %v2223 = vor.u32 1.1754944e-38, %v2222
    %v2224 = vsel %vm2221, %v2223, %v2219
    %v2225 = vmul.f32 1.0, %v2224
    %2226 = vmatpush.msra.mxu0 0.0
    %2227 = vmatpush.msra.mxu0 0.0
    %2228 = vmatpush.msra.mxu0 0.0
    %2229 = vmatpush.msra.mxu0 0.0
    %2230 = vmatpush.msra.mxu0 0.0
    %2231 = vmatpush.msra.mxu0 0.0
    %2232 = vmatpush.msra.mxu0 0.0
    %2233 = vmatpush.msra.mxu0 0.0
    %2234 = vmatpush.msra.mxu0 0.0
    %2235 = vmatpush.msra.mxu0 0.0
    %2236 = vmatpush.msra.mxu0 0.0
    %2237 = vmatpush.msra.mxu0 0.0
    %2238 = vmatpush.msra.mxu0 0.0
    %2239 = vmatpush.msra.mxu0 0.0
    %2240 = vmatpush.msra.mxu0 %v1756
    %2241 = vmatpush.msra.mxu0 %v1755
    %2242 = vmatmul.f32.gmra.mxu0 %v2142
    %v2243 = vpop.f32.mrf.mxu0
    %v2244 = vadd.f32 %v1858, %v2243
    %2245 = vdwg.mxu0
    %v2246 = vmul.f32 %v2184, %v2244
    %v2247 = vadd.f32 %v2140, %v2246
    %v2248 = vtanh.pop %v2247
    %v2249 = vsub.f32 1.0, %v2225
    %v2250 = vmul.f32 %v2249, %v2248
    %v2251 = vmul.f32 %v2225, %v2134
    %v2252 = vadd.f32 %v2250, %v2251
    %2253 = vst.msk [vmem:[%s1889] sm:$0xff] %vm1626, %v2252
    %s2254 = scalar_lea.vmem [#allocation8], 24
    %2255 = vst.msk [vmem:[%s2254] sm:$0xff] %vm1626, %v2252
    %v2256 = vld [vmem:[#allocation7] sm:$0xff]
    %s2257 = scalar_lea.vmem [#allocation9], 32
    %v2258 = vld [vmem:[%s2257] sm:$0xff]
    %s2259 = scalar_lea.vmem [#allocation10], 32
    %v2260 = vld [vmem:[%s2259] sm:$0xff]
    %s2261 = scalar_lea.vmem [#allocation11], 32
    %v2262 = vld [vmem:[%s2261] sm:$0xff]
    %v2264 = vsel %vm1626, %v2256, 0
    %2266 = vmatpush.msra.mxu0 0.0
    %2267 = vmatpush.msra.mxu0 0.0
    %2268 = vmatpush.msra.mxu0 0.0
    %2269 = vmatpush.msra.mxu0 0.0
    %2270 = vmatpush.msra.mxu0 0.0
    %2271 = vmatpush.msra.mxu0 0.0
    %2272 = vmatpush.msra.mxu0 0.0
    %2273 = vmatpush.msra.mxu0 0.0
    %2274 = vmatpush.msra.mxu0 0.0
    %2275 = vmatpush.msra.mxu0 0.0
    %2276 = vmatpush.msra.mxu0 0.0
    %2277 = vmatpush.msra.mxu0 0.0
    %2278 = vmatpush.msra.mxu0 0.0
    %2279 = vmatpush.msra.mxu0 0.0
    %2280 = vmatpush.msra.mxu0 %v1750
    %2281 = vmatpush.msra.mxu0 %v1749
    %2282 = vmatmul.f32.gmra.mxu0 %v2264
    %v2283 = vpop.f32.mrf.mxu0
    %v2284 = vadd.f32 0.0, %v2283
    %2285 = vdwg.mxu0
    %v2286 = vadd.f32 %v2258, %v2284
    %v2287 = vadd.f32 %v2286, %v1791
    %v2288 = vxor.u32 %v2287, 2147483648
    %v2289 = vmul.f32 %v2288, 1.442695
    %v2290 = vpow.pop %v2289
    %v2291 = vadd.f32 %v2290, 1.0
    %v2292 = vrcp.pop %v2291
    %v2293 = vmul.f32 %v2291, %v2292
    %v2294 = vsub.f32 1.0, %v2293
    %v2295 = vmul.f32 %v2292, %v2294
    %v2296 = vadd.f32 %v2292, %v2295
    %vm2297 = vweird.f32 %v2291
    %vm2298 = vweird.f32 %v2292
    %vm2299 = vmor %vm2297, %vm2298
    %v2300 = vsel %vm2299, %v2292, %v2296
    %v2301 = vand.u32 2147483647, %v2291
    %vm2302 = vcmp.eq.f32.partialorder %v2301, 8.507059e+37
    %v2303 = vand.u32 %v2291, 2147483648
    %v2304 = vor.u32 1.1754944e-38, %v2303
    %v2305 = vsel %vm2302, %v2304, %v2300
    %v2306 = vmul.f32 1.0, %v2305
    %2307 = vmatpush.msra.mxu0 0.0
    %2308 = vmatpush.msra.mxu0 0.0
    %2309 = vmatpush.msra.mxu0 0.0
    %2310 = vmatpush.msra.mxu0 0.0
    %2311 = vmatpush.msra.mxu0 0.0
    %2312 = vmatpush.msra.mxu0 0.0
    %2313 = vmatpush.msra.mxu0 0.0
    %2314 = vmatpush.msra.mxu0 0.0
    %2315 = vmatpush.msra.mxu0 0.0
    %2316 = vmatpush.msra.mxu0 0.0
    %2317 = vmatpush.msra.mxu0 0.0
    %2318 = vmatpush.msra.mxu0 0.0
    %2319 = vmatpush.msra.mxu0 0.0
    %2320 = vmatpush.msra.mxu0 0.0
    %2321 = vmatpush.msra.mxu0 %v1753
    %2322 = vmatpush.msra.mxu0 %v1752
    %2323 = vmatmul.f32.gmra.mxu0 %v2264
    %v2324 = vpop.f32.mrf.mxu0
    %v2325 = vadd.f32 0.0, %v2324
    %2326 = vdwg.mxu0
    %v2327 = vadd.f32 %v2260, %v2325
    %v2328 = vadd.f32 %v2327, %v1835
    %v2329 = vxor.u32 %v2328, 2147483648
    %v2330 = vmul.f32 %v2329, 1.442695
    %v2331 = vpow.pop %v2330
    %v2332 = vadd.f32 %v2331, 1.0
    %v2333 = vrcp.pop %v2332
    %v2334 = vmul.f32 %v2332, %v2333
    %v2335 = vsub.f32 1.0, %v2334
    %v2336 = vmul.f32 %v2333, %v2335
    %v2337 = vadd.f32 %v2333, %v2336
    %vm2338 = vweird.f32 %v2332
    %vm2339 = vweird.f32 %v2333
    %vm2340 = vmor %vm2338, %vm2339
    %v2341 = vsel %vm2340, %v2333, %v2337
    %v2342 = vand.u32 2147483647, %v2332
    %vm2343 = vcmp.eq.f32.partialorder %v2342, 8.507059e+37
    %v2344 = vand.u32 %v2332, 2147483648
    %v2345 = vor.u32 1.1754944e-38, %v2344
    %v2346 = vsel %vm2343, %v2345, %v2341
    %v2347 = vmul.f32 1.0, %v2346
    %2348 = vmatpush.msra.mxu0 0.0
    %2349 = vmatpush.msra.mxu0 0.0
    %2350 = vmatpush.msra.mxu0 0.0
    %2351 = vmatpush.msra.mxu0 0.0
    %2352 = vmatpush.msra.mxu0 0.0
    %2353 = vmatpush.msra.mxu0 0.0
    %2354 = vmatpush.msra.mxu0 0.0
    %2355 = vmatpush.msra.mxu0 0.0
    %2356 = vmatpush.msra.mxu0 0.0
    %2357 = vmatpush.msra.mxu0 0.0
    %2358 = vmatpush.msra.mxu0 0.0
    %2359 = vmatpush.msra.mxu0 0.0
    %2360 = vmatpush.msra.mxu0 0.0
    %2361 = vmatpush.msra.mxu0 0.0
    %2362 = vmatpush.msra.mxu0 %v1756
    %2363 = vmatpush.msra.mxu0 %v1755
    %2364 = vmatmul.f32.gmra.mxu0 %v2264
    %v2365 = vpop.f32.mrf.mxu0
    %v2366 = vadd.f32 %v1858, %v2365
    %2367 = vdwg.mxu0
    %v2368 = vmul.f32 %v2306, %v2366
    %v2369 = vadd.f32 %v2262, %v2368
    %v2370 = vtanh.pop %v2369
    %v2371 = vsub.f32 1.0, %v2347
    %v2372 = vmul.f32 %v2371, %v2370
    %v2373 = vmul.f32 %v2347, %v2256
    %v2374 = vadd.f32 %v2372, %v2373
    %2375 = vst.msk [vmem:[#allocation7] sm:$0xff] %vm1626, %v2374
    %s2376 = scalar_lea.vmem [#allocation8], 32
    %2377 = vst.msk [vmem:[%s2376] sm:$0xff] %vm1626, %v2374
    %v2378 = vld [vmem:[%s1889] sm:$0xff]
    %s2379 = scalar_lea.vmem [#allocation9], 40
    %v2380 = vld [vmem:[%s2379] sm:$0xff]
    %s2381 = scalar_lea.vmem [#allocation10], 40
    %v2382 = vld [vmem:[%s2381] sm:$0xff]
    %s2383 = scalar_lea.vmem [#allocation11], 40
    %v2384 = vld [vmem:[%s2383] sm:$0xff]
    %v2386 = vsel %vm1626, %v2378, 0
    %2388 = vmatpush.msra.mxu0 0.0
    %2389 = vmatpush.msra.mxu0 0.0
    %2390 = vmatpush.msra.mxu0 0.0
    %2391 = vmatpush.msra.mxu0 0.0
    %2392 = vmatpush.msra.mxu0 0.0
    %2393 = vmatpush.msra.mxu0 0.0
    %2394 = vmatpush.msra.mxu0 0.0
    %2395 = vmatpush.msra.mxu0 0.0
    %2396 = vmatpush.msra.mxu0 0.0
    %2397 = vmatpush.msra.mxu0 0.0
    %2398 = vmatpush.msra.mxu0 0.0
    %2399 = vmatpush.msra.mxu0 0.0
    %2400 = vmatpush.msra.mxu0 0.0
    %2401 = vmatpush.msra.mxu0 0.0
    %2402 = vmatpush.msra.mxu0 %v1750
    %2403 = vmatpush.msra.mxu0 %v1749
    %2404 = vmatmul.f32.gmra.mxu0 %v2386
    %v2405 = vpop.f32.mrf.mxu0
    %v2406 = vadd.f32 0.0, %v2405
    %2407 = vdwg.mxu0
    %v2408 = vadd.f32 %v2380, %v2406
    %v2409 = vadd.f32 %v2408, %v1791
    %v2410 = vxor.u32 %v2409, 2147483648
    %v2411 = vmul.f32 %v2410, 1.442695
    %v2412 = vpow.pop %v2411
    %v2413 = vadd.f32 %v2412, 1.0
    %v2414 = vrcp.pop %v2413
    %v2415 = vmul.f32 %v2413, %v2414
    %v2416 = vsub.f32 1.0, %v2415
    %v2417 = vmul.f32 %v2414, %v2416
    %v2418 = vadd.f32 %v2414, %v2417
    %vm2419 = vweird.f32 %v2413
    %vm2420 = vweird.f32 %v2414
    %vm2421 = vmor %vm2419, %vm2420
    %v2422 = vsel %vm2421, %v2414, %v2418
    %v2423 = vand.u32 2147483647, %v2413
    %vm2424 = vcmp.eq.f32.partialorder %v2423, 8.507059e+37
    %v2425 = vand.u32 %v2413, 2147483648
    %v2426 = vor.u32 1.1754944e-38, %v2425
    %v2427 = vsel %vm2424, %v2426, %v2422
    %v2428 = vmul.f32 1.0, %v2427
    %2429 = vmatpush.msra.mxu0 0.0
    %2430 = vmatpush.msra.mxu0 0.0
    %2431 = vmatpush.msra.mxu0 0.0
    %2432 = vmatpush.msra.mxu0 0.0
    %2433 = vmatpush.msra.mxu0 0.0
    %2434 = vmatpush.msra.mxu0 0.0
    %2435 = vmatpush.msra.mxu0 0.0
    %2436 = vmatpush.msra.mxu0 0.0
    %2437 = vmatpush.msra.mxu0 0.0
    %2438 = vmatpush.msra.mxu0 0.0
    %2439 = vmatpush.msra.mxu0 0.0
    %2440 = vmatpush.msra.mxu0 0.0
    %2441 = vmatpush.msra.mxu0 0.0
    %2442 = vmatpush.msra.mxu0 0.0
    %2443 = vmatpush.msra.mxu0 %v1753
    %2444 = vmatpush.msra.mxu0 %v1752
    %2445 = vmatmul.f32.gmra.mxu0 %v2386
    %v2446 = vpop.f32.mrf.mxu0
    %v2447 = vadd.f32 0.0, %v2446
    %2448 = vdwg.mxu0
    %v2449 = vadd.f32 %v2382, %v2447
    %v2450 = vadd.f32 %v2449, %v1835
    %v2451 = vxor.u32 %v2450, 2147483648
    %v2452 = vmul.f32 %v2451, 1.442695
    %v2453 = vpow.pop %v2452
    %v2454 = vadd.f32 %v2453, 1.0
    %v2455 = vrcp.pop %v2454
    %v2456 = vmul.f32 %v2454, %v2455
    %v2457 = vsub.f32 1.0, %v2456
    %v2458 = vmul.f32 %v2455, %v2457
    %v2459 = vadd.f32 %v2455, %v2458
    %vm2460 = vweird.f32 %v2454
    %vm2461 = vweird.f32 %v2455
    %vm2462 = vmor %vm2460, %vm2461
    %v2463 = vsel %vm2462, %v2455, %v2459
    %v2464 = vand.u32 2147483647, %v2454
    %vm2465 = vcmp.eq.f32.partialorder %v2464, 8.507059e+37
    %v2466 = vand.u32 %v2454, 2147483648
    %v2467 = vor.u32 1.1754944e-38, %v2466
    %v2468 = vsel %vm2465, %v2467, %v2463
    %v2469 = vmul.f32 1.0, %v2468
    %2470 = vmatpush.msra.mxu0 0.0
    %2471 = vmatpush.msra.mxu0 0.0
    %2472 = vmatpush.msra.mxu0 0.0
    %2473 = vmatpush.msra.mxu0 0.0
    %2474 = vmatpush.msra.mxu0 0.0
    %2475 = vmatpush.msra.mxu0 0.0
    %2476 = vmatpush.msra.mxu0 0.0
    %2477 = vmatpush.msra.mxu0 0.0
    %2478 = vmatpush.msra.mxu0 0.0
    %2479 = vmatpush.msra.mxu0 0.0
    %2480 = vmatpush.msra.mxu0 0.0
    %2481 = vmatpush.msra.mxu0 0.0
    %2482 = vmatpush.msra.mxu0 0.0
    %2483 = vmatpush.msra.mxu0 0.0
    %2484 = vmatpush.msra.mxu0 %v1756
    %2485 = vmatpush.msra.mxu0 %v1755
    %2486 = vmatmul.f32.gmra.mxu0 %v2386
    %v2487 = vpop.f32.mrf.mxu0
    %v2488 = vadd.f32 %v1858, %v2487
    %2489 = vdwg.mxu0
    %v2490 = vmul.f32 %v2428, %v2488
    %v2491 = vadd.f32 %v2384, %v2490
    %v2492 = vtanh.pop %v2491
    %v2493 = vsub.f32 1.0, %v2469
    %v2494 = vmul.f32 %v2493, %v2492
    %v2495 = vmul.f32 %v2469, %v2378
    %v2496 = vadd.f32 %v2494, %v2495
    %2497 = vst.msk [vmem:[%s1889] sm:$0xff] %vm1626, %v2496
    %s2498 = scalar_lea.vmem [#allocation8], 40
    %2499 = vst.msk [vmem:[%s2498] sm:$0xff] %vm1626, %v2496
    %v2500 = vld [vmem:[#allocation7] sm:$0xff]
    %s2501 = scalar_lea.vmem [#allocation9], 48
    %v2502 = vld [vmem:[%s2501] sm:$0xff]
    %s2503 = scalar_lea.vmem [#allocation10], 48
    %v2504 = vld [vmem:[%s2503] sm:$0xff]
    %s2505 = scalar_lea.vmem [#allocation11], 48
    %v2506 = vld [vmem:[%s2505] sm:$0xff]
    %v2508 = vsel %vm1626, %v2500, 0
    %2510 = vmatpush.msra.mxu0 0.0
    %2511 = vmatpush.msra.mxu0 0.0
    %2512 = vmatpush.msra.mxu0 0.0
    %2513 = vmatpush.msra.mxu0 0.0
    %2514 = vmatpush.msra.mxu0 0.0
    %2515 = vmatpush.msra.mxu0 0.0
    %2516 = vmatpush.msra.mxu0 0.0
    %2517 = vmatpush.msra.mxu0 0.0
    %2518 = vmatpush.msra.mxu0 0.0
    %2519 = vmatpush.msra.mxu0 0.0
    %2520 = vmatpush.msra.mxu0 0.0
    %2521 = vmatpush.msra.mxu0 0.0
    %2522 = vmatpush.msra.mxu0 0.0
    %2523 = vmatpush.msra.mxu0 0.0
    %2524 = vmatpush.msra.mxu0 %v1750
    %2525 = vmatpush.msra.mxu0 %v1749
    %2526 = vmatmul.f32.gmra.mxu0 %v2508
    %v2527 = vpop.f32.mrf.mxu0
    %v2528 = vadd.f32 0.0, %v2527
    %2529 = vdwg.mxu0
    %v2530 = vadd.f32 %v2502, %v2528
    %v2531 = vadd.f32 %v2530, %v1791
    %v2532 = vxor.u32 %v2531, 2147483648
    %v2533 = vmul.f32 %v2532, 1.442695
    %v2534 = vpow.pop %v2533
    %v2535 = vadd.f32 %v2534, 1.0
    %v2536 = vrcp.pop %v2535
    %v2537 = vmul.f32 %v2535, %v2536
    %v2538 = vsub.f32 1.0, %v2537
    %v2539 = vmul.f32 %v2536, %v2538
    %v2540 = vadd.f32 %v2536, %v2539
    %vm2541 = vweird.f32 %v2535
    %vm2542 = vweird.f32 %v2536
    %vm2543 = vmor %vm2541, %vm2542
    %v2544 = vsel %vm2543, %v2536, %v2540
    %v2545 = vand.u32 2147483647, %v2535
    %vm2546 = vcmp.eq.f32.partialorder %v2545, 8.507059e+37
    %v2547 = vand.u32 %v2535, 2147483648
    %v2548 = vor.u32 1.1754944e-38, %v2547
    %v2549 = vsel %vm2546, %v2548, %v2544
    %v2550 = vmul.f32 1.0, %v2549
    %2551 = vmatpush.msra.mxu0 0.0
    %2552 = vmatpush.msra.mxu0 0.0
    %2553 = vmatpush.msra.mxu0 0.0
    %2554 = vmatpush.msra.mxu0 0.0
    %2555 = vmatpush.msra.mxu0 0.0
    %2556 = vmatpush.msra.mxu0 0.0
    %2557 = vmatpush.msra.mxu0 0.0
    %2558 = vmatpush.msra.mxu0 0.0
    %2559 = vmatpush.msra.mxu0 0.0
    %2560 = vmatpush.msra.mxu0 0.0
    %2561 = vmatpush.msra.mxu0 0.0
    %2562 = vmatpush.msra.mxu0 0.0
    %2563 = vmatpush.msra.mxu0 0.0
    %2564 = vmatpush.msra.mxu0 0.0
    %2565 = vmatpush.msra.mxu0 %v1753
    %2566 = vmatpush.msra.mxu0 %v1752
    %2567 = vmatmul.f32.gmra.mxu0 %v2508
    %v2568 = vpop.f32.mrf.mxu0
    %v2569 = vadd.f32 0.0, %v2568
    %2570 = vdwg.mxu0
    %v2571 = vadd.f32 %v2504, %v2569
    %v2572 = vadd.f32 %v2571, %v1835
    %v2573 = vxor.u32 %v2572, 2147483648
    %v2574 = vmul.f32 %v2573, 1.442695
    %v2575 = vpow.pop %v2574
    %v2576 = vadd.f32 %v2575, 1.0
    %v2577 = vrcp.pop %v2576
    %v2578 = vmul.f32 %v2576, %v2577
    %v2579 = vsub.f32 1.0, %v2578
    %v2580 = vmul.f32 %v2577, %v2579
    %v2581 = vadd.f32 %v2577, %v2580
    %vm2582 = vweird.f32 %v2576
    %vm2583 = vweird.f32 %v2577
    %vm2584 = vmor %vm2582, %vm2583
    %v2585 = vsel %vm2584, %v2577, %v2581
    %v2586 = vand.u32 2147483647, %v2576
    %vm2587 = vcmp.eq.f32.partialorder %v2586, 8.507059e+37
    %v2588 = vand.u32 %v2576, 2147483648
    %v2589 = vor.u32 1.1754944e-38, %v2588
    %v2590 = vsel %vm2587, %v2589, %v2585
    %v2591 = vmul.f32 1.0, %v2590
    %2592 = vmatpush.msra.mxu0 0.0
    %2593 = vmatpush.msra.mxu0 0.0
    %2594 = vmatpush.msra.mxu0 0.0
    %2595 = vmatpush.msra.mxu0 0.0
    %2596 = vmatpush.msra.mxu0 0.0
    %2597 = vmatpush.msra.mxu0 0.0
    %2598 = vmatpush.msra.mxu0 0.0
    %2599 = vmatpush.msra.mxu0 0.0
    %2600 = vmatpush.msra.mxu0 0.0
    %2601 = vmatpush.msra.mxu0 0.0
    %2602 = vmatpush.msra.mxu0 0.0
    %2603 = vmatpush.msra.mxu0 0.0
    %2604 = vmatpush.msra.mxu0 0.0
    %2605 = vmatpush.msra.mxu0 0.0
    %2606 = vmatpush.msra.mxu0 %v1756
    %2607 = vmatpush.msra.mxu0 %v1755
    %2608 = vmatmul.f32.gmra.mxu0 %v2508
    %v2609 = vpop.f32.mrf.mxu0
    %v2610 = vadd.f32 %v1858, %v2609
    %2611 = vdwg.mxu0
    %v2612 = vmul.f32 %v2550, %v2610
    %v2613 = vadd.f32 %v2506, %v2612
    %v2614 = vtanh.pop %v2613
    %v2615 = vsub.f32 1.0, %v2591
    %v2616 = vmul.f32 %v2615, %v2614
    %v2617 = vmul.f32 %v2591, %v2500
    %v2618 = vadd.f32 %v2616, %v2617
    %2619 = vst.msk [vmem:[#allocation7] sm:$0xff] %vm1626, %v2618
    %s2620 = scalar_lea.vmem [#allocation8], 48
    %2621 = vst.msk [vmem:[%s2620] sm:$0xff] %vm1626, %v2618
    %v2622 = vld [vmem:[%s1889] sm:$0xff]
    %s2623 = scalar_lea.vmem [#allocation9], 56
    %v2624 = vld [vmem:[%s2623] sm:$0xff]
    %s2625 = scalar_lea.vmem [#allocation10], 56
    %v2626 = vld [vmem:[%s2625] sm:$0xff]
    %s2627 = scalar_lea.vmem [#allocation11], 56
    %v2628 = vld [vmem:[%s2627] sm:$0xff]
    %v2630 = vsel %vm1626, %v2622, 0
    %2632 = vmatpush.msra.mxu0 0.0
    %2633 = vmatpush.msra.mxu0 0.0
    %2634 = vmatpush.msra.mxu0 0.0
    %2635 = vmatpush.msra.mxu0 0.0
    %2636 = vmatpush.msra.mxu0 0.0
    %2637 = vmatpush.msra.mxu0 0.0
    %2638 = vmatpush.msra.mxu0 0.0
    %2639 = vmatpush.msra.mxu0 0.0
    %2640 = vmatpush.msra.mxu0 0.0
    %2641 = vmatpush.msra.mxu0 0.0
    %2642 = vmatpush.msra.mxu0 0.0
    %2643 = vmatpush.msra.mxu0 0.0
    %2644 = vmatpush.msra.mxu0 0.0
    %2645 = vmatpush.msra.mxu0 0.0
    %2646 = vmatpush.msra.mxu0 %v1750
    %2647 = vmatpush.msra.mxu0 %v1749
    %2648 = vmatmul.f32.gmra.mxu0 %v2630
    %v2649 = vpop.f32.mrf.mxu0
    %v2650 = vadd.f32 0.0, %v2649
    %2651 = vdwg.mxu0
    %v2652 = vadd.f32 %v2624, %v2650
    %v2653 = vadd.f32 %v2652, %v1791
    %v2654 = vxor.u32 %v2653, 2147483648
    %v2655 = vmul.f32 %v2654, 1.442695
    %v2656 = vpow.pop %v2655
    %v2657 = vadd.f32 %v2656, 1.0
    %v2658 = vrcp.pop %v2657
    %v2659 = vmul.f32 %v2657, %v2658
    %v2660 = vsub.f32 1.0, %v2659
    %v2661 = vmul.f32 %v2658, %v2660
    %v2662 = vadd.f32 %v2658, %v2661
    %vm2663 = vweird.f32 %v2657
    %vm2664 = vweird.f32 %v2658
    %vm2665 = vmor %vm2663, %vm2664
    %v2666 = vsel %vm2665, %v2658, %v2662
    %v2667 = vand.u32 2147483647, %v2657
    %vm2668 = vcmp.eq.f32.partialorder %v2667, 8.507059e+37
    %v2669 = vand.u32 %v2657, 2147483648
    %v2670 = vor.u32 1.1754944e-38, %v2669
    %v2671 = vsel %vm2668, %v2670, %v2666
    %v2672 = vmul.f32 1.0, %v2671
    %2673 = vmatpush.msra.mxu0 0.0
    %2674 = vmatpush.msra.mxu0 0.0
    %2675 = vmatpush.msra.mxu0 0.0
    %2676 = vmatpush.msra.mxu0 0.0
    %2677 = vmatpush.msra.mxu0 0.0
    %2678 = vmatpush.msra.mxu0 0.0
    %2679 = vmatpush.msra.mxu0 0.0
    %2680 = vmatpush.msra.mxu0 0.0
    %2681 = vmatpush.msra.mxu0 0.0
    %2682 = vmatpush.msra.mxu0 0.0
    %2683 = vmatpush.msra.mxu0 0.0
    %2684 = vmatpush.msra.mxu0 0.0
    %2685 = vmatpush.msra.mxu0 0.0
    %2686 = vmatpush.msra.mxu0 0.0
    %2687 = vmatpush.msra.mxu0 %v1753
    %2688 = vmatpush.msra.mxu0 %v1752
    %2689 = vmatmul.f32.gmra.mxu0 %v2630
    %v2690 = vpop.f32.mrf.mxu0
    %v2691 = vadd.f32 0.0, %v2690
    %2692 = vdwg.mxu0
    %v2693 = vadd.f32 %v2626, %v2691
    %v2694 = vadd.f32 %v2693, %v1835
    %v2695 = vxor.u32 %v2694, 2147483648
    %v2696 = vmul.f32 %v2695, 1.442695
    %v2697 = vpow.pop %v2696
    %v2698 = vadd.f32 %v2697, 1.0
    %v2699 = vrcp.pop %v2698
    %v2700 = vmul.f32 %v2698, %v2699
    %v2701 = vsub.f32 1.0, %v2700
    %v2702 = vmul.f32 %v2699, %v2701
    %v2703 = vadd.f32 %v2699, %v2702
    %vm2704 = vweird.f32 %v2698
    %vm2705 = vweird.f32 %v2699
    %vm2706 = vmor %vm2704, %vm2705
    %v2707 = vsel %vm2706, %v2699, %v2703
    %v2708 = vand.u32 2147483647, %v2698
    %vm2709 = vcmp.eq.f32.partialorder %v2708, 8.507059e+37
    %v2710 = vand.u32 %v2698, 2147483648
    %v2711 = vor.u32 1.1754944e-38, %v2710
    %v2712 = vsel %vm2709, %v2711, %v2707
    %v2713 = vmul.f32 1.0, %v2712
    %2714 = vmatpush.msra.mxu0 0.0
    %2715 = vmatpush.msra.mxu0 0.0
    %2716 = vmatpush.msra.mxu0 0.0
    %2717 = vmatpush.msra.mxu0 0.0
    %2718 = vmatpush.msra.mxu0 0.0
    %2719 = vmatpush.msra.mxu0 0.0
    %2720 = vmatpush.msra.mxu0 0.0
    %2721 = vmatpush.msra.mxu0 0.0
    %2722 = vmatpush.msra.mxu0 0.0
    %2723 = vmatpush.msra.mxu0 0.0
    %2724 = vmatpush.msra.mxu0 0.0
    %2725 = vmatpush.msra.mxu0 0.0
    %2726 = vmatpush.msra.mxu0 0.0
    %2727 = vmatpush.msra.mxu0 0.0
    %2728 = vmatpush.msra.mxu0 %v1756
    %2729 = vmatpush.msra.mxu0 %v1755
    %2730 = vmatmul.f32.gmra.mxu0 %v2630
    %v2731 = vpop.f32.mrf.mxu0
    %v2732 = vadd.f32 %v1858, %v2731
    %2733 = vdwg.mxu0
    %v2734 = vmul.f32 %v2672, %v2732
    %v2735 = vadd.f32 %v2628, %v2734
    %v2736 = vtanh.pop %v2735
    %v2737 = vsub.f32 1.0, %v2713
    %v2738 = vmul.f32 %v2737, %v2736
    %v2739 = vmul.f32 %v2713, %v2622
    %v2740 = vadd.f32 %v2738, %v2739
    %2741 = vst.msk [vmem:[%s1889] sm:$0xff] %vm1626, %v2740
    %s2742 = scalar_lea.vmem [#allocation8], 56
    %2743 = vst.msk [vmem:[%s2742] sm:$0xff] %vm1626, %v2740
    %v2744 = vld [vmem:[%s1889] sm:$0xff]
    %2746 = vrot.lane.b32.xlu0 %v2744, 8
    %v2747 = vpop.permute.xlu0 %2746
    %vm2749 = vcmask 191552
    %2750 = vst.msk [vmem:[#allocation21] sm:$0xf] %vm2749, %v2747
    %2751 = vrot.lane.b32.xlu0 %v2744, 48
    %v2752 = vpop.permute.xlu0 %2751
    %vm2754 = vcmask 523652
    %2755 = vst.msk [vmem:[#allocation21 - $0x4] sm:$0xf0] %vm2754, %v2752
    %v2756 = vld [vmem:[#allocation8] sm:$0xff]
    %v2757 = vld [vmem:[#allocation8 + $0x8] sm:$0xff]
    %v2758 = vld [vmem:[#allocation8 + $0x10] sm:$0xff]
    %v2759 = vld [vmem:[#allocation8 + $0x18] sm:$0xff]
    %v2760 = vld [vmem:[#allocation8 + $0x20] sm:$0xff]
    %v2761 = vld [vmem:[#allocation8 + $0x28] sm:$0xff]
    %v2762 = vld [vmem:[#allocation8 + $0x30] sm:$0xff]
    %v2763 = vld [vmem:[#allocation8 + $0x38] sm:$0xff]
    %v2764 = vld [vmem:[#allocation34] sm:$0xff]
    %v2765 = vld [vmem:[#allocation34 + $0x8] sm:$0xff]
    %v2766 = vld [vmem:[#allocation37] sm:$0x1]
    %v2768 = vperm.slane %v2766, 0
    %v2771 = vsel %vm1626, %v2756, 0
    %v2774 = vsel %vm1626, %v2757, 0
    %v2777 = vsel %vm1626, %v2758, 0
    %v2780 = vsel %vm1626, %v2759, 0
    %v2783 = vsel %vm1626, %v2760, 0
    %v2786 = vsel %vm1626, %v2761, 0
    %v2789 = vsel %vm1626, %v2762, 0
    %v2792 = vsel %vm1626, %v2763, 0
    %2794 = vmatpush.msra.mxu0 0.0
    %2795 = vmatpush.msra.mxu0 0.0
    %2796 = vmatpush.msra.mxu0 0.0
    %2797 = vmatpush.msra.mxu0 0.0
    %2798 = vmatpush.msra.mxu0 0.0
    %2799 = vmatpush.msra.mxu0 0.0
    %2800 = vmatpush.msra.mxu0 0.0
    %2801 = vmatpush.msra.mxu0 0.0
    %2802 = vmatpush.msra.mxu0 0.0
    %2803 = vmatpush.msra.mxu0 0.0
    %2804 = vmatpush.msra.mxu0 0.0
    %2805 = vmatpush.msra.mxu0 0.0
    %2806 = vmatpush.msra.mxu0 0.0
    %2807 = vmatpush.msra.mxu0 0.0
    %2808 = vmatpush.msra.mxu0 %v2765
    %2809 = vmatpush.msra.mxu0 %v2764
    %2810 = vmatmul.f32.gmra.mxu0 %v2771
    %v2811 = vpop.f32.mrf.mxu0
    %v2812 = vadd.f32 %v2768, %v2811
    %2813 = vmatmul.f32.gmra.mxu0 %v2774
    %v2814 = vpop.f32.mrf.mxu0
    %v2815 = vadd.f32 %v2768, %v2814
    %2816 = vmatmul.f32.gmra.mxu0 %v2777
    %v2817 = vpop.f32.mrf.mxu0
    %v2818 = vadd.f32 %v2768, %v2817
    %2819 = vmatmul.f32.gmra.mxu0 %v2780
    %v2820 = vpop.f32.mrf.mxu0
    %v2821 = vadd.f32 %v2768, %v2820
    %2822 = vmatmul.f32.gmra.mxu0 %v2783
    %v2823 = vpop.f32.mrf.mxu0
    %v2824 = vadd.f32 %v2768, %v2823
    %2825 = vmatmul.f32.gmra.mxu0 %v2786
    %v2826 = vpop.f32.mrf.mxu0
    %v2827 = vadd.f32 %v2768, %v2826
    %2828 = vmatmul.f32.gmra.mxu0 %v2789
    %v2829 = vpop.f32.mrf.mxu0
    %v2830 = vadd.f32 %v2768, %v2829
    %2831 = vmatmul.f32.gmra.mxu0 %v2792
    %v2832 = vpop.f32.mrf.mxu0
    %v2833 = vadd.f32 %v2768, %v2832
    %2834 = vdwg.mxu0
    %2835 = vst.msk [vmem:[#allocation14] sm:$0xff] %vm1626, %v2812
    %2836 = vst.msk [vmem:[#allocation14 + $0x8] sm:$0xff] %vm1626, %v2815
    %2837 = vst.msk [vmem:[#allocation14 + $0x10] sm:$0xff] %vm1626, %v2818
    %2838 = vst.msk [vmem:[#allocation14 + $0x18] sm:$0xff] %vm1626, %v2821
    %2839 = vst.msk [vmem:[#allocation14 + $0x20] sm:$0xff] %vm1626, %v2824
    %2840 = vst.msk [vmem:[#allocation14 + $0x28] sm:$0xff] %vm1626, %v2827
    %2841 = vst.msk [vmem:[#allocation14 + $0x30] sm:$0xff] %vm1626, %v2830
    %2842 = vst.msk [vmem:[#allocation14 + $0x38] sm:$0xff] %vm1626, %v2833
    %s2843 = scalar_lea.vmem [#allocation34], 16
    %v2844 = vld [vmem:[%s2843] sm:$0xff]
    %v2845 = vld [vmem:[%s2843 + $0x8] sm:$0xff]
    %s2846 = scalar_lea.vmem [#allocation37], 1
    %v2847 = vld [vmem:[%s2846] sm:$0x1]
    %v2849 = vperm.slane %v2847, 0
    %2851 = vmatpush.msra.mxu0 0.0
    %2852 = vmatpush.msra.mxu0 0.0
    %2853 = vmatpush.msra.mxu0 0.0
    %2854 = vmatpush.msra.mxu0 0.0
    %2855 = vmatpush.msra.mxu0 0.0
    %2856 = vmatpush.msra.mxu0 0.0
    %2857 = vmatpush.msra.mxu0 0.0
    %2858 = vmatpush.msra.mxu0 0.0
    %2859 = vmatpush.msra.mxu0 0.0
    %2860 = vmatpush.msra.mxu0 0.0
    %2861 = vmatpush.msra.mxu0 0.0
    %2862 = vmatpush.msra.mxu0 0.0
    %2863 = vmatpush.msra.mxu0 0.0
    %2864 = vmatpush.msra.mxu0 0.0
    %2865 = vmatpush.msra.mxu0 %v2845
    %2866 = vmatpush.msra.mxu0 %v2844
    %2867 = vmatmul.f32.gmra.mxu0 %v2771
    %v2868 = vpop.f32.mrf.mxu0
    %v2869 = vadd.f32 %v2849, %v2868
    %2870 = vmatmul.f32.gmra.mxu0 %v2774
    %v2871 = vpop.f32.mrf.mxu0
    %v2872 = vadd.f32 %v2849, %v2871
    %2873 = vmatmul.f32.gmra.mxu0 %v2777
    %v2874 = vpop.f32.mrf.mxu0
    %v2875 = vadd.f32 %v2849, %v2874
    %2876 = vmatmul.f32.gmra.mxu0 %v2780
    %v2877 = vpop.f32.mrf.mxu0
    %v2878 = vadd.f32 %v2849, %v2877
    %2879 = vmatmul.f32.gmra.mxu0 %v2783
    %v2880 = vpop.f32.mrf.mxu0
    %v2881 = vadd.f32 %v2849, %v2880
    %2882 = vmatmul.f32.gmra.mxu0 %v2786
    %v2883 = vpop.f32.mrf.mxu0
    %v2884 = vadd.f32 %v2849, %v2883
    %2885 = vmatmul.f32.gmra.mxu0 %v2789
    %v2886 = vpop.f32.mrf.mxu0
    %v2887 = vadd.f32 %v2849, %v2886
    %2888 = vmatmul.f32.gmra.mxu0 %v2792
    %v2889 = vpop.f32.mrf.mxu0
    %v2890 = vadd.f32 %v2849, %v2889
    %2891 = vdwg.mxu0
    %2892 = vst.msk [vmem:[#allocation15] sm:$0xff] %vm1626, %v2869
    %2893 = vst.msk [vmem:[#allocation15 + $0x8] sm:$0xff] %vm1626, %v2872
    %2894 = vst.msk [vmem:[#allocation15 + $0x10] sm:$0xff] %vm1626, %v2875
    %2895 = vst.msk [vmem:[#allocation15 + $0x18] sm:$0xff] %vm1626, %v2878
    %2896 = vst.msk [vmem:[#allocation15 + $0x20] sm:$0xff] %vm1626, %v2881
    %2897 = vst.msk [vmem:[#allocation15 + $0x28] sm:$0xff] %vm1626, %v2884
    %2898 = vst.msk [vmem:[#allocation15 + $0x30] sm:$0xff] %vm1626, %v2887
    %2899 = vst.msk [vmem:[#allocation15 + $0x38] sm:$0xff] %vm1626, %v2890
    %s2900 = scalar_lea.vmem [#allocation34], 32
    %v2901 = vld [vmem:[%s2900] sm:$0xff]
    %v2902 = vld [vmem:[%s2900 + $0x8] sm:$0xff]
    %s2903 = scalar_lea.vmem [#allocation37], 2
    %v2904 = vld [vmem:[%s2903] sm:$0x1]
    %v2906 = vperm.slane %v2904, 0
    %2908 = vmatpush.msra.mxu0 0.0
    %2909 = vmatpush.msra.mxu0 0.0
    %2910 = vmatpush.msra.mxu0 0.0
    %2911 = vmatpush.msra.mxu0 0.0
    %2912 = vmatpush.msra.mxu0 0.0
    %2913 = vmatpush.msra.mxu0 0.0
    %2914 = vmatpush.msra.mxu0 0.0
    %2915 = vmatpush.msra.mxu0 0.0
    %2916 = vmatpush.msra.mxu0 0.0
    %2917 = vmatpush.msra.mxu0 0.0
    %2918 = vmatpush.msra.mxu0 0.0
    %2919 = vmatpush.msra.mxu0 0.0
    %2920 = vmatpush.msra.mxu0 0.0
    %2921 = vmatpush.msra.mxu0 0.0
    %2922 = vmatpush.msra.mxu0 %v2902
    %2923 = vmatpush.msra.mxu0 %v2901
    %2924 = vmatmul.f32.gmra.mxu0 %v2771
    %v2925 = vpop.f32.mrf.mxu0
    %v2926 = vadd.f32 %v2906, %v2925
    %2927 = vmatmul.f32.gmra.mxu0 %v2774
    %v2928 = vpop.f32.mrf.mxu0
    %v2929 = vadd.f32 %v2906, %v2928
    %2930 = vmatmul.f32.gmra.mxu0 %v2777
    %v2931 = vpop.f32.mrf.mxu0
    %v2932 = vadd.f32 %v2906, %v2931
    %2933 = vmatmul.f32.gmra.mxu0 %v2780
    %v2934 = vpop.f32.mrf.mxu0
    %v2935 = vadd.f32 %v2906, %v2934
    %2936 = vmatmul.f32.gmra.mxu0 %v2783
    %v2937 = vpop.f32.mrf.mxu0
    %v2938 = vadd.f32 %v2906, %v2937
    %2939 = vmatmul.f32.gmra.mxu0 %v2786
    %v2940 = vpop.f32.mrf.mxu0
    %v2941 = vadd.f32 %v2906, %v2940
    %2942 = vmatmul.f32.gmra.mxu0 %v2789
    %v2943 = vpop.f32.mrf.mxu0
    %v2944 = vadd.f32 %v2906, %v2943
    %2945 = vmatmul.f32.gmra.mxu0 %v2792
    %v2946 = vpop.f32.mrf.mxu0
    %v2947 = vadd.f32 %v2906, %v2946
    %2948 = vdwg.mxu0
    %2949 = vst.msk [vmem:[#allocation16] sm:$0xff] %vm1626, %v2926
    %2950 = vst.msk [vmem:[#allocation16 + $0x8] sm:$0xff] %vm1626, %v2929
    %2951 = vst.msk [vmem:[#allocation16 + $0x10] sm:$0xff] %vm1626, %v2932
    %2952 = vst.msk [vmem:[#allocation16 + $0x18] sm:$0xff] %vm1626, %v2935
    %2953 = vst.msk [vmem:[#allocation16 + $0x20] sm:$0xff] %vm1626, %v2938
    %2954 = vst.msk [vmem:[#allocation16 + $0x28] sm:$0xff] %vm1626, %v2941
    %2955 = vst.msk [vmem:[#allocation16 + $0x30] sm:$0xff] %vm1626, %v2944
    %2956 = vst.msk [vmem:[#allocation16 + $0x38] sm:$0xff] %vm1626, %v2947
    %2957 = vst.msk [vmem:[#allocation12] sm:$0xff] %vm1626, 0.0
    %2958 = vst.msk [vmem:[#allocation12 + $0x8] sm:$0xff] %vm1626, 0.0
    %2959 = vst.msk [vmem:[#allocation12 + $0x10] sm:$0xff] %vm1626, 0.0
    %2960 = vst.msk [vmem:[#allocation12 + $0x18] sm:$0xff] %vm1626, 0.0
    %v2961 = vld [vmem:[#allocation36] sm:$0xff]
    %v2962 = vld [vmem:[#allocation36 + $0x8] sm:$0xff]
    %s2963 = scalar_lea.vmem [#allocation36], 16
    %v2964 = vld [vmem:[%s2963] sm:$0xff]
    %v2965 = vld [vmem:[%s2963 + $0x8] sm:$0xff]
    %s2966 = scalar_lea.vmem [#allocation36], 32
    %v2967 = vld [vmem:[%s2966] sm:$0xff]
    %v2968 = vld [vmem:[%s2966 + $0x8] sm:$0xff]
    %v2969 = vld [vmem:[#allocation39] sm:$0x1]
    %s2970 = scalar_lea.vmem [#allocation39], 1
    %v2971 = vld [vmem:[%s2970] sm:$0x1]
    %s2972 = scalar_lea.vmem [#allocation39], 2
    %v2973 = vld [vmem:[%s2972] sm:$0x1]
    %v2974 = vld [vmem:[#allocation12] sm:$0xff]
    %v2975 = vld [vmem:[#allocation14] sm:$0xff]
    %v2976 = vld [vmem:[#allocation15] sm:$0xff]
    %v2977 = vld [vmem:[#allocation16] sm:$0xff]
    %v2979 = vsel %vm1626, %v2974, 0
    %2981 = vmatpush.msra.mxu0 0.0
    %2982 = vmatpush.msra.mxu0 0.0
    %2983 = vmatpush.msra.mxu0 0.0
    %2984 = vmatpush.msra.mxu0 0.0
    %2985 = vmatpush.msra.mxu0 0.0
    %2986 = vmatpush.msra.mxu0 0.0
    %2987 = vmatpush.msra.mxu0 0.0
    %2988 = vmatpush.msra.mxu0 0.0
    %2989 = vmatpush.msra.mxu0 0.0
    %2990 = vmatpush.msra.mxu0 0.0
    %2991 = vmatpush.msra.mxu0 0.0
    %2992 = vmatpush.msra.mxu0 0.0
    %2993 = vmatpush.msra.mxu0 0.0
    %2994 = vmatpush.msra.mxu0 0.0
    %2995 = vmatpush.msra.mxu0 %v2962
    %2996 = vmatpush.msra.mxu0 %v2961
    %2997 = vmatmul.f32.gmra.mxu0 %v2979
    %v2998 = vpop.f32.mrf.mxu0
    %v2999 = vadd.f32 0.0, %v2998
    %3000 = vdwg.mxu0
    %v3001 = vadd.f32 %v2975, %v2999
    %v3003 = vperm.slane %v2969, 0
    %v3005 = vadd.f32 %v3001, %v3003
    %v3006 = vxor.u32 %v3005, 2147483648
    %v3007 = vmul.f32 %v3006, 1.442695
    %v3008 = vpow.pop %v3007
    %v3009 = vadd.f32 %v3008, 1.0
    %v3010 = vrcp.pop %v3009
    %v3011 = vmul.f32 %v3009, %v3010
    %v3012 = vsub.f32 1.0, %v3011
    %v3013 = vmul.f32 %v3010, %v3012
    %v3014 = vadd.f32 %v3010, %v3013
    %vm3015 = vweird.f32 %v3009
    %vm3016 = vweird.f32 %v3010
    %vm3017 = vmor %vm3015, %vm3016
    %v3018 = vsel %vm3017, %v3010, %v3014
    %v3019 = vand.u32 2147483647, %v3009
    %vm3020 = vcmp.eq.f32.partialorder %v3019, 8.507059e+37
    %v3021 = vand.u32 %v3009, 2147483648
    %v3022 = vor.u32 1.1754944e-38, %v3021
    %v3023 = vsel %vm3020, %v3022, %v3018
    %v3024 = vmul.f32 1.0, %v3023
    %3025 = vmatpush.msra.mxu0 0.0
    %3026 = vmatpush.msra.mxu0 0.0
    %3027 = vmatpush.msra.mxu0 0.0
    %3028 = vmatpush.msra.mxu0 0.0
    %3029 = vmatpush.msra.mxu0 0.0
    %3030 = vmatpush.msra.mxu0 0.0
    %3031 = vmatpush.msra.mxu0 0.0
    %3032 = vmatpush.msra.mxu0 0.0
    %3033 = vmatpush.msra.mxu0 0.0
    %3034 = vmatpush.msra.mxu0 0.0
    %3035 = vmatpush.msra.mxu0 0.0
    %3036 = vmatpush.msra.mxu0 0.0
    %3037 = vmatpush.msra.mxu0 0.0
    %3038 = vmatpush.msra.mxu0 0.0
    %3039 = vmatpush.msra.mxu0 %v2965
    %3040 = vmatpush.msra.mxu0 %v2964
    %3041 = vmatmul.f32.gmra.mxu0 %v2979
    %v3042 = vpop.f32.mrf.mxu0
    %v3043 = vadd.f32 0.0, %v3042
    %3044 = vdwg.mxu0
    %v3045 = vadd.f32 %v2976, %v3043
    %v3047 = vperm.slane %v2971, 0
    %v3049 = vadd.f32 %v3045, %v3047
    %v3050 = vxor.u32 %v3049, 2147483648
    %v3051 = vmul.f32 %v3050, 1.442695
    %v3052 = vpow.pop %v3051
    %v3053 = vadd.f32 %v3052, 1.0
    %v3054 = vrcp.pop %v3053
    %v3055 = vmul.f32 %v3053, %v3054
    %v3056 = vsub.f32 1.0, %v3055
    %v3057 = vmul.f32 %v3054, %v3056
    %v3058 = vadd.f32 %v3054, %v3057
    %vm3059 = vweird.f32 %v3053
    %vm3060 = vweird.f32 %v3054
    %vm3061 = vmor %vm3059, %vm3060
    %v3062 = vsel %vm3061, %v3054, %v3058
    %v3063 = vand.u32 2147483647, %v3053
    %vm3064 = vcmp.eq.f32.partialorder %v3063, 8.507059e+37
    %v3065 = vand.u32 %v3053, 2147483648
    %v3066 = vor.u32 1.1754944e-38, %v3065
    %v3067 = vsel %vm3064, %v3066, %v3062
    %v3068 = vmul.f32 1.0, %v3067
    %v3070 = vperm.slane %v2973, 0
    %3072 = vmatpush.msra.mxu0 0.0
    %3073 = vmatpush.msra.mxu0 0.0
    %3074 = vmatpush.msra.mxu0 0.0
    %3075 = vmatpush.msra.mxu0 0.0
    %3076 = vmatpush.msra.mxu0 0.0
    %3077 = vmatpush.msra.mxu0 0.0
    %3078 = vmatpush.msra.mxu0 0.0
    %3079 = vmatpush.msra.mxu0 0.0
    %3080 = vmatpush.msra.mxu0 0.0
    %3081 = vmatpush.msra.mxu0 0.0
    %3082 = vmatpush.msra.mxu0 0.0
    %3083 = vmatpush.msra.mxu0 0.0
    %3084 = vmatpush.msra.mxu0 0.0
    %3085 = vmatpush.msra.mxu0 0.0
    %3086 = vmatpush.msra.mxu0 %v2968
    %3087 = vmatpush.msra.mxu0 %v2967
    %3088 = vmatmul.f32.gmra.mxu0 %v2979
    %v3089 = vpop.f32.mrf.mxu0
    %v3090 = vadd.f32 %v3070, %v3089
    %3091 = vdwg.mxu0
    %v3092 = vmul.f32 %v3024, %v3090
    %v3093 = vadd.f32 %v2977, %v3092
    %v3094 = vtanh.pop %v3093
    %v3095 = vsub.f32 1.0, %v3068
    %v3096 = vmul.f32 %v3095, %v3094
    %v3097 = vmul.f32 %v3068, %v2974
    %v3098 = vadd.f32 %v3096, %v3097
    %3099 = vst.msk [vmem:[#allocation12] sm:$0xff] %vm1626, %v3098
    %3100 = vst.msk [vmem:[#allocation13] sm:$0xff] %vm1626, %v3098
    %s3101 = scalar_lea.vmem [#allocation12], 8
    %v3102 = vld [vmem:[%s3101] sm:$0xff]
    %s3103 = scalar_lea.vmem [#allocation14], 8
    %v3104 = vld [vmem:[%s3103] sm:$0xff]
    %s3105 = scalar_lea.vmem [#allocation15], 8
    %v3106 = vld [vmem:[%s3105] sm:$0xff]
    %s3107 = scalar_lea.vmem [#allocation16], 8
    %v3108 = vld [vmem:[%s3107] sm:$0xff]
    %v3110 = vsel %vm1626, %v3102, 0
    %3112 = vmatpush.msra.mxu0 0.0
    %3113 = vmatpush.msra.mxu0 0.0
    %3114 = vmatpush.msra.mxu0 0.0
    %3115 = vmatpush.msra.mxu0 0.0
    %3116 = vmatpush.msra.mxu0 0.0
    %3117 = vmatpush.msra.mxu0 0.0
    %3118 = vmatpush.msra.mxu0 0.0
    %3119 = vmatpush.msra.mxu0 0.0
    %3120 = vmatpush.msra.mxu0 0.0
    %3121 = vmatpush.msra.mxu0 0.0
    %3122 = vmatpush.msra.mxu0 0.0
    %3123 = vmatpush.msra.mxu0 0.0
    %3124 = vmatpush.msra.mxu0 0.0
    %3125 = vmatpush.msra.mxu0 0.0
    %3126 = vmatpush.msra.mxu0 %v2962
    %3127 = vmatpush.msra.mxu0 %v2961
    %3128 = vmatmul.f32.gmra.mxu0 %v3110
    %v3129 = vpop.f32.mrf.mxu0
    %v3130 = vadd.f32 0.0, %v3129
    %3131 = vdwg.mxu0
    %v3132 = vadd.f32 %v3104, %v3130
    %v3133 = vadd.f32 %v3132, %v3003
    %v3134 = vxor.u32 %v3133, 2147483648
    %v3135 = vmul.f32 %v3134, 1.442695
    %v3136 = vpow.pop %v3135
    %v3137 = vadd.f32 %v3136, 1.0
    %v3138 = vrcp.pop %v3137
    %v3139 = vmul.f32 %v3137, %v3138
    %v3140 = vsub.f32 1.0, %v3139
    %v3141 = vmul.f32 %v3138, %v3140
    %v3142 = vadd.f32 %v3138, %v3141
    %vm3143 = vweird.f32 %v3137
    %vm3144 = vweird.f32 %v3138
    %vm3145 = vmor %vm3143, %vm3144
    %v3146 = vsel %vm3145, %v3138, %v3142
    %v3147 = vand.u32 2147483647, %v3137
    %vm3148 = vcmp.eq.f32.partialorder %v3147, 8.507059e+37
    %v3149 = vand.u32 %v3137, 2147483648
    %v3150 = vor.u32 1.1754944e-38, %v3149
    %v3151 = vsel %vm3148, %v3150, %v3146
    %v3152 = vmul.f32 1.0, %v3151
    %3153 = vmatpush.msra.mxu0 0.0
    %3154 = vmatpush.msra.mxu0 0.0
    %3155 = vmatpush.msra.mxu0 0.0
    %3156 = vmatpush.msra.mxu0 0.0
    %3157 = vmatpush.msra.mxu0 0.0
    %3158 = vmatpush.msra.mxu0 0.0
    %3159 = vmatpush.msra.mxu0 0.0
    %3160 = vmatpush.msra.mxu0 0.0
    %3161 = vmatpush.msra.mxu0 0.0
    %3162 = vmatpush.msra.mxu0 0.0
    %3163 = vmatpush.msra.mxu0 0.0
    %3164 = vmatpush.msra.mxu0 0.0
    %3165 = vmatpush.msra.mxu0 0.0
    %3166 = vmatpush.msra.mxu0 0.0
    %3167 = vmatpush.msra.mxu0 %v2965
    %3168 = vmatpush.msra.mxu0 %v2964
    %3169 = vmatmul.f32.gmra.mxu0 %v3110
    %v3170 = vpop.f32.mrf.mxu0
    %v3171 = vadd.f32 0.0, %v3170
    %3172 = vdwg.mxu0
    %v3173 = vadd.f32 %v3106, %v3171
    %v3174 = vadd.f32 %v3173, %v3047
    %v3175 = vxor.u32 %v3174, 2147483648
    %v3176 = vmul.f32 %v3175, 1.442695
    %v3177 = vpow.pop %v3176
    %v3178 = vadd.f32 %v3177, 1.0
    %v3179 = vrcp.pop %v3178
    %v3180 = vmul.f32 %v3178, %v3179
    %v3181 = vsub.f32 1.0, %v3180
    %v3182 = vmul.f32 %v3179, %v3181
    %v3183 = vadd.f32 %v3179, %v3182
    %vm3184 = vweird.f32 %v3178
    %vm3185 = vweird.f32 %v3179
    %vm3186 = vmor %vm3184, %vm3185
    %v3187 = vsel %vm3186, %v3179, %v3183
    %v3188 = vand.u32 2147483647, %v3178
    %vm3189 = vcmp.eq.f32.partialorder %v3188, 8.507059e+37
    %v3190 = vand.u32 %v3178, 2147483648
    %v3191 = vor.u32 1.1754944e-38, %v3190
    %v3192 = vsel %vm3189, %v3191, %v3187
    %v3193 = vmul.f32 1.0, %v3192
    %3194 = vmatpush.msra.mxu0 0.0
    %3195 = vmatpush.msra.mxu0 0.0
    %3196 = vmatpush.msra.mxu0 0.0
    %3197 = vmatpush.msra.mxu0 0.0
    %3198 = vmatpush.msra.mxu0 0.0
    %3199 = vmatpush.msra.mxu0 0.0
    %3200 = vmatpush.msra.mxu0 0.0
    %3201 = vmatpush.msra.mxu0 0.0
    %3202 = vmatpush.msra.mxu0 0.0
    %3203 = vmatpush.msra.mxu0 0.0
    %3204 = vmatpush.msra.mxu0 0.0
    %3205 = vmatpush.msra.mxu0 0.0
    %3206 = vmatpush.msra.mxu0 0.0
    %3207 = vmatpush.msra.mxu0 0.0
    %3208 = vmatpush.msra.mxu0 %v2968
    %3209 = vmatpush.msra.mxu0 %v2967
    %3210 = vmatmul.f32.gmra.mxu0 %v3110
    %v3211 = vpop.f32.mrf.mxu0
    %v3212 = vadd.f32 %v3070, %v3211
    %3213 = vdwg.mxu0
    %v3214 = vmul.f32 %v3152, %v3212
    %v3215 = vadd.f32 %v3108, %v3214
    %v3216 = vtanh.pop %v3215
    %v3217 = vsub.f32 1.0, %v3193
    %v3218 = vmul.f32 %v3217, %v3216
    %v3219 = vmul.f32 %v3193, %v3102
    %v3220 = vadd.f32 %v3218, %v3219
    %3221 = vst.msk [vmem:[%s3101] sm:$0xff] %vm1626, %v3220
    %s3222 = scalar_lea.vmem [#allocation13], 8
    %3223 = vst.msk [vmem:[%s3222] sm:$0xff] %vm1626, %v3220
    %s3224 = scalar_lea.vmem [#allocation12], 16
    %v3225 = vld [vmem:[%s3224] sm:$0xff]
    %s3226 = scalar_lea.vmem [#allocation14], 16
    %v3227 = vld [vmem:[%s3226] sm:$0xff]
    %s3228 = scalar_lea.vmem [#allocation15], 16
    %v3229 = vld [vmem:[%s3228] sm:$0xff]
    %s3230 = scalar_lea.vmem [#allocation16], 16
    %v3231 = vld [vmem:[%s3230] sm:$0xff]
    %v3233 = vsel %vm1626, %v3225, 0
    %3235 = vmatpush.msra.mxu0 0.0
    %3236 = vmatpush.msra.mxu0 0.0
    %3237 = vmatpush.msra.mxu0 0.0
    %3238 = vmatpush.msra.mxu0 0.0
    %3239 = vmatpush.msra.mxu0 0.0
    %3240 = vmatpush.msra.mxu0 0.0
    %3241 = vmatpush.msra.mxu0 0.0
    %3242 = vmatpush.msra.mxu0 0.0
    %3243 = vmatpush.msra.mxu0 0.0
    %3244 = vmatpush.msra.mxu0 0.0
    %3245 = vmatpush.msra.mxu0 0.0
    %3246 = vmatpush.msra.mxu0 0.0
    %3247 = vmatpush.msra.mxu0 0.0
    %3248 = vmatpush.msra.mxu0 0.0
    %3249 = vmatpush.msra.mxu0 %v2962
    %3250 = vmatpush.msra.mxu0 %v2961
    %3251 = vmatmul.f32.gmra.mxu0 %v3233
    %v3252 = vpop.f32.mrf.mxu0
    %v3253 = vadd.f32 0.0, %v3252
    %3254 = vdwg.mxu0
    %v3255 = vadd.f32 %v3227, %v3253
    %v3256 = vadd.f32 %v3255, %v3003
    %v3257 = vxor.u32 %v3256, 2147483648
    %v3258 = vmul.f32 %v3257, 1.442695
    %v3259 = vpow.pop %v3258
    %v3260 = vadd.f32 %v3259, 1.0
    %v3261 = vrcp.pop %v3260
    %v3262 = vmul.f32 %v3260, %v3261
    %v3263 = vsub.f32 1.0, %v3262
    %v3264 = vmul.f32 %v3261, %v3263
    %v3265 = vadd.f32 %v3261, %v3264
    %vm3266 = vweird.f32 %v3260
    %vm3267 = vweird.f32 %v3261
    %vm3268 = vmor %vm3266, %vm3267
    %v3269 = vsel %vm3268, %v3261, %v3265
    %v3270 = vand.u32 2147483647, %v3260
    %vm3271 = vcmp.eq.f32.partialorder %v3270, 8.507059e+37
    %v3272 = vand.u32 %v3260, 2147483648
    %v3273 = vor.u32 1.1754944e-38, %v3272
    %v3274 = vsel %vm3271, %v3273, %v3269
    %v3275 = vmul.f32 1.0, %v3274
    %3276 = vmatpush.msra.mxu0 0.0
    %3277 = vmatpush.msra.mxu0 0.0
    %3278 = vmatpush.msra.mxu0 0.0
    %3279 = vmatpush.msra.mxu0 0.0
    %3280 = vmatpush.msra.mxu0 0.0
    %3281 = vmatpush.msra.mxu0 0.0
    %3282 = vmatpush.msra.mxu0 0.0
    %3283 = vmatpush.msra.mxu0 0.0
    %3284 = vmatpush.msra.mxu0 0.0
    %3285 = vmatpush.msra.mxu0 0.0
    %3286 = vmatpush.msra.mxu0 0.0
    %3287 = vmatpush.msra.mxu0 0.0
    %3288 = vmatpush.msra.mxu0 0.0
    %3289 = vmatpush.msra.mxu0 0.0
    %3290 = vmatpush.msra.mxu0 %v2965
    %3291 = vmatpush.msra.mxu0 %v2964
    %3292 = vmatmul.f32.gmra.mxu0 %v3233
    %v3293 = vpop.f32.mrf.mxu0
    %v3294 = vadd.f32 0.0, %v3293
    %3295 = vdwg.mxu0
    %v3296 = vadd.f32 %v3229, %v3294
    %v3297 = vadd.f32 %v3296, %v3047
    %v3298 = vxor.u32 %v3297, 2147483648
    %v3299 = vmul.f32 %v3298, 1.442695
    %v3300 = vpow.pop %v3299
    %v3301 = vadd.f32 %v3300, 1.0
    %v3302 = vrcp.pop %v3301
    %v3303 = vmul.f32 %v3301, %v3302
    %v3304 = vsub.f32 1.0, %v3303
    %v3305 = vmul.f32 %v3302, %v3304
    %v3306 = vadd.f32 %v3302, %v3305
    %vm3307 = vweird.f32 %v3301
    %vm3308 = vweird.f32 %v3302
    %vm3309 = vmor %vm3307, %vm3308
    %v3310 = vsel %vm3309, %v3302, %v3306
    %v3311 = vand.u32 2147483647, %v3301
    %vm3312 = vcmp.eq.f32.partialorder %v3311, 8.507059e+37
    %v3313 = vand.u32 %v3301, 2147483648
    %v3314 = vor.u32 1.1754944e-38, %v3313
    %v3315 = vsel %vm3312, %v3314, %v3310
    %v3316 = vmul.f32 1.0, %v3315
    %3317 = vmatpush.msra.mxu0 0.0
    %3318 = vmatpush.msra.mxu0 0.0
    %3319 = vmatpush.msra.mxu0 0.0
    %3320 = vmatpush.msra.mxu0 0.0
    %3321 = vmatpush.msra.mxu0 0.0
    %3322 = vmatpush.msra.mxu0 0.0
    %3323 = vmatpush.msra.mxu0 0.0
    %3324 = vmatpush.msra.mxu0 0.0
    %3325 = vmatpush.msra.mxu0 0.0
    %3326 = vmatpush.msra.mxu0 0.0
    %3327 = vmatpush.msra.mxu0 0.0
    %3328 = vmatpush.msra.mxu0 0.0
    %3329 = vmatpush.msra.mxu0 0.0
    %3330 = vmatpush.msra.mxu0 0.0
    %3331 = vmatpush.msra.mxu0 %v2968
    %3332 = vmatpush.msra.mxu0 %v2967
    %3333 = vmatmul.f32.gmra.mxu0 %v3233
    %v3334 = vpop.f32.mrf.mxu0
    %v3335 = vadd.f32 %v3070, %v3334
    %3336 = vdwg.mxu0
    %v3337 = vmul.f32 %v3275, %v3335
    %v3338 = vadd.f32 %v3231, %v3337
    %v3339 = vtanh.pop %v3338
    %v3340 = vsub.f32 1.0, %v3316
    %v3341 = vmul.f32 %v3340, %v3339
    %v3342 = vmul.f32 %v3316, %v3225
    %v3343 = vadd.f32 %v3341, %v3342
    %3344 = vst.msk [vmem:[%s3224] sm:$0xff] %vm1626, %v3343
    %s3345 = scalar_lea.vmem [#allocation13], 16
    %3346 = vst.msk [vmem:[%s3345] sm:$0xff] %vm1626, %v3343
    %s3347 = scalar_lea.vmem [#allocation12], 24
    %v3348 = vld [vmem:[%s3347] sm:$0xff]
    %s3349 = scalar_lea.vmem [#allocation14], 24
    %v3350 = vld [vmem:[%s3349] sm:$0xff]
    %s3351 = scalar_lea.vmem [#allocation15], 24
    %v3352 = vld [vmem:[%s3351] sm:$0xff]
    %s3353 = scalar_lea.vmem [#allocation16], 24
    %v3354 = vld [vmem:[%s3353] sm:$0xff]
    %v3356 = vsel %vm1626, %v3348, 0
    %3358 = vmatpush.msra.mxu0 0.0
    %3359 = vmatpush.msra.mxu0 0.0
    %3360 = vmatpush.msra.mxu0 0.0
    %3361 = vmatpush.msra.mxu0 0.0
    %3362 = vmatpush.msra.mxu0 0.0
    %3363 = vmatpush.msra.mxu0 0.0
    %3364 = vmatpush.msra.mxu0 0.0
    %3365 = vmatpush.msra.mxu0 0.0
    %3366 = vmatpush.msra.mxu0 0.0
    %3367 = vmatpush.msra.mxu0 0.0
    %3368 = vmatpush.msra.mxu0 0.0
    %3369 = vmatpush.msra.mxu0 0.0
    %3370 = vmatpush.msra.mxu0 0.0
    %3371 = vmatpush.msra.mxu0 0.0
    %3372 = vmatpush.msra.mxu0 %v2962
    %3373 = vmatpush.msra.mxu0 %v2961
    %3374 = vmatmul.f32.gmra.mxu0 %v3356
    %v3375 = vpop.f32.mrf.mxu0
    %v3376 = vadd.f32 0.0, %v3375
    %3377 = vdwg.mxu0
    %v3378 = vadd.f32 %v3350, %v3376
    %v3379 = vadd.f32 %v3378, %v3003
    %v3380 = vxor.u32 %v3379, 2147483648
    %v3381 = vmul.f32 %v3380, 1.442695
    %v3382 = vpow.pop %v3381
    %v3383 = vadd.f32 %v3382, 1.0
    %v3384 = vrcp.pop %v3383
    %v3385 = vmul.f32 %v3383, %v3384
    %v3386 = vsub.f32 1.0, %v3385
    %v3387 = vmul.f32 %v3384, %v3386
    %v3388 = vadd.f32 %v3384, %v3387
    %vm3389 = vweird.f32 %v3383
    %vm3390 = vweird.f32 %v3384
    %vm3391 = vmor %vm3389, %vm3390
    %v3392 = vsel %vm3391, %v3384, %v3388
    %v3393 = vand.u32 2147483647, %v3383
    %vm3394 = vcmp.eq.f32.partialorder %v3393, 8.507059e+37
    %v3395 = vand.u32 %v3383, 2147483648
    %v3396 = vor.u32 1.1754944e-38, %v3395
    %v3397 = vsel %vm3394, %v3396, %v3392
    %v3398 = vmul.f32 1.0, %v3397
    %3399 = vmatpush.msra.mxu0 0.0
    %3400 = vmatpush.msra.mxu0 0.0
    %3401 = vmatpush.msra.mxu0 0.0
    %3402 = vmatpush.msra.mxu0 0.0
    %3403 = vmatpush.msra.mxu0 0.0
    %3404 = vmatpush.msra.mxu0 0.0
    %3405 = vmatpush.msra.mxu0 0.0
    %3406 = vmatpush.msra.mxu0 0.0
    %3407 = vmatpush.msra.mxu0 0.0
    %3408 = vmatpush.msra.mxu0 0.0
    %3409 = vmatpush.msra.mxu0 0.0
    %3410 = vmatpush.msra.mxu0 0.0
    %3411 = vmatpush.msra.mxu0 0.0
    %3412 = vmatpush.msra.mxu0 0.0
    %3413 = vmatpush.msra.mxu0 %v2965
    %3414 = vmatpush.msra.mxu0 %v2964
    %3415 = vmatmul.f32.gmra.mxu0 %v3356
    %v3416 = vpop.f32.mrf.mxu0
    %v3417 = vadd.f32 0.0, %v3416
    %3418 = vdwg.mxu0
    %v3419 = vadd.f32 %v3352, %v3417
    %v3420 = vadd.f32 %v3419, %v3047
    %v3421 = vxor.u32 %v3420, 2147483648
    %v3422 = vmul.f32 %v3421, 1.442695
    %v3423 = vpow.pop %v3422
    %v3424 = vadd.f32 %v3423, 1.0
    %v3425 = vrcp.pop %v3424
    %v3426 = vmul.f32 %v3424, %v3425
    %v3427 = vsub.f32 1.0, %v3426
    %v3428 = vmul.f32 %v3425, %v3427
    %v3429 = vadd.f32 %v3425, %v3428
    %vm3430 = vweird.f32 %v3424
    %vm3431 = vweird.f32 %v3425
    %vm3432 = vmor %vm3430, %vm3431
    %v3433 = vsel %vm3432, %v3425, %v3429
    %v3434 = vand.u32 2147483647, %v3424
    %vm3435 = vcmp.eq.f32.partialorder %v3434, 8.507059e+37
    %v3436 = vand.u32 %v3424, 2147483648
    %v3437 = vor.u32 1.1754944e-38, %v3436
    %v3438 = vsel %vm3435, %v3437, %v3433
    %v3439 = vmul.f32 1.0, %v3438
    %3440 = vmatpush.msra.mxu0 0.0
    %3441 = vmatpush.msra.mxu0 0.0
    %3442 = vmatpush.msra.mxu0 0.0
    %3443 = vmatpush.msra.mxu0 0.0
    %3444 = vmatpush.msra.mxu0 0.0
    %3445 = vmatpush.msra.mxu0 0.0
    %3446 = vmatpush.msra.mxu0 0.0
    %3447 = vmatpush.msra.mxu0 0.0
    %3448 = vmatpush.msra.mxu0 0.0
    %3449 = vmatpush.msra.mxu0 0.0
    %3450 = vmatpush.msra.mxu0 0.0
    %3451 = vmatpush.msra.mxu0 0.0
    %3452 = vmatpush.msra.mxu0 0.0
    %3453 = vmatpush.msra.mxu0 0.0
    %3454 = vmatpush.msra.mxu0 %v2968
    %3455 = vmatpush.msra.mxu0 %v2967
    %3456 = vmatmul.f32.gmra.mxu0 %v3356
    %v3457 = vpop.f32.mrf.mxu0
    %v3458 = vadd.f32 %v3070, %v3457
    %3459 = vdwg.mxu0
    %v3460 = vmul.f32 %v3398, %v3458
    %v3461 = vadd.f32 %v3354, %v3460
    %v3462 = vtanh.pop %v3461
    %v3463 = vsub.f32 1.0, %v3439
    %v3464 = vmul.f32 %v3463, %v3462
    %v3465 = vmul.f32 %v3439, %v3348
    %v3466 = vadd.f32 %v3464, %v3465
    %3467 = vst.msk [vmem:[%s3347] sm:$0xff] %vm1626, %v3466
    %s3468 = scalar_lea.vmem [#allocation13], 24
    %3469 = vst.msk [vmem:[%s3468] sm:$0xff] %vm1626, %v3466
    %v3470 = vld [vmem:[#allocation12] sm:$0xff]
    %s3471 = scalar_lea.vmem [#allocation14], 32
    %v3472 = vld [vmem:[%s3471] sm:$0xff]
    %s3473 = scalar_lea.vmem [#allocation15], 32
    %v3474 = vld [vmem:[%s3473] sm:$0xff]
    %s3475 = scalar_lea.vmem [#allocation16], 32
    %v3476 = vld [vmem:[%s3475] sm:$0xff]
    %v3478 = vsel %vm1626, %v3470, 0
    %3480 = vmatpush.msra.mxu0 0.0
    %3481 = vmatpush.msra.mxu0 0.0
    %3482 = vmatpush.msra.mxu0 0.0
    %3483 = vmatpush.msra.mxu0 0.0
    %3484 = vmatpush.msra.mxu0 0.0
    %3485 = vmatpush.msra.mxu0 0.0
    %3486 = vmatpush.msra.mxu0 0.0
    %3487 = vmatpush.msra.mxu0 0.0
    %3488 = vmatpush.msra.mxu0 0.0
    %3489 = vmatpush.msra.mxu0 0.0
    %3490 = vmatpush.msra.mxu0 0.0
    %3491 = vmatpush.msra.mxu0 0.0
    %3492 = vmatpush.msra.mxu0 0.0
    %3493 = vmatpush.msra.mxu0 0.0
    %3494 = vmatpush.msra.mxu0 %v2962
    %3495 = vmatpush.msra.mxu0 %v2961
    %3496 = vmatmul.f32.gmra.mxu0 %v3478
    %v3497 = vpop.f32.mrf.mxu0
    %v3498 = vadd.f32 0.0, %v3497
    %3499 = vdwg.mxu0
    %v3500 = vadd.f32 %v3472, %v3498
    %v3501 = vadd.f32 %v3500, %v3003
    %v3502 = vxor.u32 %v3501, 2147483648
    %v3503 = vmul.f32 %v3502, 1.442695
    %v3504 = vpow.pop %v3503
    %v3505 = vadd.f32 %v3504, 1.0
    %v3506 = vrcp.pop %v3505
    %v3507 = vmul.f32 %v3505, %v3506
    %v3508 = vsub.f32 1.0, %v3507
    %v3509 = vmul.f32 %v3506, %v3508
    %v3510 = vadd.f32 %v3506, %v3509
    %vm3511 = vweird.f32 %v3505
    %vm3512 = vweird.f32 %v3506
    %vm3513 = vmor %vm3511, %vm3512
    %v3514 = vsel %vm3513, %v3506, %v3510
    %v3515 = vand.u32 2147483647, %v3505
    %vm3516 = vcmp.eq.f32.partialorder %v3515, 8.507059e+37
    %v3517 = vand.u32 %v3505, 2147483648
    %v3518 = vor.u32 1.1754944e-38, %v3517
    %v3519 = vsel %vm3516, %v3518, %v3514
    %v3520 = vmul.f32 1.0, %v3519
    %3521 = vmatpush.msra.mxu0 0.0
    %3522 = vmatpush.msra.mxu0 0.0
    %3523 = vmatpush.msra.mxu0 0.0
    %3524 = vmatpush.msra.mxu0 0.0
    %3525 = vmatpush.msra.mxu0 0.0
    %3526 = vmatpush.msra.mxu0 0.0
    %3527 = vmatpush.msra.mxu0 0.0
    %3528 = vmatpush.msra.mxu0 0.0
    %3529 = vmatpush.msra.mxu0 0.0
    %3530 = vmatpush.msra.mxu0 0.0
    %3531 = vmatpush.msra.mxu0 0.0
    %3532 = vmatpush.msra.mxu0 0.0
    %3533 = vmatpush.msra.mxu0 0.0
    %3534 = vmatpush.msra.mxu0 0.0
    %3535 = vmatpush.msra.mxu0 %v2965
    %3536 = vmatpush.msra.mxu0 %v2964
    %3537 = vmatmul.f32.gmra.mxu0 %v3478
    %v3538 = vpop.f32.mrf.mxu0
    %v3539 = vadd.f32 0.0, %v3538
    %3540 = vdwg.mxu0
    %v3541 = vadd.f32 %v3474, %v3539
    %v3542 = vadd.f32 %v3541, %v3047
    %v3543 = vxor.u32 %v3542, 2147483648
    %v3544 = vmul.f32 %v3543, 1.442695
    %v3545 = vpow.pop %v3544
    %v3546 = vadd.f32 %v3545, 1.0
    %v3547 = vrcp.pop %v3546
    %v3548 = vmul.f32 %v3546, %v3547
    %v3549 = vsub.f32 1.0, %v3548
    %v3550 = vmul.f32 %v3547, %v3549
    %v3551 = vadd.f32 %v3547, %v3550
    %vm3552 = vweird.f32 %v3546
    %vm3553 = vweird.f32 %v3547
    %vm3554 = vmor %vm3552, %vm3553
    %v3555 = vsel %vm3554, %v3547, %v3551
    %v3556 = vand.u32 2147483647, %v3546
    %vm3557 = vcmp.eq.f32.partialorder %v3556, 8.507059e+37
    %v3558 = vand.u32 %v3546, 2147483648
    %v3559 = vor.u32 1.1754944e-38, %v3558
    %v3560 = vsel %vm3557, %v3559, %v3555
    %v3561 = vmul.f32 1.0, %v3560
    %3562 = vmatpush.msra.mxu0 0.0
    %3563 = vmatpush.msra.mxu0 0.0
    %3564 = vmatpush.msra.mxu0 0.0
    %3565 = vmatpush.msra.mxu0 0.0
    %3566 = vmatpush.msra.mxu0 0.0
    %3567 = vmatpush.msra.mxu0 0.0
    %3568 = vmatpush.msra.mxu0 0.0
    %3569 = vmatpush.msra.mxu0 0.0
    %3570 = vmatpush.msra.mxu0 0.0
    %3571 = vmatpush.msra.mxu0 0.0
    %3572 = vmatpush.msra.mxu0 0.0
    %3573 = vmatpush.msra.mxu0 0.0
    %3574 = vmatpush.msra.mxu0 0.0
    %3575 = vmatpush.msra.mxu0 0.0
    %3576 = vmatpush.msra.mxu0 %v2968
    %3577 = vmatpush.msra.mxu0 %v2967
    %3578 = vmatmul.f32.gmra.mxu0 %v3478
    %v3579 = vpop.f32.mrf.mxu0
    %v3580 = vadd.f32 %v3070, %v3579
    %3581 = vdwg.mxu0
    %v3582 = vmul.f32 %v3520, %v3580
    %v3583 = vadd.f32 %v3476, %v3582
    %v3584 = vtanh.pop %v3583
    %v3585 = vsub.f32 1.0, %v3561
    %v3586 = vmul.f32 %v3585, %v3584
    %v3587 = vmul.f32 %v3561, %v3470
    %v3588 = vadd.f32 %v3586, %v3587
    %3589 = vst.msk [vmem:[#allocation12] sm:$0xff] %vm1626, %v3588
    %s3590 = scalar_lea.vmem [#allocation13], 32
    %3591 = vst.msk [vmem:[%s3590] sm:$0xff] %vm1626, %v3588
    %v3592 = vld [vmem:[%s3101] sm:$0xff]
    %s3593 = scalar_lea.vmem [#allocation14], 40
    %v3594 = vld [vmem:[%s3593] sm:$0xff]
    %s3595 = scalar_lea.vmem [#allocation15], 40
    %v3596 = vld [vmem:[%s3595] sm:$0xff]
    %s3597 = scalar_lea.vmem [#allocation16], 40
    %v3598 = vld [vmem:[%s3597] sm:$0xff]
    %v3600 = vsel %vm1626, %v3592, 0
    %3602 = vmatpush.msra.mxu0 0.0
    %3603 = vmatpush.msra.mxu0 0.0
    %3604 = vmatpush.msra.mxu0 0.0
    %3605 = vmatpush.msra.mxu0 0.0
    %3606 = vmatpush.msra.mxu0 0.0
    %3607 = vmatpush.msra.mxu0 0.0
    %3608 = vmatpush.msra.mxu0 0.0
    %3609 = vmatpush.msra.mxu0 0.0
    %3610 = vmatpush.msra.mxu0 0.0
    %3611 = vmatpush.msra.mxu0 0.0
    %3612 = vmatpush.msra.mxu0 0.0
    %3613 = vmatpush.msra.mxu0 0.0
    %3614 = vmatpush.msra.mxu0 0.0
    %3615 = vmatpush.msra.mxu0 0.0
    %3616 = vmatpush.msra.mxu0 %v2962
    %3617 = vmatpush.msra.mxu0 %v2961
    %3618 = vmatmul.f32.gmra.mxu0 %v3600
    %v3619 = vpop.f32.mrf.mxu0
    %v3620 = vadd.f32 0.0, %v3619
    %3621 = vdwg.mxu0
    %v3622 = vadd.f32 %v3594, %v3620
    %v3623 = vadd.f32 %v3622, %v3003
    %v3624 = vxor.u32 %v3623, 2147483648
    %v3625 = vmul.f32 %v3624, 1.442695
    %v3626 = vpow.pop %v3625
    %v3627 = vadd.f32 %v3626, 1.0
    %v3628 = vrcp.pop %v3627
    %v3629 = vmul.f32 %v3627, %v3628
    %v3630 = vsub.f32 1.0, %v3629
    %v3631 = vmul.f32 %v3628, %v3630
    %v3632 = vadd.f32 %v3628, %v3631
    %vm3633 = vweird.f32 %v3627
    %vm3634 = vweird.f32 %v3628
    %vm3635 = vmor %vm3633, %vm3634
    %v3636 = vsel %vm3635, %v3628, %v3632
    %v3637 = vand.u32 2147483647, %v3627
    %vm3638 = vcmp.eq.f32.partialorder %v3637, 8.507059e+37
    %v3639 = vand.u32 %v3627, 2147483648
    %v3640 = vor.u32 1.1754944e-38, %v3639
    %v3641 = vsel %vm3638, %v3640, %v3636
    %v3642 = vmul.f32 1.0, %v3641
    %3643 = vmatpush.msra.mxu0 0.0
    %3644 = vmatpush.msra.mxu0 0.0
    %3645 = vmatpush.msra.mxu0 0.0
    %3646 = vmatpush.msra.mxu0 0.0
    %3647 = vmatpush.msra.mxu0 0.0
    %3648 = vmatpush.msra.mxu0 0.0
    %3649 = vmatpush.msra.mxu0 0.0
    %3650 = vmatpush.msra.mxu0 0.0
    %3651 = vmatpush.msra.mxu0 0.0
    %3652 = vmatpush.msra.mxu0 0.0
    %3653 = vmatpush.msra.mxu0 0.0
    %3654 = vmatpush.msra.mxu0 0.0
    %3655 = vmatpush.msra.mxu0 0.0
    %3656 = vmatpush.msra.mxu0 0.0
    %3657 = vmatpush.msra.mxu0 %v2965
    %3658 = vmatpush.msra.mxu0 %v2964
    %3659 = vmatmul.f32.gmra.mxu0 %v3600
    %v3660 = vpop.f32.mrf.mxu0
    %v3661 = vadd.f32 0.0, %v3660
    %3662 = vdwg.mxu0
    %v3663 = vadd.f32 %v3596, %v3661
    %v3664 = vadd.f32 %v3663, %v3047
    %v3665 = vxor.u32 %v3664, 2147483648
    %v3666 = vmul.f32 %v3665, 1.442695
    %v3667 = vpow.pop %v3666
    %v3668 = vadd.f32 %v3667, 1.0
    %v3669 = vrcp.pop %v3668
    %v3670 = vmul.f32 %v3668, %v3669
    %v3671 = vsub.f32 1.0, %v3670
    %v3672 = vmul.f32 %v3669, %v3671
    %v3673 = vadd.f32 %v3669, %v3672
    %vm3674 = vweird.f32 %v3668
    %vm3675 = vweird.f32 %v3669
    %vm3676 = vmor %vm3674, %vm3675
    %v3677 = vsel %vm3676, %v3669, %v3673
    %v3678 = vand.u32 2147483647, %v3668
    %vm3679 = vcmp.eq.f32.partialorder %v3678, 8.507059e+37
    %v3680 = vand.u32 %v3668, 2147483648
    %v3681 = vor.u32 1.1754944e-38, %v3680
    %v3682 = vsel %vm3679, %v3681, %v3677
    %v3683 = vmul.f32 1.0, %v3682
    %3684 = vmatpush.msra.mxu0 0.0
    %3685 = vmatpush.msra.mxu0 0.0
    %3686 = vmatpush.msra.mxu0 0.0
    %3687 = vmatpush.msra.mxu0 0.0
    %3688 = vmatpush.msra.mxu0 0.0
    %3689 = vmatpush.msra.mxu0 0.0
    %3690 = vmatpush.msra.mxu0 0.0
    %3691 = vmatpush.msra.mxu0 0.0
    %3692 = vmatpush.msra.mxu0 0.0
    %3693 = vmatpush.msra.mxu0 0.0
    %3694 = vmatpush.msra.mxu0 0.0
    %3695 = vmatpush.msra.mxu0 0.0
    %3696 = vmatpush.msra.mxu0 0.0
    %3697 = vmatpush.msra.mxu0 0.0
    %3698 = vmatpush.msra.mxu0 %v2968
    %3699 = vmatpush.msra.mxu0 %v2967
    %3700 = vmatmul.f32.gmra.mxu0 %v3600
    %v3701 = vpop.f32.mrf.mxu0
    %v3702 = vadd.f32 %v3070, %v3701
    %3703 = vdwg.mxu0
    %v3704 = vmul.f32 %v3642, %v3702
    %v3705 = vadd.f32 %v3598, %v3704
    %v3706 = vtanh.pop %v3705
    %v3707 = vsub.f32 1.0, %v3683
    %v3708 = vmul.f32 %v3707, %v3706
    %v3709 = vmul.f32 %v3683, %v3592
    %v3710 = vadd.f32 %v3708, %v3709
    %3711 = vst.msk [vmem:[%s3101] sm:$0xff] %vm1626, %v3710
    %s3712 = scalar_lea.vmem [#allocation13], 40
    %3713 = vst.msk [vmem:[%s3712] sm:$0xff] %vm1626, %v3710
    %v3714 = vld [vmem:[%s3224] sm:$0xff]
    %s3715 = scalar_lea.vmem [#allocation14], 48
    %v3716 = vld [vmem:[%s3715] sm:$0xff]
    %s3717 = scalar_lea.vmem [#allocation15], 48
    %v3718 = vld [vmem:[%s3717] sm:$0xff]
    %s3719 = scalar_lea.vmem [#allocation16], 48
    %v3720 = vld [vmem:[%s3719] sm:$0xff]
    %v3722 = vsel %vm1626, %v3714, 0
    %3724 = vmatpush.msra.mxu0 0.0
    %3725 = vmatpush.msra.mxu0 0.0
    %3726 = vmatpush.msra.mxu0 0.0
    %3727 = vmatpush.msra.mxu0 0.0
    %3728 = vmatpush.msra.mxu0 0.0
    %3729 = vmatpush.msra.mxu0 0.0
    %3730 = vmatpush.msra.mxu0 0.0
    %3731 = vmatpush.msra.mxu0 0.0
    %3732 = vmatpush.msra.mxu0 0.0
    %3733 = vmatpush.msra.mxu0 0.0
    %3734 = vmatpush.msra.mxu0 0.0
    %3735 = vmatpush.msra.mxu0 0.0
    %3736 = vmatpush.msra.mxu0 0.0
    %3737 = vmatpush.msra.mxu0 0.0
    %3738 = vmatpush.msra.mxu0 %v2962
    %3739 = vmatpush.msra.mxu0 %v2961
    %3740 = vmatmul.f32.gmra.mxu0 %v3722
    %v3741 = vpop.f32.mrf.mxu0
    %v3742 = vadd.f32 0.0, %v3741
    %3743 = vdwg.mxu0
    %v3744 = vadd.f32 %v3716, %v3742
    %v3745 = vadd.f32 %v3744, %v3003
    %v3746 = vxor.u32 %v3745, 2147483648
    %v3747 = vmul.f32 %v3746, 1.442695
    %v3748 = vpow.pop %v3747
    %v3749 = vadd.f32 %v3748, 1.0
    %v3750 = vrcp.pop %v3749
    %v3751 = vmul.f32 %v3749, %v3750
    %v3752 = vsub.f32 1.0, %v3751
    %v3753 = vmul.f32 %v3750, %v3752
    %v3754 = vadd.f32 %v3750, %v3753
    %vm3755 = vweird.f32 %v3749
    %vm3756 = vweird.f32 %v3750
    %vm3757 = vmor %vm3755, %vm3756
    %v3758 = vsel %vm3757, %v3750, %v3754
    %v3759 = vand.u32 2147483647, %v3749
    %vm3760 = vcmp.eq.f32.partialorder %v3759, 8.507059e+37
    %v3761 = vand.u32 %v3749, 2147483648
    %v3762 = vor.u32 1.1754944e-38, %v3761
    %v3763 = vsel %vm3760, %v3762, %v3758
    %v3764 = vmul.f32 1.0, %v3763
    %3765 = vmatpush.msra.mxu0 0.0
    %3766 = vmatpush.msra.mxu0 0.0
    %3767 = vmatpush.msra.mxu0 0.0
    %3768 = vmatpush.msra.mxu0 0.0
    %3769 = vmatpush.msra.mxu0 0.0
    %3770 = vmatpush.msra.mxu0 0.0
    %3771 = vmatpush.msra.mxu0 0.0
    %3772 = vmatpush.msra.mxu0 0.0
    %3773 = vmatpush.msra.mxu0 0.0
    %3774 = vmatpush.msra.mxu0 0.0
    %3775 = vmatpush.msra.mxu0 0.0
    %3776 = vmatpush.msra.mxu0 0.0
    %3777 = vmatpush.msra.mxu0 0.0
    %3778 = vmatpush.msra.mxu0 0.0
    %3779 = vmatpush.msra.mxu0 %v2965
    %3780 = vmatpush.msra.mxu0 %v2964
    %3781 = vmatmul.f32.gmra.mxu0 %v3722
    %v3782 = vpop.f32.mrf.mxu0
    %v3783 = vadd.f32 0.0, %v3782
    %3784 = vdwg.mxu0
    %v3785 = vadd.f32 %v3718, %v3783
    %v3786 = vadd.f32 %v3785, %v3047
    %v3787 = vxor.u32 %v3786, 2147483648
    %v3788 = vmul.f32 %v3787, 1.442695
    %v3789 = vpow.pop %v3788
    %v3790 = vadd.f32 %v3789, 1.0
    %v3791 = vrcp.pop %v3790
    %v3792 = vmul.f32 %v3790, %v3791
    %v3793 = vsub.f32 1.0, %v3792
    %v3794 = vmul.f32 %v3791, %v3793
    %v3795 = vadd.f32 %v3791, %v3794
    %vm3796 = vweird.f32 %v3790
    %vm3797 = vweird.f32 %v3791
    %vm3798 = vmor %vm3796, %vm3797
    %v3799 = vsel %vm3798, %v3791, %v3795
    %v3800 = vand.u32 2147483647, %v3790
    %vm3801 = vcmp.eq.f32.partialorder %v3800, 8.507059e+37
    %v3802 = vand.u32 %v3790, 2147483648
    %v3803 = vor.u32 1.1754944e-38, %v3802
    %v3804 = vsel %vm3801, %v3803, %v3799
    %v3805 = vmul.f32 1.0, %v3804
    %3806 = vmatpush.msra.mxu0 0.0
    %3807 = vmatpush.msra.mxu0 0.0
    %3808 = vmatpush.msra.mxu0 0.0
    %3809 = vmatpush.msra.mxu0 0.0
    %3810 = vmatpush.msra.mxu0 0.0
    %3811 = vmatpush.msra.mxu0 0.0
    %3812 = vmatpush.msra.mxu0 0.0
    %3813 = vmatpush.msra.mxu0 0.0
    %3814 = vmatpush.msra.mxu0 0.0
    %3815 = vmatpush.msra.mxu0 0.0
    %3816 = vmatpush.msra.mxu0 0.0
    %3817 = vmatpush.msra.mxu0 0.0
    %3818 = vmatpush.msra.mxu0 0.0
    %3819 = vmatpush.msra.mxu0 0.0
    %3820 = vmatpush.msra.mxu0 %v2968
    %3821 = vmatpush.msra.mxu0 %v2967
    %3822 = vmatmul.f32.gmra.mxu0 %v3722
    %v3823 = vpop.f32.mrf.mxu0
    %v3824 = vadd.f32 %v3070, %v3823
    %3825 = vdwg.mxu0
    %v3826 = vmul.f32 %v3764, %v3824
    %v3827 = vadd.f32 %v3720, %v3826
    %v3828 = vtanh.pop %v3827
    %v3829 = vsub.f32 1.0, %v3805
    %v3830 = vmul.f32 %v3829, %v3828
    %v3831 = vmul.f32 %v3805, %v3714
    %v3832 = vadd.f32 %v3830, %v3831
    %3833 = vst.msk [vmem:[%s3224] sm:$0xff] %vm1626, %v3832
    %s3834 = scalar_lea.vmem [#allocation13], 48
    %3835 = vst.msk [vmem:[%s3834] sm:$0xff] %vm1626, %v3832
    %v3836 = vld [vmem:[%s3347] sm:$0xff]
    %s3837 = scalar_lea.vmem [#allocation14], 56
    %v3838 = vld [vmem:[%s3837] sm:$0xff]
    %s3839 = scalar_lea.vmem [#allocation15], 56
    %v3840 = vld [vmem:[%s3839] sm:$0xff]
    %s3841 = scalar_lea.vmem [#allocation16], 56
    %v3842 = vld [vmem:[%s3841] sm:$0xff]
    %v3844 = vsel %vm1626, %v3836, 0
    %3846 = vmatpush.msra.mxu0 0.0
    %3847 = vmatpush.msra.mxu0 0.0
    %3848 = vmatpush.msra.mxu0 0.0
    %3849 = vmatpush.msra.mxu0 0.0
    %3850 = vmatpush.msra.mxu0 0.0
    %3851 = vmatpush.msra.mxu0 0.0
    %3852 = vmatpush.msra.mxu0 0.0
    %3853 = vmatpush.msra.mxu0 0.0
    %3854 = vmatpush.msra.mxu0 0.0
    %3855 = vmatpush.msra.mxu0 0.0
    %3856 = vmatpush.msra.mxu0 0.0
    %3857 = vmatpush.msra.mxu0 0.0
    %3858 = vmatpush.msra.mxu0 0.0
    %3859 = vmatpush.msra.mxu0 0.0
    %3860 = vmatpush.msra.mxu0 %v2962
    %3861 = vmatpush.msra.mxu0 %v2961
    %3862 = vmatmul.f32.gmra.mxu0 %v3844
    %v3863 = vpop.f32.mrf.mxu0
    %v3864 = vadd.f32 0.0, %v3863
    %3865 = vdwg.mxu0
    %v3866 = vadd.f32 %v3838, %v3864
    %v3867 = vadd.f32 %v3866, %v3003
    %v3868 = vxor.u32 %v3867, 2147483648
    %v3869 = vmul.f32 %v3868, 1.442695
    %v3870 = vpow.pop %v3869
    %v3871 = vadd.f32 %v3870, 1.0
    %v3872 = vrcp.pop %v3871
    %v3873 = vmul.f32 %v3871, %v3872
    %v3874 = vsub.f32 1.0, %v3873
    %v3875 = vmul.f32 %v3872, %v3874
    %v3876 = vadd.f32 %v3872, %v3875
    %vm3877 = vweird.f32 %v3871
    %vm3878 = vweird.f32 %v3872
    %vm3879 = vmor %vm3877, %vm3878
    %v3880 = vsel %vm3879, %v3872, %v3876
    %v3881 = vand.u32 2147483647, %v3871
    %vm3882 = vcmp.eq.f32.partialorder %v3881, 8.507059e+37
    %v3883 = vand.u32 %v3871, 2147483648
    %v3884 = vor.u32 1.1754944e-38, %v3883
    %v3885 = vsel %vm3882, %v3884, %v3880
    %v3886 = vmul.f32 1.0, %v3885
    %3887 = vmatpush.msra.mxu0 0.0
    %3888 = vmatpush.msra.mxu0 0.0
    %3889 = vmatpush.msra.mxu0 0.0
    %3890 = vmatpush.msra.mxu0 0.0
    %3891 = vmatpush.msra.mxu0 0.0
    %3892 = vmatpush.msra.mxu0 0.0
    %3893 = vmatpush.msra.mxu0 0.0
    %3894 = vmatpush.msra.mxu0 0.0
    %3895 = vmatpush.msra.mxu0 0.0
    %3896 = vmatpush.msra.mxu0 0.0
    %3897 = vmatpush.msra.mxu0 0.0
    %3898 = vmatpush.msra.mxu0 0.0
    %3899 = vmatpush.msra.mxu0 0.0
    %3900 = vmatpush.msra.mxu0 0.0
    %3901 = vmatpush.msra.mxu0 %v2965
    %3902 = vmatpush.msra.mxu0 %v2964
    %3903 = vmatmul.f32.gmra.mxu0 %v3844
    %v3904 = vpop.f32.mrf.mxu0
    %v3905 = vadd.f32 0.0, %v3904
    %3906 = vdwg.mxu0
    %v3907 = vadd.f32 %v3840, %v3905
    %v3908 = vadd.f32 %v3907, %v3047
    %v3909 = vxor.u32 %v3908, 2147483648
    %v3910 = vmul.f32 %v3909, 1.442695
    %v3911 = vpow.pop %v3910
    %v3912 = vadd.f32 %v3911, 1.0
    %v3913 = vrcp.pop %v3912
    %v3914 = vmul.f32 %v3912, %v3913
    %v3915 = vsub.f32 1.0, %v3914
    %v3916 = vmul.f32 %v3913, %v3915
    %v3917 = vadd.f32 %v3913, %v3916
    %vm3918 = vweird.f32 %v3912
    %vm3919 = vweird.f32 %v3913
    %vm3920 = vmor %vm3918, %vm3919
    %v3921 = vsel %vm3920, %v3913, %v3917
    %v3922 = vand.u32 2147483647, %v3912
    %vm3923 = vcmp.eq.f32.partialorder %v3922, 8.507059e+37
    %v3924 = vand.u32 %v3912, 2147483648
    %v3925 = vor.u32 1.1754944e-38, %v3924
    %v3926 = vsel %vm3923, %v3925, %v3921
    %v3927 = vmul.f32 1.0, %v3926
    %3928 = vmatpush.msra.mxu0 0.0
    %3929 = vmatpush.msra.mxu0 0.0
    %3930 = vmatpush.msra.mxu0 0.0
    %3931 = vmatpush.msra.mxu0 0.0
    %3932 = vmatpush.msra.mxu0 0.0
    %3933 = vmatpush.msra.mxu0 0.0
    %3934 = vmatpush.msra.mxu0 0.0
    %3935 = vmatpush.msra.mxu0 0.0
    %3936 = vmatpush.msra.mxu0 0.0
    %3937 = vmatpush.msra.mxu0 0.0
    %3938 = vmatpush.msra.mxu0 0.0
    %3939 = vmatpush.msra.mxu0 0.0
    %3940 = vmatpush.msra.mxu0 0.0
    %3941 = vmatpush.msra.mxu0 0.0
    %3942 = vmatpush.msra.mxu0 %v2968
    %3943 = vmatpush.msra.mxu0 %v2967
    %3944 = vmatmul.f32.gmra.mxu0 %v3844
    %v3945 = vpop.f32.mrf.mxu0
    %v3946 = vadd.f32 %v3070, %v3945
    %3947 = vdwg.mxu0
    %v3948 = vmul.f32 %v3886, %v3946
    %v3949 = vadd.f32 %v3842, %v3948
    %v3950 = vtanh.pop %v3949
    %v3951 = vsub.f32 1.0, %v3927
    %v3952 = vmul.f32 %v3951, %v3950
    %v3953 = vmul.f32 %v3927, %v3836
    %v3954 = vadd.f32 %v3952, %v3953
    %3955 = vst.msk [vmem:[%s3347] sm:$0xff] %vm1626, %v3954
    %s3956 = scalar_lea.vmem [#allocation13], 56
    %3957 = vst.msk [vmem:[%s3956] sm:$0xff] %vm1626, %v3954
    %v3958 = vld [vmem:[%s3347] sm:$0xff]
    %3960 = vrot.lane.b32.xlu0 %v3958, 24
    %v3961 = vpop.permute.xlu0 %3960
    %vm3963 = vcmask 322752
    %3964 = vst.msk [vmem:[#allocation21] sm:$0xf] %vm3963, %v3961
    %3965 = vrot.lane.b32.xlu0 %v3958, 64
    %v3966 = vpop.permute.xlu0 %3965
    %vm3968 = vcmask 654852
    %3969 = vst.msk [vmem:[#allocation21 - $0x4] sm:$0xf0] %vm3968, %v3966
    %v3970 = vld [vmem:[#allocation21] sm:$0xff]
    %3971 = vst.msk [vmem:[#allocation45] sm:$0xff] %vm335, %v3970
    %v3972 = vld [vmem:[#allocation40] sm:$0xf]
    %s3973 = scalar_lea.vmem [#allocation40], 4
    %v3974 = vld [vmem:[%s3973] sm:$0xf]
    %s3975 = scalar_lea.vmem [#allocation40], 8
    %v3976 = vld [vmem:[%s3975] sm:$0xf]
    %v3977 = vld [vmem:[#allocation42] sm:$0x1]
    %s3978 = scalar_lea.vmem [#allocation42], 1
    %v3979 = vld [vmem:[%s3978] sm:$0x1]
    %s3980 = scalar_lea.vmem [#allocation42], 2
    %v3981 = vld [vmem:[%s3980] sm:$0x1]
    %v3982 = vld [vmem:[%s31] sm:$0xff]
    %v3983 = vld [vmem:[%s31 + $0x8] sm:$0xff]
    %v3984 = vld [vmem:[%s31 + $0x10] sm:$0xff]
    %v3985 = vld [vmem:[%s31 + $0x18] sm:$0xff]
    %v3986 = vld [vmem:[%s31 + $0x20] sm:$0xff]
    %v3987 = vld [vmem:[%s31 + $0x28] sm:$0xff]
    %v3988 = vld [vmem:[%s31 + $0x30] sm:$0xff]
    %v3989 = vld [vmem:[%s31 + $0x38] sm:$0xff]
    %v3990 = vld [vmem:[%s31 + $0x40] sm:$0xff]
    %v3991 = vld [vmem:[%s31 + $0x48] sm:$0xff]
    %s3992 = scalar_lea.vmem %s31, 80
    %v3993 = vld [vmem:[%s3992] sm:$0xff]
    %v3994 = vld [vmem:[%s3992 + $0x8] sm:$0xff]
    %v3995 = vld [vmem:[%s3992 + $0x10] sm:$0xff]
    %v3996 = vld [vmem:[%s3992 + $0x18] sm:$0xff]
    %v3997 = vld [vmem:[%s3992 + $0x20] sm:$0xff]
    %v3998 = vld [vmem:[%s3992 + $0x28] sm:$0xff]
    %v3999 = vld [vmem:[%s3992 + $0x30] sm:$0xff]
    %v4000 = vld [vmem:[%s3992 + $0x38] sm:$0xff]
    %v4001 = vld [vmem:[%s3992 + $0x40] sm:$0xff]
    %v4002 = vld [vmem:[%s3992 + $0x48] sm:$0xff]
    %s4003 = scalar_lea.vmem %s31, 160
    %v4004 = vld [vmem:[%s4003] sm:$0xff]
    %v4005 = vld [vmem:[%s4003 + $0x8] sm:$0xff]
    %v4006 = vld [vmem:[%s4003 + $0x10] sm:$0xff]
    %v4007 = vld [vmem:[%s4003 + $0x18] sm:$0xff]
    %v4008 = vld [vmem:[%s4003 + $0x20] sm:$0xff]
    %v4009 = vld [vmem:[%s4003 + $0x28] sm:$0xff]
    %v4010 = vld [vmem:[%s4003 + $0x30] sm:$0xff]
    %v4011 = vld [vmem:[%s4003 + $0x38] sm:$0xff]
    %v4012 = vld [vmem:[%s4003 + $0x40] sm:$0xff]
    %v4013 = vld [vmem:[%s4003 + $0x48] sm:$0xff]
    %v4014 = vld [vmem:[#allocation43] sm:$0x1]
    %s4015 = scalar_lea.vmem [#allocation43], 1
    %v4016 = vld [vmem:[%s4015] sm:$0x1]
    %s4017 = scalar_lea.vmem [#allocation43], 2
    %v4018 = vld [vmem:[%s4017] sm:$0x1]
    %v4019 = vld [vmem:[#allocation21] sm:$0xff]
    %v4020 = vld [vmem:[%s3] sm:$0xff]
    %v4021 = vld [vmem:[%s3 + $0x8] sm:$0xff]
    %v4022 = vld [vmem:[%s3 + $0x10] sm:$0xff]
    %v4023 = vld [vmem:[%s3 + $0x18] sm:$0xff]
    %v4024 = vld [vmem:[%s3 + $0x20] sm:$0xff]
    %v4025 = vld [vmem:[%s3 + $0x28] sm:$0xff]
    %v4026 = vld [vmem:[%s3 + $0x30] sm:$0xff]
    %v4027 = vld [vmem:[%s3 + $0x38] sm:$0xff]
    %v4029 = vperm.slane %v3977, 0
    %v4032 = vsel %vm350, %v4020, 0
    %v4035 = vsel %vm350, %v4021, 0
    %v4038 = vsel %vm350, %v4022, 0
    %v4041 = vsel %vm350, %v4023, 0
    %v4044 = vsel %vm350, %v4024, 0
    %v4047 = vsel %vm350, %v4025, 0
    %v4050 = vsel %vm350, %v4026, 0
    %v4053 = vsel %vm350, %v4027, 0
    %v4056 = vsel %vm375, %v3972, 0
    %4058 = vmatpush.msra.mxu0 0.0
    %4059 = vmatpush.msra.mxu0 0.0
    %4060 = vmatpush.msra.mxu0 0.0
    %4061 = vmatpush.msra.mxu0 0.0
    %4062 = vmatpush.msra.mxu0 0.0
    %4063 = vmatpush.msra.mxu0 0.0
    %4064 = vmatpush.msra.mxu0 0.0
    %4065 = vmatpush.msra.mxu0 0.0
    %4066 = vmatpush.msra.mxu0 0.0
    %4067 = vmatpush.msra.mxu0 0.0
    %4068 = vmatpush.msra.mxu0 0.0
    %4069 = vmatpush.msra.mxu0 0.0
    %4070 = vmatpush.msra.mxu0 0.0
    %4071 = vmatpush.msra.mxu0 0.0
    %4072 = vmatpush.msra.mxu0 0.0
    %4073 = vmatpush.msra.mxu0 %v4056
    %4074 = vmatmul.f32.gmra.mxu0 %v4032
    %v4075 = vpop.f32.mrf.mxu0
    %v4076 = vadd.f32 %v4029, %v4075
    %4077 = vmatmul.f32.gmra.mxu0 %v4035
    %v4078 = vpop.f32.mrf.mxu0
    %v4079 = vadd.f32 %v4029, %v4078
    %4080 = vmatmul.f32.gmra.mxu0 %v4038
    %v4081 = vpop.f32.mrf.mxu0
    %v4082 = vadd.f32 %v4029, %v4081
    %4083 = vmatmul.f32.gmra.mxu0 %v4041
    %v4084 = vpop.f32.mrf.mxu0
    %v4085 = vadd.f32 %v4029, %v4084
    %4086 = vmatmul.f32.gmra.mxu0 %v4044
    %v4087 = vpop.f32.mrf.mxu0
    %v4088 = vadd.f32 %v4029, %v4087
    %4089 = vmatmul.f32.gmra.mxu0 %v4047
    %v4090 = vpop.f32.mrf.mxu0
    %v4091 = vadd.f32 %v4029, %v4090
    %4092 = vmatmul.f32.gmra.mxu0 %v4050
    %v4093 = vpop.f32.mrf.mxu0
    %v4094 = vadd.f32 %v4029, %v4093
    %4095 = vmatmul.f32.gmra.mxu0 %v4053
    %v4096 = vpop.f32.mrf.mxu0
    %v4097 = vadd.f32 %v4029, %v4096
    %4098 = vdwg.mxu0
    %4099 = vst.msk [vmem:[#allocation18] sm:$0xff] %vm335, %v4076
    %4100 = vst.msk [vmem:[#allocation18 + $0x8] sm:$0xff] %vm335, %v4079
    %4101 = vst.msk [vmem:[#allocation18 + $0x10] sm:$0xff] %vm335, %v4082
    %4102 = vst.msk [vmem:[#allocation18 + $0x18] sm:$0xff] %vm335, %v4085
    %4103 = vst.msk [vmem:[#allocation18 + $0x20] sm:$0xff] %vm335, %v4088
    %4104 = vst.msk [vmem:[#allocation18 + $0x28] sm:$0xff] %vm335, %v4091
    %4105 = vst.msk [vmem:[#allocation18 + $0x30] sm:$0xff] %vm335, %v4094
    %4106 = vst.msk [vmem:[#allocation18 + $0x38] sm:$0xff] %vm335, %v4097
    %v4108 = vperm.slane %v3979, 0
    %v4111 = vsel %vm375, %v3974, 0
    %4113 = vmatpush.msra.mxu0 0.0
    %4114 = vmatpush.msra.mxu0 0.0
    %4115 = vmatpush.msra.mxu0 0.0
    %4116 = vmatpush.msra.mxu0 0.0
    %4117 = vmatpush.msra.mxu0 0.0
    %4118 = vmatpush.msra.mxu0 0.0
    %4119 = vmatpush.msra.mxu0 0.0
    %4120 = vmatpush.msra.mxu0 0.0
    %4121 = vmatpush.msra.mxu0 0.0
    %4122 = vmatpush.msra.mxu0 0.0
    %4123 = vmatpush.msra.mxu0 0.0
    %4124 = vmatpush.msra.mxu0 0.0
    %4125 = vmatpush.msra.mxu0 0.0
    %4126 = vmatpush.msra.mxu0 0.0
    %4127 = vmatpush.msra.mxu0 0.0
    %4128 = vmatpush.msra.mxu0 %v4111
    %4129 = vmatmul.f32.gmra.mxu0 %v4032
    %v4130 = vpop.f32.mrf.mxu0
    %v4131 = vadd.f32 %v4108, %v4130
    %4132 = vmatmul.f32.gmra.mxu0 %v4035
    %v4133 = vpop.f32.mrf.mxu0
    %v4134 = vadd.f32 %v4108, %v4133
    %4135 = vmatmul.f32.gmra.mxu0 %v4038
    %v4136 = vpop.f32.mrf.mxu0
    %v4137 = vadd.f32 %v4108, %v4136
    %4138 = vmatmul.f32.gmra.mxu0 %v4041
    %v4139 = vpop.f32.mrf.mxu0
    %v4140 = vadd.f32 %v4108, %v4139
    %4141 = vmatmul.f32.gmra.mxu0 %v4044
    %v4142 = vpop.f32.mrf.mxu0
    %v4143 = vadd.f32 %v4108, %v4142
    %4144 = vmatmul.f32.gmra.mxu0 %v4047
    %v4145 = vpop.f32.mrf.mxu0
    %v4146 = vadd.f32 %v4108, %v4145
    %4147 = vmatmul.f32.gmra.mxu0 %v4050
    %v4148 = vpop.f32.mrf.mxu0
    %v4149 = vadd.f32 %v4108, %v4148
    %4150 = vmatmul.f32.gmra.mxu0 %v4053
    %v4151 = vpop.f32.mrf.mxu0
    %v4152 = vadd.f32 %v4108, %v4151
    %4153 = vdwg.mxu0
    %4154 = vst.msk [vmem:[#allocation19] sm:$0xff] %vm335, %v4131
    %4155 = vst.msk [vmem:[#allocation19 + $0x8] sm:$0xff] %vm335, %v4134
    %4156 = vst.msk [vmem:[#allocation19 + $0x10] sm:$0xff] %vm335, %v4137
    %4157 = vst.msk [vmem:[#allocation19 + $0x18] sm:$0xff] %vm335, %v4140
    %4158 = vst.msk [vmem:[#allocation19 + $0x20] sm:$0xff] %vm335, %v4143
    %4159 = vst.msk [vmem:[#allocation19 + $0x28] sm:$0xff] %vm335, %v4146
    %4160 = vst.msk [vmem:[#allocation19 + $0x30] sm:$0xff] %vm335, %v4149
    %4161 = vst.msk [vmem:[#allocation19 + $0x38] sm:$0xff] %vm335, %v4152
    %v4163 = vperm.slane %v3981, 0
    %v4166 = vsel %vm375, %v3976, 0
    %4168 = vmatpush.msra.mxu0 0.0
    %4169 = vmatpush.msra.mxu0 0.0
    %4170 = vmatpush.msra.mxu0 0.0
    %4171 = vmatpush.msra.mxu0 0.0
    %4172 = vmatpush.msra.mxu0 0.0
    %4173 = vmatpush.msra.mxu0 0.0
    %4174 = vmatpush.msra.mxu0 0.0
    %4175 = vmatpush.msra.mxu0 0.0
    %4176 = vmatpush.msra.mxu0 0.0
    %4177 = vmatpush.msra.mxu0 0.0
    %4178 = vmatpush.msra.mxu0 0.0
    %4179 = vmatpush.msra.mxu0 0.0
    %4180 = vmatpush.msra.mxu0 0.0
    %4181 = vmatpush.msra.mxu0 0.0
    %4182 = vmatpush.msra.mxu0 0.0
    %4183 = vmatpush.msra.mxu0 %v4166
    %4184 = vmatmul.f32.gmra.mxu0 %v4032
    %v4185 = vpop.f32.mrf.mxu0
    %v4186 = vadd.f32 %v4163, %v4185
    %4187 = vmatmul.f32.gmra.mxu0 %v4035
    %v4188 = vpop.f32.mrf.mxu0
    %v4189 = vadd.f32 %v4163, %v4188
    %4190 = vmatmul.f32.gmra.mxu0 %v4038
    %v4191 = vpop.f32.mrf.mxu0
    %v4192 = vadd.f32 %v4163, %v4191
    %4193 = vmatmul.f32.gmra.mxu0 %v4041
    %v4194 = vpop.f32.mrf.mxu0
    %v4195 = vadd.f32 %v4163, %v4194
    %4196 = vmatmul.f32.gmra.mxu0 %v4044
    %v4197 = vpop.f32.mrf.mxu0
    %v4198 = vadd.f32 %v4163, %v4197
    %4199 = vmatmul.f32.gmra.mxu0 %v4047
    %v4200 = vpop.f32.mrf.mxu0
    %v4201 = vadd.f32 %v4163, %v4200
    %4202 = vmatmul.f32.gmra.mxu0 %v4050
    %v4203 = vpop.f32.mrf.mxu0
    %v4204 = vadd.f32 %v4163, %v4203
    %4205 = vmatmul.f32.gmra.mxu0 %v4053
    %v4206 = vpop.f32.mrf.mxu0
    %v4207 = vadd.f32 %v4163, %v4206
    %4208 = vdwg.mxu0
    %4209 = vst.msk [vmem:[#allocation20] sm:$0xff] %vm335, %v4186
    %4210 = vst.msk [vmem:[#allocation20 + $0x8] sm:$0xff] %vm335, %v4189
    %4211 = vst.msk [vmem:[#allocation20 + $0x10] sm:$0xff] %vm335, %v4192
    %4212 = vst.msk [vmem:[#allocation20 + $0x18] sm:$0xff] %vm335, %v4195
    %4213 = vst.msk [vmem:[#allocation20 + $0x20] sm:$0xff] %vm335, %v4198
    %4214 = vst.msk [vmem:[#allocation20 + $0x28] sm:$0xff] %vm335, %v4201
    %4215 = vst.msk [vmem:[#allocation20 + $0x30] sm:$0xff] %vm335, %v4204
    %4216 = vst.msk [vmem:[#allocation20 + $0x38] sm:$0xff] %vm335, %v4207
    %v4217 = vld [vmem:[#allocation18] sm:$0xff]
    %v4218 = vld [vmem:[#allocation19] sm:$0xff]
    %v4219 = vld [vmem:[#allocation20] sm:$0xff]
    %v4221 = vsel %vm335, %v4019, 0
    %4223 = vmatpush.msra.mxu0 0.0
    %4224 = vmatpush.msra.mxu0 0.0
    %4225 = vmatpush.msra.mxu0 0.0
    %4226 = vmatpush.msra.mxu0 0.0
    %4227 = vmatpush.msra.mxu0 0.0
    %4228 = vmatpush.msra.mxu0 0.0
    %4229 = vmatpush.msra.mxu0 %v3991
    %4230 = vmatpush.msra.mxu0 %v3990
    %4231 = vmatpush.msra.mxu0 %v3989
    %4232 = vmatpush.msra.mxu0 %v3988
    %4233 = vmatpush.msra.mxu0 %v3987
    %4234 = vmatpush.msra.mxu0 %v3986
    %4235 = vmatpush.msra.mxu0 %v3985
    %4236 = vmatpush.msra.mxu0 %v3984
    %4237 = vmatpush.msra.mxu0 %v3983
    %4238 = vmatpush.msra.mxu0 %v3982
    %4239 = vmatmul.f32.gmra.mxu0 %v4221
    %v4240 = vpop.f32.mrf.mxu0
    %v4241 = vadd.f32 0.0, %v4240
    %4242 = vdwg.mxu0
    %v4243 = vadd.f32 %v4217, %v4241
    %v4245 = vperm.slane %v4014, 0
    %v4247 = vadd.f32 %v4243, %v4245
    %v4248 = vxor.u32 %v4247, 2147483648
    %v4249 = vmul.f32 %v4248, 1.442695
    %v4250 = vpow.pop %v4249
    %v4251 = vadd.f32 %v4250, 1.0
    %v4252 = vrcp.pop %v4251
    %v4253 = vmul.f32 %v4251, %v4252
    %v4254 = vsub.f32 1.0, %v4253
    %v4255 = vmul.f32 %v4252, %v4254
    %v4256 = vadd.f32 %v4252, %v4255
    %vm4257 = vweird.f32 %v4251
    %vm4258 = vweird.f32 %v4252
    %vm4259 = vmor %vm4257, %vm4258
    %v4260 = vsel %vm4259, %v4252, %v4256
    %v4261 = vand.u32 2147483647, %v4251
    %vm4262 = vcmp.eq.f32.partialorder %v4261, 8.507059e+37
    %v4263 = vand.u32 %v4251, 2147483648
    %v4264 = vor.u32 1.1754944e-38, %v4263
    %v4265 = vsel %vm4262, %v4264, %v4260
    %v4266 = vmul.f32 1.0, %v4265
    %4267 = vmatpush.msra.mxu0 0.0
    %4268 = vmatpush.msra.mxu0 0.0
    %4269 = vmatpush.msra.mxu0 0.0
    %4270 = vmatpush.msra.mxu0 0.0
    %4271 = vmatpush.msra.mxu0 0.0
    %4272 = vmatpush.msra.mxu0 0.0
    %4273 = vmatpush.msra.mxu0 %v4002
    %4274 = vmatpush.msra.mxu0 %v4001
    %4275 = vmatpush.msra.mxu0 %v4000
    %4276 = vmatpush.msra.mxu0 %v3999
    %4277 = vmatpush.msra.mxu0 %v3998
    %4278 = vmatpush.msra.mxu0 %v3997
    %4279 = vmatpush.msra.mxu0 %v3996
    %4280 = vmatpush.msra.mxu0 %v3995
    %4281 = vmatpush.msra.mxu0 %v3994
    %4282 = vmatpush.msra.mxu0 %v3993
    %4283 = vmatmul.f32.gmra.mxu0 %v4221
    %v4284 = vpop.f32.mrf.mxu0
    %v4285 = vadd.f32 0.0, %v4284
    %4286 = vdwg.mxu0
    %v4287 = vadd.f32 %v4218, %v4285
    %v4289 = vperm.slane %v4016, 0
    %v4291 = vadd.f32 %v4287, %v4289
    %v4292 = vxor.u32 %v4291, 2147483648
    %v4293 = vmul.f32 %v4292, 1.442695
    %v4294 = vpow.pop %v4293
    %v4295 = vadd.f32 %v4294, 1.0
    %v4296 = vrcp.pop %v4295
    %v4297 = vmul.f32 %v4295, %v4296
    %v4298 = vsub.f32 1.0, %v4297
    %v4299 = vmul.f32 %v4296, %v4298
    %v4300 = vadd.f32 %v4296, %v4299
    %vm4301 = vweird.f32 %v4295
    %vm4302 = vweird.f32 %v4296
    %vm4303 = vmor %vm4301, %vm4302
    %v4304 = vsel %vm4303, %v4296, %v4300
    %v4305 = vand.u32 2147483647, %v4295
    %vm4306 = vcmp.eq.f32.partialorder %v4305, 8.507059e+37
    %v4307 = vand.u32 %v4295, 2147483648
    %v4308 = vor.u32 1.1754944e-38, %v4307
    %v4309 = vsel %vm4306, %v4308, %v4304
    %v4310 = vmul.f32 1.0, %v4309
    %v4312 = vperm.slane %v4018, 0
    %4314 = vmatpush.msra.mxu0 0.0
    %4315 = vmatpush.msra.mxu0 0.0
    %4316 = vmatpush.msra.mxu0 0.0
    %4317 = vmatpush.msra.mxu0 0.0
    %4318 = vmatpush.msra.mxu0 0.0
    %4319 = vmatpush.msra.mxu0 0.0
    %4320 = vmatpush.msra.mxu0 %v4013
    %4321 = vmatpush.msra.mxu0 %v4012
    %4322 = vmatpush.msra.mxu0 %v4011
    %4323 = vmatpush.msra.mxu0 %v4010
    %4324 = vmatpush.msra.mxu0 %v4009
    %4325 = vmatpush.msra.mxu0 %v4008
    %4326 = vmatpush.msra.mxu0 %v4007
    %4327 = vmatpush.msra.mxu0 %v4006
    %4328 = vmatpush.msra.mxu0 %v4005
    %4329 = vmatpush.msra.mxu0 %v4004
    %4330 = vmatmul.f32.gmra.mxu0 %v4221
    %v4331 = vpop.f32.mrf.mxu0
    %v4332 = vadd.f32 %v4312, %v4331
    %4333 = vdwg.mxu0
    %v4334 = vmul.f32 %v4266, %v4332
    %v4335 = vadd.f32 %v4219, %v4334
    %v4336 = vtanh.pop %v4335
    %v4337 = vsub.f32 1.0, %v4310
    %v4338 = vmul.f32 %v4337, %v4336
    %v4339 = vmul.f32 %v4310, %v4019
    %v4340 = vadd.f32 %v4338, %v4339
    %4341 = vst.msk [vmem:[#allocation17] sm:$0xff] %vm335, %v4340
    %s4342 = scalar_lea.vmem [#allocation18], 8
    %v4343 = vld [vmem:[%s4342] sm:$0xff]
    %s4344 = scalar_lea.vmem [#allocation19], 8
    %v4345 = vld [vmem:[%s4344] sm:$0xff]
    %s4346 = scalar_lea.vmem [#allocation20], 8
    %v4347 = vld [vmem:[%s4346] sm:$0xff]
    %v4349 = vsel %vm335, %v4340, 0
    %4351 = vmatpush.msra.mxu0 0.0
    %4352 = vmatpush.msra.mxu0 0.0
    %4353 = vmatpush.msra.mxu0 0.0
    %4354 = vmatpush.msra.mxu0 0.0
    %4355 = vmatpush.msra.mxu0 0.0
    %4356 = vmatpush.msra.mxu0 0.0
    %4357 = vmatpush.msra.mxu0 %v3991
    %4358 = vmatpush.msra.mxu0 %v3990
    %4359 = vmatpush.msra.mxu0 %v3989
    %4360 = vmatpush.msra.mxu0 %v3988
    %4361 = vmatpush.msra.mxu0 %v3987
    %4362 = vmatpush.msra.mxu0 %v3986
    %4363 = vmatpush.msra.mxu0 %v3985
    %4364 = vmatpush.msra.mxu0 %v3984
    %4365 = vmatpush.msra.mxu0 %v3983
    %4366 = vmatpush.msra.mxu0 %v3982
    %4367 = vmatmul.f32.gmra.mxu0 %v4349
    %v4368 = vpop.f32.mrf.mxu0
    %v4369 = vadd.f32 0.0, %v4368
    %4370 = vdwg.mxu0
    %v4371 = vadd.f32 %v4343, %v4369
    %v4372 = vadd.f32 %v4371, %v4245
    %v4373 = vxor.u32 %v4372, 2147483648
    %v4374 = vmul.f32 %v4373, 1.442695
    %v4375 = vpow.pop %v4374
    %v4376 = vadd.f32 %v4375, 1.0
    %v4377 = vrcp.pop %v4376
    %v4378 = vmul.f32 %v4376, %v4377
    %v4379 = vsub.f32 1.0, %v4378
    %v4380 = vmul.f32 %v4377, %v4379
    %v4381 = vadd.f32 %v4377, %v4380
    %vm4382 = vweird.f32 %v4376
    %vm4383 = vweird.f32 %v4377
    %vm4384 = vmor %vm4382, %vm4383
    %v4385 = vsel %vm4384, %v4377, %v4381
    %v4386 = vand.u32 2147483647, %v4376
    %vm4387 = vcmp.eq.f32.partialorder %v4386, 8.507059e+37
    %v4388 = vand.u32 %v4376, 2147483648
    %v4389 = vor.u32 1.1754944e-38, %v4388
    %v4390 = vsel %vm4387, %v4389, %v4385
    %v4391 = vmul.f32 1.0, %v4390
    %4392 = vmatpush.msra.mxu0 0.0
    %4393 = vmatpush.msra.mxu0 0.0
    %4394 = vmatpush.msra.mxu0 0.0
    %4395 = vmatpush.msra.mxu0 0.0
    %4396 = vmatpush.msra.mxu0 0.0
    %4397 = vmatpush.msra.mxu0 0.0
    %4398 = vmatpush.msra.mxu0 %v4002
    %4399 = vmatpush.msra.mxu0 %v4001
    %4400 = vmatpush.msra.mxu0 %v4000
    %4401 = vmatpush.msra.mxu0 %v3999
    %4402 = vmatpush.msra.mxu0 %v3998
    %4403 = vmatpush.msra.mxu0 %v3997
    %4404 = vmatpush.msra.mxu0 %v3996
    %4405 = vmatpush.msra.mxu0 %v3995
    %4406 = vmatpush.msra.mxu0 %v3994
    %4407 = vmatpush.msra.mxu0 %v3993
    %4408 = vmatmul.f32.gmra.mxu0 %v4349
    %v4409 = vpop.f32.mrf.mxu0
    %v4410 = vadd.f32 0.0, %v4409
    %4411 = vdwg.mxu0
    %v4412 = vadd.f32 %v4345, %v4410
    %v4413 = vadd.f32 %v4412, %v4289
    %v4414 = vxor.u32 %v4413, 2147483648
    %v4415 = vmul.f32 %v4414, 1.442695
    %v4416 = vpow.pop %v4415
    %v4417 = vadd.f32 %v4416, 1.0
    %v4418 = vrcp.pop %v4417
    %v4419 = vmul.f32 %v4417, %v4418
    %v4420 = vsub.f32 1.0, %v4419
    %v4421 = vmul.f32 %v4418, %v4420
    %v4422 = vadd.f32 %v4418, %v4421
    %vm4423 = vweird.f32 %v4417
    %vm4424 = vweird.f32 %v4418
    %vm4425 = vmor %vm4423, %vm4424
    %v4426 = vsel %vm4425, %v4418, %v4422
    %v4427 = vand.u32 2147483647, %v4417
    %vm4428 = vcmp.eq.f32.partialorder %v4427, 8.507059e+37
    %v4429 = vand.u32 %v4417, 2147483648
    %v4430 = vor.u32 1.1754944e-38, %v4429
    %v4431 = vsel %vm4428, %v4430, %v4426
    %v4432 = vmul.f32 1.0, %v4431
    %4433 = vmatpush.msra.mxu0 0.0
    %4434 = vmatpush.msra.mxu0 0.0
    %4435 = vmatpush.msra.mxu0 0.0
    %4436 = vmatpush.msra.mxu0 0.0
    %4437 = vmatpush.msra.mxu0 0.0
    %4438 = vmatpush.msra.mxu0 0.0
    %4439 = vmatpush.msra.mxu0 %v4013
    %4440 = vmatpush.msra.mxu0 %v4012
    %4441 = vmatpush.msra.mxu0 %v4011
    %4442 = vmatpush.msra.mxu0 %v4010
    %4443 = vmatpush.msra.mxu0 %v4009
    %4444 = vmatpush.msra.mxu0 %v4008
    %4445 = vmatpush.msra.mxu0 %v4007
    %4446 = vmatpush.msra.mxu0 %v4006
    %4447 = vmatpush.msra.mxu0 %v4005
    %4448 = vmatpush.msra.mxu0 %v4004
    %4449 = vmatmul.f32.gmra.mxu0 %v4349
    %v4450 = vpop.f32.mrf.mxu0
    %v4451 = vadd.f32 %v4312, %v4450
    %4452 = vdwg.mxu0
    %v4453 = vmul.f32 %v4391, %v4451
    %v4454 = vadd.f32 %v4347, %v4453
    %v4455 = vtanh.pop %v4454
    %v4456 = vsub.f32 1.0, %v4432
    %v4457 = vmul.f32 %v4456, %v4455
    %v4458 = vmul.f32 %v4432, %v4340
    %v4459 = vadd.f32 %v4457, %v4458
    %s4460 = scalar_lea.vmem [#allocation17], 8
    %4461 = vst.msk [vmem:[%s4460] sm:$0xff] %vm335, %v4459
    %s4462 = scalar_lea.vmem [#allocation18], 16
    %v4463 = vld [vmem:[%s4462] sm:$0xff]
    %s4464 = scalar_lea.vmem [#allocation19], 16
    %v4465 = vld [vmem:[%s4464] sm:$0xff]
    %s4466 = scalar_lea.vmem [#allocation20], 16
    %v4467 = vld [vmem:[%s4466] sm:$0xff]
    %v4469 = vsel %vm335, %v4459, 0
    %4471 = vmatpush.msra.mxu0 0.0
    %4472 = vmatpush.msra.mxu0 0.0
    %4473 = vmatpush.msra.mxu0 0.0
    %4474 = vmatpush.msra.mxu0 0.0
    %4475 = vmatpush.msra.mxu0 0.0
    %4476 = vmatpush.msra.mxu0 0.0
    %4477 = vmatpush.msra.mxu0 %v3991
    %4478 = vmatpush.msra.mxu0 %v3990
    %4479 = vmatpush.msra.mxu0 %v3989
    %4480 = vmatpush.msra.mxu0 %v3988
    %4481 = vmatpush.msra.mxu0 %v3987
    %4482 = vmatpush.msra.mxu0 %v3986
    %4483 = vmatpush.msra.mxu0 %v3985
    %4484 = vmatpush.msra.mxu0 %v3984
    %4485 = vmatpush.msra.mxu0 %v3983
    %4486 = vmatpush.msra.mxu0 %v3982
    %4487 = vmatmul.f32.gmra.mxu0 %v4469
    %v4488 = vpop.f32.mrf.mxu0
    %v4489 = vadd.f32 0.0, %v4488
    %4490 = vdwg.mxu0
    %v4491 = vadd.f32 %v4463, %v4489
    %v4492 = vadd.f32 %v4491, %v4245
    %v4493 = vxor.u32 %v4492, 2147483648
    %v4494 = vmul.f32 %v4493, 1.442695
    %v4495 = vpow.pop %v4494
    %v4496 = vadd.f32 %v4495, 1.0
    %v4497 = vrcp.pop %v4496
    %v4498 = vmul.f32 %v4496, %v4497
    %v4499 = vsub.f32 1.0, %v4498
    %v4500 = vmul.f32 %v4497, %v4499
    %v4501 = vadd.f32 %v4497, %v4500
    %vm4502 = vweird.f32 %v4496
    %vm4503 = vweird.f32 %v4497
    %vm4504 = vmor %vm4502, %vm4503
    %v4505 = vsel %vm4504, %v4497, %v4501
    %v4506 = vand.u32 2147483647, %v4496
    %vm4507 = vcmp.eq.f32.partialorder %v4506, 8.507059e+37
    %v4508 = vand.u32 %v4496, 2147483648
    %v4509 = vor.u32 1.1754944e-38, %v4508
    %v4510 = vsel %vm4507, %v4509, %v4505
    %v4511 = vmul.f32 1.0, %v4510
    %4512 = vmatpush.msra.mxu0 0.0
    %4513 = vmatpush.msra.mxu0 0.0
    %4514 = vmatpush.msra.mxu0 0.0
    %4515 = vmatpush.msra.mxu0 0.0
    %4516 = vmatpush.msra.mxu0 0.0
    %4517 = vmatpush.msra.mxu0 0.0
    %4518 = vmatpush.msra.mxu0 %v4002
    %4519 = vmatpush.msra.mxu0 %v4001
    %4520 = vmatpush.msra.mxu0 %v4000
    %4521 = vmatpush.msra.mxu0 %v3999
    %4522 = vmatpush.msra.mxu0 %v3998
    %4523 = vmatpush.msra.mxu0 %v3997
    %4524 = vmatpush.msra.mxu0 %v3996
    %4525 = vmatpush.msra.mxu0 %v3995
    %4526 = vmatpush.msra.mxu0 %v3994
    %4527 = vmatpush.msra.mxu0 %v3993
    %4528 = vmatmul.f32.gmra.mxu0 %v4469
    %v4529 = vpop.f32.mrf.mxu0
    %v4530 = vadd.f32 0.0, %v4529
    %4531 = vdwg.mxu0
    %v4532 = vadd.f32 %v4465, %v4530
    %v4533 = vadd.f32 %v4532, %v4289
    %v4534 = vxor.u32 %v4533, 2147483648
    %v4535 = vmul.f32 %v4534, 1.442695
    %v4536 = vpow.pop %v4535
    %v4537 = vadd.f32 %v4536, 1.0
    %v4538 = vrcp.pop %v4537
    %v4539 = vmul.f32 %v4537, %v4538
    %v4540 = vsub.f32 1.0, %v4539
    %v4541 = vmul.f32 %v4538, %v4540
    %v4542 = vadd.f32 %v4538, %v4541
    %vm4543 = vweird.f32 %v4537
    %vm4544 = vweird.f32 %v4538
    %vm4545 = vmor %vm4543, %vm4544
    %v4546 = vsel %vm4545, %v4538, %v4542
    %v4547 = vand.u32 2147483647, %v4537
    %vm4548 = vcmp.eq.f32.partialorder %v4547, 8.507059e+37
    %v4549 = vand.u32 %v4537, 2147483648
    %v4550 = vor.u32 1.1754944e-38, %v4549
    %v4551 = vsel %vm4548, %v4550, %v4546
    %v4552 = vmul.f32 1.0, %v4551
    %4553 = vmatpush.msra.mxu0 0.0
    %4554 = vmatpush.msra.mxu0 0.0
    %4555 = vmatpush.msra.mxu0 0.0
    %4556 = vmatpush.msra.mxu0 0.0
    %4557 = vmatpush.msra.mxu0 0.0
    %4558 = vmatpush.msra.mxu0 0.0
    %4559 = vmatpush.msra.mxu0 %v4013
    %4560 = vmatpush.msra.mxu0 %v4012
    %4561 = vmatpush.msra.mxu0 %v4011
    %4562 = vmatpush.msra.mxu0 %v4010
    %4563 = vmatpush.msra.mxu0 %v4009
    %4564 = vmatpush.msra.mxu0 %v4008
    %4565 = vmatpush.msra.mxu0 %v4007
    %4566 = vmatpush.msra.mxu0 %v4006
    %4567 = vmatpush.msra.mxu0 %v4005
    %4568 = vmatpush.msra.mxu0 %v4004
    %4569 = vmatmul.f32.gmra.mxu0 %v4469
    %v4570 = vpop.f32.mrf.mxu0
    %v4571 = vadd.f32 %v4312, %v4570
    %4572 = vdwg.mxu0
    %v4573 = vmul.f32 %v4511, %v4571
    %v4574 = vadd.f32 %v4467, %v4573
    %v4575 = vtanh.pop %v4574
    %v4576 = vsub.f32 1.0, %v4552
    %v4577 = vmul.f32 %v4576, %v4575
    %v4578 = vmul.f32 %v4552, %v4459
    %v4579 = vadd.f32 %v4577, %v4578
    %s4580 = scalar_lea.vmem [#allocation17], 16
    %4581 = vst.msk [vmem:[%s4580] sm:$0xff] %vm335, %v4579
    %s4582 = scalar_lea.vmem [#allocation18], 24
    %v4583 = vld [vmem:[%s4582] sm:$0xff]
    %s4584 = scalar_lea.vmem [#allocation19], 24
    %v4585 = vld [vmem:[%s4584] sm:$0xff]
    %s4586 = scalar_lea.vmem [#allocation20], 24
    %v4587 = vld [vmem:[%s4586] sm:$0xff]
    %v4589 = vsel %vm335, %v4579, 0
    %4591 = vmatpush.msra.mxu0 0.0
    %4592 = vmatpush.msra.mxu0 0.0
    %4593 = vmatpush.msra.mxu0 0.0
    %4594 = vmatpush.msra.mxu0 0.0
    %4595 = vmatpush.msra.mxu0 0.0
    %4596 = vmatpush.msra.mxu0 0.0
    %4597 = vmatpush.msra.mxu0 %v3991
    %4598 = vmatpush.msra.mxu0 %v3990
    %4599 = vmatpush.msra.mxu0 %v3989
    %4600 = vmatpush.msra.mxu0 %v3988
    %4601 = vmatpush.msra.mxu0 %v3987
    %4602 = vmatpush.msra.mxu0 %v3986
    %4603 = vmatpush.msra.mxu0 %v3985
    %4604 = vmatpush.msra.mxu0 %v3984
    %4605 = vmatpush.msra.mxu0 %v3983
    %4606 = vmatpush.msra.mxu0 %v3982
    %4607 = vmatmul.f32.gmra.mxu0 %v4589
    %v4608 = vpop.f32.mrf.mxu0
    %v4609 = vadd.f32 0.0, %v4608
    %4610 = vdwg.mxu0
    %v4611 = vadd.f32 %v4583, %v4609
    %v4612 = vadd.f32 %v4611, %v4245
    %v4613 = vxor.u32 %v4612, 2147483648
    %v4614 = vmul.f32 %v4613, 1.442695
    %v4615 = vpow.pop %v4614
    %v4616 = vadd.f32 %v4615, 1.0
    %v4617 = vrcp.pop %v4616
    %v4618 = vmul.f32 %v4616, %v4617
    %v4619 = vsub.f32 1.0, %v4618
    %v4620 = vmul.f32 %v4617, %v4619
    %v4621 = vadd.f32 %v4617, %v4620
    %vm4622 = vweird.f32 %v4616
    %vm4623 = vweird.f32 %v4617
    %vm4624 = vmor %vm4622, %vm4623
    %v4625 = vsel %vm4624, %v4617, %v4621
    %v4626 = vand.u32 2147483647, %v4616
    %vm4627 = vcmp.eq.f32.partialorder %v4626, 8.507059e+37
    %v4628 = vand.u32 %v4616, 2147483648
    %v4629 = vor.u32 1.1754944e-38, %v4628
    %v4630 = vsel %vm4627, %v4629, %v4625
    %v4631 = vmul.f32 1.0, %v4630
    %4632 = vmatpush.msra.mxu0 0.0
    %4633 = vmatpush.msra.mxu0 0.0
    %4634 = vmatpush.msra.mxu0 0.0
    %4635 = vmatpush.msra.mxu0 0.0
    %4636 = vmatpush.msra.mxu0 0.0
    %4637 = vmatpush.msra.mxu0 0.0
    %4638 = vmatpush.msra.mxu0 %v4002
    %4639 = vmatpush.msra.mxu0 %v4001
    %4640 = vmatpush.msra.mxu0 %v4000
    %4641 = vmatpush.msra.mxu0 %v3999
    %4642 = vmatpush.msra.mxu0 %v3998
    %4643 = vmatpush.msra.mxu0 %v3997
    %4644 = vmatpush.msra.mxu0 %v3996
    %4645 = vmatpush.msra.mxu0 %v3995
    %4646 = vmatpush.msra.mxu0 %v3994
    %4647 = vmatpush.msra.mxu0 %v3993
    %4648 = vmatmul.f32.gmra.mxu0 %v4589
    %v4649 = vpop.f32.mrf.mxu0
    %v4650 = vadd.f32 0.0, %v4649
    %4651 = vdwg.mxu0
    %v4652 = vadd.f32 %v4585, %v4650
    %v4653 = vadd.f32 %v4652, %v4289
    %v4654 = vxor.u32 %v4653, 2147483648
    %v4655 = vmul.f32 %v4654, 1.442695
    %v4656 = vpow.pop %v4655
    %v4657 = vadd.f32 %v4656, 1.0
    %v4658 = vrcp.pop %v4657
    %v4659 = vmul.f32 %v4657, %v4658
    %v4660 = vsub.f32 1.0, %v4659
    %v4661 = vmul.f32 %v4658, %v4660
    %v4662 = vadd.f32 %v4658, %v4661
    %vm4663 = vweird.f32 %v4657
    %vm4664 = vweird.f32 %v4658
    %vm4665 = vmor %vm4663, %vm4664
    %v4666 = vsel %vm4665, %v4658, %v4662
    %v4667 = vand.u32 2147483647, %v4657
    %vm4668 = vcmp.eq.f32.partialorder %v4667, 8.507059e+37
    %v4669 = vand.u32 %v4657, 2147483648
    %v4670 = vor.u32 1.1754944e-38, %v4669
    %v4671 = vsel %vm4668, %v4670, %v4666
    %v4672 = vmul.f32 1.0, %v4671
    %4673 = vmatpush.msra.mxu0 0.0
    %4674 = vmatpush.msra.mxu0 0.0
    %4675 = vmatpush.msra.mxu0 0.0
    %4676 = vmatpush.msra.mxu0 0.0
    %4677 = vmatpush.msra.mxu0 0.0
    %4678 = vmatpush.msra.mxu0 0.0
    %4679 = vmatpush.msra.mxu0 %v4013
    %4680 = vmatpush.msra.mxu0 %v4012
    %4681 = vmatpush.msra.mxu0 %v4011
    %4682 = vmatpush.msra.mxu0 %v4010
    %4683 = vmatpush.msra.mxu0 %v4009
    %4684 = vmatpush.msra.mxu0 %v4008
    %4685 = vmatpush.msra.mxu0 %v4007
    %4686 = vmatpush.msra.mxu0 %v4006
    %4687 = vmatpush.msra.mxu0 %v4005
    %4688 = vmatpush.msra.mxu0 %v4004
    %4689 = vmatmul.f32.gmra.mxu0 %v4589
    %v4690 = vpop.f32.mrf.mxu0
    %v4691 = vadd.f32 %v4312, %v4690
    %4692 = vdwg.mxu0
    %v4693 = vmul.f32 %v4631, %v4691
    %v4694 = vadd.f32 %v4587, %v4693
    %v4695 = vtanh.pop %v4694
    %v4696 = vsub.f32 1.0, %v4672
    %v4697 = vmul.f32 %v4696, %v4695
    %v4698 = vmul.f32 %v4672, %v4579
    %v4699 = vadd.f32 %v4697, %v4698
    %s4700 = scalar_lea.vmem [#allocation17], 24
    %4701 = vst.msk [vmem:[%s4700] sm:$0xff] %vm335, %v4699
    %s4702 = scalar_lea.vmem [#allocation18], 32
    %v4703 = vld [vmem:[%s4702] sm:$0xff]
    %s4704 = scalar_lea.vmem [#allocation19], 32
    %v4705 = vld [vmem:[%s4704] sm:$0xff]
    %s4706 = scalar_lea.vmem [#allocation20], 32
    %v4707 = vld [vmem:[%s4706] sm:$0xff]
    %v4709 = vsel %vm335, %v4699, 0
    %4711 = vmatpush.msra.mxu0 0.0
    %4712 = vmatpush.msra.mxu0 0.0
    %4713 = vmatpush.msra.mxu0 0.0
    %4714 = vmatpush.msra.mxu0 0.0
    %4715 = vmatpush.msra.mxu0 0.0
    %4716 = vmatpush.msra.mxu0 0.0
    %4717 = vmatpush.msra.mxu0 %v3991
    %4718 = vmatpush.msra.mxu0 %v3990
    %4719 = vmatpush.msra.mxu0 %v3989
    %4720 = vmatpush.msra.mxu0 %v3988
    %4721 = vmatpush.msra.mxu0 %v3987
    %4722 = vmatpush.msra.mxu0 %v3986
    %4723 = vmatpush.msra.mxu0 %v3985
    %4724 = vmatpush.msra.mxu0 %v3984
    %4725 = vmatpush.msra.mxu0 %v3983
    %4726 = vmatpush.msra.mxu0 %v3982
    %4727 = vmatmul.f32.gmra.mxu0 %v4709
    %v4728 = vpop.f32.mrf.mxu0
    %v4729 = vadd.f32 0.0, %v4728
    %4730 = vdwg.mxu0
    %v4731 = vadd.f32 %v4703, %v4729
    %v4732 = vadd.f32 %v4731, %v4245
    %v4733 = vxor.u32 %v4732, 2147483648
    %v4734 = vmul.f32 %v4733, 1.442695
    %v4735 = vpow.pop %v4734
    %v4736 = vadd.f32 %v4735, 1.0
    %v4737 = vrcp.pop %v4736
    %v4738 = vmul.f32 %v4736, %v4737
    %v4739 = vsub.f32 1.0, %v4738
    %v4740 = vmul.f32 %v4737, %v4739
    %v4741 = vadd.f32 %v4737, %v4740
    %vm4742 = vweird.f32 %v4736
    %vm4743 = vweird.f32 %v4737
    %vm4744 = vmor %vm4742, %vm4743
    %v4745 = vsel %vm4744, %v4737, %v4741
    %v4746 = vand.u32 2147483647, %v4736
    %vm4747 = vcmp.eq.f32.partialorder %v4746, 8.507059e+37
    %v4748 = vand.u32 %v4736, 2147483648
    %v4749 = vor.u32 1.1754944e-38, %v4748
    %v4750 = vsel %vm4747, %v4749, %v4745
    %v4751 = vmul.f32 1.0, %v4750
    %4752 = vmatpush.msra.mxu0 0.0
    %4753 = vmatpush.msra.mxu0 0.0
    %4754 = vmatpush.msra.mxu0 0.0
    %4755 = vmatpush.msra.mxu0 0.0
    %4756 = vmatpush.msra.mxu0 0.0
    %4757 = vmatpush.msra.mxu0 0.0
    %4758 = vmatpush.msra.mxu0 %v4002
    %4759 = vmatpush.msra.mxu0 %v4001
    %4760 = vmatpush.msra.mxu0 %v4000
    %4761 = vmatpush.msra.mxu0 %v3999
    %4762 = vmatpush.msra.mxu0 %v3998
    %4763 = vmatpush.msra.mxu0 %v3997
    %4764 = vmatpush.msra.mxu0 %v3996
    %4765 = vmatpush.msra.mxu0 %v3995
    %4766 = vmatpush.msra.mxu0 %v3994
    %4767 = vmatpush.msra.mxu0 %v3993
    %4768 = vmatmul.f32.gmra.mxu0 %v4709
    %v4769 = vpop.f32.mrf.mxu0
    %v4770 = vadd.f32 0.0, %v4769
    %4771 = vdwg.mxu0
    %v4772 = vadd.f32 %v4705, %v4770
    %v4773 = vadd.f32 %v4772, %v4289
    %v4774 = vxor.u32 %v4773, 2147483648
    %v4775 = vmul.f32 %v4774, 1.442695
    %v4776 = vpow.pop %v4775
    %v4777 = vadd.f32 %v4776, 1.0
    %v4778 = vrcp.pop %v4777
    %v4779 = vmul.f32 %v4777, %v4778
    %v4780 = vsub.f32 1.0, %v4779
    %v4781 = vmul.f32 %v4778, %v4780
    %v4782 = vadd.f32 %v4778, %v4781
    %vm4783 = vweird.f32 %v4777
    %vm4784 = vweird.f32 %v4778
    %vm4785 = vmor %vm4783, %vm4784
    %v4786 = vsel %vm4785, %v4778, %v4782
    %v4787 = vand.u32 2147483647, %v4777
    %vm4788 = vcmp.eq.f32.partialorder %v4787, 8.507059e+37
    %v4789 = vand.u32 %v4777, 2147483648
    %v4790 = vor.u32 1.1754944e-38, %v4789
    %v4791 = vsel %vm4788, %v4790, %v4786
    %v4792 = vmul.f32 1.0, %v4791
    %4793 = vmatpush.msra.mxu0 0.0
    %4794 = vmatpush.msra.mxu0 0.0
    %4795 = vmatpush.msra.mxu0 0.0
    %4796 = vmatpush.msra.mxu0 0.0
    %4797 = vmatpush.msra.mxu0 0.0
    %4798 = vmatpush.msra.mxu0 0.0
    %4799 = vmatpush.msra.mxu0 %v4013
    %4800 = vmatpush.msra.mxu0 %v4012
    %4801 = vmatpush.msra.mxu0 %v4011
    %4802 = vmatpush.msra.mxu0 %v4010
    %4803 = vmatpush.msra.mxu0 %v4009
    %4804 = vmatpush.msra.mxu0 %v4008
    %4805 = vmatpush.msra.mxu0 %v4007
    %4806 = vmatpush.msra.mxu0 %v4006
    %4807 = vmatpush.msra.mxu0 %v4005
    %4808 = vmatpush.msra.mxu0 %v4004
    %4809 = vmatmul.f32.gmra.mxu0 %v4709
    %v4810 = vpop.f32.mrf.mxu0
    %v4811 = vadd.f32 %v4312, %v4810
    %4812 = vdwg.mxu0
    %v4813 = vmul.f32 %v4751, %v4811
    %v4814 = vadd.f32 %v4707, %v4813
    %v4815 = vtanh.pop %v4814
    %v4816 = vsub.f32 1.0, %v4792
    %v4817 = vmul.f32 %v4816, %v4815
    %v4818 = vmul.f32 %v4792, %v4699
    %v4819 = vadd.f32 %v4817, %v4818
    %s4820 = scalar_lea.vmem [#allocation17], 32
    %4821 = vst.msk [vmem:[%s4820] sm:$0xff] %vm335, %v4819
    %s4822 = scalar_lea.vmem [#allocation18], 40
    %v4823 = vld [vmem:[%s4822] sm:$0xff]
    %s4824 = scalar_lea.vmem [#allocation19], 40
    %v4825 = vld [vmem:[%s4824] sm:$0xff]
    %s4826 = scalar_lea.vmem [#allocation20], 40
    %v4827 = vld [vmem:[%s4826] sm:$0xff]
    %v4829 = vsel %vm335, %v4819, 0
    %4831 = vmatpush.msra.mxu0 0.0
    %4832 = vmatpush.msra.mxu0 0.0
    %4833 = vmatpush.msra.mxu0 0.0
    %4834 = vmatpush.msra.mxu0 0.0
    %4835 = vmatpush.msra.mxu0 0.0
    %4836 = vmatpush.msra.mxu0 0.0
    %4837 = vmatpush.msra.mxu0 %v3991
    %4838 = vmatpush.msra.mxu0 %v3990
    %4839 = vmatpush.msra.mxu0 %v3989
    %4840 = vmatpush.msra.mxu0 %v3988
    %4841 = vmatpush.msra.mxu0 %v3987
    %4842 = vmatpush.msra.mxu0 %v3986
    %4843 = vmatpush.msra.mxu0 %v3985
    %4844 = vmatpush.msra.mxu0 %v3984
    %4845 = vmatpush.msra.mxu0 %v3983
    %4846 = vmatpush.msra.mxu0 %v3982
    %4847 = vmatmul.f32.gmra.mxu0 %v4829
    %v4848 = vpop.f32.mrf.mxu0
    %v4849 = vadd.f32 0.0, %v4848
    %4850 = vdwg.mxu0
    %v4851 = vadd.f32 %v4823, %v4849
    %v4852 = vadd.f32 %v4851, %v4245
    %v4853 = vxor.u32 %v4852, 2147483648
    %v4854 = vmul.f32 %v4853, 1.442695
    %v4855 = vpow.pop %v4854
    %v4856 = vadd.f32 %v4855, 1.0
    %v4857 = vrcp.pop %v4856
    %v4858 = vmul.f32 %v4856, %v4857
    %v4859 = vsub.f32 1.0, %v4858
    %v4860 = vmul.f32 %v4857, %v4859
    %v4861 = vadd.f32 %v4857, %v4860
    %vm4862 = vweird.f32 %v4856
    %vm4863 = vweird.f32 %v4857
    %vm4864 = vmor %vm4862, %vm4863
    %v4865 = vsel %vm4864, %v4857, %v4861
    %v4866 = vand.u32 2147483647, %v4856
    %vm4867 = vcmp.eq.f32.partialorder %v4866, 8.507059e+37
    %v4868 = vand.u32 %v4856, 2147483648
    %v4869 = vor.u32 1.1754944e-38, %v4868
    %v4870 = vsel %vm4867, %v4869, %v4865
    %v4871 = vmul.f32 1.0, %v4870
    %4872 = vmatpush.msra.mxu0 0.0
    %4873 = vmatpush.msra.mxu0 0.0
    %4874 = vmatpush.msra.mxu0 0.0
    %4875 = vmatpush.msra.mxu0 0.0
    %4876 = vmatpush.msra.mxu0 0.0
    %4877 = vmatpush.msra.mxu0 0.0
    %4878 = vmatpush.msra.mxu0 %v4002
    %4879 = vmatpush.msra.mxu0 %v4001
    %4880 = vmatpush.msra.mxu0 %v4000
    %4881 = vmatpush.msra.mxu0 %v3999
    %4882 = vmatpush.msra.mxu0 %v3998
    %4883 = vmatpush.msra.mxu0 %v3997
    %4884 = vmatpush.msra.mxu0 %v3996
    %4885 = vmatpush.msra.mxu0 %v3995
    %4886 = vmatpush.msra.mxu0 %v3994
    %4887 = vmatpush.msra.mxu0 %v3993
    %4888 = vmatmul.f32.gmra.mxu0 %v4829
    %v4889 = vpop.f32.mrf.mxu0
    %v4890 = vadd.f32 0.0, %v4889
    %4891 = vdwg.mxu0
    %v4892 = vadd.f32 %v4825, %v4890
    %v4893 = vadd.f32 %v4892, %v4289
    %v4894 = vxor.u32 %v4893, 2147483648
    %v4895 = vmul.f32 %v4894, 1.442695
    %v4896 = vpow.pop %v4895
    %v4897 = vadd.f32 %v4896, 1.0
    %v4898 = vrcp.pop %v4897
    %v4899 = vmul.f32 %v4897, %v4898
    %v4900 = vsub.f32 1.0, %v4899
    %v4901 = vmul.f32 %v4898, %v4900
    %v4902 = vadd.f32 %v4898, %v4901
    %vm4903 = vweird.f32 %v4897
    %vm4904 = vweird.f32 %v4898
    %vm4905 = vmor %vm4903, %vm4904
    %v4906 = vsel %vm4905, %v4898, %v4902
    %v4907 = vand.u32 2147483647, %v4897
    %vm4908 = vcmp.eq.f32.partialorder %v4907, 8.507059e+37
    %v4909 = vand.u32 %v4897, 2147483648
    %v4910 = vor.u32 1.1754944e-38, %v4909
    %v4911 = vsel %vm4908, %v4910, %v4906
    %v4912 = vmul.f32 1.0, %v4911
    %4913 = vmatpush.msra.mxu0 0.0
    %4914 = vmatpush.msra.mxu0 0.0
    %4915 = vmatpush.msra.mxu0 0.0
    %4916 = vmatpush.msra.mxu0 0.0
    %4917 = vmatpush.msra.mxu0 0.0
    %4918 = vmatpush.msra.mxu0 0.0
    %4919 = vmatpush.msra.mxu0 %v4013
    %4920 = vmatpush.msra.mxu0 %v4012
    %4921 = vmatpush.msra.mxu0 %v4011
    %4922 = vmatpush.msra.mxu0 %v4010
    %4923 = vmatpush.msra.mxu0 %v4009
    %4924 = vmatpush.msra.mxu0 %v4008
    %4925 = vmatpush.msra.mxu0 %v4007
    %4926 = vmatpush.msra.mxu0 %v4006
    %4927 = vmatpush.msra.mxu0 %v4005
    %4928 = vmatpush.msra.mxu0 %v4004
    %4929 = vmatmul.f32.gmra.mxu0 %v4829
    %v4930 = vpop.f32.mrf.mxu0
    %v4931 = vadd.f32 %v4312, %v4930
    %4932 = vdwg.mxu0
    %v4933 = vmul.f32 %v4871, %v4931
    %v4934 = vadd.f32 %v4827, %v4933
    %v4935 = vtanh.pop %v4934
    %v4936 = vsub.f32 1.0, %v4912
    %v4937 = vmul.f32 %v4936, %v4935
    %v4938 = vmul.f32 %v4912, %v4819
    %v4939 = vadd.f32 %v4937, %v4938
    %s4940 = scalar_lea.vmem [#allocation17], 40
    %4941 = vst.msk [vmem:[%s4940] sm:$0xff] %vm335, %v4939
    %s4942 = scalar_lea.vmem [#allocation18], 48
    %v4943 = vld [vmem:[%s4942] sm:$0xff]
    %s4944 = scalar_lea.vmem [#allocation19], 48
    %v4945 = vld [vmem:[%s4944] sm:$0xff]
    %s4946 = scalar_lea.vmem [#allocation20], 48
    %v4947 = vld [vmem:[%s4946] sm:$0xff]
    %v4949 = vsel %vm335, %v4939, 0
    %4951 = vmatpush.msra.mxu0 0.0
    %4952 = vmatpush.msra.mxu0 0.0
    %4953 = vmatpush.msra.mxu0 0.0
    %4954 = vmatpush.msra.mxu0 0.0
    %4955 = vmatpush.msra.mxu0 0.0
    %4956 = vmatpush.msra.mxu0 0.0
    %4957 = vmatpush.msra.mxu0 %v3991
    %4958 = vmatpush.msra.mxu0 %v3990
    %4959 = vmatpush.msra.mxu0 %v3989
    %4960 = vmatpush.msra.mxu0 %v3988
    %4961 = vmatpush.msra.mxu0 %v3987
    %4962 = vmatpush.msra.mxu0 %v3986
    %4963 = vmatpush.msra.mxu0 %v3985
    %4964 = vmatpush.msra.mxu0 %v3984
    %4965 = vmatpush.msra.mxu0 %v3983
    %4966 = vmatpush.msra.mxu0 %v3982
    %4967 = vmatmul.f32.gmra.mxu0 %v4949
    %v4968 = vpop.f32.mrf.mxu0
    %v4969 = vadd.f32 0.0, %v4968
    %4970 = vdwg.mxu0
    %v4971 = vadd.f32 %v4943, %v4969
    %v4972 = vadd.f32 %v4971, %v4245
    %v4973 = vxor.u32 %v4972, 2147483648
    %v4974 = vmul.f32 %v4973, 1.442695
    %v4975 = vpow.pop %v4974
    %v4976 = vadd.f32 %v4975, 1.0
    %v4977 = vrcp.pop %v4976
    %v4978 = vmul.f32 %v4976, %v4977
    %v4979 = vsub.f32 1.0, %v4978
    %v4980 = vmul.f32 %v4977, %v4979
    %v4981 = vadd.f32 %v4977, %v4980
    %vm4982 = vweird.f32 %v4976
    %vm4983 = vweird.f32 %v4977
    %vm4984 = vmor %vm4982, %vm4983
    %v4985 = vsel %vm4984, %v4977, %v4981
    %v4986 = vand.u32 2147483647, %v4976
    %vm4987 = vcmp.eq.f32.partialorder %v4986, 8.507059e+37
    %v4988 = vand.u32 %v4976, 2147483648
    %v4989 = vor.u32 1.1754944e-38, %v4988
    %v4990 = vsel %vm4987, %v4989, %v4985
    %v4991 = vmul.f32 1.0, %v4990
    %4992 = vmatpush.msra.mxu0 0.0
    %4993 = vmatpush.msra.mxu0 0.0
    %4994 = vmatpush.msra.mxu0 0.0
    %4995 = vmatpush.msra.mxu0 0.0
    %4996 = vmatpush.msra.mxu0 0.0
    %4997 = vmatpush.msra.mxu0 0.0
    %4998 = vmatpush.msra.mxu0 %v4002
    %4999 = vmatpush.msra.mxu0 %v4001
    %5000 = vmatpush.msra.mxu0 %v4000
    %5001 = vmatpush.msra.mxu0 %v3999
    %5002 = vmatpush.msra.mxu0 %v3998
    %5003 = vmatpush.msra.mxu0 %v3997
    %5004 = vmatpush.msra.mxu0 %v3996
    %5005 = vmatpush.msra.mxu0 %v3995
    %5006 = vmatpush.msra.mxu0 %v3994
    %5007 = vmatpush.msra.mxu0 %v3993
    %5008 = vmatmul.f32.gmra.mxu0 %v4949
    %v5009 = vpop.f32.mrf.mxu0
    %v5010 = vadd.f32 0.0, %v5009
    %5011 = vdwg.mxu0
    %v5012 = vadd.f32 %v4945, %v5010
    %v5013 = vadd.f32 %v5012, %v4289
    %v5014 = vxor.u32 %v5013, 2147483648
    %v5015 = vmul.f32 %v5014, 1.442695
    %v5016 = vpow.pop %v5015
    %v5017 = vadd.f32 %v5016, 1.0
    %v5018 = vrcp.pop %v5017
    %v5019 = vmul.f32 %v5017, %v5018
    %v5020 = vsub.f32 1.0, %v5019
    %v5021 = vmul.f32 %v5018, %v5020
    %v5022 = vadd.f32 %v5018, %v5021
    %vm5023 = vweird.f32 %v5017
    %vm5024 = vweird.f32 %v5018
    %vm5025 = vmor %vm5023, %vm5024
    %v5026 = vsel %vm5025, %v5018, %v5022
    %v5027 = vand.u32 2147483647, %v5017
    %vm5028 = vcmp.eq.f32.partialorder %v5027, 8.507059e+37
    %v5029 = vand.u32 %v5017, 2147483648
    %v5030 = vor.u32 1.1754944e-38, %v5029
    %v5031 = vsel %vm5028, %v5030, %v5026
    %v5032 = vmul.f32 1.0, %v5031
    %5033 = vmatpush.msra.mxu0 0.0
    %5034 = vmatpush.msra.mxu0 0.0
    %5035 = vmatpush.msra.mxu0 0.0
    %5036 = vmatpush.msra.mxu0 0.0
    %5037 = vmatpush.msra.mxu0 0.0
    %5038 = vmatpush.msra.mxu0 0.0
    %5039 = vmatpush.msra.mxu0 %v4013
    %5040 = vmatpush.msra.mxu0 %v4012
    %5041 = vmatpush.msra.mxu0 %v4011
    %5042 = vmatpush.msra.mxu0 %v4010
    %5043 = vmatpush.msra.mxu0 %v4009
    %5044 = vmatpush.msra.mxu0 %v4008
    %5045 = vmatpush.msra.mxu0 %v4007
    %5046 = vmatpush.msra.mxu0 %v4006
    %5047 = vmatpush.msra.mxu0 %v4005
    %5048 = vmatpush.msra.mxu0 %v4004
    %5049 = vmatmul.f32.gmra.mxu0 %v4949
    %v5050 = vpop.f32.mrf.mxu0
    %v5051 = vadd.f32 %v4312, %v5050
    %5052 = vdwg.mxu0
    %v5053 = vmul.f32 %v4991, %v5051
    %v5054 = vadd.f32 %v4947, %v5053
    %v5055 = vtanh.pop %v5054
    %v5056 = vsub.f32 1.0, %v5032
    %v5057 = vmul.f32 %v5056, %v5055
    %v5058 = vmul.f32 %v5032, %v4939
    %v5059 = vadd.f32 %v5057, %v5058
    %s5060 = scalar_lea.vmem [#allocation17], 48
    %5061 = vst.msk [vmem:[%s5060] sm:$0xff] %vm335, %v5059
    %s5062 = scalar_lea.vmem [#allocation18], 56
    %v5063 = vld [vmem:[%s5062] sm:$0xff]
    %s5064 = scalar_lea.vmem [#allocation19], 56
    %v5065 = vld [vmem:[%s5064] sm:$0xff]
    %s5066 = scalar_lea.vmem [#allocation20], 56
    %v5067 = vld [vmem:[%s5066] sm:$0xff]
    %v5069 = vsel %vm335, %v5059, 0
    %5071 = vmatpush.msra.mxu0 0.0
    %5072 = vmatpush.msra.mxu0 0.0
    %5073 = vmatpush.msra.mxu0 0.0
    %5074 = vmatpush.msra.mxu0 0.0
    %5075 = vmatpush.msra.mxu0 0.0
    %5076 = vmatpush.msra.mxu0 0.0
    %5077 = vmatpush.msra.mxu0 %v3991
    %5078 = vmatpush.msra.mxu0 %v3990
    %5079 = vmatpush.msra.mxu0 %v3989
    %5080 = vmatpush.msra.mxu0 %v3988
    %5081 = vmatpush.msra.mxu0 %v3987
    %5082 = vmatpush.msra.mxu0 %v3986
    %5083 = vmatpush.msra.mxu0 %v3985
    %5084 = vmatpush.msra.mxu0 %v3984
    %5085 = vmatpush.msra.mxu0 %v3983
    %5086 = vmatpush.msra.mxu0 %v3982
    %5087 = vmatmul.f32.gmra.mxu0 %v5069
    %v5088 = vpop.f32.mrf.mxu0
    %v5089 = vadd.f32 0.0, %v5088
    %5090 = vdwg.mxu0
    %v5091 = vadd.f32 %v5063, %v5089
    %v5092 = vadd.f32 %v5091, %v4245
    %v5093 = vxor.u32 %v5092, 2147483648
    %v5094 = vmul.f32 %v5093, 1.442695
    %v5095 = vpow.pop %v5094
    %v5096 = vadd.f32 %v5095, 1.0
    %v5097 = vrcp.pop %v5096
    %v5098 = vmul.f32 %v5096, %v5097
    %v5099 = vsub.f32 1.0, %v5098
    %v5100 = vmul.f32 %v5097, %v5099
    %v5101 = vadd.f32 %v5097, %v5100
    %vm5102 = vweird.f32 %v5096
    %vm5103 = vweird.f32 %v5097
    %vm5104 = vmor %vm5102, %vm5103
    %v5105 = vsel %vm5104, %v5097, %v5101
    %v5106 = vand.u32 2147483647, %v5096
    %vm5107 = vcmp.eq.f32.partialorder %v5106, 8.507059e+37
    %v5108 = vand.u32 %v5096, 2147483648
    %v5109 = vor.u32 1.1754944e-38, %v5108
    %v5110 = vsel %vm5107, %v5109, %v5105
    %v5111 = vmul.f32 1.0, %v5110
    %5112 = vmatpush.msra.mxu0 0.0
    %5113 = vmatpush.msra.mxu0 0.0
    %5114 = vmatpush.msra.mxu0 0.0
    %5115 = vmatpush.msra.mxu0 0.0
    %5116 = vmatpush.msra.mxu0 0.0
    %5117 = vmatpush.msra.mxu0 0.0
    %5118 = vmatpush.msra.mxu0 %v4002
    %5119 = vmatpush.msra.mxu0 %v4001
    %5120 = vmatpush.msra.mxu0 %v4000
    %5121 = vmatpush.msra.mxu0 %v3999
    %5122 = vmatpush.msra.mxu0 %v3998
    %5123 = vmatpush.msra.mxu0 %v3997
    %5124 = vmatpush.msra.mxu0 %v3996
    %5125 = vmatpush.msra.mxu0 %v3995
    %5126 = vmatpush.msra.mxu0 %v3994
    %5127 = vmatpush.msra.mxu0 %v3993
    %5128 = vmatmul.f32.gmra.mxu0 %v5069
    %v5129 = vpop.f32.mrf.mxu0
    %v5130 = vadd.f32 0.0, %v5129
    %5131 = vdwg.mxu0
    %v5132 = vadd.f32 %v5065, %v5130
    %v5133 = vadd.f32 %v5132, %v4289
    %v5134 = vxor.u32 %v5133, 2147483648
    %v5135 = vmul.f32 %v5134, 1.442695
    %v5136 = vpow.pop %v5135
    %v5137 = vadd.f32 %v5136, 1.0
    %v5138 = vrcp.pop %v5137
    %v5139 = vmul.f32 %v5137, %v5138
    %v5140 = vsub.f32 1.0, %v5139
    %v5141 = vmul.f32 %v5138, %v5140
    %v5142 = vadd.f32 %v5138, %v5141
    %vm5143 = vweird.f32 %v5137
    %vm5144 = vweird.f32 %v5138
    %vm5145 = vmor %vm5143, %vm5144
    %v5146 = vsel %vm5145, %v5138, %v5142
    %v5147 = vand.u32 2147483647, %v5137
    %vm5148 = vcmp.eq.f32.partialorder %v5147, 8.507059e+37
    %v5149 = vand.u32 %v5137, 2147483648
    %v5150 = vor.u32 1.1754944e-38, %v5149
    %v5151 = vsel %vm5148, %v5150, %v5146
    %v5152 = vmul.f32 1.0, %v5151
    %5153 = vmatpush.msra.mxu0 0.0
    %5154 = vmatpush.msra.mxu0 0.0
    %5155 = vmatpush.msra.mxu0 0.0
    %5156 = vmatpush.msra.mxu0 0.0
    %5157 = vmatpush.msra.mxu0 0.0
    %5158 = vmatpush.msra.mxu0 0.0
    %5159 = vmatpush.msra.mxu0 %v4013
    %5160 = vmatpush.msra.mxu0 %v4012
    %5161 = vmatpush.msra.mxu0 %v4011
    %5162 = vmatpush.msra.mxu0 %v4010
    %5163 = vmatpush.msra.mxu0 %v4009
    %5164 = vmatpush.msra.mxu0 %v4008
    %5165 = vmatpush.msra.mxu0 %v4007
    %5166 = vmatpush.msra.mxu0 %v4006
    %5167 = vmatpush.msra.mxu0 %v4005
    %5168 = vmatpush.msra.mxu0 %v4004
    %5169 = vmatmul.f32.gmra.mxu0 %v5069
    %v5170 = vpop.f32.mrf.mxu0
    %v5171 = vadd.f32 %v4312, %v5170
    %5172 = vdwg.mxu0
    %v5173 = vmul.f32 %v5111, %v5171
    %v5174 = vadd.f32 %v5067, %v5173
    %v5175 = vtanh.pop %v5174
    %v5176 = vsub.f32 1.0, %v5152
    %v5177 = vmul.f32 %v5176, %v5175
    %v5178 = vmul.f32 %v5152, %v5059
    %v5179 = vadd.f32 %v5177, %v5178
    %s5180 = scalar_lea.vmem [#allocation17], 56
    %5181 = vst.msk [vmem:[%s5180] sm:$0xff] %vm335, %v5179
    %v5182 = vld [vmem:[#allocation17] sm:$0xff]
    %v5183 = vld [vmem:[#allocation17 + $0x8] sm:$0xff]
    %v5184 = vld [vmem:[#allocation17 + $0x10] sm:$0xff]
    %v5185 = vld [vmem:[#allocation17 + $0x18] sm:$0xff]
    %v5186 = vld [vmem:[#allocation17 + $0x20] sm:$0xff]
    %v5187 = vld [vmem:[#allocation17 + $0x28] sm:$0xff]
    %v5188 = vld [vmem:[#allocation17 + $0x30] sm:$0xff]
    %v5189 = vld [vmem:[#allocation17 + $0x38] sm:$0xff]
    %v5190 = vld [vmem:[%s37] sm:$0xff]
    %v5191 = vld [vmem:[%s37 + $0x8] sm:$0xff]
    %v5192 = vld [vmem:[%s37 + $0x10] sm:$0xff]
    %v5193 = vld [vmem:[%s37 + $0x18] sm:$0xff]
    %v5194 = vld [vmem:[%s37 + $0x20] sm:$0xff]
    %v5195 = vld [vmem:[%s37 + $0x28] sm:$0xff]
    %v5196 = vld [vmem:[%s37 + $0x30] sm:$0xff]
    %v5197 = vld [vmem:[%s37 + $0x38] sm:$0xff]
    %v5198 = vld [vmem:[%s37 + $0x40] sm:$0xff]
    %v5199 = vld [vmem:[%s37 + $0x48] sm:$0xff]
    %v5200 = vld [vmem:[%s39] sm:$0x1]
    %v5202 = vperm.slane %v5200, 0
    %v5205 = vsel %vm335, %v5182, 0
    %v5208 = vsel %vm335, %v5183, 0
    %v5211 = vsel %vm335, %v5184, 0
    %v5214 = vsel %vm335, %v5185, 0
    %v5217 = vsel %vm335, %v5186, 0
    %v5220 = vsel %vm335, %v5187, 0
    %v5223 = vsel %vm335, %v5188, 0
    %v5226 = vsel %vm335, %v5189, 0
    %5228 = vmatpush.msra.mxu0 0.0
    %5229 = vmatpush.msra.mxu0 0.0
    %5230 = vmatpush.msra.mxu0 0.0
    %5231 = vmatpush.msra.mxu0 0.0
    %5232 = vmatpush.msra.mxu0 0.0
    %5233 = vmatpush.msra.mxu0 0.0
    %5234 = vmatpush.msra.mxu0 %v5199
    %5235 = vmatpush.msra.mxu0 %v5198
    %5236 = vmatpush.msra.mxu0 %v5197
    %5237 = vmatpush.msra.mxu0 %v5196
    %5238 = vmatpush.msra.mxu0 %v5195
    %5239 = vmatpush.msra.mxu0 %v5194
    %5240 = vmatpush.msra.mxu0 %v5193
    %5241 = vmatpush.msra.mxu0 %v5192
    %5242 = vmatpush.msra.mxu0 %v5191
    %5243 = vmatpush.msra.mxu0 %v5190
    %5244 = vmatmul.f32.gmra.mxu0 %v5205
    %v5245 = vpop.f32.mrf.mxu0
    %v5246 = vadd.f32 %v5202, %v5245
    %5247 = vmatmul.f32.gmra.mxu0 %v5208
    %v5248 = vpop.f32.mrf.mxu0
    %v5249 = vadd.f32 %v5202, %v5248
    %5250 = vmatmul.f32.gmra.mxu0 %v5211
    %v5251 = vpop.f32.mrf.mxu0
    %v5252 = vadd.f32 %v5202, %v5251
    %5253 = vmatmul.f32.gmra.mxu0 %v5214
    %v5254 = vpop.f32.mrf.mxu0
    %v5255 = vadd.f32 %v5202, %v5254
    %5256 = vmatmul.f32.gmra.mxu0 %v5217
    %v5257 = vpop.f32.mrf.mxu0
    %v5258 = vadd.f32 %v5202, %v5257
    %5259 = vmatmul.f32.gmra.mxu0 %v5220
    %v5260 = vpop.f32.mrf.mxu0
    %v5261 = vadd.f32 %v5202, %v5260
    %5262 = vmatmul.f32.gmra.mxu0 %v5223
    %v5263 = vpop.f32.mrf.mxu0
    %v5264 = vadd.f32 %v5202, %v5263
    %5265 = vmatmul.f32.gmra.mxu0 %v5226
    %v5266 = vpop.f32.mrf.mxu0
    %v5267 = vadd.f32 %v5202, %v5266
    %5268 = vdwg.mxu0
    %5269 = vst.msk [vmem:[%s51] sm:$0xff] %vm350, %v5246
    %5270 = vst.msk [vmem:[%s51 + $0x8] sm:$0xff] %vm350, %v5249
    %5271 = vst.msk [vmem:[%s51 + $0x10] sm:$0xff] %vm350, %v5252
    %5272 = vst.msk [vmem:[%s51 + $0x18] sm:$0xff] %vm350, %v5255
    %5273 = vst.msk [vmem:[%s51 + $0x20] sm:$0xff] %vm350, %v5258
    %5274 = vst.msk [vmem:[%s51 + $0x28] sm:$0xff] %vm350, %v5261
    %5275 = vst.msk [vmem:[%s51 + $0x30] sm:$0xff] %vm350, %v5264
    %5276 = vst.msk [vmem:[%s51 + $0x38] sm:$0xff] %vm350, %v5267
    %v5277 = vld [vmem:[#allocation21] sm:$0xff]
    %v5278 = vld [vmem:[%s41] sm:$0xff]
    %v5280 = vsel %vm335, %v5277, 0
    %5282 = vmatpush.xpose.msra.mxu0 0.0
    %5283 = vmatpush.xpose.msra.mxu0 0.0
    %5284 = vmatpush.xpose.msra.mxu0 0.0
    %5285 = vmatpush.xpose.msra.mxu0 0.0
    %5286 = vmatpush.xpose.msra.mxu0 0.0
    %5287 = vmatpush.xpose.msra.mxu0 0.0
    %5288 = vmatpush.xpose.msra.mxu0 0.0
    %5289 = vmatpush.xpose.msra.mxu0 0.0
    %5290 = vmatpush.xpose.msra.mxu0 0.0
    %5291 = vmatpush.xpose.msra.mxu0 0.0
    %5292 = vmatpush.xpose.msra.mxu0 0.0
    %5293 = vmatpush.xpose.msra.mxu0 0.0
    %5294 = vmatpush.xpose.msra.mxu0 0.0
    %5295 = vmatpush.xpose.msra.mxu0 0.0
    %5296 = vmatpush.xpose.msra.mxu0 0.0
    %5297 = vmatpush.xpose.msra.mxu0 %v5280
    %5298 = vmatmul.f32.gmra.mxu0 %v5280
    %v5299 = vpop.f32.mrf.mxu0
    %v5300 = vadd.f32 0.0, %v5299
    %5301 = vdwg.mxu0
    %5302 = vst.msk [vmem:[#allocation46] sm:$0xff] %vm420, %v5300
    %v5304 = vsel %vm420, %v5300, 0
    %5306 = vmatpush.msra.mxu0 0.0
    %5307 = vmatpush.msra.mxu0 0.0
    %5308 = vmatpush.msra.mxu0 0.0
    %5309 = vmatpush.msra.mxu0 0.0
    %5310 = vmatpush.msra.mxu0 0.0
    %5311 = vmatpush.msra.mxu0 0.0
    %5312 = vmatpush.msra.mxu0 0.0
    %5313 = vmatpush.msra.mxu0 0.0
    %5314 = vmatpush.msra.mxu0 0.0
    %5315 = vmatpush.msra.mxu0 0.0
    %5316 = vmatpush.msra.mxu0 0.0
    %5317 = vmatpush.msra.mxu0 0.0
    %5318 = vmatpush.msra.mxu0 0.0
    %5319 = vmatpush.msra.mxu0 0.0
    %5320 = vmatpush.msra.mxu0 0.0
    %5321 = vmatpush.msra.mxu0 %v5278
    %5322 = vmatmul.f32.gmra.mxu0 %v5304
    %v5323 = vpop.f32.mrf.mxu0
    %v5324 = vadd.f32 0.0, %v5323
    %5325 = vdwg.mxu0
    %5326 = vxpose.xlu0.b32.start [1/16] %v5278, 128
    %5327 = vxpose.xlu0.b32.cont [2/16] 0.0, 128
    %5328 = vxpose.xlu0.b32.cont [3/16] 0.0, 128
    %5329 = vxpose.xlu0.b32.cont [4/16] 0.0, 128
    %5330 = vxpose.xlu0.b32.cont [5/16] 0.0, 128
    %5331 = vxpose.xlu0.b32.cont [6/16] 0.0, 128
    %5332 = vxpose.xlu0.b32.cont [7/16] 0.0, 128
    %5333 = vxpose.xlu0.b32.cont [8/16] 0.0, 128
    %5334 = vxpose.xlu0.b32.cont [9/16] 0.0, 128
    %5335 = vxpose.xlu0.b32.cont [10/16] 0.0, 128
    %5336 = vxpose.xlu0.b32.cont [11/16] 0.0, 128
    %5337 = vxpose.xlu0.b32.cont [12/16] 0.0, 128
    %5338 = vxpose.xlu0.b32.cont [13/16] 0.0, 128
    %5339 = vxpose.xlu0.b32.cont [14/16] 0.0, 128
    %5340 = vxpose.xlu0.b32.cont [15/16] 0.0, 128
    %5341 = vxpose.xlu0.b32.end [16/16] 0.0, 128
    %v5342 = vpop.trf.xlu0
    %v5343 = vpop.trf.xlu0
    %v5344 = vpop.trf.xlu0
    %v5345 = vpop.trf.xlu0
    %v5346 = vpop.trf.xlu0
    %v5347 = vpop.trf.xlu0
    %v5348 = vpop.trf.xlu0
    %v5349 = vpop.trf.xlu0
    %v5350 = vpop.trf.xlu0
    %v5351 = vpop.trf.xlu0
    %v5352 = vpop.trf.xlu0
    %v5353 = vpop.trf.xlu0
    %v5354 = vpop.trf.xlu0
    %v5355 = vpop.trf.xlu0
    %v5356 = vpop.trf.xlu0
    %v5357 = vpop.trf.xlu0
    %v5359 = vsel %vm420, %v5342, 0
    %5361 = vmatpush.msra.mxu0 0.0
    %5362 = vmatpush.msra.mxu0 0.0
    %5363 = vmatpush.msra.mxu0 0.0
    %5364 = vmatpush.msra.mxu0 0.0
    %5365 = vmatpush.msra.mxu0 0.0
    %5366 = vmatpush.msra.mxu0 0.0
    %5367 = vmatpush.msra.mxu0 0.0
    %5368 = vmatpush.msra.mxu0 0.0
    %5369 = vmatpush.msra.mxu0 0.0
    %5370 = vmatpush.msra.mxu0 0.0
    %5371 = vmatpush.msra.mxu0 0.0
    %5372 = vmatpush.msra.mxu0 0.0
    %5373 = vmatpush.msra.mxu0 0.0
    %5374 = vmatpush.msra.mxu0 0.0
    %5375 = vmatpush.msra.mxu0 0.0
    %5376 = vmatpush.msra.mxu0 %v5324
    %5377 = vmatmul.f32.gmra.mxu0 %v5359
    %v5378 = vpop.f32.mrf.mxu0
    %v5379 = vadd.f32 0.0, %v5378
    %5380 = vdwg.mxu0
    %vm5381 = vcmask 18432
    %5382 = vst.msk [vmem:[#allocation48] sm:$0x7] %vm5381, %v5379
    %v5383 = vld [vmem:[%s43] sm:$0xff]
    %v5384 = vld [vmem:[%s43 + $0x8] sm:$0xff]
    %v5385 = vld [vmem:[%s43 + $0x10] sm:$0xff]
    %v5386 = vld [vmem:[%s43 + $0x18] sm:$0xff]
    %v5387 = vld [vmem:[%s43 + $0x20] sm:$0xff]
    %v5388 = vld [vmem:[%s43 + $0x28] sm:$0xff]
    %v5389 = vld [vmem:[%s43 + $0x30] sm:$0xff]
    %v5390 = vld [vmem:[%s43 + $0x38] sm:$0xff]
    %v5391 = vld [vmem:[%s43 + $0x40] sm:$0xff]
    %v5392 = vld [vmem:[%s43 + $0x48] sm:$0xff]
    %v5393 = vld [vmem:[%s45] sm:$0x1]
    %v5395 = vperm.slane %v5393, 0
    %5397 = vmatpush.msra.mxu0 0.0
    %5398 = vmatpush.msra.mxu0 0.0
    %5399 = vmatpush.msra.mxu0 0.0
    %5400 = vmatpush.msra.mxu0 0.0
    %5401 = vmatpush.msra.mxu0 0.0
    %5402 = vmatpush.msra.mxu0 0.0
    %5403 = vmatpush.msra.mxu0 %v5392
    %5404 = vmatpush.msra.mxu0 %v5391
    %5405 = vmatpush.msra.mxu0 %v5390
    %5406 = vmatpush.msra.mxu0 %v5389
    %5407 = vmatpush.msra.mxu0 %v5388
    %5408 = vmatpush.msra.mxu0 %v5387
    %5409 = vmatpush.msra.mxu0 %v5386
    %5410 = vmatpush.msra.mxu0 %v5385
    %5411 = vmatpush.msra.mxu0 %v5384
    %5412 = vmatpush.msra.mxu0 %v5383
    %5413 = vmatmul.f32.gmra.mxu0 %v5280
    %v5414 = vpop.f32.mrf.mxu0
    %v5415 = vadd.f32 %v5395, %v5414
    %5416 = vdwg.mxu0
    %v5417 = vmax.f32 %v5415, 0.0
    %v5418 = vld [vmem:[%s47] sm:$0xff]
    %v5419 = vld [vmem:[%s47 + $0x8] sm:$0xff]
    %v5420 = vld [vmem:[%s47 + $0x10] sm:$0xff]
    %v5421 = vld [vmem:[%s47 + $0x18] sm:$0xff]
    %v5422 = vld [vmem:[%s47 + $0x20] sm:$0xff]
    %v5423 = vld [vmem:[%s47 + $0x28] sm:$0xff]
    %v5424 = vld [vmem:[%s47 + $0x30] sm:$0xff]
    %v5425 = vld [vmem:[%s47 + $0x38] sm:$0xff]
    %v5426 = vld [vmem:[%s47 + $0x40] sm:$0xff]
    %v5427 = vld [vmem:[%s47 + $0x48] sm:$0xff]
    %v5428 = vld [vmem:[%s47 + $0x50] sm:$0xff]
    %v5429 = vld [vmem:[%s47 + $0x58] sm:$0xff]
    %v5430 = vld [vmem:[%s47 + $0x60] sm:$0xff]
    %v5431 = vld [vmem:[%s47 + $0x68] sm:$0xff]
    %v5432 = vld [vmem:[%s47 + $0x70] sm:$0xff]
    %v5433 = vld [vmem:[%s47 + $0x78] sm:$0xff]
    %v5434 = vld [vmem:[%s49] sm:$0x1]
    %v5436 = vperm.slane %v5434, 0
    %5438 = vmatpush.msra.mxu0 %v5433
    %5439 = vmatpush.msra.mxu0 %v5432
    %5440 = vmatpush.msra.mxu0 %v5431
    %5441 = vmatpush.msra.mxu0 %v5430
    %5442 = vmatpush.msra.mxu0 %v5429
    %5443 = vmatpush.msra.mxu0 %v5428
    %5444 = vmatpush.msra.mxu0 %v5427
    %5445 = vmatpush.msra.mxu0 %v5426
    %5446 = vmatpush.msra.mxu0 %v5425
    %5447 = vmatpush.msra.mxu0 %v5424
    %5448 = vmatpush.msra.mxu0 %v5423
    %5449 = vmatpush.msra.mxu0 %v5422
    %5450 = vmatpush.msra.mxu0 %v5421
    %5451 = vmatpush.msra.mxu0 %v5420
    %5452 = vmatpush.msra.mxu0 %v5419
    %5453 = vmatpush.msra.mxu0 %v5418
    %5454 = vmatmul.f32.gmra.mxu0 %v5417
    %v5455 = vpop.f32.mrf.mxu0
    %v5456 = vadd.f32 %v5436, %v5455
    %5457 = vdwg.mxu0
    %v5458 = vxor.u32 %v5456, 2147483648
    %v5459 = vmul.f32 %v5458, 1.442695
    %v5460 = vpow.pop %v5459
    %v5461 = vadd.f32 %v5460, 1.0
    %v5462 = vrcp.pop %v5461
    %v5463 = vmul.f32 %v5461, %v5462
    %v5464 = vsub.f32 1.0, %v5463
    %v5465 = vmul.f32 %v5462, %v5464
    %v5466 = vadd.f32 %v5462, %v5465
    %vm5467 = vweird.f32 %v5461
    %vm5468 = vweird.f32 %v5462
    %vm5469 = vmor %vm5467, %vm5468
    %v5470 = vsel %vm5469, %v5462, %v5466
    %v5471 = vand.u32 2147483647, %v5461
    %vm5472 = vcmp.eq.f32.partialorder %v5471, 8.507059e+37
    %v5473 = vand.u32 %v5461, 2147483648
    %v5474 = vor.u32 1.1754944e-38, %v5473
    %v5475 = vsel %vm5472, %v5474, %v5470
    %v5476 = vmul.f32 1.0, %v5475
    %vm5477 = vcmask 15360
    %5478 = vst.msk [vmem:[%s59] sm:$0xff] %vm5477, %v5476
    // Predicated region
    $region158: #{tpu_custom_call.1} parent=1 // pred_check
      _
    $region159: #{tpu_custom_call.1} parent=1 // pred_check_branch
      %5480 = sbr.rel (0) target = $region161
    $region160: #{tpu_custom_call.1} parent=1 // pred_region
      _
    $region161: #{tpu_custom_call.1} parent=1 // pred_fallthru
      _
    // Predicated region
    $region162: #{tpu_custom_call.1} parent=1 // pred_check
      _
    $region163: #{tpu_custom_call.1} parent=1 // pred_check_branch
      %5482 = sbr.rel (0) target = $region165
    $region164: #{tpu_custom_call.1} parent=1 // pred_region
      %5484 = vsyncadd [#allocation24], 0
      %s5486 = sshll.u32 [#allocation45], 4
      %s5487 = int_to_ptr.vmem [resolvable:$true] %s5486
      %s5488 = sshll.u32 %s53, 4
      %s5489 = int_to_ptr.hbm [resolvable:$true] %s5488
      %5491 = dma.vmem_to_hbm [thread:$0]  %s5487, 128, %s5489, [#allocation24]
    $region165: #{tpu_custom_call.1} parent=1 // pred_fallthru
      _
    // Predicated region
    $region166: #{tpu_custom_call.1} parent=1 // pred_check
      _
    $region167: #{tpu_custom_call.1} parent=1 // pred_check_branch
      %5493 = sbr.rel (0) target = $region169
    $region168: #{tpu_custom_call.1} parent=1 // pred_region
      %5495 = vsyncadd [#allocation47], 0
      %s5497 = sshll.u32 [#allocation46], 4
      %s5498 = int_to_ptr.vmem [resolvable:$true] %s5497
      %s5499 = sshll.u32 %s55, 4
      %s5500 = int_to_ptr.hbm [resolvable:$true] %s5499
      %5502 = dma.vmem_to_hbm [thread:$0]  %s5498, 128, %s5500, [#allocation47]
    $region169: #{tpu_custom_call.1} parent=1 // pred_fallthru
      _
    // Predicated region
    $region170: #{tpu_custom_call.1} parent=1 // pred_check
      _
    $region171: #{tpu_custom_call.1} parent=1 // pred_check_branch
      %5504 = sbr.rel (0) target = $region173
    $region172: #{tpu_custom_call.1} parent=1 // pred_region
      %5506 = vsyncadd [#allocation47], 0
      %s5508 = sshll.u32 [#allocation48], 4
      %s5509 = int_to_ptr.vmem [resolvable:$true] %s5508
      %s5510 = sshll.u32 %s57, 4
      %s5511 = int_to_ptr.hbm [resolvable:$true] %s5510
      %5513 = dma.vmem_to_hbm [thread:$0]  %s5509, 64, %s5511, [#allocation47]
    $region173: #{tpu_custom_call.1} parent=1 // pred_fallthru
      _
    // Predicated region
    $region174: #{tpu_custom_call.1} parent=1 // pred_check
      _
    $region175: #{tpu_custom_call.1} parent=1 // pred_check_branch
      %5515 = sbr.rel (0) target = $region177
    $region176: #{tpu_custom_call.1} parent=1 // pred_region
      _
    $region177: #{tpu_custom_call.1} parent=1 // pred_fallthru
      _
    // Predicated region
    $region178: #{tpu_custom_call.1} parent=1 // pred_check
      _
    $region179: #{tpu_custom_call.1} parent=1 // pred_check_branch
      %5517 = sbr.rel (0) target = $region181
    $region180: #{tpu_custom_call.1} parent=1 // pred_region
      _
    $region181: #{tpu_custom_call.1} parent=1 // pred_fallthru
      _
    // Predicated region
    $region182: #{tpu_custom_call.1} parent=1 // pred_check
      _
    $region183: #{tpu_custom_call.1} parent=1 // pred_check_branch
      %5519 = sbr.rel (0) target = $region185
    $region184: #{tpu_custom_call.1} parent=1 // pred_region
      %5521 = dma.done [#allocation24], 128
    $region185: #{tpu_custom_call.1} parent=1 // pred_fallthru
      _
    // Predicated region
    $region186: #{tpu_custom_call.1} parent=1 // pred_check
      _
    $region187: #{tpu_custom_call.1} parent=1 // pred_check_branch
      %5523 = sbr.rel (0) target = $region189
    $region188: #{tpu_custom_call.1} parent=1 // pred_region
      %5525 = dma.done [#allocation47], 128
    $region189: #{tpu_custom_call.1} parent=1 // pred_fallthru
      _
    // Predicated region
    $region190: #{tpu_custom_call.1} parent=1 // pred_check
      _
    $region191: #{tpu_custom_call.1} parent=1 // pred_check_branch
      %5527 = sbr.rel (0) target = $region193
    $region192: #{tpu_custom_call.1} parent=1 // pred_region
      %5529 = dma.done [#allocation47], 64
    $region193: #{tpu_custom_call.1} parent=1 // pred_fallthru
      _
    // Predicated region
    $region194: #{tpu_custom_call.1} parent=1 // pred_check
      _
    $region195: #{tpu_custom_call.1} parent=1 // pred_check_branch
      %5531 = sbr.rel (0) target = $region197
    $region196: #{tpu_custom_call.1} parent=1 // pred_region
      _
    $region197: #{tpu_custom_call.1} parent=1 // pred_fallthru
      _
    %5532 = vsyncpa [#allocation23], 1
    %5533 = vsyncpa [#allocation26], 1
    %5534 = vsyncpa [#allocation29], 1
    %5535 = vsyncpa [#allocation32], 1
    %5536 = vsyncpa [#allocation35], 1
    %5537 = vsyncpa [#allocation38], 1
    %5538 = vsyncpa [#allocation41], 1
    %5539 = vsyncpa [#allocation44], 1
    %5540 = vsyncpa [#allocation24], 1
    %5541 = vsyncpa [#allocation47], 1

</llo_original>
